<compile_context>
chip_gen: v7x
topology: tpu7x:2x2x1
jax: 0.10.0
libtpu: 0.0.40
codegen_flags: <defaults>
</compile_context>

<pallas_src>
import jax
import jax.numpy as jnp
import numpy as np
from jax.experimental import pallas as pl
from jax.experimental.pallas import tpu as pltpu

C_IN = 512          # inp
C_MID = 16          # max(8, 512 // 32)
C_OUT = 512         # out
H = 7
W = 7
EPS = 1e-5


def _ca_kernel(tap_ref, vec_ref, w1_ref, w23_ref, x_ref, o_ref, lhs_ref):
    """One block of `bsz` batch elements per grid step (NHWC).

    tap_ref : (2, 8, C_IN)   [0,:7]=(1,7) taps over W, [1,:7]=(7,1) taps over H
                             (depthwise BN scale already folded in)
    vec_ref : (8, C_IN)      rows: th, tw, b2, b3, t1 (t1 in the first 16 lanes)
    w1_ref  : (C_IN, C_MID)  conv1 weight with bn1 scale folded
    w23_ref : (2, C_MID, C_OUT)  conv2 / conv3 weights
    x_ref   : (bsz, H, W, C_IN)
    o_ref   : (bsz, H, W, C_OUT)
    lhs_ref : (16*bsz, C_IN) VMEM scratch holding the concatenated [x_h; x_w]
              strips (8 rows per strip; row 7 of each strip is padding).
    """
    bsz = x_ref.shape[0]
    f32 = jnp.float32

    wh = tap_ref[0, :W, :]          # (7, C) folded (1,7) taps (reduce over W)
    ww = tap_ref[1, :H, :]          # (7, C) folded (7,1) taps (reduce over H)
    th = vec_ref[0]                 # (C,)
    tw = vec_ref[1]
    b2 = vec_ref[2]
    b3 = vec_ref[3]
    t1 = vec_ref[4, :C_MID]         # (16,)

    half = 8 * bsz                  # rows [0, half): x_h strips; [half, 2*half): x_w strips

    # Clear the strip buffer once so the per-strip padding rows are zero.
    lhs_ref[...] = jnp.zeros((2 * half, C_IN), f32)

    # ---- depthwise (1,7)/(7,1) convs + folded BatchNorm --------------------
    # Unrolled MAC over the 7 taps; live state per step is a single (7, C) row
    # plus the (7, C) x_w accumulator (no (H, W, C) broadcast temporaries).
    for b in range(bsz):
        xw_acc = None
        for i in range(H):
            row = x_ref[b, i]                                        # (W, C)
            # x_h[b, i, c] = sum_j x[b, i, j, c] * wh[j, c]
            lhs_ref[8 * b + i, :] = jnp.sum(row * wh, axis=0) + th   # (C,)
            # x_w[b, j, c] += x[b, i, j, c] * ww[i, c]
            contrib = row * ww[i]
            xw_acc = contrib if xw_acc is None else xw_acc + contrib
        lhs_ref[pl.ds(half + 8 * b, W), :] = xw_acc + tw             # (7, C)

    # ---- conv1 (1x1) + bn1 + h_swish ---------------------------------------
    # Matches PyTorch's cat([x_h, x_w]) -> conv1: one MXU matmul with
    # M = 16*bsz instead of 2*bsz tiny M=7 matmuls.  Default MXU precision.
    y = jnp.dot(lhs_ref[...], w1_ref[...],
                preferred_element_type=f32) + t1                     # (16B, 16)
    y = y * (jnp.clip(y + 3.0, 0.0, 6.0) * (1.0 / 6.0))              # h_swish

    # ---- conv2 / conv3 (1x1) + sigmoid, combined across the block ----------
    ah = jax.nn.sigmoid(
        jnp.dot(y[:half], w23_ref[0], preferred_element_type=f32) + b2)   # (8B, C)
    aw = jax.nn.sigmoid(
        jnp.dot(y[half:], w23_ref[1], preferred_element_type=f32) + b3)   # (8B, C)

    # ---- out[b, i, j, c] = ah[b, i, c] * aw[b, j, c]  (the .expand()s + mul)
    for b in range(bsz):
        ah_b = ah[8 * b:8 * b + H]                                   # (7, C)
        aw_b = aw[8 * b:8 * b + W]                                   # (7, C)
        o_ref[b] = (ah_b[:, None, :] * aw_b[None, :, :]).astype(o_ref.dtype)


def coordinate_attention_head_nhwc(x_nhwc, params, *, block_b=8,
                                   out_dtype=jnp.float32):
    """x_nhwc: (N, 7, 7, 512) float32 -> (N, 7, 7, 512) attention map.

    NHWC end-to-end: no layout transposes around the (HBM-bandwidth-bound)
    kernel.  `out_dtype=jnp.bfloat16` halves output traffic if the consumer
    tolerates it.
    """
    n = x_nhwc.shape[0]
    nb = pl.cdiv(n, block_b)
    n_pad = nb * block_b - n
    if n_pad:
        x_nhwc = jnp.pad(x_nhwc, ((0, n_pad), (0, 0), (0, 0), (0, 0)))

    out = pl.pallas_call(
        _ca_kernel,
        out_shape=jax.ShapeDtypeStruct((nb * block_b, H, W, C_OUT), out_dtype),
        grid=(nb,),
        in_specs=[
            pl.BlockSpec((2, 8, C_IN), lambda i: (0, 0, 0)),          # taps
            pl.BlockSpec((8, C_IN), lambda i: (0, 0)),                # shift/bias vectors
            pl.BlockSpec((C_IN, C_MID), lambda i: (0, 0)),            # conv1 (bn1 folded)
            pl.BlockSpec((2, C_MID, C_OUT), lambda i: (0, 0, 0)),     # conv2 / conv3
            pl.BlockSpec((block_b, H, W, C_IN), lambda i: (i, 0, 0, 0)),
        ],
        out_specs=pl.BlockSpec((block_b, H, W, C_OUT), lambda i: (i, 0, 0, 0)),
        scratch_shapes=[pltpu.VMEM((16 * block_b, C_IN), jnp.float32)],
        compiler_params=pltpu.CompilerParams(
            # Batch blocks are independent -> v7x can shard them over its 2 TCs.
            dimension_semantics=("parallel",)),
    )(params["taps"], params["vecs"], params["w1f"], params["w23"], x_nhwc)

    if n_pad:
        out = out[:n]
    return out


def coordinate_attention_head(x_nchw, params, **kwargs):
    """Drop-in wrapper matching the PyTorch NCHW layout exactly.

    NOTE: each transpose below is a full extra read+write pass over HBM;
    prefer coordinate_attention_head_nhwc and keep the model NHWC end-to-end.
    """
    x = jnp.transpose(x_nchw, (0, 2, 3, 1))
    out = coordinate_attention_head_nhwc(x, params, **kwargs)
    return jnp.transpose(out, (0, 3, 1, 2))


# ---------------- deterministic parameter construction (synthetic) -----------

def init_params(key):
    ks = jax.random.split(key, 20)

    def u(k, shape, lo=-0.1, hi=0.1):
        return jax.random.uniform(k, shape, jnp.float32, lo, hi)

    raw = dict(
        # Linear_h: depthwise Conv2d(512,512,(1,7),groups=512,bias=False) + BN
        wh=u(ks[0], (C_IN, 1, 1, 7)),
        gh=u(ks[1], (C_IN,), 0.5, 1.5), bh=u(ks[2], (C_IN,)),
        mh=u(ks[3], (C_IN,)),           vh=u(ks[4], (C_IN,), 0.5, 1.5),
        # Linear_w: depthwise Conv2d(512,512,(7,1),groups=512,bias=False) + BN
        ww=u(ks[5], (C_IN, 1, 7, 1)),
        gw=u(ks[6], (C_IN,), 0.5, 1.5), bw=u(ks[7], (C_IN,)),
        mw=u(ks[8], (C_IN,)),           vw=u(ks[9], (C_IN,), 0.5, 1.5),
        # conv1: Conv2d(512,16,1) + bn1
        w1=u(ks[10], (C_MID, C_IN)),    b1=u(ks[11], (C_MID,)),
        g1=u(ks[12], (C_MID,), 0.5, 1.5), be1=u(ks[13], (C_MID,)),
        m1=u(ks[14], (C_MID,)),         v1=u(ks[15], (C_MID,), 0.5, 1.5),
        # conv2 / conv3: Conv2d(16,512,1)
        w2=u(ks[16], (C_OUT, C_MID)),   b2=u(ks[17], (C_OUT,)),
        w3=u(ks[18], (C_OUT, C_MID)),   b3=u(ks[19], (C_OUT,)),
    )

    # Fold eval-mode BatchNorms into the conv weights / per-channel shifts.
    sh = raw["gh"] / jnp.sqrt(raw["vh"] + EPS)
    sw = raw["gw"] / jnp.sqrt(raw["vw"] + EPS)
    s1 = raw["g1"] / jnp.sqrt(raw["v1"] + EPS)
    th = raw["bh"] - raw["mh"] * sh
    tw = raw["bw"] - raw["mw"] * sw
    t1 = (raw["b1"] - raw["m1"]) * s1 + raw["be1"]

    taps = jnp.zeros((2, 8, C_IN), jnp.float32)
    taps = taps.at[0, :7, :].set((raw["wh"][:, 0, 0, :] * sh[:, None]).T)  # (7, C)
    taps = taps.at[1, :7, :].set((raw["ww"][:, 0, :, 0] * sw[:, None]).T)  # (7, C)

    vecs = jnp.zeros((8, C_IN), jnp.float32)
    vecs = vecs.at[0].set(th).at[1].set(tw)
    vecs = vecs.at[2].set(raw["b2"]).at[3].set(raw["b3"])
    vecs = vecs.at[4, :C_MID].set(t1)

    params = dict(
        taps=taps,                                            # (2, 8, C_IN)
        vecs=vecs,                                            # (8, C_IN)
        w1f=(raw["w1"] * s1[:, None]).T,                      # (C_IN, C_MID)
        w23=jnp.stack([raw["w2"].T, raw["w3"].T], axis=0),    # (2, C_MID, C_OUT)
    )
    return raw, params


# ---------------- plain-JAX reference mirroring the PyTorch NCHW forward -----

def reference(x, r):
    hp = jax.lax.Precision.HIGHEST

    def bn(t, g, b, m, v):
        rs = lambda a: a[None, :, None, None]
        return (t - rs(m)) / jnp.sqrt(rs(v) + EPS) * rs(g) + rs(b)

    n, c, h, w = x.shape
    xh = jnp.einsum("nchw,cw->nch", x, r["wh"][:, 0, 0, :], precision=hp)[..., None]
    xh = bn(xh, r["gh"], r["bh"], r["mh"], r["vh"])
    xw = jnp.einsum("nchw,ch->ncw", x, r["ww"][:, 0, :, 0], precision=hp)[:, :, None, :]
    xw = bn(xw, r["gw"], r["bw"], r["mw"], r["vw"])
    xw = jnp.transpose(xw, (0, 1, 3, 2))                                    # (n,C,w,1)
    y = jnp.concatenate([xh, xw], axis=2)                                   # (n,C,h+w,1)
    y = jnp.einsum("ncsk,mc->nmsk", y, r["w1"], precision=hp) \
        + r["b1"][None, :, None, None]
    y = bn(y, r["g1"], r["be1"], r["m1"], r["v1"])
    y = y * jnp.clip(y + 3.0, 0.0, 6.0) / 6.0                               # h_swish
    yh, yw = y[:, :, :h, :], y[:, :, h:, :]
    yw = jnp.transpose(yw, (0, 1, 3, 2))
    ah = jax.nn.sigmoid(jnp.einsum("ncsk,mc->nmsk", yh, r["w2"], precision=hp)
                        + r["b2"][None, :, None, None])                     # (n,C,h,1)
    aw = jax.nn.sigmoid(jnp.einsum("ncsk,mc->nmsk", yw, r["w3"], precision=hp)
                        + r["b3"][None, :, None, None])                     # (n,C,1,w)
    return aw * ah                                                          # (n,C,h,w)


if __name__ == "__main__":
    key = jax.random.PRNGKey(0)
    k_x, k_p = jax.random.split(key)
    raw, params = init_params(k_p)

    n = 10                                    # exercises batch blocking + tail padding
    x_nchw = jax.random.normal(k_x, (n, C_IN, H, W), jnp.float32)   # PyTorch layout
    x_nhwc = jnp.transpose(x_nchw, (0, 2, 3, 1))  # one-time, test-only relayout

    run_nhwc = jax.jit(lambda a, p: coordinate_attention_head_nhwc(a, p, block_b=8))
    out_nhwc = jax.block_until_ready(run_nhwc(x_nhwc, params))

    ref_nchw = reference(x_nchw, raw)
    ref_nhwc = jnp.transpose(ref_nchw, (0, 2, 3, 1))

    # Default (non-HIGHEST) MXU precision => bf16-rounded matmul operands, so
    # the tolerance is 5e-3 instead of the previous 1e-4.
    np.testing.assert_allclose(np.asarray(out_nhwc), np.asarray(ref_nhwc),
                               rtol=5e-3, atol=5e-3)
    assert out_nhwc.shape == (n, H, W, C_OUT)

    # NCHW drop-in wrapper parity (matches the PyTorch module layout exactly).
    run_nchw = jax.jit(lambda a, p: coordinate_attention_head(a, p, block_b=8))
    out_nchw = jax.block_until_ready(run_nchw(x_nchw, params))
    np.testing.assert_allclose(np.asarray(out_nchw), np.asarray(ref_nchw),
                               rtol=5e-3, atol=5e-3)

    print("KERNEL_OK")
</pallas_src>

<mosaic_0001>
module attributes {stable_mosaic.version = 11 : i64} {
  func.func @_ca_kernel(%arg0: i32, %arg1: memref<2x8x512xf32, #tpu.memory_space<vmem>>, %arg2: memref<8x512xf32, #tpu.memory_space<vmem>>, %arg3: memref<512x16xf32, #tpu.memory_space<vmem>>, %arg4: memref<2x16x512xf32, #tpu.memory_space<vmem>>, %arg5: memref<8x7x7x512xf32, #tpu.memory_space<vmem>>, %arg6: memref<8x7x7x512xf32, #tpu.memory_space<vmem>>, %arg7: memref<128x512xf32, #tpu.memory_space<vmem>>) attributes {dimension_semantics = [#tpu.dimension_semantics<parallel>], iteration_bounds = array<i64: 2>, scalar_prefetch = 0 : i64, scratch_operands = 1 : i64, tpu.core_type = #tpu.core_type<tc>, window_params = [{pipeline_mode = #tpu.pipeline_mode<synchronous>, transform_indices = @transform_0, window_bounds = array<i64: 2, 8, 512>}, {pipeline_mode = #tpu.pipeline_mode<synchronous>, transform_indices = @transform_1, window_bounds = array<i64: 8, 512>}, {pipeline_mode = #tpu.pipeline_mode<synchronous>, transform_indices = @transform_2, window_bounds = array<i64: 512, 16>}, {pipeline_mode = #tpu.pipeline_mode<synchronous>, transform_indices = @transform_3, window_bounds = array<i64: 2, 16, 512>}, {transform_indices = @transform_4, window_bounds = array<i64: 8, 7, 7, 512>}, {transform_indices = @transform_5, window_bounds = array<i64: 8, 7, 7, 512>}]} {
    %c0 = arith.constant 0 : index
    %c0_0 = arith.constant 0 : index
    %c0_1 = arith.constant 0 : index
    %0 = vector.load %arg1[%c0, %c0_0, %c0_1] : memref<2x8x512xf32, #tpu.memory_space<vmem>>, vector<1x7x512xf32>
    %1 = vector.shape_cast %0 : vector<1x7x512xf32> to vector<7x512xf32>
    %c1 = arith.constant 1 : index
    %c0_2 = arith.constant 0 : index
    %c0_3 = arith.constant 0 : index
    %2 = vector.load %arg1[%c1, %c0_2, %c0_3] : memref<2x8x512xf32, #tpu.memory_space<vmem>>, vector<1x7x512xf32>
    %3 = vector.shape_cast %2 : vector<1x7x512xf32> to vector<7x512xf32>
    %c0_4 = arith.constant 0 : index
    %c0_5 = arith.constant 0 : index
    %4 = vector.load %arg2[%c0_4, %c0_5] : memref<8x512xf32, #tpu.memory_space<vmem>>, vector<1x512xf32>
    %5 = vector.shape_cast %4 : vector<1x512xf32> to vector<512xf32>
    %c1_6 = arith.constant 1 : index
    %c0_7 = arith.constant 0 : index
    %6 = vector.load %arg2[%c1_6, %c0_7] : memref<8x512xf32, #tpu.memory_space<vmem>>, vector<1x512xf32>
    %7 = vector.shape_cast %6 : vector<1x512xf32> to vector<512xf32>
    %c2 = arith.constant 2 : index
    %c0_8 = arith.constant 0 : index
    %8 = vector.load %arg2[%c2, %c0_8] : memref<8x512xf32, #tpu.memory_space<vmem>>, vector<1x512xf32>
    %9 = vector.shape_cast %8 : vector<1x512xf32> to vector<512xf32>
    %c3 = arith.constant 3 : index
    %c0_9 = arith.constant 0 : index
    %10 = vector.load %arg2[%c3, %c0_9] : memref<8x512xf32, #tpu.memory_space<vmem>>, vector<1x512xf32>
    %11 = vector.shape_cast %10 : vector<1x512xf32> to vector<512xf32>
    %c4 = arith.constant 4 : index
    %c0_10 = arith.constant 0 : index
    %12 = vector.load %arg2[%c4, %c0_10] : memref<8x512xf32, #tpu.memory_space<vmem>>, vector<1x16xf32>
    %13 = vector.shape_cast %12 : vector<1x16xf32> to vector<16xf32>
    %cst = arith.constant 0.000000e+00 : f32
    %14 = vector.broadcast %cst : f32 to vector<128x512xf32>
    %c0_11 = arith.constant 0 : index
    %c0_12 = arith.constant 0 : index
    %15 = vector.load %arg7[%c0_11, %c0_12] : memref<128x512xf32, #tpu.memory_space<vmem>>, vector<128x512xf32>
    tpu.vector_store %arg7[%c0_11, %c0_12], %14 {strides = array<i32>} : memref<128x512xf32, #tpu.memory_space<vmem>>, vector<128x512xf32>,
    %c0_13 = arith.constant 0 : index
    %c0_14 = arith.constant 0 : index
    %c0_15 = arith.constant 0 : index
    %c0_16 = arith.constant 0 : index
    %16 = vector.load %arg5[%c0_13, %c0_14, %c0_15, %c0_16] : memref<8x7x7x512xf32, #tpu.memory_space<vmem>>, vector<1x1x7x512xf32>
    %17 = vector.shape_cast %16 : vector<1x1x7x512xf32> to vector<7x512xf32>
    %18 = arith.mulf %17, %1 : vector<7x512xf32>
    %cst_17 = arith.constant dense<0.000000e+00> : vector<512xf32>
    %19 = vector.multi_reduction <add>, %18, %cst_17 [0] : vector<7x512xf32> to vector<512xf32>
    %20 = arith.addf %19, %5 : vector<512xf32>
    %c0_18 = arith.constant 0 : index
    %c0_19 = arith.constant 0 : index
    %21 = vector.load %arg7[%c0_18, %c0_19] : memref<128x512xf32, #tpu.memory_space<vmem>>, vector<1x512xf32>
    %22 = vector.shape_cast %21 : vector<1x512xf32> to vector<512xf32>
    %23 = vector.shape_cast %20 : vector<512xf32> to vector<1x512xf32>
    tpu.vector_store %arg7[%c0_18, %c0_19], %23 {strides = array<i32>} : memref<128x512xf32, #tpu.memory_space<vmem>>, vector<1x512xf32>,
    %24 = vector.extract_strided_slice %3 {offsets = [0, 0], sizes = [1, 512], strides = [1, 1]} : vector<7x512xf32> to vector<1x512xf32>
    %25 = vector.shape_cast %24 : vector<1x512xf32> to vector<512xf32>
    %26 = vector.shape_cast %25 : vector<512xf32> to vector<1x512xf32>
    %27 = vector.broadcast %26 : vector<1x512xf32> to vector<7x512xf32>
    %28 = arith.mulf %17, %27 : vector<7x512xf32>
    %c0_20 = arith.constant 0 : index
    %c1_21 = arith.constant 1 : index
    %c0_22 = arith.constant 0 : index
    %c0_23 = arith.constant 0 : index
    %29 = vector.load %arg5[%c0_20, %c1_21, %c0_22, %c0_23] : memref<8x7x7x512xf32, #tpu.memory_space<vmem>>, vector<1x1x7x512xf32>
    %30 = vector.shape_cast %29 : vector<1x1x7x512xf32> to vector<7x512xf32>
    %31 = arith.mulf %30, %1 : vector<7x512xf32>
    %cst_24 = arith.constant dense<0.000000e+00> : vector<512xf32>
    %32 = vector.multi_reduction <add>, %31, %cst_24 [0] : vector<7x512xf32> to vector<512xf32>
    %33 = arith.addf %32, %5 : vector<512xf32>
    %c1_25 = arith.constant 1 : index
    %c0_26 = arith.constant 0 : index
    %34 = vector.load %arg7[%c1_25, %c0_26] : memref<128x512xf32, #tpu.memory_space<vmem>>, vector<1x512xf32>
    %35 = vector.shape_cast %34 : vector<1x512xf32> to vector<512xf32>
    %36 = vector.shape_cast %33 : vector<512xf32> to vector<1x512xf32>
    tpu.vector_store %arg7[%c1_25, %c0_26], %36 {strides = array<i32>} : memref<128x512xf32, #tpu.memory_space<vmem>>, vector<1x512xf32>,
    %37 = vector.extract_strided_slice %3 {offsets = [1, 0], sizes = [1, 512], strides = [1, 1]} : vector<7x512xf32> to vector<1x512xf32>
    %38 = vector.shape_cast %37 : vector<1x512xf32> to vector<512xf32>
    %39 = vector.shape_cast %38 : vector<512xf32> to vector<1x512xf32>
    %40 = vector.broadcast %39 : vector<1x512xf32> to vector<7x512xf32>
    %41 = arith.mulf %30, %40 : vector<7x512xf32>
    %42 = arith.addf %28, %41 : vector<7x512xf32>
    %c0_27 = arith.constant 0 : index
    %c2_28 = arith.constant 2 : index
    %c0_29 = arith.constant 0 : index
    %c0_30 = arith.constant 0 : index
    %43 = vector.load %arg5[%c0_27, %c2_28, %c0_29, %c0_30] : memref<8x7x7x512xf32, #tpu.memory_space<vmem>>, vector<1x1x7x512xf32>
    %44 = vector.shape_cast %43 : vector<1x1x7x512xf32> to vector<7x512xf32>
    %45 = arith.mulf %44, %1 : vector<7x512xf32>
    %cst_31 = arith.constant dense<0.000000e+00> : vector<512xf32>
    %46 = vector.multi_reduction <add>, %45, %cst_31 [0] : vector<7x512xf32> to vector<512xf32>
    %47 = arith.addf %46, %5 : vector<512xf32>
    %c2_32 = arith.constant 2 : index
    %c0_33 = arith.constant 0 : index
    %48 = vector.load %arg7[%c2_32, %c0_33] : memref<128x512xf32, #tpu.memory_space<vmem>>, vector<1x512xf32>
    %49 = vector.shape_cast %48 : vector<1x512xf32> to vector<512xf32>
    %50 = vector.shape_cast %47 : vector<512xf32> to vector<1x512xf32>
    tpu.vector_store %arg7[%c2_32, %c0_33], %50 {strides = array<i32>} : memref<128x512xf32, #tpu.memory_space<vmem>>, vector<1x512xf32>,
    %51 = vector.extract_strided_slice %3 {offsets = [2, 0], sizes = [1, 512], strides = [1, 1]} : vector<7x512xf32> to vector<1x512xf32>
    %52 = vector.shape_cast %51 : vector<1x512xf32> to vector<512xf32>
    %53 = vector.shape_cast %52 : vector<512xf32> to vector<1x512xf32>
    %54 = vector.broadcast %53 : vector<1x512xf32> to vector<7x512xf32>
    %55 = arith.mulf %44, %54 : vector<7x512xf32>
    %56 = arith.addf %42, %55 : vector<7x512xf32>
    %c0_34 = arith.constant 0 : index
    %c3_35 = arith.constant 3 : index
    %c0_36 = arith.constant 0 : index
    %c0_37 = arith.constant 0 : index
    %57 = vector.load %arg5[%c0_34, %c3_35, %c0_36, %c0_37] : memref<8x7x7x512xf32, #tpu.memory_space<vmem>>, vector<1x1x7x512xf32>
    %58 = vector.shape_cast %57 : vector<1x1x7x512xf32> to vector<7x512xf32>
    %59 = arith.mulf %58, %1 : vector<7x512xf32>
    %cst_38 = arith.constant dense<0.000000e+00> : vector<512xf32>
    %60 = vector.multi_reduction <add>, %59, %cst_38 [0] : vector<7x512xf32> to vector<512xf32>
    %61 = arith.addf %60, %5 : vector<512xf32>
    %c3_39 = arith.constant 3 : index
    %c0_40 = arith.constant 0 : index
    %62 = vector.load %arg7[%c3_39, %c0_40] : memref<128x512xf32, #tpu.memory_space<vmem>>, vector<1x512xf32>
    %63 = vector.shape_cast %62 : vector<1x512xf32> to vector<512xf32>
    %64 = vector.shape_cast %61 : vector<512xf32> to vector<1x512xf32>
    tpu.vector_store %arg7[%c3_39, %c0_40], %64 {strides = array<i32>} : memref<128x512xf32, #tpu.memory_space<vmem>>, vector<1x512xf32>,
    %65 = vector.extract_strided_slice %3 {offsets = [3, 0], sizes = [1, 512], strides = [1, 1]} : vector<7x512xf32> to vector<1x512xf32>
    %66 = vector.shape_cast %65 : vector<1x512xf32> to vector<512xf32>
    %67 = vector.shape_cast %66 : vector<512xf32> to vector<1x512xf32>
    %68 = vector.broadcast %67 : vector<1x512xf32> to vector<7x512xf32>
    %69 = arith.mulf %58, %68 : vector<7x512xf32>
    %70 = arith.addf %56, %69 : vector<7x512xf32>
    %c0_41 = arith.constant 0 : index
    %c4_42 = arith.constant 4 : index
    %c0_43 = arith.constant 0 : index
    %c0_44 = arith.constant 0 : index
    %71 = vector.load %arg5[%c0_41, %c4_42, %c0_43, %c0_44] : memref<8x7x7x512xf32, #tpu.memory_space<vmem>>, vector<1x1x7x512xf32>
    %72 = vector.shape_cast %71 : vector<1x1x7x512xf32> to vector<7x512xf32>
    %73 = arith.mulf %72, %1 : vector<7x512xf32>
    %cst_45 = arith.constant dense<0.000000e+00> : vector<512xf32>
    %74 = vector.multi_reduction <add>, %73, %cst_45 [0] : vector<7x512xf32> to vector<512xf32>
    %75 = arith.addf %74, %5 : vector<512xf32>
    %c4_46 = arith.constant 4 : index
    %c0_47 = arith.constant 0 : index
    %76 = vector.load %arg7[%c4_46, %c0_47] : memref<128x512xf32, #tpu.memory_space<vmem>>, vector<1x512xf32>
    %77 = vector.shape_cast %76 : vector<1x512xf32> to vector<512xf32>
    %78 = vector.shape_cast %75 : vector<512xf32> to vector<1x512xf32>
    tpu.vector_store %arg7[%c4_46, %c0_47], %78 {strides = array<i32>} : memref<128x512xf32, #tpu.memory_space<vmem>>, vector<1x512xf32>,
    %79 = vector.extract_strided_slice %3 {offsets = [4, 0], sizes = [1, 512], strides = [1, 1]} : vector<7x512xf32> to vector<1x512xf32>
    %80 = vector.shape_cast %79 : vector<1x512xf32> to vector<512xf32>
    %81 = vector.shape_cast %80 : vector<512xf32> to vector<1x512xf32>
    %82 = vector.broadcast %81 : vector<1x512xf32> to vector<7x512xf32>
    %83 = arith.mulf %72, %82 : vector<7x512xf32>
    %84 = arith.addf %70, %83 : vector<7x512xf32>
    %c0_48 = arith.constant 0 : index
    %c5 = arith.constant 5 : index
    %c0_49 = arith.constant 0 : index
    %c0_50 = arith.constant 0 : index
    %85 = vector.load %arg5[%c0_48, %c5, %c0_49, %c0_50] : memref<8x7x7x512xf32, #tpu.memory_space<vmem>>, vector<1x1x7x512xf32>
    %86 = vector.shape_cast %85 : vector<1x1x7x512xf32> to vector<7x512xf32>
    %87 = arith.mulf %86, %1 : vector<7x512xf32>
    %cst_51 = arith.constant dense<0.000000e+00> : vector<512xf32>
    %88 = vector.multi_reduction <add>, %87, %cst_51 [0] : vector<7x512xf32> to vector<512xf32>
    %89 = arith.addf %88, %5 : vector<512xf32>
    %c5_52 = arith.constant 5 : index
    %c0_53 = arith.constant 0 : index
    %90 = vector.load %arg7[%c5_52, %c0_53] : memref<128x512xf32, #tpu.memory_space<vmem>>, vector<1x512xf32>
    %91 = vector.shape_cast %90 : vector<1x512xf32> to vector<512xf32>
    %92 = vector.shape_cast %89 : vector<512xf32> to vector<1x512xf32>
    tpu.vector_store %arg7[%c5_52, %c0_53], %92 {strides = array<i32>} : memref<128x512xf32, #tpu.memory_space<vmem>>, vector<1x512xf32>,
    %93 = vector.extract_strided_slice %3 {offsets = [5, 0], sizes = [1, 512], strides = [1, 1]} : vector<7x512xf32> to vector<1x512xf32>
    %94 = vector.shape_cast %93 : vector<1x512xf32> to vector<512xf32>
    %95 = vector.shape_cast %94 : vector<512xf32> to vector<1x512xf32>
    %96 = vector.broadcast %95 : vector<1x512xf32> to vector<7x512xf32>
    %97 = arith.mulf %86, %96 : vector<7x512xf32>
    %98 = arith.addf %84, %97 : vector<7x512xf32>
    %c0_54 = arith.constant 0 : index
    %c6 = arith.constant 6 : index
    %c0_55 = arith.constant 0 : index
    %c0_56 = arith.constant 0 : index
    %99 = vector.load %arg5[%c0_54, %c6, %c0_55, %c0_56] : memref<8x7x7x512xf32, #tpu.memory_space<vmem>>, vector<1x1x7x512xf32>
    %100 = vector.shape_cast %99 : vector<1x1x7x512xf32> to vector<7x512xf32>
    %101 = arith.mulf %100, %1 : vector<7x512xf32>
    %cst_57 = arith.constant dense<0.000000e+00> : vector<512xf32>
    %102 = vector.multi_reduction <add>, %101, %cst_57 [0] : vector<7x512xf32> to vector<512xf32>
    %103 = arith.addf %102, %5 : vector<512xf32>
    %c6_58 = arith.constant 6 : index
    %c0_59 = arith.constant 0 : index
    %104 = vector.load %arg7[%c6_58, %c0_59] : memref<128x512xf32, #tpu.memory_space<vmem>>, vector<1x512xf32>
    %105 = vector.shape_cast %104 : vector<1x512xf32> to vector<512xf32>
    %106 = vector.shape_cast %103 : vector<512xf32> to vector<1x512xf32>
    tpu.vector_store %arg7[%c6_58, %c0_59], %106 {strides = array<i32>} : memref<128x512xf32, #tpu.memory_space<vmem>>, vector<1x512xf32>,
    %107 = vector.extract_strided_slice %3 {offsets = [6, 0], sizes = [1, 512], strides = [1, 1]} : vector<7x512xf32> to vector<1x512xf32>
    %108 = vector.shape_cast %107 : vector<1x512xf32> to vector<512xf32>
    %109 = vector.shape_cast %108 : vector<512xf32> to vector<1x512xf32>
    %110 = vector.broadcast %109 : vector<1x512xf32> to vector<7x512xf32>
    %111 = arith.mulf %100, %110 : vector<7x512xf32>
    %112 = arith.addf %98, %111 : vector<7x512xf32>
    %113 = vector.shape_cast %7 : vector<512xf32> to vector<1x512xf32>
    %114 = vector.broadcast %113 : vector<1x512xf32> to vector<7x512xf32>
    %115 = arith.addf %112, %114 : vector<7x512xf32>
    %c64 = arith.constant 64 : index
    %c0_60 = arith.constant 0 : index
    %116 = vector.load %arg7[%c64, %c0_60] : memref<128x512xf32, #tpu.memory_space<vmem>>, vector<7x512xf32>
    tpu.vector_store %arg7[%c64, %c0_60], %115 {strides = array<i32>} : memref<128x512xf32, #tpu.memory_space<vmem>>, vector<7x512xf32>,
    %c1_61 = arith.constant 1 : index
    %c0_62 = arith.constant 0 : index
    %c0_63 = arith.constant 0 : index
    %c0_64 = arith.constant 0 : index
    %117 = vector.load %arg5[%c1_61, %c0_62, %c0_63, %c0_64] : memref<8x7x7x512xf32, #tpu.memory_space<vmem>>, vector<1x1x7x512xf32>
    %118 = vector.shape_cast %117 : vector<1x1x7x512xf32> to vector<7x512xf32>
    %119 = arith.mulf %118, %1 : vector<7x512xf32>
    %cst_65 = arith.constant dense<0.000000e+00> : vector<512xf32>
    %120 = vector.multi_reduction <add>, %119, %cst_65 [0] : vector<7x512xf32> to vector<512xf32>
    %121 = arith.addf %120, %5 : vector<512xf32>
    %c8 = arith.constant 8 : index
    %c0_66 = arith.constant 0 : index
    %122 = vector.load %arg7[%c8, %c0_66] : memref<128x512xf32, #tpu.memory_space<vmem>>, vector<1x512xf32>
    %123 = vector.shape_cast %122 : vector<1x512xf32> to vector<512xf32>
    %124 = vector.shape_cast %121 : vector<512xf32> to vector<1x512xf32>
    tpu.vector_store %arg7[%c8, %c0_66], %124 {strides = array<i32>} : memref<128x512xf32, #tpu.memory_space<vmem>>, vector<1x512xf32>,
    %125 = vector.extract_strided_slice %3 {offsets = [0, 0], sizes = [1, 512], strides = [1, 1]} : vector<7x512xf32> to vector<1x512xf32>
    %126 = vector.shape_cast %125 : vector<1x512xf32> to vector<512xf32>
    %127 = vector.shape_cast %126 : vector<512xf32> to vector<1x512xf32>
    %128 = vector.broadcast %127 : vector<1x512xf32> to vector<7x512xf32>
    %129 = arith.mulf %118, %128 : vector<7x512xf32>
    %c1_67 = arith.constant 1 : index
    %c1_68 = arith.constant 1 : index
    %c0_69 = arith.constant 0 : index
    %c0_70 = arith.constant 0 : index
    %130 = vector.load %arg5[%c1_67, %c1_68, %c0_69, %c0_70] : memref<8x7x7x512xf32, #tpu.memory_space<vmem>>, vector<1x1x7x512xf32>
    %131 = vector.shape_cast %130 : vector<1x1x7x512xf32> to vector<7x512xf32>
    %132 = arith.mulf %131, %1 : vector<7x512xf32>
    %cst_71 = arith.constant dense<0.000000e+00> : vector<512xf32>
    %133 = vector.multi_reduction <add>, %132, %cst_71 [0] : vector<7x512xf32> to vector<512xf32>
    %134 = arith.addf %133, %5 : vector<512xf32>
    %c9 = arith.constant 9 : index
    %c0_72 = arith.constant 0 : index
    %135 = vector.load %arg7[%c9, %c0_72] : memref<128x512xf32, #tpu.memory_space<vmem>>, vector<1x512xf32>
    %136 = vector.shape_cast %135 : vector<1x512xf32> to vector<512xf32>
    %137 = vector.shape_cast %134 : vector<512xf32> to vector<1x512xf32>
    tpu.vector_store %arg7[%c9, %c0_72], %137 {strides = array<i32>} : memref<128x512xf32, #tpu.memory_space<vmem>>, vector<1x512xf32>,
    %138 = vector.extract_strided_slice %3 {offsets = [1, 0], sizes = [1, 512], strides = [1, 1]} : vector<7x512xf32> to vector<1x512xf32>
    %139 = vector.shape_cast %138 : vector<1x512xf32> to vector<512xf32>
    %140 = vector.shape_cast %139 : vector<512xf32> to vector<1x512xf32>
    %141 = vector.broadcast %140 : vector<1x512xf32> to vector<7x512xf32>
    %142 = arith.mulf %131, %141 : vector<7x512xf32>
    %143 = arith.addf %129, %142 : vector<7x512xf32>
    %c1_73 = arith.constant 1 : index
    %c2_74 = arith.constant 2 : index
    %c0_75 = arith.constant 0 : index
    %c0_76 = arith.constant 0 : index
    %144 = vector.load %arg5[%c1_73, %c2_74, %c0_75, %c0_76] : memref<8x7x7x512xf32, #tpu.memory_space<vmem>>, vector<1x1x7x512xf32>
    %145 = vector.shape_cast %144 : vector<1x1x7x512xf32> to vector<7x512xf32>
    %146 = arith.mulf %145, %1 : vector<7x512xf32>
    %cst_77 = arith.constant dense<0.000000e+00> : vector<512xf32>
    %147 = vector.multi_reduction <add>, %146, %cst_77 [0] : vector<7x512xf32> to vector<512xf32>
    %148 = arith.addf %147, %5 : vector<512xf32>
    %c10 = arith.constant 10 : index
    %c0_78 = arith.constant 0 : index
    %149 = vector.load %arg7[%c10, %c0_78] : memref<128x512xf32, #tpu.memory_space<vmem>>, vector<1x512xf32>
    %150 = vector.shape_cast %149 : vector<1x512xf32> to vector<512xf32>
    %151 = vector.shape_cast %148 : vector<512xf32> to vector<1x512xf32>
    tpu.vector_store %arg7[%c10, %c0_78], %151 {strides = array<i32>} : memref<128x512xf32, #tpu.memory_space<vmem>>, vector<1x512xf32>,
    %152 = vector.extract_strided_slice %3 {offsets = [2, 0], sizes = [1, 512], strides = [1, 1]} : vector<7x512xf32> to vector<1x512xf32>
    %153 = vector.shape_cast %152 : vector<1x512xf32> to vector<512xf32>
    %154 = vector.shape_cast %153 : vector<512xf32> to vector<1x512xf32>
    %155 = vector.broadcast %154 : vector<1x512xf32> to vector<7x512xf32>
    %156 = arith.mulf %145, %155 : vector<7x512xf32>
    %157 = arith.addf %143, %156 : vector<7x512xf32>
    %c1_79 = arith.constant 1 : index
    %c3_80 = arith.constant 3 : index
    %c0_81 = arith.constant 0 : index
    %c0_82 = arith.constant 0 : index
    %158 = vector.load %arg5[%c1_79, %c3_80, %c0_81, %c0_82] : memref<8x7x7x512xf32, #tpu.memory_space<vmem>>, vector<1x1x7x512xf32>
    %159 = vector.shape_cast %158 : vector<1x1x7x512xf32> to vector<7x512xf32>
    %160 = arith.mulf %159, %1 : vector<7x512xf32>
    %cst_83 = arith.constant dense<0.000000e+00> : vector<512xf32>
    %161 = vector.multi_reduction <add>, %160, %cst_83 [0] : vector<7x512xf32> to vector<512xf32>
    %162 = arith.addf %161, %5 : vector<512xf32>
    %c11 = arith.constant 11 : index
    %c0_84 = arith.constant 0 : index
    %163 = vector.load %arg7[%c11, %c0_84] : memref<128x512xf32, #tpu.memory_space<vmem>>, vector<1x512xf32>
    %164 = vector.shape_cast %163 : vector<1x512xf32> to vector<512xf32>
    %165 = vector.shape_cast %162 : vector<512xf32> to vector<1x512xf32>
    tpu.vector_store %arg7[%c11, %c0_84], %165 {strides = array<i32>} : memref<128x512xf32, #tpu.memory_space<vmem>>, vector<1x512xf32>,
    %166 = vector.extract_strided_slice %3 {offsets = [3, 0], sizes = [1, 512], strides = [1, 1]} : vector<7x512xf32> to vector<1x512xf32>
    %167 = vector.shape_cast %166 : vector<1x512xf32> to vector<512xf32>
    %168 = vector.shape_cast %167 : vector<512xf32> to vector<1x512xf32>
    %169 = vector.broadcast %168 : vector<1x512xf32> to vector<7x512xf32>
    %170 = arith.mulf %159, %169 : vector<7x512xf32>
    %171 = arith.addf %157, %170 : vector<7x512xf32>
    %c1_85 = arith.constant 1 : index
    %c4_86 = arith.constant 4 : index
    %c0_87 = arith.constant 0 : index
    %c0_88 = arith.constant 0 : index
    %172 = vector.load %arg5[%c1_85, %c4_86, %c0_87, %c0_88] : memref<8x7x7x512xf32, #tpu.memory_space<vmem>>, vector<1x1x7x512xf32>
    %173 = vector.shape_cast %172 : vector<1x1x7x512xf32> to vector<7x512xf32>
    %174 = arith.mulf %173, %1 : vector<7x512xf32>
    %cst_89 = arith.constant dense<0.000000e+00> : vector<512xf32>
    %175 = vector.multi_reduction <add>, %174, %cst_89 [0] : vector<7x512xf32> to vector<512xf32>
    %176 = arith.addf %175, %5 : vector<512xf32>
    %c12 = arith.constant 12 : index
    %c0_90 = arith.constant 0 : index
    %177 = vector.load %arg7[%c12, %c0_90] : memref<128x512xf32, #tpu.memory_space<vmem>>, vector<1x512xf32>
    %178 = vector.shape_cast %177 : vector<1x512xf32> to vector<512xf32>
    %179 = vector.shape_cast %176 : vector<512xf32> to vector<1x512xf32>
    tpu.vector_store %arg7[%c12, %c0_90], %179 {strides = array<i32>} : memref<128x512xf32, #tpu.memory_space<vmem>>, vector<1x512xf32>,
    %180 = vector.extract_strided_slice %3 {offsets = [4, 0], sizes = [1, 512], strides = [1, 1]} : vector<7x512xf32> to vector<1x512xf32>
    %181 = vector.shape_cast %180 : vector<1x512xf32> to vector<512xf32>
    %182 = vector.shape_cast %181 : vector<512xf32> to vector<1x512xf32>
    %183 = vector.broadcast %182 : vector<1x512xf32> to vector<7x512xf32>
    %184 = arith.mulf %173, %183 : vector<7x512xf32>
    %185 = arith.addf %171, %184 : vector<7x512xf32>
    %c1_91 = arith.constant 1 : index
    %c5_92 = arith.constant 5 : index
    %c0_93 = arith.constant 0 : index
    %c0_94 = arith.constant 0 : index
    %186 = vector.load %arg5[%c1_91, %c5_92, %c0_93, %c0_94] : memref<8x7x7x512xf32, #tpu.memory_space<vmem>>, vector<1x1x7x512xf32>
    %187 = vector.shape_cast %186 : vector<1x1x7x512xf32> to vector<7x512xf32>
    %188 = arith.mulf %187, %1 : vector<7x512xf32>
    %cst_95 = arith.constant dense<0.000000e+00> : vector<512xf32>
    %189 = vector.multi_reduction <add>, %188, %cst_95 [0] : vector<7x512xf32> to vector<512xf32>
    %190 = arith.addf %189, %5 : vector<512xf32>
    %c13 = arith.constant 13 : index
    %c0_96 = arith.constant 0 : index
    %191 = vector.load %arg7[%c13, %c0_96] : memref<128x512xf32, #tpu.memory_space<vmem>>, vector<1x512xf32>
    %192 = vector.shape_cast %191 : vector<1x512xf32> to vector<512xf32>
    %193 = vector.shape_cast %190 : vector<512xf32> to vector<1x512xf32>
    tpu.vector_store %arg7[%c13, %c0_96], %193 {strides = array<i32>} : memref<128x512xf32, #tpu.memory_space<vmem>>, vector<1x512xf32>,
    %194 = vector.extract_strided_slice %3 {offsets = [5, 0], sizes = [1, 512], strides = [1, 1]} : vector<7x512xf32> to vector<1x512xf32>
    %195 = vector.shape_cast %194 : vector<1x512xf32> to vector<512xf32>
    %196 = vector.shape_cast %195 : vector<512xf32> to vector<1x512xf32>
    %197 = vector.broadcast %196 : vector<1x512xf32> to vector<7x512xf32>
    %198 = arith.mulf %187, %197 : vector<7x512xf32>
    %199 = arith.addf %185, %198 : vector<7x512xf32>
    %c1_97 = arith.constant 1 : index
    %c6_98 = arith.constant 6 : index
    %c0_99 = arith.constant 0 : index
    %c0_100 = arith.constant 0 : index
    %200 = vector.load %arg5[%c1_97, %c6_98, %c0_99, %c0_100] : memref<8x7x7x512xf32, #tpu.memory_space<vmem>>, vector<1x1x7x512xf32>
    %201 = vector.shape_cast %200 : vector<1x1x7x512xf32> to vector<7x512xf32>
    %202 = arith.mulf %201, %1 : vector<7x512xf32>
    %cst_101 = arith.constant dense<0.000000e+00> : vector<512xf32>
    %203 = vector.multi_reduction <add>, %202, %cst_101 [0] : vector<7x512xf32> to vector<512xf32>
    %204 = arith.addf %203, %5 : vector<512xf32>
    %c14 = arith.constant 14 : index
    %c0_102 = arith.constant 0 : index
    %205 = vector.load %arg7[%c14, %c0_102] : memref<128x512xf32, #tpu.memory_space<vmem>>, vector<1x512xf32>
    %206 = vector.shape_cast %205 : vector<1x512xf32> to vector<512xf32>
    %207 = vector.shape_cast %204 : vector<512xf32> to vector<1x512xf32>
    tpu.vector_store %arg7[%c14, %c0_102], %207 {strides = array<i32>} : memref<128x512xf32, #tpu.memory_space<vmem>>, vector<1x512xf32>,
    %208 = vector.extract_strided_slice %3 {offsets = [6, 0], sizes = [1, 512], strides = [1, 1]} : vector<7x512xf32> to vector<1x512xf32>
    %209 = vector.shape_cast %208 : vector<1x512xf32> to vector<512xf32>
    %210 = vector.shape_cast %209 : vector<512xf32> to vector<1x512xf32>
    %211 = vector.broadcast %210 : vector<1x512xf32> to vector<7x512xf32>
    %212 = arith.mulf %201, %211 : vector<7x512xf32>
    %213 = arith.addf %199, %212 : vector<7x512xf32>
    %214 = vector.shape_cast %7 : vector<512xf32> to vector<1x512xf32>
    %215 = vector.broadcast %214 : vector<1x512xf32> to vector<7x512xf32>
    %216 = arith.addf %213, %215 : vector<7x512xf32>
    %c72 = arith.constant 72 : index
    %c0_103 = arith.constant 0 : index
    %217 = vector.load %arg7[%c72, %c0_103] : memref<128x512xf32, #tpu.memory_space<vmem>>, vector<7x512xf32>
    tpu.vector_store %arg7[%c72, %c0_103], %216 {strides = array<i32>} : memref<128x512xf32, #tpu.memory_space<vmem>>, vector<7x512xf32>,
    %c2_104 = arith.constant 2 : index
    %c0_105 = arith.constant 0 : index
    %c0_106 = arith.constant 0 : index
    %c0_107 = arith.constant 0 : index
    %218 = vector.load %arg5[%c2_104, %c0_105, %c0_106, %c0_107] : memref<8x7x7x512xf32, #tpu.memory_space<vmem>>, vector<1x1x7x512xf32>
    %219 = vector.shape_cast %218 : vector<1x1x7x512xf32> to vector<7x512xf32>
    %220 = arith.mulf %219, %1 : vector<7x512xf32>
    %cst_108 = arith.constant dense<0.000000e+00> : vector<512xf32>
    %221 = vector.multi_reduction <add>, %220, %cst_108 [0] : vector<7x512xf32> to vector<512xf32>
    %222 = arith.addf %221, %5 : vector<512xf32>
    %c16 = arith.constant 16 : index
    %c0_109 = arith.constant 0 : index
    %223 = vector.load %arg7[%c16, %c0_109] : memref<128x512xf32, #tpu.memory_space<vmem>>, vector<1x512xf32>
    %224 = vector.shape_cast %223 : vector<1x512xf32> to vector<512xf32>
    %225 = vector.shape_cast %222 : vector<512xf32> to vector<1x512xf32>
    tpu.vector_store %arg7[%c16, %c0_109], %225 {strides = array<i32>} : memref<128x512xf32, #tpu.memory_space<vmem>>, vector<1x512xf32>,
    %226 = vector.extract_strided_slice %3 {offsets = [0, 0], sizes = [1, 512], strides = [1, 1]} : vector<7x512xf32> to vector<1x512xf32>
    %227 = vector.shape_cast %226 : vector<1x512xf32> to vector<512xf32>
    %228 = vector.shape_cast %227 : vector<512xf32> to vector<1x512xf32>
    %229 = vector.broadcast %228 : vector<1x512xf32> to vector<7x512xf32>
    %230 = arith.mulf %219, %229 : vector<7x512xf32>
    %c2_110 = arith.constant 2 : index
    %c1_111 = arith.constant 1 : index
    %c0_112 = arith.constant 0 : index
    %c0_113 = arith.constant 0 : index
    %231 = vector.load %arg5[%c2_110, %c1_111, %c0_112, %c0_113] : memref<8x7x7x512xf32, #tpu.memory_space<vmem>>, vector<1x1x7x512xf32>
    %232 = vector.shape_cast %231 : vector<1x1x7x512xf32> to vector<7x512xf32>
    %233 = arith.mulf %232, %1 : vector<7x512xf32>
    %cst_114 = arith.constant dense<0.000000e+00> : vector<512xf32>
    %234 = vector.multi_reduction <add>, %233, %cst_114 [0] : vector<7x512xf32> to vector<512xf32>
    %235 = arith.addf %234, %5 : vector<512xf32>
    %c17 = arith.constant 17 : index
    %c0_115 = arith.constant 0 : index
    %236 = vector.load %arg7[%c17, %c0_115] : memref<128x512xf32, #tpu.memory_space<vmem>>, vector<1x512xf32>
    %237 = vector.shape_cast %236 : vector<1x512xf32> to vector<512xf32>
    %238 = vector.shape_cast %235 : vector<512xf32> to vector<1x512xf32>
    tpu.vector_store %arg7[%c17, %c0_115], %238 {strides = array<i32>} : memref<128x512xf32, #tpu.memory_space<vmem>>, vector<1x512xf32>,
    %239 = vector.extract_strided_slice %3 {offsets = [1, 0], sizes = [1, 512], strides = [1, 1]} : vector<7x512xf32> to vector<1x512xf32>
    %240 = vector.shape_cast %239 : vector<1x512xf32> to vector<512xf32>
    %241 = vector.shape_cast %240 : vector<512xf32> to vector<1x512xf32>
    %242 = vector.broadcast %241 : vector<1x512xf32> to vector<7x512xf32>
    %243 = arith.mulf %232, %242 : vector<7x512xf32>
    %244 = arith.addf %230, %243 : vector<7x512xf32>
    %c2_116 = arith.constant 2 : index
    %c2_117 = arith.constant 2 : index
    %c0_118 = arith.constant 0 : index
    %c0_119 = arith.constant 0 : index
    %245 = vector.load %arg5[%c2_116, %c2_117, %c0_118, %c0_119] : memref<8x7x7x512xf32, #tpu.memory_space<vmem>>, vector<1x1x7x512xf32>
    %246 = vector.shape_cast %245 : vector<1x1x7x512xf32> to vector<7x512xf32>
    %247 = arith.mulf %246, %1 : vector<7x512xf32>
    %cst_120 = arith.constant dense<0.000000e+00> : vector<512xf32>
    %248 = vector.multi_reduction <add>, %247, %cst_120 [0] : vector<7x512xf32> to vector<512xf32>
    %249 = arith.addf %248, %5 : vector<512xf32>
    %c18 = arith.constant 18 : index
    %c0_121 = arith.constant 0 : index
    %250 = vector.load %arg7[%c18, %c0_121] : memref<128x512xf32, #tpu.memory_space<vmem>>, vector<1x512xf32>
    %251 = vector.shape_cast %250 : vector<1x512xf32> to vector<512xf32>
    %252 = vector.shape_cast %249 : vector<512xf32> to vector<1x512xf32>
    tpu.vector_store %arg7[%c18, %c0_121], %252 {strides = array<i32>} : memref<128x512xf32, #tpu.memory_space<vmem>>, vector<1x512xf32>,
    %253 = vector.extract_strided_slice %3 {offsets = [2, 0], sizes = [1, 512], strides = [1, 1]} : vector<7x512xf32> to vector<1x512xf32>
    %254 = vector.shape_cast %253 : vector<1x512xf32> to vector<512xf32>
    %255 = vector.shape_cast %254 : vector<512xf32> to vector<1x512xf32>
    %256 = vector.broadcast %255 : vector<1x512xf32> to vector<7x512xf32>
    %257 = arith.mulf %246, %256 : vector<7x512xf32>
    %258 = arith.addf %244, %257 : vector<7x512xf32>
    %c2_122 = arith.constant 2 : index
    %c3_123 = arith.constant 3 : index
    %c0_124 = arith.constant 0 : index
    %c0_125 = arith.constant 0 : index
    %259 = vector.load %arg5[%c2_122, %c3_123, %c0_124, %c0_125] : memref<8x7x7x512xf32, #tpu.memory_space<vmem>>, vector<1x1x7x512xf32>
    %260 = vector.shape_cast %259 : vector<1x1x7x512xf32> to vector<7x512xf32>
    %261 = arith.mulf %260, %1 : vector<7x512xf32>
    %cst_126 = arith.constant dense<0.000000e+00> : vector<512xf32>
    %262 = vector.multi_reduction <add>, %261, %cst_126 [0] : vector<7x512xf32> to vector<512xf32>
    %263 = arith.addf %262, %5 : vector<512xf32>
    %c19 = arith.constant 19 : index
    %c0_127 = arith.constant 0 : index
    %264 = vector.load %arg7[%c19, %c0_127] : memref<128x512xf32, #tpu.memory_space<vmem>>, vector<1x512xf32>
    %265 = vector.shape_cast %264 : vector<1x512xf32> to vector<512xf32>
    %266 = vector.shape_cast %263 : vector<512xf32> to vector<1x512xf32>
    tpu.vector_store %arg7[%c19, %c0_127], %266 {strides = array<i32>} : memref<128x512xf32, #tpu.memory_space<vmem>>, vector<1x512xf32>,
    %267 = vector.extract_strided_slice %3 {offsets = [3, 0], sizes = [1, 512], strides = [1, 1]} : vector<7x512xf32> to vector<1x512xf32>
    %268 = vector.shape_cast %267 : vector<1x512xf32> to vector<512xf32>
    %269 = vector.shape_cast %268 : vector<512xf32> to vector<1x512xf32>
    %270 = vector.broadcast %269 : vector<1x512xf32> to vector<7x512xf32>
    %271 = arith.mulf %260, %270 : vector<7x512xf32>
    %272 = arith.addf %258, %271 : vector<7x512xf32>
    %c2_128 = arith.constant 2 : index
    %c4_129 = arith.constant 4 : index
    %c0_130 = arith.constant 0 : index
    %c0_131 = arith.constant 0 : index
    %273 = vector.load %arg5[%c2_128, %c4_129, %c0_130, %c0_131] : memref<8x7x7x512xf32, #tpu.memory_space<vmem>>, vector<1x1x7x512xf32>
    %274 = vector.shape_cast %273 : vector<1x1x7x512xf32> to vector<7x512xf32>
    %275 = arith.mulf %274, %1 : vector<7x512xf32>
    %cst_132 = arith.constant dense<0.000000e+00> : vector<512xf32>
    %276 = vector.multi_reduction <add>, %275, %cst_132 [0] : vector<7x512xf32> to vector<512xf32>
    %277 = arith.addf %276, %5 : vector<512xf32>
    %c20 = arith.constant 20 : index
    %c0_133 = arith.constant 0 : index
    %278 = vector.load %arg7[%c20, %c0_133] : memref<128x512xf32, #tpu.memory_space<vmem>>, vector<1x512xf32>
    %279 = vector.shape_cast %278 : vector<1x512xf32> to vector<512xf32>
    %280 = vector.shape_cast %277 : vector<512xf32> to vector<1x512xf32>
    tpu.vector_store %arg7[%c20, %c0_133], %280 {strides = array<i32>} : memref<128x512xf32, #tpu.memory_space<vmem>>, vector<1x512xf32>,
    %281 = vector.extract_strided_slice %3 {offsets = [4, 0], sizes = [1, 512], strides = [1, 1]} : vector<7x512xf32> to vector<1x512xf32>
    %282 = vector.shape_cast %281 : vector<1x512xf32> to vector<512xf32>
    %283 = vector.shape_cast %282 : vector<512xf32> to vector<1x512xf32>
    %284 = vector.broadcast %283 : vector<1x512xf32> to vector<7x512xf32>
    %285 = arith.mulf %274, %284 : vector<7x512xf32>
    %286 = arith.addf %272, %285 : vector<7x512xf32>
    %c2_134 = arith.constant 2 : index
    %c5_135 = arith.constant 5 : index
    %c0_136 = arith.constant 0 : index
    %c0_137 = arith.constant 0 : index
    %287 = vector.load %arg5[%c2_134, %c5_135, %c0_136, %c0_137] : memref<8x7x7x512xf32, #tpu.memory_space<vmem>>, vector<1x1x7x512xf32>
    %288 = vector.shape_cast %287 : vector<1x1x7x512xf32> to vector<7x512xf32>
    %289 = arith.mulf %288, %1 : vector<7x512xf32>
    %cst_138 = arith.constant dense<0.000000e+00> : vector<512xf32>
    %290 = vector.multi_reduction <add>, %289, %cst_138 [0] : vector<7x512xf32> to vector<512xf32>
    %291 = arith.addf %290, %5 : vector<512xf32>
    %c21 = arith.constant 21 : index
    %c0_139 = arith.constant 0 : index
    %292 = vector.load %arg7[%c21, %c0_139] : memref<128x512xf32, #tpu.memory_space<vmem>>, vector<1x512xf32>
    %293 = vector.shape_cast %292 : vector<1x512xf32> to vector<512xf32>
    %294 = vector.shape_cast %291 : vector<512xf32> to vector<1x512xf32>
    tpu.vector_store %arg7[%c21, %c0_139], %294 {strides = array<i32>} : memref<128x512xf32, #tpu.memory_space<vmem>>, vector<1x512xf32>,
    %295 = vector.extract_strided_slice %3 {offsets = [5, 0], sizes = [1, 512], strides = [1, 1]} : vector<7x512xf32> to vector<1x512xf32>
    %296 = vector.shape_cast %295 : vector<1x512xf32> to vector<512xf32>
    %297 = vector.shape_cast %296 : vector<512xf32> to vector<1x512xf32>
    %298 = vector.broadcast %297 : vector<1x512xf32> to vector<7x512xf32>
    %299 = arith.mulf %288, %298 : vector<7x512xf32>
    %300 = arith.addf %286, %299 : vector<7x512xf32>
    %c2_140 = arith.constant 2 : index
    %c6_141 = arith.constant 6 : index
    %c0_142 = arith.constant 0 : index
    %c0_143 = arith.constant 0 : index
    %301 = vector.load %arg5[%c2_140, %c6_141, %c0_142, %c0_143] : memref<8x7x7x512xf32, #tpu.memory_space<vmem>>, vector<1x1x7x512xf32>
    %302 = vector.shape_cast %301 : vector<1x1x7x512xf32> to vector<7x512xf32>
    %303 = arith.mulf %302, %1 : vector<7x512xf32>
    %cst_144 = arith.constant dense<0.000000e+00> : vector<512xf32>
    %304 = vector.multi_reduction <add>, %303, %cst_144 [0] : vector<7x512xf32> to vector<512xf32>
    %305 = arith.addf %304, %5 : vector<512xf32>
    %c22 = arith.constant 22 : index
    %c0_145 = arith.constant 0 : index
    %306 = vector.load %arg7[%c22, %c0_145] : memref<128x512xf32, #tpu.memory_space<vmem>>, vector<1x512xf32>
    %307 = vector.shape_cast %306 : vector<1x512xf32> to vector<512xf32>
    %308 = vector.shape_cast %305 : vector<512xf32> to vector<1x512xf32>
    tpu.vector_store %arg7[%c22, %c0_145], %308 {strides = array<i32>} : memref<128x512xf32, #tpu.memory_space<vmem>>, vector<1x512xf32>,
    %309 = vector.extract_strided_slice %3 {offsets = [6, 0], sizes = [1, 512], strides = [1, 1]} : vector<7x512xf32> to vector<1x512xf32>
    %310 = vector.shape_cast %309 : vector<1x512xf32> to vector<512xf32>
    %311 = vector.shape_cast %310 : vector<512xf32> to vector<1x512xf32>
    %312 = vector.broadcast %311 : vector<1x512xf32> to vector<7x512xf32>
    %313 = arith.mulf %302, %312 : vector<7x512xf32>
    %314 = arith.addf %300, %313 : vector<7x512xf32>
    %315 = vector.shape_cast %7 : vector<512xf32> to vector<1x512xf32>
    %316 = vector.broadcast %315 : vector<1x512xf32> to vector<7x512xf32>
    %317 = arith.addf %314, %316 : vector<7x512xf32>
    %c80 = arith.constant 80 : index
    %c0_146 = arith.constant 0 : index
    %318 = vector.load %arg7[%c80, %c0_146] : memref<128x512xf32, #tpu.memory_space<vmem>>, vector<7x512xf32>
    tpu.vector_store %arg7[%c80, %c0_146], %317 {strides = array<i32>} : memref<128x512xf32, #tpu.memory_space<vmem>>, vector<7x512xf32>,
    %c3_147 = arith.constant 3 : index
    %c0_148 = arith.constant 0 : index
    %c0_149 = arith.constant 0 : index
    %c0_150 = arith.constant 0 : index
    %319 = vector.load %arg5[%c3_147, %c0_148, %c0_149, %c0_150] : memref<8x7x7x512xf32, #tpu.memory_space<vmem>>, vector<1x1x7x512xf32>
    %320 = vector.shape_cast %319 : vector<1x1x7x512xf32> to vector<7x512xf32>
    %321 = arith.mulf %320, %1 : vector<7x512xf32>
    %cst_151 = arith.constant dense<0.000000e+00> : vector<512xf32>
    %322 = vector.multi_reduction <add>, %321, %cst_151 [0] : vector<7x512xf32> to vector<512xf32>
    %323 = arith.addf %322, %5 : vector<512xf32>
    %c24 = arith.constant 24 : index
    %c0_152 = arith.constant 0 : index
    %324 = vector.load %arg7[%c24, %c0_152] : memref<128x512xf32, #tpu.memory_space<vmem>>, vector<1x512xf32>
    %325 = vector.shape_cast %324 : vector<1x512xf32> to vector<512xf32>
    %326 = vector.shape_cast %323 : vector<512xf32> to vector<1x512xf32>
    tpu.vector_store %arg7[%c24, %c0_152], %326 {strides = array<i32>} : memref<128x512xf32, #tpu.memory_space<vmem>>, vector<1x512xf32>,
    %327 = vector.extract_strided_slice %3 {offsets = [0, 0], sizes = [1, 512], strides = [1, 1]} : vector<7x512xf32> to vector<1x512xf32>
    %328 = vector.shape_cast %327 : vector<1x512xf32> to vector<512xf32>
    %329 = vector.shape_cast %328 : vector<512xf32> to vector<1x512xf32>
    %330 = vector.broadcast %329 : vector<1x512xf32> to vector<7x512xf32>
    %331 = arith.mulf %320, %330 : vector<7x512xf32>
    %c3_153 = arith.constant 3 : index
    %c1_154 = arith.constant 1 : index
    %c0_155 = arith.constant 0 : index
    %c0_156 = arith.constant 0 : index
    %332 = vector.load %arg5[%c3_153, %c1_154, %c0_155, %c0_156] : memref<8x7x7x512xf32, #tpu.memory_space<vmem>>, vector<1x1x7x512xf32>
    %333 = vector.shape_cast %332 : vector<1x1x7x512xf32> to vector<7x512xf32>
    %334 = arith.mulf %333, %1 : vector<7x512xf32>
    %cst_157 = arith.constant dense<0.000000e+00> : vector<512xf32>
    %335 = vector.multi_reduction <add>, %334, %cst_157 [0] : vector<7x512xf32> to vector<512xf32>
    %336 = arith.addf %335, %5 : vector<512xf32>
    %c25 = arith.constant 25 : index
    %c0_158 = arith.constant 0 : index
    %337 = vector.load %arg7[%c25, %c0_158] : memref<128x512xf32, #tpu.memory_space<vmem>>, vector<1x512xf32>
    %338 = vector.shape_cast %337 : vector<1x512xf32> to vector<512xf32>
    %339 = vector.shape_cast %336 : vector<512xf32> to vector<1x512xf32>
    tpu.vector_store %arg7[%c25, %c0_158], %339 {strides = array<i32>} : memref<128x512xf32, #tpu.memory_space<vmem>>, vector<1x512xf32>,
    %340 = vector.extract_strided_slice %3 {offsets = [1, 0], sizes = [1, 512], strides = [1, 1]} : vector<7x512xf32> to vector<1x512xf32>
    %341 = vector.shape_cast %340 : vector<1x512xf32> to vector<512xf32>
    %342 = vector.shape_cast %341 : vector<512xf32> to vector<1x512xf32>
    %343 = vector.broadcast %342 : vector<1x512xf32> to vector<7x512xf32>
    %344 = arith.mulf %333, %343 : vector<7x512xf32>
    %345 = arith.addf %331, %344 : vector<7x512xf32>
    %c3_159 = arith.constant 3 : index
    %c2_160 = arith.constant 2 : index
    %c0_161 = arith.constant 0 : index
    %c0_162 = arith.constant 0 : index
    %346 = vector.load %arg5[%c3_159, %c2_160, %c0_161, %c0_162] : memref<8x7x7x512xf32, #tpu.memory_space<vmem>>, vector<1x1x7x512xf32>
    %347 = vector.shape_cast %346 : vector<1x1x7x512xf32> to vector<7x512xf32>
    %348 = arith.mulf %347, %1 : vector<7x512xf32>
    %cst_163 = arith.constant dense<0.000000e+00> : vector<512xf32>
    %349 = vector.multi_reduction <add>, %348, %cst_163 [0] : vector<7x512xf32> to vector<512xf32>
    %350 = arith.addf %349, %5 : vector<512xf32>
    %c26 = arith.constant 26 : index
    %c0_164 = arith.constant 0 : index
    %351 = vector.load %arg7[%c26, %c0_164] : memref<128x512xf32, #tpu.memory_space<vmem>>, vector<1x512xf32>
    %352 = vector.shape_cast %351 : vector<1x512xf32> to vector<512xf32>
    %353 = vector.shape_cast %350 : vector<512xf32> to vector<1x512xf32>
    tpu.vector_store %arg7[%c26, %c0_164], %353 {strides = array<i32>} : memref<128x512xf32, #tpu.memory_space<vmem>>, vector<1x512xf32>,
    %354 = vector.extract_strided_slice %3 {offsets = [2, 0], sizes = [1, 512], strides = [1, 1]} : vector<7x512xf32> to vector<1x512xf32>
    %355 = vector.shape_cast %354 : vector<1x512xf32> to vector<512xf32>
    %356 = vector.shape_cast %355 : vector<512xf32> to vector<1x512xf32>
    %357 = vector.broadcast %356 : vector<1x512xf32> to vector<7x512xf32>
    %358 = arith.mulf %347, %357 : vector<7x512xf32>
    %359 = arith.addf %345, %358 : vector<7x512xf32>
    %c3_165 = arith.constant 3 : index
    %c3_166 = arith.constant 3 : index
    %c0_167 = arith.constant 0 : index
    %c0_168 = arith.constant 0 : index
    %360 = vector.load %arg5[%c3_165, %c3_166, %c0_167, %c0_168] : memref<8x7x7x512xf32, #tpu.memory_space<vmem>>, vector<1x1x7x512xf32>
    %361 = vector.shape_cast %360 : vector<1x1x7x512xf32> to vector<7x512xf32>
    %362 = arith.mulf %361, %1 : vector<7x512xf32>
    %cst_169 = arith.constant dense<0.000000e+00> : vector<512xf32>
    %363 = vector.multi_reduction <add>, %362, %cst_169 [0] : vector<7x512xf32> to vector<512xf32>
    %364 = arith.addf %363, %5 : vector<512xf32>
    %c27 = arith.constant 27 : index
    %c0_170 = arith.constant 0 : index
    %365 = vector.load %arg7[%c27, %c0_170] : memref<128x512xf32, #tpu.memory_space<vmem>>, vector<1x512xf32>
    %366 = vector.shape_cast %365 : vector<1x512xf32> to vector<512xf32>
    %367 = vector.shape_cast %364 : vector<512xf32> to vector<1x512xf32>
    tpu.vector_store %arg7[%c27, %c0_170], %367 {strides = array<i32>} : memref<128x512xf32, #tpu.memory_space<vmem>>, vector<1x512xf32>,
    %368 = vector.extract_strided_slice %3 {offsets = [3, 0], sizes = [1, 512], strides = [1, 1]} : vector<7x512xf32> to vector<1x512xf32>
    %369 = vector.shape_cast %368 : vector<1x512xf32> to vector<512xf32>
    %370 = vector.shape_cast %369 : vector<512xf32> to vector<1x512xf32>
    %371 = vector.broadcast %370 : vector<1x512xf32> to vector<7x512xf32>
    %372 = arith.mulf %361, %371 : vector<7x512xf32>
    %373 = arith.addf %359, %372 : vector<7x512xf32>
    %c3_171 = arith.constant 3 : index
    %c4_172 = arith.constant 4 : index
    %c0_173 = arith.constant 0 : index
    %c0_174 = arith.constant 0 : index
    %374 = vector.load %arg5[%c3_171, %c4_172, %c0_173, %c0_174] : memref<8x7x7x512xf32, #tpu.memory_space<vmem>>, vector<1x1x7x512xf32>
    %375 = vector.shape_cast %374 : vector<1x1x7x512xf32> to vector<7x512xf32>
    %376 = arith.mulf %375, %1 : vector<7x512xf32>
    %cst_175 = arith.constant dense<0.000000e+00> : vector<512xf32>
    %377 = vector.multi_reduction <add>, %376, %cst_175 [0] : vector<7x512xf32> to vector<512xf32>
    %378 = arith.addf %377, %5 : vector<512xf32>
    %c28 = arith.constant 28 : index
    %c0_176 = arith.constant 0 : index
    %379 = vector.load %arg7[%c28, %c0_176] : memref<128x512xf32, #tpu.memory_space<vmem>>, vector<1x512xf32>
    %380 = vector.shape_cast %379 : vector<1x512xf32> to vector<512xf32>
    %381 = vector.shape_cast %378 : vector<512xf32> to vector<1x512xf32>
    tpu.vector_store %arg7[%c28, %c0_176], %381 {strides = array<i32>} : memref<128x512xf32, #tpu.memory_space<vmem>>, vector<1x512xf32>,
    %382 = vector.extract_strided_slice %3 {offsets = [4, 0], sizes = [1, 512], strides = [1, 1]} : vector<7x512xf32> to vector<1x512xf32>
    %383 = vector.shape_cast %382 : vector<1x512xf32> to vector<512xf32>
    %384 = vector.shape_cast %383 : vector<512xf32> to vector<1x512xf32>
    %385 = vector.broadcast %384 : vector<1x512xf32> to vector<7x512xf32>
    %386 = arith.mulf %375, %385 : vector<7x512xf32>
    %387 = arith.addf %373, %386 : vector<7x512xf32>
    %c3_177 = arith.constant 3 : index
    %c5_178 = arith.constant 5 : index
    %c0_179 = arith.constant 0 : index
    %c0_180 = arith.constant 0 : index
    %388 = vector.load %arg5[%c3_177, %c5_178, %c0_179, %c0_180] : memref<8x7x7x512xf32, #tpu.memory_space<vmem>>, vector<1x1x7x512xf32>
    %389 = vector.shape_cast %388 : vector<1x1x7x512xf32> to vector<7x512xf32>
    %390 = arith.mulf %389, %1 : vector<7x512xf32>
    %cst_181 = arith.constant dense<0.000000e+00> : vector<512xf32>
    %391 = vector.multi_reduction <add>, %390, %cst_181 [0] : vector<7x512xf32> to vector<512xf32>
    %392 = arith.addf %391, %5 : vector<512xf32>
    %c29 = arith.constant 29 : index
    %c0_182 = arith.constant 0 : index
    %393 = vector.load %arg7[%c29, %c0_182] : memref<128x512xf32, #tpu.memory_space<vmem>>, vector<1x512xf32>
    %394 = vector.shape_cast %393 : vector<1x512xf32> to vector<512xf32>
    %395 = vector.shape_cast %392 : vector<512xf32> to vector<1x512xf32>
    tpu.vector_store %arg7[%c29, %c0_182], %395 {strides = array<i32>} : memref<128x512xf32, #tpu.memory_space<vmem>>, vector<1x512xf32>,
    %396 = vector.extract_strided_slice %3 {offsets = [5, 0], sizes = [1, 512], strides = [1, 1]} : vector<7x512xf32> to vector<1x512xf32>
    %397 = vector.shape_cast %396 : vector<1x512xf32> to vector<512xf32>
    %398 = vector.shape_cast %397 : vector<512xf32> to vector<1x512xf32>
    %399 = vector.broadcast %398 : vector<1x512xf32> to vector<7x512xf32>
    %400 = arith.mulf %389, %399 : vector<7x512xf32>
    %401 = arith.addf %387, %400 : vector<7x512xf32>
    %c3_183 = arith.constant 3 : index
    %c6_184 = arith.constant 6 : index
    %c0_185 = arith.constant 0 : index
    %c0_186 = arith.constant 0 : index
    %402 = vector.load %arg5[%c3_183, %c6_184, %c0_185, %c0_186] : memref<8x7x7x512xf32, #tpu.memory_space<vmem>>, vector<1x1x7x512xf32>
    %403 = vector.shape_cast %402 : vector<1x1x7x512xf32> to vector<7x512xf32>
    %404 = arith.mulf %403, %1 : vector<7x512xf32>
    %cst_187 = arith.constant dense<0.000000e+00> : vector<512xf32>
    %405 = vector.multi_reduction <add>, %404, %cst_187 [0] : vector<7x512xf32> to vector<512xf32>
    %406 = arith.addf %405, %5 : vector<512xf32>
    %c30 = arith.constant 30 : index
    %c0_188 = arith.constant 0 : index
    %407 = vector.load %arg7[%c30, %c0_188] : memref<128x512xf32, #tpu.memory_space<vmem>>, vector<1x512xf32>
    %408 = vector.shape_cast %407 : vector<1x512xf32> to vector<512xf32>
    %409 = vector.shape_cast %406 : vector<512xf32> to vector<1x512xf32>
    tpu.vector_store %arg7[%c30, %c0_188], %409 {strides = array<i32>} : memref<128x512xf32, #tpu.memory_space<vmem>>, vector<1x512xf32>,
    %410 = vector.extract_strided_slice %3 {offsets = [6, 0], sizes = [1, 512], strides = [1, 1]} : vector<7x512xf32> to vector<1x512xf32>
    %411 = vector.shape_cast %410 : vector<1x512xf32> to vector<512xf32>
    %412 = vector.shape_cast %411 : vector<512xf32> to vector<1x512xf32>
    %413 = vector.broadcast %412 : vector<1x512xf32> to vector<7x512xf32>
    %414 = arith.mulf %403, %413 : vector<7x512xf32>
    %415 = arith.addf %401, %414 : vector<7x512xf32>
    %416 = vector.shape_cast %7 : vector<512xf32> to vector<1x512xf32>
    %417 = vector.broadcast %416 : vector<1x512xf32> to vector<7x512xf32>
    %418 = arith.addf %415, %417 : vector<7x512xf32>
    %c88 = arith.constant 88 : index
    %c0_189 = arith.constant 0 : index
    %419 = vector.load %arg7[%c88, %c0_189] : memref<128x512xf32, #tpu.memory_space<vmem>>, vector<7x512xf32>
    tpu.vector_store %arg7[%c88, %c0_189], %418 {strides = array<i32>} : memref<128x512xf32, #tpu.memory_space<vmem>>, vector<7x512xf32>,
    %c4_190 = arith.constant 4 : index
    %c0_191 = arith.constant 0 : index
    %c0_192 = arith.constant 0 : index
    %c0_193 = arith.constant 0 : index
    %420 = vector.load %arg5[%c4_190, %c0_191, %c0_192, %c0_193] : memref<8x7x7x512xf32, #tpu.memory_space<vmem>>, vector<1x1x7x512xf32>
    %421 = vector.shape_cast %420 : vector<1x1x7x512xf32> to vector<7x512xf32>
    %422 = arith.mulf %421, %1 : vector<7x512xf32>
    %cst_194 = arith.constant dense<0.000000e+00> : vector<512xf32>
    %423 = vector.multi_reduction <add>, %422, %cst_194 [0] : vector<7x512xf32> to vector<512xf32>
    %424 = arith.addf %423, %5 : vector<512xf32>
    %c32 = arith.constant 32 : index
    %c0_195 = arith.constant 0 : index
    %425 = vector.load %arg7[%c32, %c0_195] : memref<128x512xf32, #tpu.memory_space<vmem>>, vector<1x512xf32>
    %426 = vector.shape_cast %425 : vector<1x512xf32> to vector<512xf32>
    %427 = vector.shape_cast %424 : vector<512xf32> to vector<1x512xf32>
    tpu.vector_store %arg7[%c32, %c0_195], %427 {strides = array<i32>} : memref<128x512xf32, #tpu.memory_space<vmem>>, vector<1x512xf32>,
    %428 = vector.extract_strided_slice %3 {offsets = [0, 0], sizes = [1, 512], strides = [1, 1]} : vector<7x512xf32> to vector<1x512xf32>
    %429 = vector.shape_cast %428 : vector<1x512xf32> to vector<512xf32>
    %430 = vector.shape_cast %429 : vector<512xf32> to vector<1x512xf32>
    %431 = vector.broadcast %430 : vector<1x512xf32> to vector<7x512xf32>
    %432 = arith.mulf %421, %431 : vector<7x512xf32>
    %c4_196 = arith.constant 4 : index
    %c1_197 = arith.constant 1 : index
    %c0_198 = arith.constant 0 : index
    %c0_199 = arith.constant 0 : index
    %433 = vector.load %arg5[%c4_196, %c1_197, %c0_198, %c0_199] : memref<8x7x7x512xf32, #tpu.memory_space<vmem>>, vector<1x1x7x512xf32>
    %434 = vector.shape_cast %433 : vector<1x1x7x512xf32> to vector<7x512xf32>
    %435 = arith.mulf %434, %1 : vector<7x512xf32>
    %cst_200 = arith.constant dense<0.000000e+00> : vector<512xf32>
    %436 = vector.multi_reduction <add>, %435, %cst_200 [0] : vector<7x512xf32> to vector<512xf32>
    %437 = arith.addf %436, %5 : vector<512xf32>
    %c33 = arith.constant 33 : index
    %c0_201 = arith.constant 0 : index
    %438 = vector.load %arg7[%c33, %c0_201] : memref<128x512xf32, #tpu.memory_space<vmem>>, vector<1x512xf32>
    %439 = vector.shape_cast %438 : vector<1x512xf32> to vector<512xf32>
    %440 = vector.shape_cast %437 : vector<512xf32> to vector<1x512xf32>
    tpu.vector_store %arg7[%c33, %c0_201], %440 {strides = array<i32>} : memref<128x512xf32, #tpu.memory_space<vmem>>, vector<1x512xf32>,
    %441 = vector.extract_strided_slice %3 {offsets = [1, 0], sizes = [1, 512], strides = [1, 1]} : vector<7x512xf32> to vector<1x512xf32>
    %442 = vector.shape_cast %441 : vector<1x512xf32> to vector<512xf32>
    %443 = vector.shape_cast %442 : vector<512xf32> to vector<1x512xf32>
    %444 = vector.broadcast %443 : vector<1x512xf32> to vector<7x512xf32>
    %445 = arith.mulf %434, %444 : vector<7x512xf32>
    %446 = arith.addf %432, %445 : vector<7x512xf32>
    %c4_202 = arith.constant 4 : index
    %c2_203 = arith.constant 2 : index
    %c0_204 = arith.constant 0 : index
    %c0_205 = arith.constant 0 : index
    %447 = vector.load %arg5[%c4_202, %c2_203, %c0_204, %c0_205] : memref<8x7x7x512xf32, #tpu.memory_space<vmem>>, vector<1x1x7x512xf32>
    %448 = vector.shape_cast %447 : vector<1x1x7x512xf32> to vector<7x512xf32>
    %449 = arith.mulf %448, %1 : vector<7x512xf32>
    %cst_206 = arith.constant dense<0.000000e+00> : vector<512xf32>
    %450 = vector.multi_reduction <add>, %449, %cst_206 [0] : vector<7x512xf32> to vector<512xf32>
    %451 = arith.addf %450, %5 : vector<512xf32>
    %c34 = arith.constant 34 : index
    %c0_207 = arith.constant 0 : index
    %452 = vector.load %arg7[%c34, %c0_207] : memref<128x512xf32, #tpu.memory_space<vmem>>, vector<1x512xf32>
    %453 = vector.shape_cast %452 : vector<1x512xf32> to vector<512xf32>
    %454 = vector.shape_cast %451 : vector<512xf32> to vector<1x512xf32>
    tpu.vector_store %arg7[%c34, %c0_207], %454 {strides = array<i32>} : memref<128x512xf32, #tpu.memory_space<vmem>>, vector<1x512xf32>,
    %455 = vector.extract_strided_slice %3 {offsets = [2, 0], sizes = [1, 512], strides = [1, 1]} : vector<7x512xf32> to vector<1x512xf32>
    %456 = vector.shape_cast %455 : vector<1x512xf32> to vector<512xf32>
    %457 = vector.shape_cast %456 : vector<512xf32> to vector<1x512xf32>
    %458 = vector.broadcast %457 : vector<1x512xf32> to vector<7x512xf32>
    %459 = arith.mulf %448, %458 : vector<7x512xf32>
    %460 = arith.addf %446, %459 : vector<7x512xf32>
    %c4_208 = arith.constant 4 : index
    %c3_209 = arith.constant 3 : index
    %c0_210 = arith.constant 0 : index
    %c0_211 = arith.constant 0 : index
    %461 = vector.load %arg5[%c4_208, %c3_209, %c0_210, %c0_211] : memref<8x7x7x512xf32, #tpu.memory_space<vmem>>, vector<1x1x7x512xf32>
    %462 = vector.shape_cast %461 : vector<1x1x7x512xf32> to vector<7x512xf32>
    %463 = arith.mulf %462, %1 : vector<7x512xf32>
    %cst_212 = arith.constant dense<0.000000e+00> : vector<512xf32>
    %464 = vector.multi_reduction <add>, %463, %cst_212 [0] : vector<7x512xf32> to vector<512xf32>
    %465 = arith.addf %464, %5 : vector<512xf32>
    %c35 = arith.constant 35 : index
    %c0_213 = arith.constant 0 : index
    %466 = vector.load %arg7[%c35, %c0_213] : memref<128x512xf32, #tpu.memory_space<vmem>>, vector<1x512xf32>
    %467 = vector.shape_cast %466 : vector<1x512xf32> to vector<512xf32>
    %468 = vector.shape_cast %465 : vector<512xf32> to vector<1x512xf32>
    tpu.vector_store %arg7[%c35, %c0_213], %468 {strides = array<i32>} : memref<128x512xf32, #tpu.memory_space<vmem>>, vector<1x512xf32>,
    %469 = vector.extract_strided_slice %3 {offsets = [3, 0], sizes = [1, 512], strides = [1, 1]} : vector<7x512xf32> to vector<1x512xf32>
    %470 = vector.shape_cast %469 : vector<1x512xf32> to vector<512xf32>
    %471 = vector.shape_cast %470 : vector<512xf32> to vector<1x512xf32>
    %472 = vector.broadcast %471 : vector<1x512xf32> to vector<7x512xf32>
    %473 = arith.mulf %462, %472 : vector<7x512xf32>
    %474 = arith.addf %460, %473 : vector<7x512xf32>
    %c4_214 = arith.constant 4 : index
    %c4_215 = arith.constant 4 : index
    %c0_216 = arith.constant 0 : index
    %c0_217 = arith.constant 0 : index
    %475 = vector.load %arg5[%c4_214, %c4_215, %c0_216, %c0_217] : memref<8x7x7x512xf32, #tpu.memory_space<vmem>>, vector<1x1x7x512xf32>
    %476 = vector.shape_cast %475 : vector<1x1x7x512xf32> to vector<7x512xf32>
    %477 = arith.mulf %476, %1 : vector<7x512xf32>
    %cst_218 = arith.constant dense<0.000000e+00> : vector<512xf32>
    %478 = vector.multi_reduction <add>, %477, %cst_218 [0] : vector<7x512xf32> to vector<512xf32>
    %479 = arith.addf %478, %5 : vector<512xf32>
    %c36 = arith.constant 36 : index
    %c0_219 = arith.constant 0 : index
    %480 = vector.load %arg7[%c36, %c0_219] : memref<128x512xf32, #tpu.memory_space<vmem>>, vector<1x512xf32>
    %481 = vector.shape_cast %480 : vector<1x512xf32> to vector<512xf32>
    %482 = vector.shape_cast %479 : vector<512xf32> to vector<1x512xf32>
    tpu.vector_store %arg7[%c36, %c0_219], %482 {strides = array<i32>} : memref<128x512xf32, #tpu.memory_space<vmem>>, vector<1x512xf32>,
    %483 = vector.extract_strided_slice %3 {offsets = [4, 0], sizes = [1, 512], strides = [1, 1]} : vector<7x512xf32> to vector<1x512xf32>
    %484 = vector.shape_cast %483 : vector<1x512xf32> to vector<512xf32>
    %485 = vector.shape_cast %484 : vector<512xf32> to vector<1x512xf32>
    %486 = vector.broadcast %485 : vector<1x512xf32> to vector<7x512xf32>
    %487 = arith.mulf %476, %486 : vector<7x512xf32>
    %488 = arith.addf %474, %487 : vector<7x512xf32>
    %c4_220 = arith.constant 4 : index
    %c5_221 = arith.constant 5 : index
    %c0_222 = arith.constant 0 : index
    %c0_223 = arith.constant 0 : index
    %489 = vector.load %arg5[%c4_220, %c5_221, %c0_222, %c0_223] : memref<8x7x7x512xf32, #tpu.memory_space<vmem>>, vector<1x1x7x512xf32>
    %490 = vector.shape_cast %489 : vector<1x1x7x512xf32> to vector<7x512xf32>
    %491 = arith.mulf %490, %1 : vector<7x512xf32>
    %cst_224 = arith.constant dense<0.000000e+00> : vector<512xf32>
    %492 = vector.multi_reduction <add>, %491, %cst_224 [0] : vector<7x512xf32> to vector<512xf32>
    %493 = arith.addf %492, %5 : vector<512xf32>
    %c37 = arith.constant 37 : index
    %c0_225 = arith.constant 0 : index
    %494 = vector.load %arg7[%c37, %c0_225] : memref<128x512xf32, #tpu.memory_space<vmem>>, vector<1x512xf32>
    %495 = vector.shape_cast %494 : vector<1x512xf32> to vector<512xf32>
    %496 = vector.shape_cast %493 : vector<512xf32> to vector<1x512xf32>
    tpu.vector_store %arg7[%c37, %c0_225], %496 {strides = array<i32>} : memref<128x512xf32, #tpu.memory_space<vmem>>, vector<1x512xf32>,
    %497 = vector.extract_strided_slice %3 {offsets = [5, 0], sizes = [1, 512], strides = [1, 1]} : vector<7x512xf32> to vector<1x512xf32>
    %498 = vector.shape_cast %497 : vector<1x512xf32> to vector<512xf32>
    %499 = vector.shape_cast %498 : vector<512xf32> to vector<1x512xf32>
    %500 = vector.broadcast %499 : vector<1x512xf32> to vector<7x512xf32>
    %501 = arith.mulf %490, %500 : vector<7x512xf32>
    %502 = arith.addf %488, %501 : vector<7x512xf32>
    %c4_226 = arith.constant 4 : index
    %c6_227 = arith.constant 6 : index
    %c0_228 = arith.constant 0 : index
    %c0_229 = arith.constant 0 : index
    %503 = vector.load %arg5[%c4_226, %c6_227, %c0_228, %c0_229] : memref<8x7x7x512xf32, #tpu.memory_space<vmem>>, vector<1x1x7x512xf32>
    %504 = vector.shape_cast %503 : vector<1x1x7x512xf32> to vector<7x512xf32>
    %505 = arith.mulf %504, %1 : vector<7x512xf32>
    %cst_230 = arith.constant dense<0.000000e+00> : vector<512xf32>
    %506 = vector.multi_reduction <add>, %505, %cst_230 [0] : vector<7x512xf32> to vector<512xf32>
    %507 = arith.addf %506, %5 : vector<512xf32>
    %c38 = arith.constant 38 : index
    %c0_231 = arith.constant 0 : index
    %508 = vector.load %arg7[%c38, %c0_231] : memref<128x512xf32, #tpu.memory_space<vmem>>, vector<1x512xf32>
    %509 = vector.shape_cast %508 : vector<1x512xf32> to vector<512xf32>
    %510 = vector.shape_cast %507 : vector<512xf32> to vector<1x512xf32>
    tpu.vector_store %arg7[%c38, %c0_231], %510 {strides = array<i32>} : memref<128x512xf32, #tpu.memory_space<vmem>>, vector<1x512xf32>,
    %511 = vector.extract_strided_slice %3 {offsets = [6, 0], sizes = [1, 512], strides = [1, 1]} : vector<7x512xf32> to vector<1x512xf32>
    %512 = vector.shape_cast %511 : vector<1x512xf32> to vector<512xf32>
    %513 = vector.shape_cast %512 : vector<512xf32> to vector<1x512xf32>
    %514 = vector.broadcast %513 : vector<1x512xf32> to vector<7x512xf32>
    %515 = arith.mulf %504, %514 : vector<7x512xf32>
    %516 = arith.addf %502, %515 : vector<7x512xf32>
    %517 = vector.shape_cast %7 : vector<512xf32> to vector<1x512xf32>
    %518 = vector.broadcast %517 : vector<1x512xf32> to vector<7x512xf32>
    %519 = arith.addf %516, %518 : vector<7x512xf32>
    %c96 = arith.constant 96 : index
    %c0_232 = arith.constant 0 : index
    %520 = vector.load %arg7[%c96, %c0_232] : memref<128x512xf32, #tpu.memory_space<vmem>>, vector<7x512xf32>
    tpu.vector_store %arg7[%c96, %c0_232], %519 {strides = array<i32>} : memref<128x512xf32, #tpu.memory_space<vmem>>, vector<7x512xf32>,
    %c5_233 = arith.constant 5 : index
    %c0_234 = arith.constant 0 : index
    %c0_235 = arith.constant 0 : index
    %c0_236 = arith.constant 0 : index
    %521 = vector.load %arg5[%c5_233, %c0_234, %c0_235, %c0_236] : memref<8x7x7x512xf32, #tpu.memory_space<vmem>>, vector<1x1x7x512xf32>
    %522 = vector.shape_cast %521 : vector<1x1x7x512xf32> to vector<7x512xf32>
    %523 = arith.mulf %522, %1 : vector<7x512xf32>
    %cst_237 = arith.constant dense<0.000000e+00> : vector<512xf32>
    %524 = vector.multi_reduction <add>, %523, %cst_237 [0] : vector<7x512xf32> to vector<512xf32>
    %525 = arith.addf %524, %5 : vector<512xf32>
    %c40 = arith.constant 40 : index
    %c0_238 = arith.constant 0 : index
    %526 = vector.load %arg7[%c40, %c0_238] : memref<128x512xf32, #tpu.memory_space<vmem>>, vector<1x512xf32>
    %527 = vector.shape_cast %526 : vector<1x512xf32> to vector<512xf32>
    %528 = vector.shape_cast %525 : vector<512xf32> to vector<1x512xf32>
    tpu.vector_store %arg7[%c40, %c0_238], %528 {strides = array<i32>} : memref<128x512xf32, #tpu.memory_space<vmem>>, vector<1x512xf32>,
    %529 = vector.extract_strided_slice %3 {offsets = [0, 0], sizes = [1, 512], strides = [1, 1]} : vector<7x512xf32> to vector<1x512xf32>
    %530 = vector.shape_cast %529 : vector<1x512xf32> to vector<512xf32>
    %531 = vector.shape_cast %530 : vector<512xf32> to vector<1x512xf32>
    %532 = vector.broadcast %531 : vector<1x512xf32> to vector<7x512xf32>
    %533 = arith.mulf %522, %532 : vector<7x512xf32>
    %c5_239 = arith.constant 5 : index
    %c1_240 = arith.constant 1 : index
    %c0_241 = arith.constant 0 : index
    %c0_242 = arith.constant 0 : index
    %534 = vector.load %arg5[%c5_239, %c1_240, %c0_241, %c0_242] : memref<8x7x7x512xf32, #tpu.memory_space<vmem>>, vector<1x1x7x512xf32>
    %535 = vector.shape_cast %534 : vector<1x1x7x512xf32> to vector<7x512xf32>
    %536 = arith.mulf %535, %1 : vector<7x512xf32>
    %cst_243 = arith.constant dense<0.000000e+00> : vector<512xf32>
    %537 = vector.multi_reduction <add>, %536, %cst_243 [0] : vector<7x512xf32> to vector<512xf32>
    %538 = arith.addf %537, %5 : vector<512xf32>
    %c41 = arith.constant 41 : index
    %c0_244 = arith.constant 0 : index
    %539 = vector.load %arg7[%c41, %c0_244] : memref<128x512xf32, #tpu.memory_space<vmem>>, vector<1x512xf32>
    %540 = vector.shape_cast %539 : vector<1x512xf32> to vector<512xf32>
    %541 = vector.shape_cast %538 : vector<512xf32> to vector<1x512xf32>
    tpu.vector_store %arg7[%c41, %c0_244], %541 {strides = array<i32>} : memref<128x512xf32, #tpu.memory_space<vmem>>, vector<1x512xf32>,
    %542 = vector.extract_strided_slice %3 {offsets = [1, 0], sizes = [1, 512], strides = [1, 1]} : vector<7x512xf32> to vector<1x512xf32>
    %543 = vector.shape_cast %542 : vector<1x512xf32> to vector<512xf32>
    %544 = vector.shape_cast %543 : vector<512xf32> to vector<1x512xf32>
    %545 = vector.broadcast %544 : vector<1x512xf32> to vector<7x512xf32>
    %546 = arith.mulf %535, %545 : vector<7x512xf32>
    %547 = arith.addf %533, %546 : vector<7x512xf32>
    %c5_245 = arith.constant 5 : index
    %c2_246 = arith.constant 2 : index
    %c0_247 = arith.constant 0 : index
    %c0_248 = arith.constant 0 : index
    %548 = vector.load %arg5[%c5_245, %c2_246, %c0_247, %c0_248] : memref<8x7x7x512xf32, #tpu.memory_space<vmem>>, vector<1x1x7x512xf32>
    %549 = vector.shape_cast %548 : vector<1x1x7x512xf32> to vector<7x512xf32>
    %550 = arith.mulf %549, %1 : vector<7x512xf32>
    %cst_249 = arith.constant dense<0.000000e+00> : vector<512xf32>
    %551 = vector.multi_reduction <add>, %550, %cst_249 [0] : vector<7x512xf32> to vector<512xf32>
    %552 = arith.addf %551, %5 : vector<512xf32>
    %c42 = arith.constant 42 : index
    %c0_250 = arith.constant 0 : index
    %553 = vector.load %arg7[%c42, %c0_250] : memref<128x512xf32, #tpu.memory_space<vmem>>, vector<1x512xf32>
    %554 = vector.shape_cast %553 : vector<1x512xf32> to vector<512xf32>
    %555 = vector.shape_cast %552 : vector<512xf32> to vector<1x512xf32>
    tpu.vector_store %arg7[%c42, %c0_250], %555 {strides = array<i32>} : memref<128x512xf32, #tpu.memory_space<vmem>>, vector<1x512xf32>,
    %556 = vector.extract_strided_slice %3 {offsets = [2, 0], sizes = [1, 512], strides = [1, 1]} : vector<7x512xf32> to vector<1x512xf32>
    %557 = vector.shape_cast %556 : vector<1x512xf32> to vector<512xf32>
    %558 = vector.shape_cast %557 : vector<512xf32> to vector<1x512xf32>
    %559 = vector.broadcast %558 : vector<1x512xf32> to vector<7x512xf32>
    %560 = arith.mulf %549, %559 : vector<7x512xf32>
    %561 = arith.addf %547, %560 : vector<7x512xf32>
    %c5_251 = arith.constant 5 : index
    %c3_252 = arith.constant 3 : index
    %c0_253 = arith.constant 0 : index
    %c0_254 = arith.constant 0 : index
    %562 = vector.load %arg5[%c5_251, %c3_252, %c0_253, %c0_254] : memref<8x7x7x512xf32, #tpu.memory_space<vmem>>, vector<1x1x7x512xf32>
    %563 = vector.shape_cast %562 : vector<1x1x7x512xf32> to vector<7x512xf32>
    %564 = arith.mulf %563, %1 : vector<7x512xf32>
    %cst_255 = arith.constant dense<0.000000e+00> : vector<512xf32>
    %565 = vector.multi_reduction <add>, %564, %cst_255 [0] : vector<7x512xf32> to vector<512xf32>
    %566 = arith.addf %565, %5 : vector<512xf32>
    %c43 = arith.constant 43 : index
    %c0_256 = arith.constant 0 : index
    %567 = vector.load %arg7[%c43, %c0_256] : memref<128x512xf32, #tpu.memory_space<vmem>>, vector<1x512xf32>
    %568 = vector.shape_cast %567 : vector<1x512xf32> to vector<512xf32>
    %569 = vector.shape_cast %566 : vector<512xf32> to vector<1x512xf32>
    tpu.vector_store %arg7[%c43, %c0_256], %569 {strides = array<i32>} : memref<128x512xf32, #tpu.memory_space<vmem>>, vector<1x512xf32>,
    %570 = vector.extract_strided_slice %3 {offsets = [3, 0], sizes = [1, 512], strides = [1, 1]} : vector<7x512xf32> to vector<1x512xf32>
    %571 = vector.shape_cast %570 : vector<1x512xf32> to vector<512xf32>
    %572 = vector.shape_cast %571 : vector<512xf32> to vector<1x512xf32>
    %573 = vector.broadcast %572 : vector<1x512xf32> to vector<7x512xf32>
    %574 = arith.mulf %563, %573 : vector<7x512xf32>
    %575 = arith.addf %561, %574 : vector<7x512xf32>
    %c5_257 = arith.constant 5 : index
    %c4_258 = arith.constant 4 : index
    %c0_259 = arith.constant 0 : index
    %c0_260 = arith.constant 0 : index
    %576 = vector.load %arg5[%c5_257, %c4_258, %c0_259, %c0_260] : memref<8x7x7x512xf32, #tpu.memory_space<vmem>>, vector<1x1x7x512xf32>
    %577 = vector.shape_cast %576 : vector<1x1x7x512xf32> to vector<7x512xf32>
    %578 = arith.mulf %577, %1 : vector<7x512xf32>
    %cst_261 = arith.constant dense<0.000000e+00> : vector<512xf32>
    %579 = vector.multi_reduction <add>, %578, %cst_261 [0] : vector<7x512xf32> to vector<512xf32>
    %580 = arith.addf %579, %5 : vector<512xf32>
    %c44 = arith.constant 44 : index
    %c0_262 = arith.constant 0 : index
    %581 = vector.load %arg7[%c44, %c0_262] : memref<128x512xf32, #tpu.memory_space<vmem>>, vector<1x512xf32>
    %582 = vector.shape_cast %581 : vector<1x512xf32> to vector<512xf32>
    %583 = vector.shape_cast %580 : vector<512xf32> to vector<1x512xf32>
    tpu.vector_store %arg7[%c44, %c0_262], %583 {strides = array<i32>} : memref<128x512xf32, #tpu.memory_space<vmem>>, vector<1x512xf32>,
    %584 = vector.extract_strided_slice %3 {offsets = [4, 0], sizes = [1, 512], strides = [1, 1]} : vector<7x512xf32> to vector<1x512xf32>
    %585 = vector.shape_cast %584 : vector<1x512xf32> to vector<512xf32>
    %586 = vector.shape_cast %585 : vector<512xf32> to vector<1x512xf32>
    %587 = vector.broadcast %586 : vector<1x512xf32> to vector<7x512xf32>
    %588 = arith.mulf %577, %587 : vector<7x512xf32>
    %589 = arith.addf %575, %588 : vector<7x512xf32>
    %c5_263 = arith.constant 5 : index
    %c5_264 = arith.constant 5 : index
    %c0_265 = arith.constant 0 : index
    %c0_266 = arith.constant 0 : index
    %590 = vector.load %arg5[%c5_263, %c5_264, %c0_265, %c0_266] : memref<8x7x7x512xf32, #tpu.memory_space<vmem>>, vector<1x1x7x512xf32>
    %591 = vector.shape_cast %590 : vector<1x1x7x512xf32> to vector<7x512xf32>
    %592 = arith.mulf %591, %1 : vector<7x512xf32>
    %cst_267 = arith.constant dense<0.000000e+00> : vector<512xf32>
    %593 = vector.multi_reduction <add>, %592, %cst_267 [0] : vector<7x512xf32> to vector<512xf32>
    %594 = arith.addf %593, %5 : vector<512xf32>
    %c45 = arith.constant 45 : index
    %c0_268 = arith.constant 0 : index
    %595 = vector.load %arg7[%c45, %c0_268] : memref<128x512xf32, #tpu.memory_space<vmem>>, vector<1x512xf32>
    %596 = vector.shape_cast %595 : vector<1x512xf32> to vector<512xf32>
    %597 = vector.shape_cast %594 : vector<512xf32> to vector<1x512xf32>
    tpu.vector_store %arg7[%c45, %c0_268], %597 {strides = array<i32>} : memref<128x512xf32, #tpu.memory_space<vmem>>, vector<1x512xf32>,
    %598 = vector.extract_strided_slice %3 {offsets = [5, 0], sizes = [1, 512], strides = [1, 1]} : vector<7x512xf32> to vector<1x512xf32>
    %599 = vector.shape_cast %598 : vector<1x512xf32> to vector<512xf32>
    %600 = vector.shape_cast %599 : vector<512xf32> to vector<1x512xf32>
    %601 = vector.broadcast %600 : vector<1x512xf32> to vector<7x512xf32>
    %602 = arith.mulf %591, %601 : vector<7x512xf32>
    %603 = arith.addf %589, %602 : vector<7x512xf32>
    %c5_269 = arith.constant 5 : index
    %c6_270 = arith.constant 6 : index
    %c0_271 = arith.constant 0 : index
    %c0_272 = arith.constant 0 : index
    %604 = vector.load %arg5[%c5_269, %c6_270, %c0_271, %c0_272] : memref<8x7x7x512xf32, #tpu.memory_space<vmem>>, vector<1x1x7x512xf32>
    %605 = vector.shape_cast %604 : vector<1x1x7x512xf32> to vector<7x512xf32>
    %606 = arith.mulf %605, %1 : vector<7x512xf32>
    %cst_273 = arith.constant dense<0.000000e+00> : vector<512xf32>
    %607 = vector.multi_reduction <add>, %606, %cst_273 [0] : vector<7x512xf32> to vector<512xf32>
    %608 = arith.addf %607, %5 : vector<512xf32>
    %c46 = arith.constant 46 : index
    %c0_274 = arith.constant 0 : index
    %609 = vector.load %arg7[%c46, %c0_274] : memref<128x512xf32, #tpu.memory_space<vmem>>, vector<1x512xf32>
    %610 = vector.shape_cast %609 : vector<1x512xf32> to vector<512xf32>
    %611 = vector.shape_cast %608 : vector<512xf32> to vector<1x512xf32>
    tpu.vector_store %arg7[%c46, %c0_274], %611 {strides = array<i32>} : memref<128x512xf32, #tpu.memory_space<vmem>>, vector<1x512xf32>,
    %612 = vector.extract_strided_slice %3 {offsets = [6, 0], sizes = [1, 512], strides = [1, 1]} : vector<7x512xf32> to vector<1x512xf32>
    %613 = vector.shape_cast %612 : vector<1x512xf32> to vector<512xf32>
    %614 = vector.shape_cast %613 : vector<512xf32> to vector<1x512xf32>
    %615 = vector.broadcast %614 : vector<1x512xf32> to vector<7x512xf32>
    %616 = arith.mulf %605, %615 : vector<7x512xf32>
    %617 = arith.addf %603, %616 : vector<7x512xf32>
    %618 = vector.shape_cast %7 : vector<512xf32> to vector<1x512xf32>
    %619 = vector.broadcast %618 : vector<1x512xf32> to vector<7x512xf32>
    %620 = arith.addf %617, %619 : vector<7x512xf32>
    %c104 = arith.constant 104 : index
    %c0_275 = arith.constant 0 : index
    %621 = vector.load %arg7[%c104, %c0_275] : memref<128x512xf32, #tpu.memory_space<vmem>>, vector<7x512xf32>
    tpu.vector_store %arg7[%c104, %c0_275], %620 {strides = array<i32>} : memref<128x512xf32, #tpu.memory_space<vmem>>, vector<7x512xf32>,
    %c6_276 = arith.constant 6 : index
    %c0_277 = arith.constant 0 : index
    %c0_278 = arith.constant 0 : index
    %c0_279 = arith.constant 0 : index
    %622 = vector.load %arg5[%c6_276, %c0_277, %c0_278, %c0_279] : memref<8x7x7x512xf32, #tpu.memory_space<vmem>>, vector<1x1x7x512xf32>
    %623 = vector.shape_cast %622 : vector<1x1x7x512xf32> to vector<7x512xf32>
    %624 = arith.mulf %623, %1 : vector<7x512xf32>
    %cst_280 = arith.constant dense<0.000000e+00> : vector<512xf32>
    %625 = vector.multi_reduction <add>, %624, %cst_280 [0] : vector<7x512xf32> to vector<512xf32>
    %626 = arith.addf %625, %5 : vector<512xf32>
    %c48 = arith.constant 48 : index
    %c0_281 = arith.constant 0 : index
    %627 = vector.load %arg7[%c48, %c0_281] : memref<128x512xf32, #tpu.memory_space<vmem>>, vector<1x512xf32>
    %628 = vector.shape_cast %627 : vector<1x512xf32> to vector<512xf32>
    %629 = vector.shape_cast %626 : vector<512xf32> to vector<1x512xf32>
    tpu.vector_store %arg7[%c48, %c0_281], %629 {strides = array<i32>} : memref<128x512xf32, #tpu.memory_space<vmem>>, vector<1x512xf32>,
    %630 = vector.extract_strided_slice %3 {offsets = [0, 0], sizes = [1, 512], strides = [1, 1]} : vector<7x512xf32> to vector<1x512xf32>
    %631 = vector.shape_cast %630 : vector<1x512xf32> to vector<512xf32>
    %632 = vector.shape_cast %631 : vector<512xf32> to vector<1x512xf32>
    %633 = vector.broadcast %632 : vector<1x512xf32> to vector<7x512xf32>
    %634 = arith.mulf %623, %633 : vector<7x512xf32>
    %c6_282 = arith.constant 6 : index
    %c1_283 = arith.constant 1 : index
    %c0_284 = arith.constant 0 : index
    %c0_285 = arith.constant 0 : index
    %635 = vector.load %arg5[%c6_282, %c1_283, %c0_284, %c0_285] : memref<8x7x7x512xf32, #tpu.memory_space<vmem>>, vector<1x1x7x512xf32>
    %636 = vector.shape_cast %635 : vector<1x1x7x512xf32> to vector<7x512xf32>
    %637 = arith.mulf %636, %1 : vector<7x512xf32>
    %cst_286 = arith.constant dense<0.000000e+00> : vector<512xf32>
    %638 = vector.multi_reduction <add>, %637, %cst_286 [0] : vector<7x512xf32> to vector<512xf32>
    %639 = arith.addf %638, %5 : vector<512xf32>
    %c49 = arith.constant 49 : index
    %c0_287 = arith.constant 0 : index
    %640 = vector.load %arg7[%c49, %c0_287] : memref<128x512xf32, #tpu.memory_space<vmem>>, vector<1x512xf32>
    %641 = vector.shape_cast %640 : vector<1x512xf32> to vector<512xf32>
    %642 = vector.shape_cast %639 : vector<512xf32> to vector<1x512xf32>
    tpu.vector_store %arg7[%c49, %c0_287], %642 {strides = array<i32>} : memref<128x512xf32, #tpu.memory_space<vmem>>, vector<1x512xf32>,
    %643 = vector.extract_strided_slice %3 {offsets = [1, 0], sizes = [1, 512], strides = [1, 1]} : vector<7x512xf32> to vector<1x512xf32>
    %644 = vector.shape_cast %643 : vector<1x512xf32> to vector<512xf32>
    %645 = vector.shape_cast %644 : vector<512xf32> to vector<1x512xf32>
    %646 = vector.broadcast %645 : vector<1x512xf32> to vector<7x512xf32>
    %647 = arith.mulf %636, %646 : vector<7x512xf32>
    %648 = arith.addf %634, %647 : vector<7x512xf32>
    %c6_288 = arith.constant 6 : index
    %c2_289 = arith.constant 2 : index
    %c0_290 = arith.constant 0 : index
    %c0_291 = arith.constant 0 : index
    %649 = vector.load %arg5[%c6_288, %c2_289, %c0_290, %c0_291] : memref<8x7x7x512xf32, #tpu.memory_space<vmem>>, vector<1x1x7x512xf32>
    %650 = vector.shape_cast %649 : vector<1x1x7x512xf32> to vector<7x512xf32>
    %651 = arith.mulf %650, %1 : vector<7x512xf32>
    %cst_292 = arith.constant dense<0.000000e+00> : vector<512xf32>
    %652 = vector.multi_reduction <add>, %651, %cst_292 [0] : vector<7x512xf32> to vector<512xf32>
    %653 = arith.addf %652, %5 : vector<512xf32>
    %c50 = arith.constant 50 : index
    %c0_293 = arith.constant 0 : index
    %654 = vector.load %arg7[%c50, %c0_293] : memref<128x512xf32, #tpu.memory_space<vmem>>, vector<1x512xf32>
    %655 = vector.shape_cast %654 : vector<1x512xf32> to vector<512xf32>
    %656 = vector.shape_cast %653 : vector<512xf32> to vector<1x512xf32>
    tpu.vector_store %arg7[%c50, %c0_293], %656 {strides = array<i32>} : memref<128x512xf32, #tpu.memory_space<vmem>>, vector<1x512xf32>,
    %657 = vector.extract_strided_slice %3 {offsets = [2, 0], sizes = [1, 512], strides = [1, 1]} : vector<7x512xf32> to vector<1x512xf32>
    %658 = vector.shape_cast %657 : vector<1x512xf32> to vector<512xf32>
    %659 = vector.shape_cast %658 : vector<512xf32> to vector<1x512xf32>
    %660 = vector.broadcast %659 : vector<1x512xf32> to vector<7x512xf32>
    %661 = arith.mulf %650, %660 : vector<7x512xf32>
    %662 = arith.addf %648, %661 : vector<7x512xf32>
    %c6_294 = arith.constant 6 : index
    %c3_295 = arith.constant 3 : index
    %c0_296 = arith.constant 0 : index
    %c0_297 = arith.constant 0 : index
    %663 = vector.load %arg5[%c6_294, %c3_295, %c0_296, %c0_297] : memref<8x7x7x512xf32, #tpu.memory_space<vmem>>, vector<1x1x7x512xf32>
    %664 = vector.shape_cast %663 : vector<1x1x7x512xf32> to vector<7x512xf32>
    %665 = arith.mulf %664, %1 : vector<7x512xf32>
    %cst_298 = arith.constant dense<0.000000e+00> : vector<512xf32>
    %666 = vector.multi_reduction <add>, %665, %cst_298 [0] : vector<7x512xf32> to vector<512xf32>
    %667 = arith.addf %666, %5 : vector<512xf32>
    %c51 = arith.constant 51 : index
    %c0_299 = arith.constant 0 : index
    %668 = vector.load %arg7[%c51, %c0_299] : memref<128x512xf32, #tpu.memory_space<vmem>>, vector<1x512xf32>
    %669 = vector.shape_cast %668 : vector<1x512xf32> to vector<512xf32>
    %670 = vector.shape_cast %667 : vector<512xf32> to vector<1x512xf32>
    tpu.vector_store %arg7[%c51, %c0_299], %670 {strides = array<i32>} : memref<128x512xf32, #tpu.memory_space<vmem>>, vector<1x512xf32>,
    %671 = vector.extract_strided_slice %3 {offsets = [3, 0], sizes = [1, 512], strides = [1, 1]} : vector<7x512xf32> to vector<1x512xf32>
    %672 = vector.shape_cast %671 : vector<1x512xf32> to vector<512xf32>
    %673 = vector.shape_cast %672 : vector<512xf32> to vector<1x512xf32>
    %674 = vector.broadcast %673 : vector<1x512xf32> to vector<7x512xf32>
    %675 = arith.mulf %664, %674 : vector<7x512xf32>
    %676 = arith.addf %662, %675 : vector<7x512xf32>
    %c6_300 = arith.constant 6 : index
    %c4_301 = arith.constant 4 : index
    %c0_302 = arith.constant 0 : index
    %c0_303 = arith.constant 0 : index
    %677 = vector.load %arg5[%c6_300, %c4_301, %c0_302, %c0_303] : memref<8x7x7x512xf32, #tpu.memory_space<vmem>>, vector<1x1x7x512xf32>
    %678 = vector.shape_cast %677 : vector<1x1x7x512xf32> to vector<7x512xf32>
    %679 = arith.mulf %678, %1 : vector<7x512xf32>
    %cst_304 = arith.constant dense<0.000000e+00> : vector<512xf32>
    %680 = vector.multi_reduction <add>, %679, %cst_304 [0] : vector<7x512xf32> to vector<512xf32>
    %681 = arith.addf %680, %5 : vector<512xf32>
    %c52 = arith.constant 52 : index
    %c0_305 = arith.constant 0 : index
    %682 = vector.load %arg7[%c52, %c0_305] : memref<128x512xf32, #tpu.memory_space<vmem>>, vector<1x512xf32>
    %683 = vector.shape_cast %682 : vector<1x512xf32> to vector<512xf32>
    %684 = vector.shape_cast %681 : vector<512xf32> to vector<1x512xf32>
    tpu.vector_store %arg7[%c52, %c0_305], %684 {strides = array<i32>} : memref<128x512xf32, #tpu.memory_space<vmem>>, vector<1x512xf32>,
    %685 = vector.extract_strided_slice %3 {offsets = [4, 0], sizes = [1, 512], strides = [1, 1]} : vector<7x512xf32> to vector<1x512xf32>
    %686 = vector.shape_cast %685 : vector<1x512xf32> to vector<512xf32>
    %687 = vector.shape_cast %686 : vector<512xf32> to vector<1x512xf32>
    %688 = vector.broadcast %687 : vector<1x512xf32> to vector<7x512xf32>
    %689 = arith.mulf %678, %688 : vector<7x512xf32>
    %690 = arith.addf %676, %689 : vector<7x512xf32>
    %c6_306 = arith.constant 6 : index
    %c5_307 = arith.constant 5 : index
    %c0_308 = arith.constant 0 : index
    %c0_309 = arith.constant 0 : index
    %691 = vector.load %arg5[%c6_306, %c5_307, %c0_308, %c0_309] : memref<8x7x7x512xf32, #tpu.memory_space<vmem>>, vector<1x1x7x512xf32>
    %692 = vector.shape_cast %691 : vector<1x1x7x512xf32> to vector<7x512xf32>
    %693 = arith.mulf %692, %1 : vector<7x512xf32>
    %cst_310 = arith.constant dense<0.000000e+00> : vector<512xf32>
    %694 = vector.multi_reduction <add>, %693, %cst_310 [0] : vector<7x512xf32> to vector<512xf32>
    %695 = arith.addf %694, %5 : vector<512xf32>
    %c53 = arith.constant 53 : index
    %c0_311 = arith.constant 0 : index
    %696 = vector.load %arg7[%c53, %c0_311] : memref<128x512xf32, #tpu.memory_space<vmem>>, vector<1x512xf32>
    %697 = vector.shape_cast %696 : vector<1x512xf32> to vector<512xf32>
    %698 = vector.shape_cast %695 : vector<512xf32> to vector<1x512xf32>
    tpu.vector_store %arg7[%c53, %c0_311], %698 {strides = array<i32>} : memref<128x512xf32, #tpu.memory_space<vmem>>, vector<1x512xf32>,
    %699 = vector.extract_strided_slice %3 {offsets = [5, 0], sizes = [1, 512], strides = [1, 1]} : vector<7x512xf32> to vector<1x512xf32>
    %700 = vector.shape_cast %699 : vector<1x512xf32> to vector<512xf32>
    %701 = vector.shape_cast %700 : vector<512xf32> to vector<1x512xf32>
    %702 = vector.broadcast %701 : vector<1x512xf32> to vector<7x512xf32>
    %703 = arith.mulf %692, %702 : vector<7x512xf32>
    %704 = arith.addf %690, %703 : vector<7x512xf32>
    %c6_312 = arith.constant 6 : index
    %c6_313 = arith.constant 6 : index
    %c0_314 = arith.constant 0 : index
    %c0_315 = arith.constant 0 : index
    %705 = vector.load %arg5[%c6_312, %c6_313, %c0_314, %c0_315] : memref<8x7x7x512xf32, #tpu.memory_space<vmem>>, vector<1x1x7x512xf32>
    %706 = vector.shape_cast %705 : vector<1x1x7x512xf32> to vector<7x512xf32>
    %707 = arith.mulf %706, %1 : vector<7x512xf32>
    %cst_316 = arith.constant dense<0.000000e+00> : vector<512xf32>
    %708 = vector.multi_reduction <add>, %707, %cst_316 [0] : vector<7x512xf32> to vector<512xf32>
    %709 = arith.addf %708, %5 : vector<512xf32>
    %c54 = arith.constant 54 : index
    %c0_317 = arith.constant 0 : index
    %710 = vector.load %arg7[%c54, %c0_317] : memref<128x512xf32, #tpu.memory_space<vmem>>, vector<1x512xf32>
    %711 = vector.shape_cast %710 : vector<1x512xf32> to vector<512xf32>
    %712 = vector.shape_cast %709 : vector<512xf32> to vector<1x512xf32>
    tpu.vector_store %arg7[%c54, %c0_317], %712 {strides = array<i32>} : memref<128x512xf32, #tpu.memory_space<vmem>>, vector<1x512xf32>,
    %713 = vector.extract_strided_slice %3 {offsets = [6, 0], sizes = [1, 512], strides = [1, 1]} : vector<7x512xf32> to vector<1x512xf32>
    %714 = vector.shape_cast %713 : vector<1x512xf32> to vector<512xf32>
    %715 = vector.shape_cast %714 : vector<512xf32> to vector<1x512xf32>
    %716 = vector.broadcast %715 : vector<1x512xf32> to vector<7x512xf32>
    %717 = arith.mulf %706, %716 : vector<7x512xf32>
    %718 = arith.addf %704, %717 : vector<7x512xf32>
    %719 = vector.shape_cast %7 : vector<512xf32> to vector<1x512xf32>
    %720 = vector.broadcast %719 : vector<1x512xf32> to vector<7x512xf32>
    %721 = arith.addf %718, %720 : vector<7x512xf32>
    %c112 = arith.constant 112 : index
    %c0_318 = arith.constant 0 : index
    %722 = vector.load %arg7[%c112, %c0_318] : memref<128x512xf32, #tpu.memory_space<vmem>>, vector<7x512xf32>
    tpu.vector_store %arg7[%c112, %c0_318], %721 {strides = array<i32>} : memref<128x512xf32, #tpu.memory_space<vmem>>, vector<7x512xf32>,
    %c7 = arith.constant 7 : index
    %c0_319 = arith.constant 0 : index
    %c0_320 = arith.constant 0 : index
    %c0_321 = arith.constant 0 : index
    %723 = vector.load %arg5[%c7, %c0_319, %c0_320, %c0_321] : memref<8x7x7x512xf32, #tpu.memory_space<vmem>>, vector<1x1x7x512xf32>
    %724 = vector.shape_cast %723 : vector<1x1x7x512xf32> to vector<7x512xf32>
    %725 = arith.mulf %724, %1 : vector<7x512xf32>
    %cst_322 = arith.constant dense<0.000000e+00> : vector<512xf32>
    %726 = vector.multi_reduction <add>, %725, %cst_322 [0] : vector<7x512xf32> to vector<512xf32>
    %727 = arith.addf %726, %5 : vector<512xf32>
    %c56 = arith.constant 56 : index
    %c0_323 = arith.constant 0 : index
    %728 = vector.load %arg7[%c56, %c0_323] : memref<128x512xf32, #tpu.memory_space<vmem>>, vector<1x512xf32>
    %729 = vector.shape_cast %728 : vector<1x512xf32> to vector<512xf32>
    %730 = vector.shape_cast %727 : vector<512xf32> to vector<1x512xf32>
    tpu.vector_store %arg7[%c56, %c0_323], %730 {strides = array<i32>} : memref<128x512xf32, #tpu.memory_space<vmem>>, vector<1x512xf32>,
    %731 = vector.extract_strided_slice %3 {offsets = [0, 0], sizes = [1, 512], strides = [1, 1]} : vector<7x512xf32> to vector<1x512xf32>
    %732 = vector.shape_cast %731 : vector<1x512xf32> to vector<512xf32>
    %733 = vector.shape_cast %732 : vector<512xf32> to vector<1x512xf32>
    %734 = vector.broadcast %733 : vector<1x512xf32> to vector<7x512xf32>
    %735 = arith.mulf %724, %734 : vector<7x512xf32>
    %c7_324 = arith.constant 7 : index
    %c1_325 = arith.constant 1 : index
    %c0_326 = arith.constant 0 : index
    %c0_327 = arith.constant 0 : index
    %736 = vector.load %arg5[%c7_324, %c1_325, %c0_326, %c0_327] : memref<8x7x7x512xf32, #tpu.memory_space<vmem>>, vector<1x1x7x512xf32>
    %737 = vector.shape_cast %736 : vector<1x1x7x512xf32> to vector<7x512xf32>
    %738 = arith.mulf %737, %1 : vector<7x512xf32>
    %cst_328 = arith.constant dense<0.000000e+00> : vector<512xf32>
    %739 = vector.multi_reduction <add>, %738, %cst_328 [0] : vector<7x512xf32> to vector<512xf32>
    %740 = arith.addf %739, %5 : vector<512xf32>
    %c57 = arith.constant 57 : index
    %c0_329 = arith.constant 0 : index
    %741 = vector.load %arg7[%c57, %c0_329] : memref<128x512xf32, #tpu.memory_space<vmem>>, vector<1x512xf32>
    %742 = vector.shape_cast %741 : vector<1x512xf32> to vector<512xf32>
    %743 = vector.shape_cast %740 : vector<512xf32> to vector<1x512xf32>
    tpu.vector_store %arg7[%c57, %c0_329], %743 {strides = array<i32>} : memref<128x512xf32, #tpu.memory_space<vmem>>, vector<1x512xf32>,
    %744 = vector.extract_strided_slice %3 {offsets = [1, 0], sizes = [1, 512], strides = [1, 1]} : vector<7x512xf32> to vector<1x512xf32>
    %745 = vector.shape_cast %744 : vector<1x512xf32> to vector<512xf32>
    %746 = vector.shape_cast %745 : vector<512xf32> to vector<1x512xf32>
    %747 = vector.broadcast %746 : vector<1x512xf32> to vector<7x512xf32>
    %748 = arith.mulf %737, %747 : vector<7x512xf32>
    %749 = arith.addf %735, %748 : vector<7x512xf32>
    %c7_330 = arith.constant 7 : index
    %c2_331 = arith.constant 2 : index
    %c0_332 = arith.constant 0 : index
    %c0_333 = arith.constant 0 : index
    %750 = vector.load %arg5[%c7_330, %c2_331, %c0_332, %c0_333] : memref<8x7x7x512xf32, #tpu.memory_space<vmem>>, vector<1x1x7x512xf32>
    %751 = vector.shape_cast %750 : vector<1x1x7x512xf32> to vector<7x512xf32>
    %752 = arith.mulf %751, %1 : vector<7x512xf32>
    %cst_334 = arith.constant dense<0.000000e+00> : vector<512xf32>
    %753 = vector.multi_reduction <add>, %752, %cst_334 [0] : vector<7x512xf32> to vector<512xf32>
    %754 = arith.addf %753, %5 : vector<512xf32>
    %c58 = arith.constant 58 : index
    %c0_335 = arith.constant 0 : index
    %755 = vector.load %arg7[%c58, %c0_335] : memref<128x512xf32, #tpu.memory_space<vmem>>, vector<1x512xf32>
    %756 = vector.shape_cast %755 : vector<1x512xf32> to vector<512xf32>
    %757 = vector.shape_cast %754 : vector<512xf32> to vector<1x512xf32>
    tpu.vector_store %arg7[%c58, %c0_335], %757 {strides = array<i32>} : memref<128x512xf32, #tpu.memory_space<vmem>>, vector<1x512xf32>,
    %758 = vector.extract_strided_slice %3 {offsets = [2, 0], sizes = [1, 512], strides = [1, 1]} : vector<7x512xf32> to vector<1x512xf32>
    %759 = vector.shape_cast %758 : vector<1x512xf32> to vector<512xf32>
    %760 = vector.shape_cast %759 : vector<512xf32> to vector<1x512xf32>
    %761 = vector.broadcast %760 : vector<1x512xf32> to vector<7x512xf32>
    %762 = arith.mulf %751, %761 : vector<7x512xf32>
    %763 = arith.addf %749, %762 : vector<7x512xf32>
    %c7_336 = arith.constant 7 : index
    %c3_337 = arith.constant 3 : index
    %c0_338 = arith.constant 0 : index
    %c0_339 = arith.constant 0 : index
    %764 = vector.load %arg5[%c7_336, %c3_337, %c0_338, %c0_339] : memref<8x7x7x512xf32, #tpu.memory_space<vmem>>, vector<1x1x7x512xf32>
    %765 = vector.shape_cast %764 : vector<1x1x7x512xf32> to vector<7x512xf32>
    %766 = arith.mulf %765, %1 : vector<7x512xf32>
    %cst_340 = arith.constant dense<0.000000e+00> : vector<512xf32>
    %767 = vector.multi_reduction <add>, %766, %cst_340 [0] : vector<7x512xf32> to vector<512xf32>
    %768 = arith.addf %767, %5 : vector<512xf32>
    %c59 = arith.constant 59 : index
    %c0_341 = arith.constant 0 : index
    %769 = vector.load %arg7[%c59, %c0_341] : memref<128x512xf32, #tpu.memory_space<vmem>>, vector<1x512xf32>
    %770 = vector.shape_cast %769 : vector<1x512xf32> to vector<512xf32>
    %771 = vector.shape_cast %768 : vector<512xf32> to vector<1x512xf32>
    tpu.vector_store %arg7[%c59, %c0_341], %771 {strides = array<i32>} : memref<128x512xf32, #tpu.memory_space<vmem>>, vector<1x512xf32>,
    %772 = vector.extract_strided_slice %3 {offsets = [3, 0], sizes = [1, 512], strides = [1, 1]} : vector<7x512xf32> to vector<1x512xf32>
    %773 = vector.shape_cast %772 : vector<1x512xf32> to vector<512xf32>
    %774 = vector.shape_cast %773 : vector<512xf32> to vector<1x512xf32>
    %775 = vector.broadcast %774 : vector<1x512xf32> to vector<7x512xf32>
    %776 = arith.mulf %765, %775 : vector<7x512xf32>
    %777 = arith.addf %763, %776 : vector<7x512xf32>
    %c7_342 = arith.constant 7 : index
    %c4_343 = arith.constant 4 : index
    %c0_344 = arith.constant 0 : index
    %c0_345 = arith.constant 0 : index
    %778 = vector.load %arg5[%c7_342, %c4_343, %c0_344, %c0_345] : memref<8x7x7x512xf32, #tpu.memory_space<vmem>>, vector<1x1x7x512xf32>
    %779 = vector.shape_cast %778 : vector<1x1x7x512xf32> to vector<7x512xf32>
    %780 = arith.mulf %779, %1 : vector<7x512xf32>
    %cst_346 = arith.constant dense<0.000000e+00> : vector<512xf32>
    %781 = vector.multi_reduction <add>, %780, %cst_346 [0] : vector<7x512xf32> to vector<512xf32>
    %782 = arith.addf %781, %5 : vector<512xf32>
    %c60 = arith.constant 60 : index
    %c0_347 = arith.constant 0 : index
    %783 = vector.load %arg7[%c60, %c0_347] : memref<128x512xf32, #tpu.memory_space<vmem>>, vector<1x512xf32>
    %784 = vector.shape_cast %783 : vector<1x512xf32> to vector<512xf32>
    %785 = vector.shape_cast %782 : vector<512xf32> to vector<1x512xf32>
    tpu.vector_store %arg7[%c60, %c0_347], %785 {strides = array<i32>} : memref<128x512xf32, #tpu.memory_space<vmem>>, vector<1x512xf32>,
    %786 = vector.extract_strided_slice %3 {offsets = [4, 0], sizes = [1, 512], strides = [1, 1]} : vector<7x512xf32> to vector<1x512xf32>
    %787 = vector.shape_cast %786 : vector<1x512xf32> to vector<512xf32>
    %788 = vector.shape_cast %787 : vector<512xf32> to vector<1x512xf32>
    %789 = vector.broadcast %788 : vector<1x512xf32> to vector<7x512xf32>
    %790 = arith.mulf %779, %789 : vector<7x512xf32>
    %791 = arith.addf %777, %790 : vector<7x512xf32>
    %c7_348 = arith.constant 7 : index
    %c5_349 = arith.constant 5 : index
    %c0_350 = arith.constant 0 : index
    %c0_351 = arith.constant 0 : index
    %792 = vector.load %arg5[%c7_348, %c5_349, %c0_350, %c0_351] : memref<8x7x7x512xf32, #tpu.memory_space<vmem>>, vector<1x1x7x512xf32>
    %793 = vector.shape_cast %792 : vector<1x1x7x512xf32> to vector<7x512xf32>
    %794 = arith.mulf %793, %1 : vector<7x512xf32>
    %cst_352 = arith.constant dense<0.000000e+00> : vector<512xf32>
    %795 = vector.multi_reduction <add>, %794, %cst_352 [0] : vector<7x512xf32> to vector<512xf32>
    %796 = arith.addf %795, %5 : vector<512xf32>
    %c61 = arith.constant 61 : index
    %c0_353 = arith.constant 0 : index
    %797 = vector.load %arg7[%c61, %c0_353] : memref<128x512xf32, #tpu.memory_space<vmem>>, vector<1x512xf32>
    %798 = vector.shape_cast %797 : vector<1x512xf32> to vector<512xf32>
    %799 = vector.shape_cast %796 : vector<512xf32> to vector<1x512xf32>
    tpu.vector_store %arg7[%c61, %c0_353], %799 {strides = array<i32>} : memref<128x512xf32, #tpu.memory_space<vmem>>, vector<1x512xf32>,
    %800 = vector.extract_strided_slice %3 {offsets = [5, 0], sizes = [1, 512], strides = [1, 1]} : vector<7x512xf32> to vector<1x512xf32>
    %801 = vector.shape_cast %800 : vector<1x512xf32> to vector<512xf32>
    %802 = vector.shape_cast %801 : vector<512xf32> to vector<1x512xf32>
    %803 = vector.broadcast %802 : vector<1x512xf32> to vector<7x512xf32>
    %804 = arith.mulf %793, %803 : vector<7x512xf32>
    %805 = arith.addf %791, %804 : vector<7x512xf32>
    %c7_354 = arith.constant 7 : index
    %c6_355 = arith.constant 6 : index
    %c0_356 = arith.constant 0 : index
    %c0_357 = arith.constant 0 : index
    %806 = vector.load %arg5[%c7_354, %c6_355, %c0_356, %c0_357] : memref<8x7x7x512xf32, #tpu.memory_space<vmem>>, vector<1x1x7x512xf32>
    %807 = vector.shape_cast %806 : vector<1x1x7x512xf32> to vector<7x512xf32>
    %808 = arith.mulf %807, %1 : vector<7x512xf32>
    %cst_358 = arith.constant dense<0.000000e+00> : vector<512xf32>
    %809 = vector.multi_reduction <add>, %808, %cst_358 [0] : vector<7x512xf32> to vector<512xf32>
    %810 = arith.addf %809, %5 : vector<512xf32>
    %c62 = arith.constant 62 : index
    %c0_359 = arith.constant 0 : index
    %811 = vector.load %arg7[%c62, %c0_359] : memref<128x512xf32, #tpu.memory_space<vmem>>, vector<1x512xf32>
    %812 = vector.shape_cast %811 : vector<1x512xf32> to vector<512xf32>
    %813 = vector.shape_cast %810 : vector<512xf32> to vector<1x512xf32>
    tpu.vector_store %arg7[%c62, %c0_359], %813 {strides = array<i32>} : memref<128x512xf32, #tpu.memory_space<vmem>>, vector<1x512xf32>,
    %814 = vector.extract_strided_slice %3 {offsets = [6, 0], sizes = [1, 512], strides = [1, 1]} : vector<7x512xf32> to vector<1x512xf32>
    %815 = vector.shape_cast %814 : vector<1x512xf32> to vector<512xf32>
    %816 = vector.shape_cast %815 : vector<512xf32> to vector<1x512xf32>
    %817 = vector.broadcast %816 : vector<1x512xf32> to vector<7x512xf32>
    %818 = arith.mulf %807, %817 : vector<7x512xf32>
    %819 = arith.addf %805, %818 : vector<7x512xf32>
    %820 = vector.shape_cast %7 : vector<512xf32> to vector<1x512xf32>
    %821 = vector.broadcast %820 : vector<1x512xf32> to vector<7x512xf32>
    %822 = arith.addf %819, %821 : vector<7x512xf32>
    %c120 = arith.constant 120 : index
    %c0_360 = arith.constant 0 : index
    %823 = vector.load %arg7[%c120, %c0_360] : memref<128x512xf32, #tpu.memory_space<vmem>>, vector<7x512xf32>
    tpu.vector_store %arg7[%c120, %c0_360], %822 {strides = array<i32>} : memref<128x512xf32, #tpu.memory_space<vmem>>, vector<7x512xf32>,
    %c0_361 = arith.constant 0 : index
    %c0_362 = arith.constant 0 : index
    %824 = vector.load %arg7[%c0_361, %c0_362] : memref<128x512xf32, #tpu.memory_space<vmem>>, vector<128x512xf32>
    %c0_363 = arith.constant 0 : index
    %c0_364 = arith.constant 0 : index
    %825 = vector.load %arg3[%c0_363, %c0_364] : memref<512x16xf32, #tpu.memory_space<vmem>>, vector<512x16xf32>
    %cst_365 = arith.constant dense<0.000000e+00> : vector<128x16xf32>
    %826 = tpu.matmul %824, %825, %cst_365 {dimension_numbers = #tpu.dot_dimension_numbers<[1], [0], [0], [1], [0, 0, 1, 1], [], []>} : vector<128x512xf32>, vector<512x16xf32>, vector<128x16xf32> -> vector<128x16xf32>
    %827 = vector.shape_cast %13 : vector<16xf32> to vector<1x16xf32>
    %828 = vector.broadcast %827 : vector<1x16xf32> to vector<128x16xf32>
    %829 = arith.addf %826, %828 : vector<128x16xf32>
    %cst_366 = arith.constant 3.000000e+00 : f32
    %830 = vector.broadcast %cst_366 : f32 to vector<128x16xf32>
    %831 = arith.addf %829, %830 : vector<128x16xf32>
    %cst_367 = arith.constant 0.000000e+00 : f32
    %cst_368 = arith.constant 6.000000e+00 : f32
    %832 = vector.broadcast %cst_367 : f32 to vector<128x16xf32>
    %833 = arith.maximumf %832, %831 : vector<128x16xf32>
    %834 = vector.broadcast %cst_368 : f32 to vector<128x16xf32>
    %835 = arith.minimumf %834, %833 : vector<128x16xf32>
    %cst_369 = arith.constant 0.166666672 : f32
    %836 = vector.broadcast %cst_369 : f32 to vector<128x16xf32>
    %837 = arith.mulf %835, %836 : vector<128x16xf32>
    %838 = arith.mulf %829, %837 : vector<128x16xf32>
    %839 = vector.extract_strided_slice %838 {offsets = [0, 0], sizes = [64, 16], strides = [1, 1]} : vector<128x16xf32> to vector<64x16xf32>
    %c0_370 = arith.constant 0 : index
    %c0_371 = arith.constant 0 : index
    %c0_372 = arith.constant 0 : index
    %840 = vector.load %arg4[%c0_370, %c0_371, %c0_372] : memref<2x16x512xf32, #tpu.memory_space<vmem>>, vector<1x16x512xf32>
    %841 = vector.shape_cast %840 : vector<1x16x512xf32> to vector<16x512xf32>
    %cst_373 = arith.constant dense<0.000000e+00> : vector<64x512xf32>
    %842 = tpu.matmul %839, %841, %cst_373 {dimension_numbers = #tpu.dot_dimension_numbers<[1], [0], [0], [1], [0, 0, 1, 1], [], []>} : vector<64x16xf32>, vector<16x512xf32>, vector<64x512xf32> -> vector<64x512xf32>
    %843 = vector.shape_cast %9 : vector<512xf32> to vector<1x512xf32>
    %844 = vector.broadcast %843 : vector<1x512xf32> to vector<64x512xf32>
    %845 = arith.addf %842, %844 : vector<64x512xf32>
    %846 = arith.negf %845 : vector<64x512xf32>
    %847 = math.exp %846 : vector<64x512xf32>
    %cst_374 = arith.constant 1.000000e+00 : f32
    %848 = vector.broadcast %cst_374 : f32 to vector<64x512xf32>
    %849 = arith.addf %848, %847 : vector<64x512xf32>
    %850 = arith.divf %848, %849 : vector<64x512xf32>
    %851 = vector.extract_strided_slice %838 {offsets = [64, 0], sizes = [64, 16], strides = [1, 1]} : vector<128x16xf32> to vector<64x16xf32>
    %c1_375 = arith.constant 1 : index
    %c0_376 = arith.constant 0 : index
    %c0_377 = arith.constant 0 : index
    %852 = vector.load %arg4[%c1_375, %c0_376, %c0_377] : memref<2x16x512xf32, #tpu.memory_space<vmem>>, vector<1x16x512xf32>
    %853 = vector.shape_cast %852 : vector<1x16x512xf32> to vector<16x512xf32>
    %cst_378 = arith.constant dense<0.000000e+00> : vector<64x512xf32>
    %854 = tpu.matmul %851, %853, %cst_378 {dimension_numbers = #tpu.dot_dimension_numbers<[1], [0], [0], [1], [0, 0, 1, 1], [], []>} : vector<64x16xf32>, vector<16x512xf32>, vector<64x512xf32> -> vector<64x512xf32>
    %855 = vector.shape_cast %11 : vector<512xf32> to vector<1x512xf32>
    %856 = vector.broadcast %855 : vector<1x512xf32> to vector<64x512xf32>
    %857 = arith.addf %854, %856 : vector<64x512xf32>
    %858 = arith.negf %857 : vector<64x512xf32>
    %859 = math.exp %858 : vector<64x512xf32>
    %cst_379 = arith.constant 1.000000e+00 : f32
    %860 = vector.broadcast %cst_379 : f32 to vector<64x512xf32>
    %861 = arith.addf %860, %859 : vector<64x512xf32>
    %862 = arith.divf %860, %861 : vector<64x512xf32>
    %863 = vector.extract_strided_slice %850 {offsets = [0, 0], sizes = [7, 512], strides = [1, 1]} : vector<64x512xf32> to vector<7x512xf32>
    %864 = vector.extract_strided_slice %862 {offsets = [0, 0], sizes = [7, 512], strides = [1, 1]} : vector<64x512xf32> to vector<7x512xf32>
    %865 = vector.shape_cast %863 : vector<7x512xf32> to vector<7x1x512xf32>
    %866 = vector.shape_cast %864 : vector<7x512xf32> to vector<1x7x512xf32>
    %867 = vector.broadcast %865 : vector<7x1x512xf32> to vector<7x7x512xf32>
    %868 = vector.broadcast %866 : vector<1x7x512xf32> to vector<7x7x512xf32>
    %869 = arith.mulf %867, %868 : vector<7x7x512xf32>
    %c0_380 = arith.constant 0 : index
    %c0_381 = arith.constant 0 : index
    %c0_382 = arith.constant 0 : index
    %c0_383 = arith.constant 0 : index
    %870 = vector.load %arg6[%c0_380, %c0_381, %c0_382, %c0_383] : memref<8x7x7x512xf32, #tpu.memory_space<vmem>>, vector<1x7x7x512xf32>
    %871 = vector.shape_cast %870 : vector<1x7x7x512xf32> to vector<7x7x512xf32>
    %872 = vector.shape_cast %869 : vector<7x7x512xf32> to vector<1x7x7x512xf32>
    tpu.vector_store %arg6[%c0_380, %c0_381, %c0_382, %c0_383], %872 {strides = array<i32>} : memref<8x7x7x512xf32, #tpu.memory_space<vmem>>, vector<1x7x7x512xf32>,
    %873 = vector.extract_strided_slice %850 {offsets = [8, 0], sizes = [7, 512], strides = [1, 1]} : vector<64x512xf32> to vector<7x512xf32>
    %874 = vector.extract_strided_slice %862 {offsets = [8, 0], sizes = [7, 512], strides = [1, 1]} : vector<64x512xf32> to vector<7x512xf32>
    %875 = vector.shape_cast %873 : vector<7x512xf32> to vector<7x1x512xf32>
    %876 = vector.shape_cast %874 : vector<7x512xf32> to vector<1x7x512xf32>
    %877 = vector.broadcast %875 : vector<7x1x512xf32> to vector<7x7x512xf32>
    %878 = vector.broadcast %876 : vector<1x7x512xf32> to vector<7x7x512xf32>
    %879 = arith.mulf %877, %878 : vector<7x7x512xf32>
    %c1_384 = arith.constant 1 : index
    %c0_385 = arith.constant 0 : index
    %c0_386 = arith.constant 0 : index
    %c0_387 = arith.constant 0 : index
    %880 = vector.load %arg6[%c1_384, %c0_385, %c0_386, %c0_387] : memref<8x7x7x512xf32, #tpu.memory_space<vmem>>, vector<1x7x7x512xf32>
    %881 = vector.shape_cast %880 : vector<1x7x7x512xf32> to vector<7x7x512xf32>
    %882 = vector.shape_cast %879 : vector<7x7x512xf32> to vector<1x7x7x512xf32>
    tpu.vector_store %arg6[%c1_384, %c0_385, %c0_386, %c0_387], %882 {strides = array<i32>} : memref<8x7x7x512xf32, #tpu.memory_space<vmem>>, vector<1x7x7x512xf32>,
    %883 = vector.extract_strided_slice %850 {offsets = [16, 0], sizes = [7, 512], strides = [1, 1]} : vector<64x512xf32> to vector<7x512xf32>
    %884 = vector.extract_strided_slice %862 {offsets = [16, 0], sizes = [7, 512], strides = [1, 1]} : vector<64x512xf32> to vector<7x512xf32>
    %885 = vector.shape_cast %883 : vector<7x512xf32> to vector<7x1x512xf32>
    %886 = vector.shape_cast %884 : vector<7x512xf32> to vector<1x7x512xf32>
    %887 = vector.broadcast %885 : vector<7x1x512xf32> to vector<7x7x512xf32>
    %888 = vector.broadcast %886 : vector<1x7x512xf32> to vector<7x7x512xf32>
    %889 = arith.mulf %887, %888 : vector<7x7x512xf32>
    %c2_388 = arith.constant 2 : index
    %c0_389 = arith.constant 0 : index
    %c0_390 = arith.constant 0 : index
    %c0_391 = arith.constant 0 : index
    %890 = vector.load %arg6[%c2_388, %c0_389, %c0_390, %c0_391] : memref<8x7x7x512xf32, #tpu.memory_space<vmem>>, vector<1x7x7x512xf32>
    %891 = vector.shape_cast %890 : vector<1x7x7x512xf32> to vector<7x7x512xf32>
    %892 = vector.shape_cast %889 : vector<7x7x512xf32> to vector<1x7x7x512xf32>
    tpu.vector_store %arg6[%c2_388, %c0_389, %c0_390, %c0_391], %892 {strides = array<i32>} : memref<8x7x7x512xf32, #tpu.memory_space<vmem>>, vector<1x7x7x512xf32>,
    %893 = vector.extract_strided_slice %850 {offsets = [24, 0], sizes = [7, 512], strides = [1, 1]} : vector<64x512xf32> to vector<7x512xf32>
    %894 = vector.extract_strided_slice %862 {offsets = [24, 0], sizes = [7, 512], strides = [1, 1]} : vector<64x512xf32> to vector<7x512xf32>
    %895 = vector.shape_cast %893 : vector<7x512xf32> to vector<7x1x512xf32>
    %896 = vector.shape_cast %894 : vector<7x512xf32> to vector<1x7x512xf32>
    %897 = vector.broadcast %895 : vector<7x1x512xf32> to vector<7x7x512xf32>
    %898 = vector.broadcast %896 : vector<1x7x512xf32> to vector<7x7x512xf32>
    %899 = arith.mulf %897, %898 : vector<7x7x512xf32>
    %c3_392 = arith.constant 3 : index
    %c0_393 = arith.constant 0 : index
    %c0_394 = arith.constant 0 : index
    %c0_395 = arith.constant 0 : index
    %900 = vector.load %arg6[%c3_392, %c0_393, %c0_394, %c0_395] : memref<8x7x7x512xf32, #tpu.memory_space<vmem>>, vector<1x7x7x512xf32>
    %901 = vector.shape_cast %900 : vector<1x7x7x512xf32> to vector<7x7x512xf32>
    %902 = vector.shape_cast %899 : vector<7x7x512xf32> to vector<1x7x7x512xf32>
    tpu.vector_store %arg6[%c3_392, %c0_393, %c0_394, %c0_395], %902 {strides = array<i32>} : memref<8x7x7x512xf32, #tpu.memory_space<vmem>>, vector<1x7x7x512xf32>,
    %903 = vector.extract_strided_slice %850 {offsets = [32, 0], sizes = [7, 512], strides = [1, 1]} : vector<64x512xf32> to vector<7x512xf32>
    %904 = vector.extract_strided_slice %862 {offsets = [32, 0], sizes = [7, 512], strides = [1, 1]} : vector<64x512xf32> to vector<7x512xf32>
    %905 = vector.shape_cast %903 : vector<7x512xf32> to vector<7x1x512xf32>
    %906 = vector.shape_cast %904 : vector<7x512xf32> to vector<1x7x512xf32>
    %907 = vector.broadcast %905 : vector<7x1x512xf32> to vector<7x7x512xf32>
    %908 = vector.broadcast %906 : vector<1x7x512xf32> to vector<7x7x512xf32>
    %909 = arith.mulf %907, %908 : vector<7x7x512xf32>
    %c4_396 = arith.constant 4 : index
    %c0_397 = arith.constant 0 : index
    %c0_398 = arith.constant 0 : index
    %c0_399 = arith.constant 0 : index
    %910 = vector.load %arg6[%c4_396, %c0_397, %c0_398, %c0_399] : memref<8x7x7x512xf32, #tpu.memory_space<vmem>>, vector<1x7x7x512xf32>
    %911 = vector.shape_cast %910 : vector<1x7x7x512xf32> to vector<7x7x512xf32>
    %912 = vector.shape_cast %909 : vector<7x7x512xf32> to vector<1x7x7x512xf32>
    tpu.vector_store %arg6[%c4_396, %c0_397, %c0_398, %c0_399], %912 {strides = array<i32>} : memref<8x7x7x512xf32, #tpu.memory_space<vmem>>, vector<1x7x7x512xf32>,
    %913 = vector.extract_strided_slice %850 {offsets = [40, 0], sizes = [7, 512], strides = [1, 1]} : vector<64x512xf32> to vector<7x512xf32>
    %914 = vector.extract_strided_slice %862 {offsets = [40, 0], sizes = [7, 512], strides = [1, 1]} : vector<64x512xf32> to vector<7x512xf32>
    %915 = vector.shape_cast %913 : vector<7x512xf32> to vector<7x1x512xf32>
    %916 = vector.shape_cast %914 : vector<7x512xf32> to vector<1x7x512xf32>
    %917 = vector.broadcast %915 : vector<7x1x512xf32> to vector<7x7x512xf32>
    %918 = vector.broadcast %916 : vector<1x7x512xf32> to vector<7x7x512xf32>
    %919 = arith.mulf %917, %918 : vector<7x7x512xf32>
    %c5_400 = arith.constant 5 : index
    %c0_401 = arith.constant 0 : index
    %c0_402 = arith.constant 0 : index
    %c0_403 = arith.constant 0 : index
    %920 = vector.load %arg6[%c5_400, %c0_401, %c0_402, %c0_403] : memref<8x7x7x512xf32, #tpu.memory_space<vmem>>, vector<1x7x7x512xf32>
    %921 = vector.shape_cast %920 : vector<1x7x7x512xf32> to vector<7x7x512xf32>
    %922 = vector.shape_cast %919 : vector<7x7x512xf32> to vector<1x7x7x512xf32>
    tpu.vector_store %arg6[%c5_400, %c0_401, %c0_402, %c0_403], %922 {strides = array<i32>} : memref<8x7x7x512xf32, #tpu.memory_space<vmem>>, vector<1x7x7x512xf32>,
    %923 = vector.extract_strided_slice %850 {offsets = [48, 0], sizes = [7, 512], strides = [1, 1]} : vector<64x512xf32> to vector<7x512xf32>
    %924 = vector.extract_strided_slice %862 {offsets = [48, 0], sizes = [7, 512], strides = [1, 1]} : vector<64x512xf32> to vector<7x512xf32>
    %925 = vector.shape_cast %923 : vector<7x512xf32> to vector<7x1x512xf32>
    %926 = vector.shape_cast %924 : vector<7x512xf32> to vector<1x7x512xf32>
    %927 = vector.broadcast %925 : vector<7x1x512xf32> to vector<7x7x512xf32>
    %928 = vector.broadcast %926 : vector<1x7x512xf32> to vector<7x7x512xf32>
    %929 = arith.mulf %927, %928 : vector<7x7x512xf32>
    %c6_404 = arith.constant 6 : index
    %c0_405 = arith.constant 0 : index
    %c0_406 = arith.constant 0 : index
    %c0_407 = arith.constant 0 : index
    %930 = vector.load %arg6[%c6_404, %c0_405, %c0_406, %c0_407] : memref<8x7x7x512xf32, #tpu.memory_space<vmem>>, vector<1x7x7x512xf32>
    %931 = vector.shape_cast %930 : vector<1x7x7x512xf32> to vector<7x7x512xf32>
    %932 = vector.shape_cast %929 : vector<7x7x512xf32> to vector<1x7x7x512xf32>
    tpu.vector_store %arg6[%c6_404, %c0_405, %c0_406, %c0_407], %932 {strides = array<i32>} : memref<8x7x7x512xf32, #tpu.memory_space<vmem>>, vector<1x7x7x512xf32>,
    %933 = vector.extract_strided_slice %850 {offsets = [56, 0], sizes = [7, 512], strides = [1, 1]} : vector<64x512xf32> to vector<7x512xf32>
    %934 = vector.extract_strided_slice %862 {offsets = [56, 0], sizes = [7, 512], strides = [1, 1]} : vector<64x512xf32> to vector<7x512xf32>
    %935 = vector.shape_cast %933 : vector<7x512xf32> to vector<7x1x512xf32>
    %936 = vector.shape_cast %934 : vector<7x512xf32> to vector<1x7x512xf32>
    %937 = vector.broadcast %935 : vector<7x1x512xf32> to vector<7x7x512xf32>
    %938 = vector.broadcast %936 : vector<1x7x512xf32> to vector<7x7x512xf32>
    %939 = arith.mulf %937, %938 : vector<7x7x512xf32>
    %c7_408 = arith.constant 7 : index
    %c0_409 = arith.constant 0 : index
    %c0_410 = arith.constant 0 : index
    %c0_411 = arith.constant 0 : index
    %940 = vector.load %arg6[%c7_408, %c0_409, %c0_410, %c0_411] : memref<8x7x7x512xf32, #tpu.memory_space<vmem>>, vector<1x7x7x512xf32>
    %941 = vector.shape_cast %940 : vector<1x7x7x512xf32> to vector<7x7x512xf32>
    %942 = vector.shape_cast %939 : vector<7x7x512xf32> to vector<1x7x7x512xf32>
    tpu.vector_store %arg6[%c7_408, %c0_409, %c0_410, %c0_411], %942 {strides = array<i32>} : memref<8x7x7x512xf32, #tpu.memory_space<vmem>>, vector<1x7x7x512xf32>,
    return
  }
  func.func @transform_0(%arg0: i32) -> (i32, i32, i32) {
    %c0_i32 = arith.constant 0 : i32
    %c0_i32_0 = arith.constant 0 : i32
    %c0_i32_1 = arith.constant 0 : i32
    %c0_i32_2 = arith.constant 0 : i32
    return %c0_i32, %c0_i32_0, %c0_i32_1 : i32, i32, i32
  }
  func.func @transform_1(%arg0: i32) -> (i32, i32) {
    %c0_i32 = arith.constant 0 : i32
    %c0_i32_0 = arith.constant 0 : i32
    %c0_i32_1 = arith.constant 0 : i32
    return %c0_i32, %c0_i32_0 : i32, i32
  }
  func.func @transform_2(%arg0: i32) -> (i32, i32) {
    %c0_i32 = arith.constant 0 : i32
    %c0_i32_0 = arith.constant 0 : i32
    %c0_i32_1 = arith.constant 0 : i32
    return %c0_i32, %c0_i32_0 : i32, i32
  }
  func.func @transform_3(%arg0: i32) -> (i32, i32, i32) {
    %c0_i32 = arith.constant 0 : i32
    %c0_i32_0 = arith.constant 0 : i32
    %c0_i32_1 = arith.constant 0 : i32
    %c0_i32_2 = arith.constant 0 : i32
    return %c0_i32, %c0_i32_0, %c0_i32_1 : i32, i32, i32
  }
  func.func @transform_4(%arg0: i32) -> (i32, i32, i32, i32) {
    %c0_i32 = arith.constant 0 : i32
    %c0_i32_0 = arith.constant 0 : i32
    %c0_i32_1 = arith.constant 0 : i32
    %c0_i32_2 = arith.constant 0 : i32
    return %arg0, %c0_i32, %c0_i32_0, %c0_i32_1 : i32, i32, i32, i32
  }
  func.func @transform_5(%arg0: i32) -> (i32, i32, i32, i32) {
    %c0_i32 = arith.constant 0 : i32
    %c0_i32_0 = arith.constant 0 : i32
    %c0_i32_1 = arith.constant 0 : i32
    %c0_i32_2 = arith.constant 0 : i32
    return %arg0, %c0_i32, %c0_i32_0, %c0_i32_1 : i32, i32, i32, i32
  }
}

</mosaic_0001>

<llo_original>
// kernel: _lambda_.1
$region0: #{_lambda_.1}
  #allocation0 [shape = 'u32[]', space=smem, size = 0x4, offset = 0x4, fixed_abs, tag = 'smem constant byte address 0x4 - core index']
  #allocation1 [shape = 'u32[144,128]{1,0:T(1,128)}', space=vmem, size = 0x12000, scoped, tag = 'internal scratch']
  #allocation2 [shape = 'f32[128,512]{1,0:T(8,128)}', space=vmem, size = 0x40000, scoped, tag = 'scratch operand']
  %s0 = inlined_call_operand.vmem [shape: f32[2,8,512], index: 0, kind: input, shape index: {}]
  %s1 = inlined_call_operand.vmem [shape: f32[8,512], index: 1, kind: input, shape index: {}]
  %s2 = inlined_call_operand.vmem [shape: f32[512,16], index: 2, kind: input, shape index: {}]
  %s3 = inlined_call_operand.vmem [shape: f32[2,16,512], index: 3, kind: input, shape index: {}]
  %s4 = inlined_call_operand.vmem [shape: f32[16,7,7,512], index: 4, kind: input, shape index: {}]
  %s5 = inlined_call_operand.vmem [shape: f32[16,7,7,512], index: 5, kind: output, shape index: {}]
  %s6 = sld [smem:[#allocation0]]
  $region53: #{_lambda_.1} parent=0
    _
  %s8 = ssub.s32 1, %s6
  %s9 = scalar_select 0, %s8, %s6
  loop: start=0, step=1, limit=4
  $region2: #{_lambda_.1} parent=0 // loop_pre_header
    _
  $region3: #{_lambda_.1} parent=0 // loop_header
    %s11 = sphi 0, %s15
    %p12 = scmp.ge.s32.totalorder %s11, 4
    %s19 = sphi 0, %s19
    %s21 = sphi 0, %s19
    %s22 = sphi 0, %s21
    %s36 = sphi 0, %s22
    %s40 = sphi 0, %s40
    %s42 = sphi 0, %s40
    %s43 = sphi 0, %s42
    %s57 = sphi 0, %s43
    %s61 = sphi 0, %s61
    %s63 = sphi 0, %s61
    %s64 = sphi 0, %s63
    %s78 = sphi 0, %s64
    %s82 = sphi 0, %s82
    %s84 = sphi 0, %s82
    %s85 = sphi 0, %s84
    %s99 = sphi 0, %s85
    %s105 = sphi 0, %s107
    %s108 = sphi 0, %s105
    %s109 = sphi 0, %s108
    %s125 = sphi 0, %s109
    %s131 = sphi 0, %s133
    %s134 = sphi 0, %s131
    %s135 = sphi 0, %s134
    %s151 = sphi 0, %s135
  $region4: #{_lambda_.1} parent=0 // loop_header_branch
    %14 = sbr.rel (%p12) target = $region8
  $region5: #{_lambda_.1} parent=0 // loop_body
    %s16 = ssub.s32 %s11, 1
    %s17 = ssub.s32 %s11, 2
    %s18 = sadd.s32 %s11, 1
    %s20 = sadd.s32 %s19, 1
    %p23 = scmp.eq.s32.totalorder %s11, 1
    %p24 = scmp.ne.s32.totalorder %s19, %s21
    %p25 = scmp.eq.s32.totalorder %s11, 0
    %p26 = por %p24, %p25
    %p27 = scmp.ne.s32.totalorder %s19, %s21
    %p28 = scmp.eq.s32.totalorder %s16, 1
    %p29 = por %p27, %p28
    %p30 = scmp.ne.s32.totalorder %s21, %s22
    %p31 = scmp.eq.s32.totalorder %s16, 0
    %p32 = por %p30, %p31
    %p33 = scmp.ne.s32.totalorder %s21, %s22
    %p34 = scmp.eq.s32.totalorder %s17, 1
    %p35 = por %p33, %p34
    %p37 = scmp.ne.s32.totalorder %s22, %s36
    %p38 = scmp.eq.s32.totalorder %s17, 0
    %p39 = por %p37, %p38
    %s41 = sadd.s32 %s40, 1
    %p44 = scmp.eq.s32.totalorder %s11, 1
    %p45 = scmp.ne.s32.totalorder %s40, %s42
    %p46 = scmp.eq.s32.totalorder %s11, 0
    %p47 = por %p45, %p46
    %p48 = scmp.ne.s32.totalorder %s40, %s42
    %p49 = scmp.eq.s32.totalorder %s16, 1
    %p50 = por %p48, %p49
    %p51 = scmp.ne.s32.totalorder %s42, %s43
    %p52 = scmp.eq.s32.totalorder %s16, 0
    %p53 = por %p51, %p52
    %p54 = scmp.ne.s32.totalorder %s42, %s43
    %p55 = scmp.eq.s32.totalorder %s17, 1
    %p56 = por %p54, %p55
    %p58 = scmp.ne.s32.totalorder %s43, %s57
    %p59 = scmp.eq.s32.totalorder %s17, 0
    %p60 = por %p58, %p59
    %s62 = sadd.s32 %s61, 1
    %p65 = scmp.eq.s32.totalorder %s11, 1
    %p66 = scmp.ne.s32.totalorder %s61, %s63
    %p67 = scmp.eq.s32.totalorder %s11, 0
    %p68 = por %p66, %p67
    %p69 = scmp.ne.s32.totalorder %s61, %s63
    %p70 = scmp.eq.s32.totalorder %s16, 1
    %p71 = por %p69, %p70
    %p72 = scmp.ne.s32.totalorder %s63, %s64
    %p73 = scmp.eq.s32.totalorder %s16, 0
    %p74 = por %p72, %p73
    %p75 = scmp.ne.s32.totalorder %s63, %s64
    %p76 = scmp.eq.s32.totalorder %s17, 1
    %p77 = por %p75, %p76
    %p79 = scmp.ne.s32.totalorder %s64, %s78
    %p80 = scmp.eq.s32.totalorder %s17, 0
    %p81 = por %p79, %p80
    %s83 = sadd.s32 %s82, 1
    %p86 = scmp.eq.s32.totalorder %s11, 1
    %p87 = scmp.ne.s32.totalorder %s82, %s84
    %p88 = scmp.eq.s32.totalorder %s11, 0
    %p89 = por %p87, %p88
    %p90 = scmp.ne.s32.totalorder %s82, %s84
    %p91 = scmp.eq.s32.totalorder %s16, 1
    %p92 = por %p90, %p91
    %p93 = scmp.ne.s32.totalorder %s84, %s85
    %p94 = scmp.eq.s32.totalorder %s16, 0
    %p95 = por %p93, %p94
    %p96 = scmp.ne.s32.totalorder %s84, %s85
    %p97 = scmp.eq.s32.totalorder %s17, 1
    %p98 = por %p96, %p97
    %p100 = scmp.ne.s32.totalorder %s85, %s99
    %p101 = scmp.eq.s32.totalorder %s17, 0
    %p102 = por %p100, %p101
    %s103 = ssub.s32 %s11, %s18
    %p104 = scmp.eq.s32.totalorder %s103, 0
    %s106 = sadd.s32 %s105, 1
    %s107 = scalar_select %p104, %s105, %s106
    %p110 = pneg %p104
    %p111 = scmp.eq.s32.totalorder %s11, 1
    %p112 = por %p110, %p111
    %p113 = scmp.ne.s32.totalorder %s105, %s108
    %p114 = scmp.eq.s32.totalorder %s11, 0
    %p115 = por %p113, %p114
    %p116 = scmp.ne.s32.totalorder %s105, %s108
    %p117 = scmp.eq.s32.totalorder %s16, 1
    %p118 = por %p116, %p117
    %p119 = scmp.ne.s32.totalorder %s108, %s109
    %p120 = scmp.eq.s32.totalorder %s16, 0
    %p121 = por %p119, %p120
    %p122 = scmp.ne.s32.totalorder %s108, %s109
    %p123 = scmp.eq.s32.totalorder %s17, 1
    %p124 = por %p122, %p123
    %p126 = scmp.ne.s32.totalorder %s109, %s125
    %p127 = scmp.eq.s32.totalorder %s17, 0
    %p128 = por %p126, %p127
    %s129 = ssub.s32 %s11, %s18
    %p130 = scmp.eq.s32.totalorder %s129, 0
    %s132 = sadd.s32 %s131, 1
    %s133 = scalar_select %p130, %s131, %s132
    %p136 = pneg %p130
    %p137 = scmp.eq.s32.totalorder %s11, 1
    %p138 = por %p136, %p137
    %p139 = scmp.ne.s32.totalorder %s131, %s134
    %p140 = scmp.eq.s32.totalorder %s11, 0
    %p141 = por %p139, %p140
    %p142 = scmp.ne.s32.totalorder %s131, %s134
    %p143 = scmp.eq.s32.totalorder %s16, 1
    %p144 = por %p142, %p143
    %p145 = scmp.ne.s32.totalorder %s134, %s135
    %p146 = scmp.eq.s32.totalorder %s16, 0
    %p147 = por %p145, %p146
    %p148 = scmp.ne.s32.totalorder %s134, %s135
    %p149 = scmp.eq.s32.totalorder %s17, 1
    %p150 = por %p148, %p149
    %p152 = scmp.ne.s32.totalorder %s135, %s151
    %p153 = scmp.eq.s32.totalorder %s17, 0
    %p154 = por %p152, %p153
    %p155 = scmp.le.s32.totalorder 1, %s11
    %p156 = scmp.lt.s32.totalorder %s11, 3
    %p157 = pnand %p155, %p156
    %p158 = pneg %p157
    // Predicated region
    $region9: #{_lambda_.1} parent=5 // pred_check
      _
    $region10: #{_lambda_.1} parent=5 // pred_check_branch
      %160 = sbr.rel (%p157) target = $region12
    $region11: #{_lambda_.1} parent=5 // pred_region
      %s161 = ssub.s32 %s11, 1
      // Predicated region
      $region13: #{_lambda_.1} parent=11 // pred_check
        %p162 = pneg %p32
      $region14: #{_lambda_.1} parent=11 // pred_check_branch
        %164 = sbr.rel (%p162) target = $region16
      $region15: #{_lambda_.1} parent=11 // pred_region
        _
      $region16: #{_lambda_.1} parent=11 // pred_fallthru
        _
      // Predicated region
      $region17: #{_lambda_.1} parent=11 // pred_check
        %p165 = pneg %p53
      $region18: #{_lambda_.1} parent=11 // pred_check_branch
        %167 = sbr.rel (%p165) target = $region20
      $region19: #{_lambda_.1} parent=11 // pred_region
        _
      $region20: #{_lambda_.1} parent=11 // pred_fallthru
        _
      // Predicated region
      $region21: #{_lambda_.1} parent=11 // pred_check
        %p168 = pneg %p74
      $region22: #{_lambda_.1} parent=11 // pred_check_branch
        %170 = sbr.rel (%p168) target = $region24
      $region23: #{_lambda_.1} parent=11 // pred_region
        _
      $region24: #{_lambda_.1} parent=11 // pred_fallthru
        _
      // Predicated region
      $region25: #{_lambda_.1} parent=11 // pred_check
        %p171 = pneg %p95
      $region26: #{_lambda_.1} parent=11 // pred_check_branch
        %173 = sbr.rel (%p171) target = $region28
      $region27: #{_lambda_.1} parent=11 // pred_region
        _
      $region28: #{_lambda_.1} parent=11 // pred_fallthru
        _
    $region12: #{_lambda_.1} parent=5 // pred_fallthru
      _
    %p174 = scmp.lt.s32.totalorder %s11, 2
    // Predicated region
    $region29: #{_lambda_.1} parent=5 // pred_check
      %p175 = pneg %p174
    $region30: #{_lambda_.1} parent=5 // pred_check_branch
      %177 = sbr.rel (%p175) target = $region32
    $region31: #{_lambda_.1} parent=5 // pred_region
      // Predicated region
      $region33: #{_lambda_.1} parent=31 // pred_check
        %p178 = pneg %p115
      $region34: #{_lambda_.1} parent=31 // pred_check_branch
        %180 = sbr.rel (%p178) target = $region36
      $region35: #{_lambda_.1} parent=31 // pred_region
        %s181 = smul.u32 8, %s11
        %p182 = scmp.lt.s32.totalorder %s181, 15
        %s183 = scalar_select %p182, %s181, 15
        %s184 = smul.addr %s183, 28
        %s185 = smul.addr %s184, 8
        %s186 = scalar_lea.vmem %s4, %s185
        %s187 = smul.u32 8, %s11
      $region36: #{_lambda_.1} parent=31 // pred_fallthru
        _
    $region32: #{_lambda_.1} parent=5 // pred_fallthru
      _
    %p188 = scmp.le.s32.totalorder 1, %s11
    %p189 = scmp.lt.s32.totalorder %s11, 3
    %p190 = pnand %p188, %p189
    %p191 = pneg %p190
    // Predicated region
    $region37: #{_lambda_.1} parent=5 // pred_check
      _
    $region38: #{_lambda_.1} parent=5 // pred_check_branch
      %193 = sbr.rel (%p190) target = $region40
    $region39: #{_lambda_.1} parent=5 // pred_region
      %s194 = ssub.s32 %s11, 1
      %p195 = pneg %p32
      %p196 = pneg %p29
      %p197 = pneg %p53
      %p198 = pneg %p50
      %p199 = pneg %p74
      %p200 = pneg %p71
      %p201 = pneg %p95
      %p202 = pneg %p92
      %s203 = smul.u32 8, %s16
      %p204 = scmp.lt.s32.totalorder %s203, 15
      %s205 = scalar_select %p204, %s203, 15
      %s206 = smul.addr %s205, 28
      %s207 = smul.addr %s206, 8
      %s208 = scalar_lea.vmem %s4, %s207
      %p209 = pneg %p121
      %p210 = pneg %p118
      %p211 = pneg %p147
      %p212 = pneg %p144
      %s213 = smul.u32 8, %s16
      %p214 = scmp.lt.s32.totalorder %s213, 15
      %s215 = scalar_select %p214, %s213, 15
      %s216 = smul.addr %s215, 28
      %s217 = smul.addr %s216, 8
      %s218 = scalar_lea.vmem %s5, %s217
      %s219 = smul.u32 8, %s16
      %p220 = scmp.lt.s32.totalorder %s219, 15
      %s221 = scalar_select %p220, %s219, 15
      %s222 = smul.addr %s221, 28
      %s223 = smul.addr %s222, 8
      %s224 = scalar_lea.vmem %s4, %s223
      %s225 = smul.u32 8, %s16
      %s226 = smul.u32 8, %s16
      %p227 = scmp.lt.s32.totalorder %s226, 15
      %s228 = scalar_select %p227, %s226, 15
      %s229 = smul.addr %s228, 28
      %s230 = smul.addr %s229, 8
      %s231 = scalar_lea.vmem %s5, %s230
      %s232 = smul.u32 8, %s16
      %v233 = vld [vmem:[%s0] sm:$0x7f]
      %v234 = vld [vmem:[%s0 + $0x8] sm:$0x7f]
      %v235 = vld [vmem:[%s0 + $0x10] sm:$0x7f]
      %v236 = vld [vmem:[%s0 + $0x18] sm:$0x7f]
      %s237 = scalar_lea.vmem %s0, 32
      %v238 = vld [vmem:[%s237] sm:$0x7f]
      %v239 = vld [vmem:[%s237 + $0x8] sm:$0x7f]
      %v240 = vld [vmem:[%s237 + $0x10] sm:$0x7f]
      %v241 = vld [vmem:[%s237 + $0x18] sm:$0x7f]
      %v242 = vld [vmem:[%s1] ss:$8 sm:$0xf]
      %s243 = scalar_lea.vmem %s1, 1
      %v244 = vld [vmem:[%s243] ss:$8 sm:$0xf]
      %s245 = scalar_lea.vmem %s1, 2
      %v246 = vld [vmem:[%s245] ss:$8 sm:$0xf]
      %s247 = scalar_lea.vmem %s1, 3
      %v248 = vld [vmem:[%s247] ss:$8 sm:$0xf]
      %v249 = vld [vmem:[%s1 + $0x4] ss:$0 sm:$0xff]
      %250 = vst [vmem:[#allocation2] sm:$0xff] 0.0
      %251 = vst [vmem:[#allocation2 + $0x8] sm:$0xff] 0.0
      %252 = vst [vmem:[#allocation2 + $0x10] sm:$0xff] 0.0
      %253 = vst [vmem:[#allocation2 + $0x18] sm:$0xff] 0.0
      %254 = vst [vmem:[#allocation2 + $0x20] sm:$0xff] 0.0
      %255 = vst [vmem:[#allocation2 + $0x28] sm:$0xff] 0.0
      %256 = vst [vmem:[#allocation2 + $0x30] sm:$0xff] 0.0
      %257 = vst [vmem:[#allocation2 + $0x38] sm:$0xff] 0.0
      %258 = vst [vmem:[#allocation2 + $0x40] sm:$0xff] 0.0
      %259 = vst [vmem:[#allocation2 + $0x48] sm:$0xff] 0.0
      %260 = vst [vmem:[#allocation2 + $0x50] sm:$0xff] 0.0
      %261 = vst [vmem:[#allocation2 + $0x58] sm:$0xff] 0.0
      %262 = vst [vmem:[#allocation2 + $0x60] sm:$0xff] 0.0
      %263 = vst [vmem:[#allocation2 + $0x68] sm:$0xff] 0.0
      %264 = vst [vmem:[#allocation2 + $0x70] sm:$0xff] 0.0
      %265 = vst [vmem:[#allocation2 + $0x78] sm:$0xff] 0.0
      %266 = vst [vmem:[#allocation2 + $0x80] sm:$0xff] 0.0
      %267 = vst [vmem:[#allocation2 + $0x88] sm:$0xff] 0.0
      %268 = vst [vmem:[#allocation2 + $0x90] sm:$0xff] 0.0
      %269 = vst [vmem:[#allocation2 + $0x98] sm:$0xff] 0.0
      %270 = vst [vmem:[#allocation2 + $0xa0] sm:$0xff] 0.0
      %271 = vst [vmem:[#allocation2 + $0xa8] sm:$0xff] 0.0
      %272 = vst [vmem:[#allocation2 + $0xb0] sm:$0xff] 0.0
      %273 = vst [vmem:[#allocation2 + $0xb8] sm:$0xff] 0.0
      %274 = vst [vmem:[#allocation2 + $0xc0] sm:$0xff] 0.0
      %275 = vst [vmem:[#allocation2 + $0xc8] sm:$0xff] 0.0
      %276 = vst [vmem:[#allocation2 + $0xd0] sm:$0xff] 0.0
      %277 = vst [vmem:[#allocation2 + $0xd8] sm:$0xff] 0.0
      %278 = vst [vmem:[#allocation2 + $0xe0] sm:$0xff] 0.0
      %279 = vst [vmem:[#allocation2 + $0xe8] sm:$0xff] 0.0
      %280 = vst [vmem:[#allocation2 + $0xf0] sm:$0xff] 0.0
      %281 = vst [vmem:[#allocation2 + $0xf8] sm:$0xff] 0.0
      %282 = vst [vmem:[#allocation2 + $0x100] sm:$0xff] 0.0
      %283 = vst [vmem:[#allocation2 + $0x108] sm:$0xff] 0.0
      %284 = vst [vmem:[#allocation2 + $0x110] sm:$0xff] 0.0
      %285 = vst [vmem:[#allocation2 + $0x118] sm:$0xff] 0.0
      %286 = vst [vmem:[#allocation2 + $0x120] sm:$0xff] 0.0
      %287 = vst [vmem:[#allocation2 + $0x128] sm:$0xff] 0.0
      %288 = vst [vmem:[#allocation2 + $0x130] sm:$0xff] 0.0
      %289 = vst [vmem:[#allocation2 + $0x138] sm:$0xff] 0.0
      %290 = vst [vmem:[#allocation2 + $0x140] sm:$0xff] 0.0
      %291 = vst [vmem:[#allocation2 + $0x148] sm:$0xff] 0.0
      %292 = vst [vmem:[#allocation2 + $0x150] sm:$0xff] 0.0
      %293 = vst [vmem:[#allocation2 + $0x158] sm:$0xff] 0.0
      %294 = vst [vmem:[#allocation2 + $0x160] sm:$0xff] 0.0
      %295 = vst [vmem:[#allocation2 + $0x168] sm:$0xff] 0.0
      %296 = vst [vmem:[#allocation2 + $0x170] sm:$0xff] 0.0
      %297 = vst [vmem:[#allocation2 + $0x178] sm:$0xff] 0.0
      %298 = vst [vmem:[#allocation2 + $0x180] sm:$0xff] 0.0
      %299 = vst [vmem:[#allocation2 + $0x188] sm:$0xff] 0.0
      %300 = vst [vmem:[#allocation2 + $0x190] sm:$0xff] 0.0
      %301 = vst [vmem:[#allocation2 + $0x198] sm:$0xff] 0.0
      %302 = vst [vmem:[#allocation2 + $0x1a0] sm:$0xff] 0.0
      %303 = vst [vmem:[#allocation2 + $0x1a8] sm:$0xff] 0.0
      %304 = vst [vmem:[#allocation2 + $0x1b0] sm:$0xff] 0.0
      %305 = vst [vmem:[#allocation2 + $0x1b8] sm:$0xff] 0.0
      %306 = vst [vmem:[#allocation2 + $0x1c0] sm:$0xff] 0.0
      %307 = vst [vmem:[#allocation2 + $0x1c8] sm:$0xff] 0.0
      %308 = vst [vmem:[#allocation2 + $0x1d0] sm:$0xff] 0.0
      %309 = vst [vmem:[#allocation2 + $0x1d8] sm:$0xff] 0.0
      %310 = vst [vmem:[#allocation2 + $0x1e0] sm:$0xff] 0.0
      %311 = vst [vmem:[#allocation2 + $0x1e8] sm:$0xff] 0.0
      %312 = vst [vmem:[#allocation2 + $0x1f0] sm:$0xff] 0.0
      %313 = vst [vmem:[#allocation2 + $0x1f8] sm:$0xff] 0.0
      %v314 = vld [vmem:[%s224] sm:$0x7f]
      %v315 = vld [vmem:[%s224 + $0x8] sm:$0x7f]
      %v316 = vld [vmem:[%s224 + $0x10] sm:$0x7f]
      %v317 = vld [vmem:[%s224 + $0x18] sm:$0x7f]
      %v318 = vmul.f32 %v314, %v233
      %v319 = vmul.f32 %v315, %v234
      %v320 = vmul.f32 %v316, %v235
      %v321 = vmul.f32 %v317, %v236
      %vm322 = vcmask 1046528
      %v323 = vsel %vm322, %v318, 0.0
      %v324 = vrot.slane %v323, 4
      %v325 = vadd.f32 %v323, %v324
      %v326 = vrot.slane %v325, 2
      %v327 = vadd.f32 %v325, %v326
      %v328 = vrot.slane %v327, 1
      %v329 = vadd.f32 %v327, %v328
      %v330 = vsel %vm322, %v319, 0.0
      %v331 = vrot.slane %v330, 4
      %v332 = vadd.f32 %v330, %v331
      %v333 = vrot.slane %v332, 2
      %v334 = vadd.f32 %v332, %v333
      %v335 = vrot.slane %v334, 1
      %v336 = vadd.f32 %v334, %v335
      %v337 = vsel %vm322, %v320, 0.0
      %v338 = vrot.slane %v337, 4
      %v339 = vadd.f32 %v337, %v338
      %v340 = vrot.slane %v339, 2
      %v341 = vadd.f32 %v339, %v340
      %v342 = vrot.slane %v341, 1
      %v343 = vadd.f32 %v341, %v342
      %v344 = vsel %vm322, %v321, 0.0
      %v345 = vrot.slane %v344, 4
      %v346 = vadd.f32 %v344, %v345
      %v347 = vrot.slane %v346, 2
      %v348 = vadd.f32 %v346, %v347
      %v349 = vrot.slane %v348, 1
      %v350 = vadd.f32 %v348, %v349
      %v352 = vlaneseq
      %v353 = vshrl.u32 %v352, 7
      %v354 = vsub.s32 0, %v353
      %v355 = vrot.slane %v242, %v354
      %v356 = vlaneseq
      %v357 = vshrl.u32 %v356, 7
      %v358 = vsub.s32 1, %v357
      %v359 = vrot.slane %v242, %v358
      %v360 = vlaneseq
      %v361 = vshrl.u32 %v360, 7
      %v362 = vsub.s32 2, %v361
      %v363 = vrot.slane %v242, %v362
      %v364 = vlaneseq
      %v365 = vshrl.u32 %v364, 7
      %v366 = vsub.s32 3, %v365
      %v367 = vrot.slane %v242, %v366
      %v372 = vadd.f32 %v329, %v355
      %v373 = vadd.f32 %v336, %v359
      %v374 = vadd.f32 %v343, %v363
      %v375 = vadd.f32 %v350, %v367
      %v380 = vcombine.low %v372, %v373
      %v381 = vcombine.low %v374, %v375
      %v383 = vunpack.c.l.s4 1966171168
      %v384 = vunpack.c.0.s8 %v383
      %v385 = vlaneseq
      %v386 = vshrl.u32 %v385, 7
      %v387 = vsub.s32 %v384, %v386
      %v388 = vrot.slane %v380, %v387
      %v390 = vunpack.c.l.s4 1966171168
      %v391 = vunpack.c.0.s8 %v390
      %v392 = vlaneseq
      %v393 = vshrl.u32 %v392, 7
      %v394 = vsub.s32 %v391, %v393
      %v395 = vrot.slane %v381, %v394
      %v396 = vcombine.low %v388, %v395
      %v398 = vunpack.c.l.s4 1966171168
      %v399 = vunpack.c.0.s8 %v398
      %v400 = vlaneseq
      %v401 = vshrl.u32 %v400, 7
      %v402 = vsub.s32 %v399, %v401
      %v403 = vrot.slane %v396, %v402
      %v405 = vlaneseq
      %vm406 = vcmp.ge.s32.totalorder %v405, 0
      %vm407 = vcmp.lt.s32.totalorder %v405, 512
      %vm408 = vmand %vm406, %vm407
      %409 = vst.msk [vmem:[#allocation2] ss:$8 sm:$0xf] %vm408, %v403
      %410 = vst.msk [vmem:[#allocation2] ss:$8 sm:$0x0] %vm408, %v403
      %v411 = vlaneseq
      %v412 = vshrl.u32 %v411, 7
      %v413 = vsub.s32 0, %v412
      %v414 = vrot.slane %v238, %v413
      %v415 = vlaneseq
      %v416 = vshrl.u32 %v415, 7
      %v417 = vsub.s32 0, %v416
      %v418 = vrot.slane %v239, %v417
      %v419 = vlaneseq
      %v420 = vshrl.u32 %v419, 7
      %v421 = vsub.s32 0, %v420
      %v422 = vrot.slane %v240, %v421
      %v423 = vlaneseq
      %v424 = vshrl.u32 %v423, 7
      %v425 = vsub.s32 0, %v424
      %v426 = vrot.slane %v241, %v425
      %v427 = vmul.f32 %v314, %v414
      %v428 = vmul.f32 %v315, %v418
      %v429 = vmul.f32 %v316, %v422
      %v430 = vmul.f32 %v317, %v426
      %s431 = scalar_lea.vmem %s224, 32
      %v432 = vld [vmem:[%s431] sm:$0x7f]
      %v433 = vld [vmem:[%s431 + $0x8] sm:$0x7f]
      %v434 = vld [vmem:[%s431 + $0x10] sm:$0x7f]
      %v435 = vld [vmem:[%s431 + $0x18] sm:$0x7f]
      %v436 = vmul.f32 %v432, %v233
      %v437 = vmul.f32 %v433, %v234
      %v438 = vmul.f32 %v434, %v235
      %v439 = vmul.f32 %v435, %v236
      %v440 = vsel %vm322, %v436, 0.0
      %v441 = vrot.slane %v440, 4
      %v442 = vadd.f32 %v440, %v441
      %v443 = vrot.slane %v442, 2
      %v444 = vadd.f32 %v442, %v443
      %v445 = vrot.slane %v444, 1
      %v446 = vadd.f32 %v444, %v445
      %v447 = vsel %vm322, %v437, 0.0
      %v448 = vrot.slane %v447, 4
      %v449 = vadd.f32 %v447, %v448
      %v450 = vrot.slane %v449, 2
      %v451 = vadd.f32 %v449, %v450
      %v452 = vrot.slane %v451, 1
      %v453 = vadd.f32 %v451, %v452
      %v454 = vsel %vm322, %v438, 0.0
      %v455 = vrot.slane %v454, 4
      %v456 = vadd.f32 %v454, %v455
      %v457 = vrot.slane %v456, 2
      %v458 = vadd.f32 %v456, %v457
      %v459 = vrot.slane %v458, 1
      %v460 = vadd.f32 %v458, %v459
      %v461 = vsel %vm322, %v439, 0.0
      %v462 = vrot.slane %v461, 4
      %v463 = vadd.f32 %v461, %v462
      %v464 = vrot.slane %v463, 2
      %v465 = vadd.f32 %v463, %v464
      %v466 = vrot.slane %v465, 1
      %v467 = vadd.f32 %v465, %v466
      %v468 = vadd.f32 %v446, %v355
      %v469 = vadd.f32 %v453, %v359
      %v470 = vadd.f32 %v460, %v363
      %v471 = vadd.f32 %v467, %v367
      %v476 = vcombine.low %v468, %v469
      %v477 = vcombine.low %v470, %v471
      %v479 = vunpack.c.l.s4 1966171168
      %v480 = vunpack.c.0.s8 %v479
      %v481 = vlaneseq
      %v482 = vshrl.u32 %v481, 7
      %v483 = vsub.s32 %v480, %v482
      %v484 = vrot.slane %v476, %v483
      %v486 = vunpack.c.l.s4 1966171168
      %v487 = vunpack.c.0.s8 %v486
      %v488 = vlaneseq
      %v489 = vshrl.u32 %v488, 7
      %v490 = vsub.s32 %v487, %v489
      %v491 = vrot.slane %v477, %v490
      %v492 = vcombine.low %v484, %v491
      %v494 = vunpack.c.l.s4 1966171168
      %v495 = vunpack.c.0.s8 %v494
      %v496 = vlaneseq
      %v497 = vshrl.u32 %v496, 7
      %v498 = vsub.s32 %v495, %v497
      %v499 = vrot.slane %v492, %v498
      %s501 = scalar_lea.vmem [#allocation2], 1
      %502 = vst.msk [vmem:[%s501] ss:$8 sm:$0xf] %vm408, %v499
      %503 = vst.msk [vmem:[%s501] ss:$8 sm:$0x0] %vm408, %v499
      %v504 = vlaneseq
      %v505 = vshrl.u32 %v504, 7
      %v506 = vsub.s32 1, %v505
      %v507 = vrot.slane %v238, %v506
      %v508 = vlaneseq
      %v509 = vshrl.u32 %v508, 7
      %v510 = vsub.s32 1, %v509
      %v511 = vrot.slane %v239, %v510
      %v512 = vlaneseq
      %v513 = vshrl.u32 %v512, 7
      %v514 = vsub.s32 1, %v513
      %v515 = vrot.slane %v240, %v514
      %v516 = vlaneseq
      %v517 = vshrl.u32 %v516, 7
      %v518 = vsub.s32 1, %v517
      %v519 = vrot.slane %v241, %v518
      %v520 = vmul.f32 %v432, %v507
      %v521 = vmul.f32 %v433, %v511
      %v522 = vmul.f32 %v434, %v515
      %v523 = vmul.f32 %v435, %v519
      %v524 = vadd.f32 %v427, %v520
      %v525 = vadd.f32 %v428, %v521
      %v526 = vadd.f32 %v429, %v522
      %v527 = vadd.f32 %v430, %v523
      %s528 = scalar_lea.vmem %s224, 64
      %v529 = vld [vmem:[%s528] sm:$0x7f]
      %v530 = vld [vmem:[%s528 + $0x8] sm:$0x7f]
      %v531 = vld [vmem:[%s528 + $0x10] sm:$0x7f]
      %v532 = vld [vmem:[%s528 + $0x18] sm:$0x7f]
      %v533 = vmul.f32 %v529, %v233
      %v534 = vmul.f32 %v530, %v234
      %v535 = vmul.f32 %v531, %v235
      %v536 = vmul.f32 %v532, %v236
      %v537 = vsel %vm322, %v533, 0.0
      %v538 = vrot.slane %v537, 4
      %v539 = vadd.f32 %v537, %v538
      %v540 = vrot.slane %v539, 2
      %v541 = vadd.f32 %v539, %v540
      %v542 = vrot.slane %v541, 1
      %v543 = vadd.f32 %v541, %v542
      %v544 = vsel %vm322, %v534, 0.0
      %v545 = vrot.slane %v544, 4
      %v546 = vadd.f32 %v544, %v545
      %v547 = vrot.slane %v546, 2
      %v548 = vadd.f32 %v546, %v547
      %v549 = vrot.slane %v548, 1
      %v550 = vadd.f32 %v548, %v549
      %v551 = vsel %vm322, %v535, 0.0
      %v552 = vrot.slane %v551, 4
      %v553 = vadd.f32 %v551, %v552
      %v554 = vrot.slane %v553, 2
      %v555 = vadd.f32 %v553, %v554
      %v556 = vrot.slane %v555, 1
      %v557 = vadd.f32 %v555, %v556
      %v558 = vsel %vm322, %v536, 0.0
      %v559 = vrot.slane %v558, 4
      %v560 = vadd.f32 %v558, %v559
      %v561 = vrot.slane %v560, 2
      %v562 = vadd.f32 %v560, %v561
      %v563 = vrot.slane %v562, 1
      %v564 = vadd.f32 %v562, %v563
      %v565 = vadd.f32 %v543, %v355
      %v566 = vadd.f32 %v550, %v359
      %v567 = vadd.f32 %v557, %v363
      %v568 = vadd.f32 %v564, %v367
      %v573 = vcombine.low %v565, %v566
      %v574 = vcombine.low %v567, %v568
      %v576 = vunpack.c.l.s4 1966171168
      %v577 = vunpack.c.0.s8 %v576
      %v578 = vlaneseq
      %v579 = vshrl.u32 %v578, 7
      %v580 = vsub.s32 %v577, %v579
      %v581 = vrot.slane %v573, %v580
      %v583 = vunpack.c.l.s4 1966171168
      %v584 = vunpack.c.0.s8 %v583
      %v585 = vlaneseq
      %v586 = vshrl.u32 %v585, 7
      %v587 = vsub.s32 %v584, %v586
      %v588 = vrot.slane %v574, %v587
      %v589 = vcombine.low %v581, %v588
      %v591 = vunpack.c.l.s4 1966171168
      %v592 = vunpack.c.0.s8 %v591
      %v593 = vlaneseq
      %v594 = vshrl.u32 %v593, 7
      %v595 = vsub.s32 %v592, %v594
      %v596 = vrot.slane %v589, %v595
      %s598 = scalar_lea.vmem [#allocation2], 2
      %599 = vst.msk [vmem:[%s598] ss:$8 sm:$0xf] %vm408, %v596
      %600 = vst.msk [vmem:[%s598] ss:$8 sm:$0x0] %vm408, %v596
      %v601 = vlaneseq
      %v602 = vshrl.u32 %v601, 7
      %v603 = vsub.s32 2, %v602
      %v604 = vrot.slane %v238, %v603
      %v605 = vlaneseq
      %v606 = vshrl.u32 %v605, 7
      %v607 = vsub.s32 2, %v606
      %v608 = vrot.slane %v239, %v607
      %v609 = vlaneseq
      %v610 = vshrl.u32 %v609, 7
      %v611 = vsub.s32 2, %v610
      %v612 = vrot.slane %v240, %v611
      %v613 = vlaneseq
      %v614 = vshrl.u32 %v613, 7
      %v615 = vsub.s32 2, %v614
      %v616 = vrot.slane %v241, %v615
      %v617 = vmul.f32 %v529, %v604
      %v618 = vmul.f32 %v530, %v608
      %v619 = vmul.f32 %v531, %v612
      %v620 = vmul.f32 %v532, %v616
      %v621 = vadd.f32 %v524, %v617
      %v622 = vadd.f32 %v525, %v618
      %v623 = vadd.f32 %v526, %v619
      %v624 = vadd.f32 %v527, %v620
      %s625 = scalar_lea.vmem %s224, 96
      %v626 = vld [vmem:[%s625] sm:$0x7f]
      %v627 = vld [vmem:[%s625 + $0x8] sm:$0x7f]
      %v628 = vld [vmem:[%s625 + $0x10] sm:$0x7f]
      %v629 = vld [vmem:[%s625 + $0x18] sm:$0x7f]
      %v630 = vmul.f32 %v626, %v233
      %v631 = vmul.f32 %v627, %v234
      %v632 = vmul.f32 %v628, %v235
      %v633 = vmul.f32 %v629, %v236
      %v634 = vsel %vm322, %v630, 0.0
      %v635 = vrot.slane %v634, 4
      %v636 = vadd.f32 %v634, %v635
      %v637 = vrot.slane %v636, 2
      %v638 = vadd.f32 %v636, %v637
      %v639 = vrot.slane %v638, 1
      %v640 = vadd.f32 %v638, %v639
      %v641 = vsel %vm322, %v631, 0.0
      %v642 = vrot.slane %v641, 4
      %v643 = vadd.f32 %v641, %v642
      %v644 = vrot.slane %v643, 2
      %v645 = vadd.f32 %v643, %v644
      %v646 = vrot.slane %v645, 1
      %v647 = vadd.f32 %v645, %v646
      %v648 = vsel %vm322, %v632, 0.0
      %v649 = vrot.slane %v648, 4
      %v650 = vadd.f32 %v648, %v649
      %v651 = vrot.slane %v650, 2
      %v652 = vadd.f32 %v650, %v651
      %v653 = vrot.slane %v652, 1
      %v654 = vadd.f32 %v652, %v653
      %v655 = vsel %vm322, %v633, 0.0
      %v656 = vrot.slane %v655, 4
      %v657 = vadd.f32 %v655, %v656
      %v658 = vrot.slane %v657, 2
      %v659 = vadd.f32 %v657, %v658
      %v660 = vrot.slane %v659, 1
      %v661 = vadd.f32 %v659, %v660
      %v662 = vadd.f32 %v640, %v355
      %v663 = vadd.f32 %v647, %v359
      %v664 = vadd.f32 %v654, %v363
      %v665 = vadd.f32 %v661, %v367
      %v670 = vcombine.low %v662, %v663
      %v671 = vcombine.low %v664, %v665
      %v673 = vunpack.c.l.s4 1966171168
      %v674 = vunpack.c.0.s8 %v673
      %v675 = vlaneseq
      %v676 = vshrl.u32 %v675, 7
      %v677 = vsub.s32 %v674, %v676
      %v678 = vrot.slane %v670, %v677
      %v680 = vunpack.c.l.s4 1966171168
      %v681 = vunpack.c.0.s8 %v680
      %v682 = vlaneseq
      %v683 = vshrl.u32 %v682, 7
      %v684 = vsub.s32 %v681, %v683
      %v685 = vrot.slane %v671, %v684
      %v686 = vcombine.low %v678, %v685
      %v688 = vunpack.c.l.s4 1966171168
      %v689 = vunpack.c.0.s8 %v688
      %v690 = vlaneseq
      %v691 = vshrl.u32 %v690, 7
      %v692 = vsub.s32 %v689, %v691
      %v693 = vrot.slane %v686, %v692
      %s695 = scalar_lea.vmem [#allocation2], 3
      %696 = vst.msk [vmem:[%s695] ss:$8 sm:$0xf] %vm408, %v693
      %697 = vst.msk [vmem:[%s695] ss:$8 sm:$0x0] %vm408, %v693
      %v698 = vlaneseq
      %v699 = vshrl.u32 %v698, 7
      %v700 = vsub.s32 3, %v699
      %v701 = vrot.slane %v238, %v700
      %v702 = vlaneseq
      %v703 = vshrl.u32 %v702, 7
      %v704 = vsub.s32 3, %v703
      %v705 = vrot.slane %v239, %v704
      %v706 = vlaneseq
      %v707 = vshrl.u32 %v706, 7
      %v708 = vsub.s32 3, %v707
      %v709 = vrot.slane %v240, %v708
      %v710 = vlaneseq
      %v711 = vshrl.u32 %v710, 7
      %v712 = vsub.s32 3, %v711
      %v713 = vrot.slane %v241, %v712
      %v714 = vmul.f32 %v626, %v701
      %v715 = vmul.f32 %v627, %v705
      %v716 = vmul.f32 %v628, %v709
      %v717 = vmul.f32 %v629, %v713
      %v718 = vadd.f32 %v621, %v714
      %v719 = vadd.f32 %v622, %v715
      %v720 = vadd.f32 %v623, %v716
      %v721 = vadd.f32 %v624, %v717
      %s722 = scalar_lea.vmem %s224, 128
      %v723 = vld [vmem:[%s722] sm:$0x7f]
      %v724 = vld [vmem:[%s722 + $0x8] sm:$0x7f]
      %v725 = vld [vmem:[%s722 + $0x10] sm:$0x7f]
      %v726 = vld [vmem:[%s722 + $0x18] sm:$0x7f]
      %v727 = vmul.f32 %v723, %v233
      %v728 = vmul.f32 %v724, %v234
      %v729 = vmul.f32 %v725, %v235
      %v730 = vmul.f32 %v726, %v236
      %v731 = vsel %vm322, %v727, 0.0
      %v732 = vrot.slane %v731, 4
      %v733 = vadd.f32 %v731, %v732
      %v734 = vrot.slane %v733, 2
      %v735 = vadd.f32 %v733, %v734
      %v736 = vrot.slane %v735, 1
      %v737 = vadd.f32 %v735, %v736
      %v738 = vsel %vm322, %v728, 0.0
      %v739 = vrot.slane %v738, 4
      %v740 = vadd.f32 %v738, %v739
      %v741 = vrot.slane %v740, 2
      %v742 = vadd.f32 %v740, %v741
      %v743 = vrot.slane %v742, 1
      %v744 = vadd.f32 %v742, %v743
      %v745 = vsel %vm322, %v729, 0.0
      %v746 = vrot.slane %v745, 4
      %v747 = vadd.f32 %v745, %v746
      %v748 = vrot.slane %v747, 2
      %v749 = vadd.f32 %v747, %v748
      %v750 = vrot.slane %v749, 1
      %v751 = vadd.f32 %v749, %v750
      %v752 = vsel %vm322, %v730, 0.0
      %v753 = vrot.slane %v752, 4
      %v754 = vadd.f32 %v752, %v753
      %v755 = vrot.slane %v754, 2
      %v756 = vadd.f32 %v754, %v755
      %v757 = vrot.slane %v756, 1
      %v758 = vadd.f32 %v756, %v757
      %v759 = vadd.f32 %v737, %v355
      %v760 = vadd.f32 %v744, %v359
      %v761 = vadd.f32 %v751, %v363
      %v762 = vadd.f32 %v758, %v367
      %v767 = vcombine.low %v759, %v760
      %v768 = vcombine.low %v761, %v762
      %v770 = vunpack.c.l.s4 1966171168
      %v771 = vunpack.c.0.s8 %v770
      %v772 = vlaneseq
      %v773 = vshrl.u32 %v772, 7
      %v774 = vsub.s32 %v771, %v773
      %v775 = vrot.slane %v767, %v774
      %v777 = vunpack.c.l.s4 1966171168
      %v778 = vunpack.c.0.s8 %v777
      %v779 = vlaneseq
      %v780 = vshrl.u32 %v779, 7
      %v781 = vsub.s32 %v778, %v780
      %v782 = vrot.slane %v768, %v781
      %v783 = vcombine.low %v775, %v782
      %v785 = vunpack.c.l.s4 1966171168
      %v786 = vunpack.c.0.s8 %v785
      %v787 = vlaneseq
      %v788 = vshrl.u32 %v787, 7
      %v789 = vsub.s32 %v786, %v788
      %v790 = vrot.slane %v783, %v789
      %s792 = scalar_lea.vmem [#allocation2], 4
      %793 = vst.msk [vmem:[%s792] ss:$8 sm:$0xf] %vm408, %v790
      %794 = vst.msk [vmem:[%s792] ss:$8 sm:$0x0] %vm408, %v790
      %v795 = vlaneseq
      %v796 = vshrl.u32 %v795, 7
      %v797 = vsub.s32 4, %v796
      %v798 = vrot.slane %v238, %v797
      %v799 = vlaneseq
      %v800 = vshrl.u32 %v799, 7
      %v801 = vsub.s32 4, %v800
      %v802 = vrot.slane %v239, %v801
      %v803 = vlaneseq
      %v804 = vshrl.u32 %v803, 7
      %v805 = vsub.s32 4, %v804
      %v806 = vrot.slane %v240, %v805
      %v807 = vlaneseq
      %v808 = vshrl.u32 %v807, 7
      %v809 = vsub.s32 4, %v808
      %v810 = vrot.slane %v241, %v809
      %v811 = vmul.f32 %v723, %v798
      %v812 = vmul.f32 %v724, %v802
      %v813 = vmul.f32 %v725, %v806
      %v814 = vmul.f32 %v726, %v810
      %v815 = vadd.f32 %v718, %v811
      %v816 = vadd.f32 %v719, %v812
      %v817 = vadd.f32 %v720, %v813
      %v818 = vadd.f32 %v721, %v814
      %s819 = scalar_lea.vmem %s224, 160
      %v820 = vld [vmem:[%s819] sm:$0x7f]
      %v821 = vld [vmem:[%s819 + $0x8] sm:$0x7f]
      %v822 = vld [vmem:[%s819 + $0x10] sm:$0x7f]
      %v823 = vld [vmem:[%s819 + $0x18] sm:$0x7f]
      %v824 = vmul.f32 %v820, %v233
      %v825 = vmul.f32 %v821, %v234
      %v826 = vmul.f32 %v822, %v235
      %v827 = vmul.f32 %v823, %v236
      %v828 = vsel %vm322, %v824, 0.0
      %v829 = vrot.slane %v828, 4
      %v830 = vadd.f32 %v828, %v829
      %v831 = vrot.slane %v830, 2
      %v832 = vadd.f32 %v830, %v831
      %v833 = vrot.slane %v832, 1
      %v834 = vadd.f32 %v832, %v833
      %v835 = vsel %vm322, %v825, 0.0
      %v836 = vrot.slane %v835, 4
      %v837 = vadd.f32 %v835, %v836
      %v838 = vrot.slane %v837, 2
      %v839 = vadd.f32 %v837, %v838
      %v840 = vrot.slane %v839, 1
      %v841 = vadd.f32 %v839, %v840
      %v842 = vsel %vm322, %v826, 0.0
      %v843 = vrot.slane %v842, 4
      %v844 = vadd.f32 %v842, %v843
      %v845 = vrot.slane %v844, 2
      %v846 = vadd.f32 %v844, %v845
      %v847 = vrot.slane %v846, 1
      %v848 = vadd.f32 %v846, %v847
      %v849 = vsel %vm322, %v827, 0.0
      %v850 = vrot.slane %v849, 4
      %v851 = vadd.f32 %v849, %v850
      %v852 = vrot.slane %v851, 2
      %v853 = vadd.f32 %v851, %v852
      %v854 = vrot.slane %v853, 1
      %v855 = vadd.f32 %v853, %v854
      %v856 = vadd.f32 %v834, %v355
      %v857 = vadd.f32 %v841, %v359
      %v858 = vadd.f32 %v848, %v363
      %v859 = vadd.f32 %v855, %v367
      %v864 = vcombine.low %v856, %v857
      %v865 = vcombine.low %v858, %v859
      %v867 = vunpack.c.l.s4 1966171168
      %v868 = vunpack.c.0.s8 %v867
      %v869 = vlaneseq
      %v870 = vshrl.u32 %v869, 7
      %v871 = vsub.s32 %v868, %v870
      %v872 = vrot.slane %v864, %v871
      %v874 = vunpack.c.l.s4 1966171168
      %v875 = vunpack.c.0.s8 %v874
      %v876 = vlaneseq
      %v877 = vshrl.u32 %v876, 7
      %v878 = vsub.s32 %v875, %v877
      %v879 = vrot.slane %v865, %v878
      %v880 = vcombine.low %v872, %v879
      %v882 = vunpack.c.l.s4 1966171168
      %v883 = vunpack.c.0.s8 %v882
      %v884 = vlaneseq
      %v885 = vshrl.u32 %v884, 7
      %v886 = vsub.s32 %v883, %v885
      %v887 = vrot.slane %v880, %v886
      %s889 = scalar_lea.vmem [#allocation2], 5
      %890 = vst.msk [vmem:[%s889] ss:$8 sm:$0xf] %vm408, %v887
      %891 = vst.msk [vmem:[%s889] ss:$8 sm:$0x0] %vm408, %v887
      %v892 = vlaneseq
      %v893 = vshrl.u32 %v892, 7
      %v894 = vsub.s32 5, %v893
      %v895 = vrot.slane %v238, %v894
      %v896 = vlaneseq
      %v897 = vshrl.u32 %v896, 7
      %v898 = vsub.s32 5, %v897
      %v899 = vrot.slane %v239, %v898
      %v900 = vlaneseq
      %v901 = vshrl.u32 %v900, 7
      %v902 = vsub.s32 5, %v901
      %v903 = vrot.slane %v240, %v902
      %v904 = vlaneseq
      %v905 = vshrl.u32 %v904, 7
      %v906 = vsub.s32 5, %v905
      %v907 = vrot.slane %v241, %v906
      %v908 = vmul.f32 %v820, %v895
      %v909 = vmul.f32 %v821, %v899
      %v910 = vmul.f32 %v822, %v903
      %v911 = vmul.f32 %v823, %v907
      %v912 = vadd.f32 %v815, %v908
      %v913 = vadd.f32 %v816, %v909
      %v914 = vadd.f32 %v817, %v910
      %v915 = vadd.f32 %v818, %v911
      %s916 = scalar_lea.vmem %s224, 192
      %v917 = vld [vmem:[%s916] sm:$0x7f]
      %v918 = vld [vmem:[%s916 + $0x8] sm:$0x7f]
      %v919 = vld [vmem:[%s916 + $0x10] sm:$0x7f]
      %v920 = vld [vmem:[%s916 + $0x18] sm:$0x7f]
      %v921 = vmul.f32 %v917, %v233
      %v922 = vmul.f32 %v918, %v234
      %v923 = vmul.f32 %v919, %v235
      %v924 = vmul.f32 %v920, %v236
      %v925 = vsel %vm322, %v921, 0.0
      %v926 = vrot.slane %v925, 4
      %v927 = vadd.f32 %v925, %v926
      %v928 = vrot.slane %v927, 2
      %v929 = vadd.f32 %v927, %v928
      %v930 = vrot.slane %v929, 1
      %v931 = vadd.f32 %v929, %v930
      %v932 = vsel %vm322, %v922, 0.0
      %v933 = vrot.slane %v932, 4
      %v934 = vadd.f32 %v932, %v933
      %v935 = vrot.slane %v934, 2
      %v936 = vadd.f32 %v934, %v935
      %v937 = vrot.slane %v936, 1
      %v938 = vadd.f32 %v936, %v937
      %v939 = vsel %vm322, %v923, 0.0
      %v940 = vrot.slane %v939, 4
      %v941 = vadd.f32 %v939, %v940
      %v942 = vrot.slane %v941, 2
      %v943 = vadd.f32 %v941, %v942
      %v944 = vrot.slane %v943, 1
      %v945 = vadd.f32 %v943, %v944
      %v946 = vsel %vm322, %v924, 0.0
      %v947 = vrot.slane %v946, 4
      %v948 = vadd.f32 %v946, %v947
      %v949 = vrot.slane %v948, 2
      %v950 = vadd.f32 %v948, %v949
      %v951 = vrot.slane %v950, 1
      %v952 = vadd.f32 %v950, %v951
      %v953 = vadd.f32 %v931, %v355
      %v954 = vadd.f32 %v938, %v359
      %v955 = vadd.f32 %v945, %v363
      %v956 = vadd.f32 %v952, %v367
      %v961 = vcombine.low %v953, %v954
      %v962 = vcombine.low %v955, %v956
      %v964 = vunpack.c.l.s4 1966171168
      %v965 = vunpack.c.0.s8 %v964
      %v966 = vlaneseq
      %v967 = vshrl.u32 %v966, 7
      %v968 = vsub.s32 %v965, %v967
      %v969 = vrot.slane %v961, %v968
      %v971 = vunpack.c.l.s4 1966171168
      %v972 = vunpack.c.0.s8 %v971
      %v973 = vlaneseq
      %v974 = vshrl.u32 %v973, 7
      %v975 = vsub.s32 %v972, %v974
      %v976 = vrot.slane %v962, %v975
      %v977 = vcombine.low %v969, %v976
      %v979 = vunpack.c.l.s4 1966171168
      %v980 = vunpack.c.0.s8 %v979
      %v981 = vlaneseq
      %v982 = vshrl.u32 %v981, 7
      %v983 = vsub.s32 %v980, %v982
      %v984 = vrot.slane %v977, %v983
      %s986 = scalar_lea.vmem [#allocation2], 6
      %987 = vst.msk [vmem:[%s986] ss:$8 sm:$0xf] %vm408, %v984
      %988 = vst.msk [vmem:[%s986] ss:$8 sm:$0x0] %vm408, %v984
      %v989 = vlaneseq
      %v990 = vshrl.u32 %v989, 7
      %v991 = vsub.s32 6, %v990
      %v992 = vrot.slane %v238, %v991
      %v993 = vlaneseq
      %v994 = vshrl.u32 %v993, 7
      %v995 = vsub.s32 6, %v994
      %v996 = vrot.slane %v239, %v995
      %v997 = vlaneseq
      %v998 = vshrl.u32 %v997, 7
      %v999 = vsub.s32 6, %v998
      %v1000 = vrot.slane %v240, %v999
      %v1001 = vlaneseq
      %v1002 = vshrl.u32 %v1001, 7
      %v1003 = vsub.s32 6, %v1002
      %v1004 = vrot.slane %v241, %v1003
      %v1005 = vmul.f32 %v917, %v992
      %v1006 = vmul.f32 %v918, %v996
      %v1007 = vmul.f32 %v919, %v1000
      %v1008 = vmul.f32 %v920, %v1004
      %v1009 = vadd.f32 %v912, %v1005
      %v1010 = vadd.f32 %v913, %v1006
      %v1011 = vadd.f32 %v914, %v1007
      %v1012 = vadd.f32 %v915, %v1008
      %v1014 = vlaneseq
      %v1015 = vshrl.u32 %v1014, 7
      %v1016 = vsub.s32 0, %v1015
      %v1017 = vrot.slane %v244, %v1016
      %v1018 = vlaneseq
      %v1019 = vshrl.u32 %v1018, 7
      %v1020 = vsub.s32 1, %v1019
      %v1021 = vrot.slane %v244, %v1020
      %v1022 = vlaneseq
      %v1023 = vshrl.u32 %v1022, 7
      %v1024 = vsub.s32 2, %v1023
      %v1025 = vrot.slane %v244, %v1024
      %v1026 = vlaneseq
      %v1027 = vshrl.u32 %v1026, 7
      %v1028 = vsub.s32 3, %v1027
      %v1029 = vrot.slane %v244, %v1028
      %v1034 = vadd.f32 %v1009, %v1017
      %v1035 = vadd.f32 %v1010, %v1021
      %v1036 = vadd.f32 %v1011, %v1025
      %v1037 = vadd.f32 %v1012, %v1029
      %1038 = vst [vmem:[#allocation2 + $0x100] sm:$0x7f] %v1034
      %1039 = vst [vmem:[#allocation2 + $0x108] sm:$0x7f] %v1035
      %1040 = vst [vmem:[#allocation2 + $0x110] sm:$0x7f] %v1036
      %1041 = vst [vmem:[#allocation2 + $0x118] sm:$0x7f] %v1037
      %s1042 = scalar_lea.vmem %s224, 224
      %v1043 = vld [vmem:[%s1042] sm:$0x7f]
      %v1044 = vld [vmem:[%s1042 + $0x8] sm:$0x7f]
      %v1045 = vld [vmem:[%s1042 + $0x10] sm:$0x7f]
      %v1046 = vld [vmem:[%s1042 + $0x18] sm:$0x7f]
      %v1047 = vmul.f32 %v1043, %v233
      %v1048 = vmul.f32 %v1044, %v234
      %v1049 = vmul.f32 %v1045, %v235
      %v1050 = vmul.f32 %v1046, %v236
      %v1051 = vsel %vm322, %v1047, 0.0
      %v1052 = vrot.slane %v1051, 4
      %v1053 = vadd.f32 %v1051, %v1052
      %v1054 = vrot.slane %v1053, 2
      %v1055 = vadd.f32 %v1053, %v1054
      %v1056 = vrot.slane %v1055, 1
      %v1057 = vadd.f32 %v1055, %v1056
      %v1058 = vsel %vm322, %v1048, 0.0
      %v1059 = vrot.slane %v1058, 4
      %v1060 = vadd.f32 %v1058, %v1059
      %v1061 = vrot.slane %v1060, 2
      %v1062 = vadd.f32 %v1060, %v1061
      %v1063 = vrot.slane %v1062, 1
      %v1064 = vadd.f32 %v1062, %v1063
      %v1065 = vsel %vm322, %v1049, 0.0
      %v1066 = vrot.slane %v1065, 4
      %v1067 = vadd.f32 %v1065, %v1066
      %v1068 = vrot.slane %v1067, 2
      %v1069 = vadd.f32 %v1067, %v1068
      %v1070 = vrot.slane %v1069, 1
      %v1071 = vadd.f32 %v1069, %v1070
      %v1072 = vsel %vm322, %v1050, 0.0
      %v1073 = vrot.slane %v1072, 4
      %v1074 = vadd.f32 %v1072, %v1073
      %v1075 = vrot.slane %v1074, 2
      %v1076 = vadd.f32 %v1074, %v1075
      %v1077 = vrot.slane %v1076, 1
      %v1078 = vadd.f32 %v1076, %v1077
      %v1079 = vadd.f32 %v1057, %v355
      %v1080 = vadd.f32 %v1064, %v359
      %v1081 = vadd.f32 %v1071, %v363
      %v1082 = vadd.f32 %v1078, %v367
      %v1087 = vcombine.low %v1079, %v1080
      %v1088 = vcombine.low %v1081, %v1082
      %v1090 = vunpack.c.l.s4 1966171168
      %v1091 = vunpack.c.0.s8 %v1090
      %v1092 = vlaneseq
      %v1093 = vshrl.u32 %v1092, 7
      %v1094 = vsub.s32 %v1091, %v1093
      %v1095 = vrot.slane %v1087, %v1094
      %v1097 = vunpack.c.l.s4 1966171168
      %v1098 = vunpack.c.0.s8 %v1097
      %v1099 = vlaneseq
      %v1100 = vshrl.u32 %v1099, 7
      %v1101 = vsub.s32 %v1098, %v1100
      %v1102 = vrot.slane %v1088, %v1101
      %v1103 = vcombine.low %v1095, %v1102
      %v1105 = vunpack.c.l.s4 1966171168
      %v1106 = vunpack.c.0.s8 %v1105
      %v1107 = vlaneseq
      %v1108 = vshrl.u32 %v1107, 7
      %v1109 = vsub.s32 %v1106, %v1108
      %v1110 = vrot.slane %v1103, %v1109
      %s1112 = scalar_lea.vmem [#allocation2], 32
      %1113 = vst.msk [vmem:[%s1112] ss:$8 sm:$0xf] %vm408, %v1110
      %1114 = vst.msk [vmem:[%s1112] ss:$8 sm:$0x0] %vm408, %v1110
      %v1115 = vmul.f32 %v1043, %v414
      %v1116 = vmul.f32 %v1044, %v418
      %v1117 = vmul.f32 %v1045, %v422
      %v1118 = vmul.f32 %v1046, %v426
      %s1119 = scalar_lea.vmem %s224, 256
      %v1120 = vld [vmem:[%s1119] sm:$0x7f]
      %v1121 = vld [vmem:[%s1119 + $0x8] sm:$0x7f]
      %v1122 = vld [vmem:[%s1119 + $0x10] sm:$0x7f]
      %v1123 = vld [vmem:[%s1119 + $0x18] sm:$0x7f]
      %v1124 = vmul.f32 %v1120, %v233
      %v1125 = vmul.f32 %v1121, %v234
      %v1126 = vmul.f32 %v1122, %v235
      %v1127 = vmul.f32 %v1123, %v236
      %v1128 = vsel %vm322, %v1124, 0.0
      %v1129 = vrot.slane %v1128, 4
      %v1130 = vadd.f32 %v1128, %v1129
      %v1131 = vrot.slane %v1130, 2
      %v1132 = vadd.f32 %v1130, %v1131
      %v1133 = vrot.slane %v1132, 1
      %v1134 = vadd.f32 %v1132, %v1133
      %v1135 = vsel %vm322, %v1125, 0.0
      %v1136 = vrot.slane %v1135, 4
      %v1137 = vadd.f32 %v1135, %v1136
      %v1138 = vrot.slane %v1137, 2
      %v1139 = vadd.f32 %v1137, %v1138
      %v1140 = vrot.slane %v1139, 1
      %v1141 = vadd.f32 %v1139, %v1140
      %v1142 = vsel %vm322, %v1126, 0.0
      %v1143 = vrot.slane %v1142, 4
      %v1144 = vadd.f32 %v1142, %v1143
      %v1145 = vrot.slane %v1144, 2
      %v1146 = vadd.f32 %v1144, %v1145
      %v1147 = vrot.slane %v1146, 1
      %v1148 = vadd.f32 %v1146, %v1147
      %v1149 = vsel %vm322, %v1127, 0.0
      %v1150 = vrot.slane %v1149, 4
      %v1151 = vadd.f32 %v1149, %v1150
      %v1152 = vrot.slane %v1151, 2
      %v1153 = vadd.f32 %v1151, %v1152
      %v1154 = vrot.slane %v1153, 1
      %v1155 = vadd.f32 %v1153, %v1154
      %v1156 = vadd.f32 %v1134, %v355
      %v1157 = vadd.f32 %v1141, %v359
      %v1158 = vadd.f32 %v1148, %v363
      %v1159 = vadd.f32 %v1155, %v367
      %v1164 = vcombine.low %v1156, %v1157
      %v1165 = vcombine.low %v1158, %v1159
      %v1167 = vunpack.c.l.s4 1966171168
      %v1168 = vunpack.c.0.s8 %v1167
      %v1169 = vlaneseq
      %v1170 = vshrl.u32 %v1169, 7
      %v1171 = vsub.s32 %v1168, %v1170
      %v1172 = vrot.slane %v1164, %v1171
      %v1174 = vunpack.c.l.s4 1966171168
      %v1175 = vunpack.c.0.s8 %v1174
      %v1176 = vlaneseq
      %v1177 = vshrl.u32 %v1176, 7
      %v1178 = vsub.s32 %v1175, %v1177
      %v1179 = vrot.slane %v1165, %v1178
      %v1180 = vcombine.low %v1172, %v1179
      %v1182 = vunpack.c.l.s4 1966171168
      %v1183 = vunpack.c.0.s8 %v1182
      %v1184 = vlaneseq
      %v1185 = vshrl.u32 %v1184, 7
      %v1186 = vsub.s32 %v1183, %v1185
      %v1187 = vrot.slane %v1180, %v1186
      %s1189 = scalar_lea.vmem [#allocation2], 33
      %1190 = vst.msk [vmem:[%s1189] ss:$8 sm:$0xf] %vm408, %v1187
      %1191 = vst.msk [vmem:[%s1189] ss:$8 sm:$0x0] %vm408, %v1187
      %v1192 = vmul.f32 %v1120, %v507
      %v1193 = vmul.f32 %v1121, %v511
      %v1194 = vmul.f32 %v1122, %v515
      %v1195 = vmul.f32 %v1123, %v519
      %v1196 = vadd.f32 %v1115, %v1192
      %v1197 = vadd.f32 %v1116, %v1193
      %v1198 = vadd.f32 %v1117, %v1194
      %v1199 = vadd.f32 %v1118, %v1195
      %s1200 = scalar_lea.vmem %s224, 288
      %v1201 = vld [vmem:[%s1200] sm:$0x7f]
      %v1202 = vld [vmem:[%s1200 + $0x8] sm:$0x7f]
      %v1203 = vld [vmem:[%s1200 + $0x10] sm:$0x7f]
      %v1204 = vld [vmem:[%s1200 + $0x18] sm:$0x7f]
      %v1205 = vmul.f32 %v1201, %v233
      %v1206 = vmul.f32 %v1202, %v234
      %v1207 = vmul.f32 %v1203, %v235
      %v1208 = vmul.f32 %v1204, %v236
      %v1209 = vsel %vm322, %v1205, 0.0
      %v1210 = vrot.slane %v1209, 4
      %v1211 = vadd.f32 %v1209, %v1210
      %v1212 = vrot.slane %v1211, 2
      %v1213 = vadd.f32 %v1211, %v1212
      %v1214 = vrot.slane %v1213, 1
      %v1215 = vadd.f32 %v1213, %v1214
      %v1216 = vsel %vm322, %v1206, 0.0
      %v1217 = vrot.slane %v1216, 4
      %v1218 = vadd.f32 %v1216, %v1217
      %v1219 = vrot.slane %v1218, 2
      %v1220 = vadd.f32 %v1218, %v1219
      %v1221 = vrot.slane %v1220, 1
      %v1222 = vadd.f32 %v1220, %v1221
      %v1223 = vsel %vm322, %v1207, 0.0
      %v1224 = vrot.slane %v1223, 4
      %v1225 = vadd.f32 %v1223, %v1224
      %v1226 = vrot.slane %v1225, 2
      %v1227 = vadd.f32 %v1225, %v1226
      %v1228 = vrot.slane %v1227, 1
      %v1229 = vadd.f32 %v1227, %v1228
      %v1230 = vsel %vm322, %v1208, 0.0
      %v1231 = vrot.slane %v1230, 4
      %v1232 = vadd.f32 %v1230, %v1231
      %v1233 = vrot.slane %v1232, 2
      %v1234 = vadd.f32 %v1232, %v1233
      %v1235 = vrot.slane %v1234, 1
      %v1236 = vadd.f32 %v1234, %v1235
      %v1237 = vadd.f32 %v1215, %v355
      %v1238 = vadd.f32 %v1222, %v359
      %v1239 = vadd.f32 %v1229, %v363
      %v1240 = vadd.f32 %v1236, %v367
      %v1245 = vcombine.low %v1237, %v1238
      %v1246 = vcombine.low %v1239, %v1240
      %v1248 = vunpack.c.l.s4 1966171168
      %v1249 = vunpack.c.0.s8 %v1248
      %v1250 = vlaneseq
      %v1251 = vshrl.u32 %v1250, 7
      %v1252 = vsub.s32 %v1249, %v1251
      %v1253 = vrot.slane %v1245, %v1252
      %v1255 = vunpack.c.l.s4 1966171168
      %v1256 = vunpack.c.0.s8 %v1255
      %v1257 = vlaneseq
      %v1258 = vshrl.u32 %v1257, 7
      %v1259 = vsub.s32 %v1256, %v1258
      %v1260 = vrot.slane %v1246, %v1259
      %v1261 = vcombine.low %v1253, %v1260
      %v1263 = vunpack.c.l.s4 1966171168
      %v1264 = vunpack.c.0.s8 %v1263
      %v1265 = vlaneseq
      %v1266 = vshrl.u32 %v1265, 7
      %v1267 = vsub.s32 %v1264, %v1266
      %v1268 = vrot.slane %v1261, %v1267
      %s1270 = scalar_lea.vmem [#allocation2], 34
      %1271 = vst.msk [vmem:[%s1270] ss:$8 sm:$0xf] %vm408, %v1268
      %1272 = vst.msk [vmem:[%s1270] ss:$8 sm:$0x0] %vm408, %v1268
      %v1273 = vmul.f32 %v1201, %v604
      %v1274 = vmul.f32 %v1202, %v608
      %v1275 = vmul.f32 %v1203, %v612
      %v1276 = vmul.f32 %v1204, %v616
      %v1277 = vadd.f32 %v1196, %v1273
      %v1278 = vadd.f32 %v1197, %v1274
      %v1279 = vadd.f32 %v1198, %v1275
      %v1280 = vadd.f32 %v1199, %v1276
      %s1281 = scalar_lea.vmem %s224, 320
      %v1282 = vld [vmem:[%s1281] sm:$0x7f]
      %v1283 = vld [vmem:[%s1281 + $0x8] sm:$0x7f]
      %v1284 = vld [vmem:[%s1281 + $0x10] sm:$0x7f]
      %v1285 = vld [vmem:[%s1281 + $0x18] sm:$0x7f]
      %v1286 = vmul.f32 %v1282, %v233
      %v1287 = vmul.f32 %v1283, %v234
      %v1288 = vmul.f32 %v1284, %v235
      %v1289 = vmul.f32 %v1285, %v236
      %v1290 = vsel %vm322, %v1286, 0.0
      %v1291 = vrot.slane %v1290, 4
      %v1292 = vadd.f32 %v1290, %v1291
      %v1293 = vrot.slane %v1292, 2
      %v1294 = vadd.f32 %v1292, %v1293
      %v1295 = vrot.slane %v1294, 1
      %v1296 = vadd.f32 %v1294, %v1295
      %v1297 = vsel %vm322, %v1287, 0.0
      %v1298 = vrot.slane %v1297, 4
      %v1299 = vadd.f32 %v1297, %v1298
      %v1300 = vrot.slane %v1299, 2
      %v1301 = vadd.f32 %v1299, %v1300
      %v1302 = vrot.slane %v1301, 1
      %v1303 = vadd.f32 %v1301, %v1302
      %v1304 = vsel %vm322, %v1288, 0.0
      %v1305 = vrot.slane %v1304, 4
      %v1306 = vadd.f32 %v1304, %v1305
      %v1307 = vrot.slane %v1306, 2
      %v1308 = vadd.f32 %v1306, %v1307
      %v1309 = vrot.slane %v1308, 1
      %v1310 = vadd.f32 %v1308, %v1309
      %v1311 = vsel %vm322, %v1289, 0.0
      %v1312 = vrot.slane %v1311, 4
      %v1313 = vadd.f32 %v1311, %v1312
      %v1314 = vrot.slane %v1313, 2
      %v1315 = vadd.f32 %v1313, %v1314
      %v1316 = vrot.slane %v1315, 1
      %v1317 = vadd.f32 %v1315, %v1316
      %v1318 = vadd.f32 %v1296, %v355
      %v1319 = vadd.f32 %v1303, %v359
      %v1320 = vadd.f32 %v1310, %v363
      %v1321 = vadd.f32 %v1317, %v367
      %v1326 = vcombine.low %v1318, %v1319
      %v1327 = vcombine.low %v1320, %v1321
      %v1329 = vunpack.c.l.s4 1966171168
      %v1330 = vunpack.c.0.s8 %v1329
      %v1331 = vlaneseq
      %v1332 = vshrl.u32 %v1331, 7
      %v1333 = vsub.s32 %v1330, %v1332
      %v1334 = vrot.slane %v1326, %v1333
      %v1336 = vunpack.c.l.s4 1966171168
      %v1337 = vunpack.c.0.s8 %v1336
      %v1338 = vlaneseq
      %v1339 = vshrl.u32 %v1338, 7
      %v1340 = vsub.s32 %v1337, %v1339
      %v1341 = vrot.slane %v1327, %v1340
      %v1342 = vcombine.low %v1334, %v1341
      %v1344 = vunpack.c.l.s4 1966171168
      %v1345 = vunpack.c.0.s8 %v1344
      %v1346 = vlaneseq
      %v1347 = vshrl.u32 %v1346, 7
      %v1348 = vsub.s32 %v1345, %v1347
      %v1349 = vrot.slane %v1342, %v1348
      %s1351 = scalar_lea.vmem [#allocation2], 35
      %1352 = vst.msk [vmem:[%s1351] ss:$8 sm:$0xf] %vm408, %v1349
      %1353 = vst.msk [vmem:[%s1351] ss:$8 sm:$0x0] %vm408, %v1349
      %v1354 = vmul.f32 %v1282, %v701
      %v1355 = vmul.f32 %v1283, %v705
      %v1356 = vmul.f32 %v1284, %v709
      %v1357 = vmul.f32 %v1285, %v713
      %v1358 = vadd.f32 %v1277, %v1354
      %v1359 = vadd.f32 %v1278, %v1355
      %v1360 = vadd.f32 %v1279, %v1356
      %v1361 = vadd.f32 %v1280, %v1357
      %s1362 = scalar_lea.vmem %s224, 352
      %v1363 = vld [vmem:[%s1362] sm:$0x7f]
      %v1364 = vld [vmem:[%s1362 + $0x8] sm:$0x7f]
      %v1365 = vld [vmem:[%s1362 + $0x10] sm:$0x7f]
      %v1366 = vld [vmem:[%s1362 + $0x18] sm:$0x7f]
      %v1367 = vmul.f32 %v1363, %v233
      %v1368 = vmul.f32 %v1364, %v234
      %v1369 = vmul.f32 %v1365, %v235
      %v1370 = vmul.f32 %v1366, %v236
      %v1371 = vsel %vm322, %v1367, 0.0
      %v1372 = vrot.slane %v1371, 4
      %v1373 = vadd.f32 %v1371, %v1372
      %v1374 = vrot.slane %v1373, 2
      %v1375 = vadd.f32 %v1373, %v1374
      %v1376 = vrot.slane %v1375, 1
      %v1377 = vadd.f32 %v1375, %v1376
      %v1378 = vsel %vm322, %v1368, 0.0
      %v1379 = vrot.slane %v1378, 4
      %v1380 = vadd.f32 %v1378, %v1379
      %v1381 = vrot.slane %v1380, 2
      %v1382 = vadd.f32 %v1380, %v1381
      %v1383 = vrot.slane %v1382, 1
      %v1384 = vadd.f32 %v1382, %v1383
      %v1385 = vsel %vm322, %v1369, 0.0
      %v1386 = vrot.slane %v1385, 4
      %v1387 = vadd.f32 %v1385, %v1386
      %v1388 = vrot.slane %v1387, 2
      %v1389 = vadd.f32 %v1387, %v1388
      %v1390 = vrot.slane %v1389, 1
      %v1391 = vadd.f32 %v1389, %v1390
      %v1392 = vsel %vm322, %v1370, 0.0
      %v1393 = vrot.slane %v1392, 4
      %v1394 = vadd.f32 %v1392, %v1393
      %v1395 = vrot.slane %v1394, 2
      %v1396 = vadd.f32 %v1394, %v1395
      %v1397 = vrot.slane %v1396, 1
      %v1398 = vadd.f32 %v1396, %v1397
      %v1399 = vadd.f32 %v1377, %v355
      %v1400 = vadd.f32 %v1384, %v359
      %v1401 = vadd.f32 %v1391, %v363
      %v1402 = vadd.f32 %v1398, %v367
      %v1407 = vcombine.low %v1399, %v1400
      %v1408 = vcombine.low %v1401, %v1402
      %v1410 = vunpack.c.l.s4 1966171168
      %v1411 = vunpack.c.0.s8 %v1410
      %v1412 = vlaneseq
      %v1413 = vshrl.u32 %v1412, 7
      %v1414 = vsub.s32 %v1411, %v1413
      %v1415 = vrot.slane %v1407, %v1414
      %v1417 = vunpack.c.l.s4 1966171168
      %v1418 = vunpack.c.0.s8 %v1417
      %v1419 = vlaneseq
      %v1420 = vshrl.u32 %v1419, 7
      %v1421 = vsub.s32 %v1418, %v1420
      %v1422 = vrot.slane %v1408, %v1421
      %v1423 = vcombine.low %v1415, %v1422
      %v1425 = vunpack.c.l.s4 1966171168
      %v1426 = vunpack.c.0.s8 %v1425
      %v1427 = vlaneseq
      %v1428 = vshrl.u32 %v1427, 7
      %v1429 = vsub.s32 %v1426, %v1428
      %v1430 = vrot.slane %v1423, %v1429
      %s1432 = scalar_lea.vmem [#allocation2], 36
      %1433 = vst.msk [vmem:[%s1432] ss:$8 sm:$0xf] %vm408, %v1430
      %1434 = vst.msk [vmem:[%s1432] ss:$8 sm:$0x0] %vm408, %v1430
      %v1435 = vmul.f32 %v1363, %v798
      %v1436 = vmul.f32 %v1364, %v802
      %v1437 = vmul.f32 %v1365, %v806
      %v1438 = vmul.f32 %v1366, %v810
      %v1439 = vadd.f32 %v1358, %v1435
      %v1440 = vadd.f32 %v1359, %v1436
      %v1441 = vadd.f32 %v1360, %v1437
      %v1442 = vadd.f32 %v1361, %v1438
      %s1443 = scalar_lea.vmem %s224, 384
      %v1444 = vld [vmem:[%s1443] sm:$0x7f]
      %v1445 = vld [vmem:[%s1443 + $0x8] sm:$0x7f]
      %v1446 = vld [vmem:[%s1443 + $0x10] sm:$0x7f]
      %v1447 = vld [vmem:[%s1443 + $0x18] sm:$0x7f]
      %v1448 = vmul.f32 %v1444, %v233
      %v1449 = vmul.f32 %v1445, %v234
      %v1450 = vmul.f32 %v1446, %v235
      %v1451 = vmul.f32 %v1447, %v236
      %v1452 = vsel %vm322, %v1448, 0.0
      %v1453 = vrot.slane %v1452, 4
      %v1454 = vadd.f32 %v1452, %v1453
      %v1455 = vrot.slane %v1454, 2
      %v1456 = vadd.f32 %v1454, %v1455
      %v1457 = vrot.slane %v1456, 1
      %v1458 = vadd.f32 %v1456, %v1457
      %v1459 = vsel %vm322, %v1449, 0.0
      %v1460 = vrot.slane %v1459, 4
      %v1461 = vadd.f32 %v1459, %v1460
      %v1462 = vrot.slane %v1461, 2
      %v1463 = vadd.f32 %v1461, %v1462
      %v1464 = vrot.slane %v1463, 1
      %v1465 = vadd.f32 %v1463, %v1464
      %v1466 = vsel %vm322, %v1450, 0.0
      %v1467 = vrot.slane %v1466, 4
      %v1468 = vadd.f32 %v1466, %v1467
      %v1469 = vrot.slane %v1468, 2
      %v1470 = vadd.f32 %v1468, %v1469
      %v1471 = vrot.slane %v1470, 1
      %v1472 = vadd.f32 %v1470, %v1471
      %v1473 = vsel %vm322, %v1451, 0.0
      %v1474 = vrot.slane %v1473, 4
      %v1475 = vadd.f32 %v1473, %v1474
      %v1476 = vrot.slane %v1475, 2
      %v1477 = vadd.f32 %v1475, %v1476
      %v1478 = vrot.slane %v1477, 1
      %v1479 = vadd.f32 %v1477, %v1478
      %v1480 = vadd.f32 %v1458, %v355
      %v1481 = vadd.f32 %v1465, %v359
      %v1482 = vadd.f32 %v1472, %v363
      %v1483 = vadd.f32 %v1479, %v367
      %v1488 = vcombine.low %v1480, %v1481
      %v1489 = vcombine.low %v1482, %v1483
      %v1491 = vunpack.c.l.s4 1966171168
      %v1492 = vunpack.c.0.s8 %v1491
      %v1493 = vlaneseq
      %v1494 = vshrl.u32 %v1493, 7
      %v1495 = vsub.s32 %v1492, %v1494
      %v1496 = vrot.slane %v1488, %v1495
      %v1498 = vunpack.c.l.s4 1966171168
      %v1499 = vunpack.c.0.s8 %v1498
      %v1500 = vlaneseq
      %v1501 = vshrl.u32 %v1500, 7
      %v1502 = vsub.s32 %v1499, %v1501
      %v1503 = vrot.slane %v1489, %v1502
      %v1504 = vcombine.low %v1496, %v1503
      %v1506 = vunpack.c.l.s4 1966171168
      %v1507 = vunpack.c.0.s8 %v1506
      %v1508 = vlaneseq
      %v1509 = vshrl.u32 %v1508, 7
      %v1510 = vsub.s32 %v1507, %v1509
      %v1511 = vrot.slane %v1504, %v1510
      %s1513 = scalar_lea.vmem [#allocation2], 37
      %1514 = vst.msk [vmem:[%s1513] ss:$8 sm:$0xf] %vm408, %v1511
      %1515 = vst.msk [vmem:[%s1513] ss:$8 sm:$0x0] %vm408, %v1511
      %v1516 = vmul.f32 %v1444, %v895
      %v1517 = vmul.f32 %v1445, %v899
      %v1518 = vmul.f32 %v1446, %v903
      %v1519 = vmul.f32 %v1447, %v907
      %v1520 = vadd.f32 %v1439, %v1516
      %v1521 = vadd.f32 %v1440, %v1517
      %v1522 = vadd.f32 %v1441, %v1518
      %v1523 = vadd.f32 %v1442, %v1519
      %s1524 = scalar_lea.vmem %s224, 416
      %v1525 = vld [vmem:[%s1524] sm:$0x7f]
      %v1526 = vld [vmem:[%s1524 + $0x8] sm:$0x7f]
      %v1527 = vld [vmem:[%s1524 + $0x10] sm:$0x7f]
      %v1528 = vld [vmem:[%s1524 + $0x18] sm:$0x7f]
      %v1529 = vmul.f32 %v1525, %v233
      %v1530 = vmul.f32 %v1526, %v234
      %v1531 = vmul.f32 %v1527, %v235
      %v1532 = vmul.f32 %v1528, %v236
      %v1533 = vsel %vm322, %v1529, 0.0
      %v1534 = vrot.slane %v1533, 4
      %v1535 = vadd.f32 %v1533, %v1534
      %v1536 = vrot.slane %v1535, 2
      %v1537 = vadd.f32 %v1535, %v1536
      %v1538 = vrot.slane %v1537, 1
      %v1539 = vadd.f32 %v1537, %v1538
      %v1540 = vsel %vm322, %v1530, 0.0
      %v1541 = vrot.slane %v1540, 4
      %v1542 = vadd.f32 %v1540, %v1541
      %v1543 = vrot.slane %v1542, 2
      %v1544 = vadd.f32 %v1542, %v1543
      %v1545 = vrot.slane %v1544, 1
      %v1546 = vadd.f32 %v1544, %v1545
      %v1547 = vsel %vm322, %v1531, 0.0
      %v1548 = vrot.slane %v1547, 4
      %v1549 = vadd.f32 %v1547, %v1548
      %v1550 = vrot.slane %v1549, 2
      %v1551 = vadd.f32 %v1549, %v1550
      %v1552 = vrot.slane %v1551, 1
      %v1553 = vadd.f32 %v1551, %v1552
      %v1554 = vsel %vm322, %v1532, 0.0
      %v1555 = vrot.slane %v1554, 4
      %v1556 = vadd.f32 %v1554, %v1555
      %v1557 = vrot.slane %v1556, 2
      %v1558 = vadd.f32 %v1556, %v1557
      %v1559 = vrot.slane %v1558, 1
      %v1560 = vadd.f32 %v1558, %v1559
      %v1561 = vadd.f32 %v1539, %v355
      %v1562 = vadd.f32 %v1546, %v359
      %v1563 = vadd.f32 %v1553, %v363
      %v1564 = vadd.f32 %v1560, %v367
      %v1569 = vcombine.low %v1561, %v1562
      %v1570 = vcombine.low %v1563, %v1564
      %v1572 = vunpack.c.l.s4 1966171168
      %v1573 = vunpack.c.0.s8 %v1572
      %v1574 = vlaneseq
      %v1575 = vshrl.u32 %v1574, 7
      %v1576 = vsub.s32 %v1573, %v1575
      %v1577 = vrot.slane %v1569, %v1576
      %v1579 = vunpack.c.l.s4 1966171168
      %v1580 = vunpack.c.0.s8 %v1579
      %v1581 = vlaneseq
      %v1582 = vshrl.u32 %v1581, 7
      %v1583 = vsub.s32 %v1580, %v1582
      %v1584 = vrot.slane %v1570, %v1583
      %v1585 = vcombine.low %v1577, %v1584
      %v1587 = vunpack.c.l.s4 1966171168
      %v1588 = vunpack.c.0.s8 %v1587
      %v1589 = vlaneseq
      %v1590 = vshrl.u32 %v1589, 7
      %v1591 = vsub.s32 %v1588, %v1590
      %v1592 = vrot.slane %v1585, %v1591
      %s1594 = scalar_lea.vmem [#allocation2], 38
      %1595 = vst.msk [vmem:[%s1594] ss:$8 sm:$0xf] %vm408, %v1592
      %1596 = vst.msk [vmem:[%s1594] ss:$8 sm:$0x0] %vm408, %v1592
      %v1597 = vmul.f32 %v1525, %v992
      %v1598 = vmul.f32 %v1526, %v996
      %v1599 = vmul.f32 %v1527, %v1000
      %v1600 = vmul.f32 %v1528, %v1004
      %v1601 = vadd.f32 %v1520, %v1597
      %v1602 = vadd.f32 %v1521, %v1598
      %v1603 = vadd.f32 %v1522, %v1599
      %v1604 = vadd.f32 %v1523, %v1600
      %v1605 = vadd.f32 %v1601, %v1017
      %v1606 = vadd.f32 %v1602, %v1021
      %v1607 = vadd.f32 %v1603, %v1025
      %v1608 = vadd.f32 %v1604, %v1029
      %1609 = vst [vmem:[#allocation2 + $0x120] sm:$0x7f] %v1605
      %1610 = vst [vmem:[#allocation2 + $0x128] sm:$0x7f] %v1606
      %1611 = vst [vmem:[#allocation2 + $0x130] sm:$0x7f] %v1607
      %1612 = vst [vmem:[#allocation2 + $0x138] sm:$0x7f] %v1608
      %s1613 = scalar_lea.vmem %s224, 448
      %v1614 = vld [vmem:[%s1613] sm:$0x7f]
      %v1615 = vld [vmem:[%s1613 + $0x8] sm:$0x7f]
      %v1616 = vld [vmem:[%s1613 + $0x10] sm:$0x7f]
      %v1617 = vld [vmem:[%s1613 + $0x18] sm:$0x7f]
      %v1618 = vmul.f32 %v1614, %v233
      %v1619 = vmul.f32 %v1615, %v234
      %v1620 = vmul.f32 %v1616, %v235
      %v1621 = vmul.f32 %v1617, %v236
      %v1622 = vsel %vm322, %v1618, 0.0
      %v1623 = vrot.slane %v1622, 4
      %v1624 = vadd.f32 %v1622, %v1623
      %v1625 = vrot.slane %v1624, 2
      %v1626 = vadd.f32 %v1624, %v1625
      %v1627 = vrot.slane %v1626, 1
      %v1628 = vadd.f32 %v1626, %v1627
      %v1629 = vsel %vm322, %v1619, 0.0
      %v1630 = vrot.slane %v1629, 4
      %v1631 = vadd.f32 %v1629, %v1630
      %v1632 = vrot.slane %v1631, 2
      %v1633 = vadd.f32 %v1631, %v1632
      %v1634 = vrot.slane %v1633, 1
      %v1635 = vadd.f32 %v1633, %v1634
      %v1636 = vsel %vm322, %v1620, 0.0
      %v1637 = vrot.slane %v1636, 4
      %v1638 = vadd.f32 %v1636, %v1637
      %v1639 = vrot.slane %v1638, 2
      %v1640 = vadd.f32 %v1638, %v1639
      %v1641 = vrot.slane %v1640, 1
      %v1642 = vadd.f32 %v1640, %v1641
      %v1643 = vsel %vm322, %v1621, 0.0
      %v1644 = vrot.slane %v1643, 4
      %v1645 = vadd.f32 %v1643, %v1644
      %v1646 = vrot.slane %v1645, 2
      %v1647 = vadd.f32 %v1645, %v1646
      %v1648 = vrot.slane %v1647, 1
      %v1649 = vadd.f32 %v1647, %v1648
      %v1650 = vadd.f32 %v1628, %v355
      %v1651 = vadd.f32 %v1635, %v359
      %v1652 = vadd.f32 %v1642, %v363
      %v1653 = vadd.f32 %v1649, %v367
      %v1658 = vcombine.low %v1650, %v1651
      %v1659 = vcombine.low %v1652, %v1653
      %v1661 = vunpack.c.l.s4 1966171168
      %v1662 = vunpack.c.0.s8 %v1661
      %v1663 = vlaneseq
      %v1664 = vshrl.u32 %v1663, 7
      %v1665 = vsub.s32 %v1662, %v1664
      %v1666 = vrot.slane %v1658, %v1665
      %v1668 = vunpack.c.l.s4 1966171168
      %v1669 = vunpack.c.0.s8 %v1668
      %v1670 = vlaneseq
      %v1671 = vshrl.u32 %v1670, 7
      %v1672 = vsub.s32 %v1669, %v1671
      %v1673 = vrot.slane %v1659, %v1672
      %v1674 = vcombine.low %v1666, %v1673
      %v1676 = vunpack.c.l.s4 1966171168
      %v1677 = vunpack.c.0.s8 %v1676
      %v1678 = vlaneseq
      %v1679 = vshrl.u32 %v1678, 7
      %v1680 = vsub.s32 %v1677, %v1679
      %v1681 = vrot.slane %v1674, %v1680
      %s1683 = scalar_lea.vmem [#allocation2], 64
      %1684 = vst.msk [vmem:[%s1683] ss:$8 sm:$0xf] %vm408, %v1681
      %1685 = vst.msk [vmem:[%s1683] ss:$8 sm:$0x0] %vm408, %v1681
      %v1686 = vmul.f32 %v1614, %v414
      %v1687 = vmul.f32 %v1615, %v418
      %v1688 = vmul.f32 %v1616, %v422
      %v1689 = vmul.f32 %v1617, %v426
      %s1690 = scalar_lea.vmem %s224, 480
      %v1691 = vld [vmem:[%s1690] sm:$0x7f]
      %v1692 = vld [vmem:[%s1690 + $0x8] sm:$0x7f]
      %v1693 = vld [vmem:[%s1690 + $0x10] sm:$0x7f]
      %v1694 = vld [vmem:[%s1690 + $0x18] sm:$0x7f]
      %v1695 = vmul.f32 %v1691, %v233
      %v1696 = vmul.f32 %v1692, %v234
      %v1697 = vmul.f32 %v1693, %v235
      %v1698 = vmul.f32 %v1694, %v236
      %v1699 = vsel %vm322, %v1695, 0.0
      %v1700 = vrot.slane %v1699, 4
      %v1701 = vadd.f32 %v1699, %v1700
      %v1702 = vrot.slane %v1701, 2
      %v1703 = vadd.f32 %v1701, %v1702
      %v1704 = vrot.slane %v1703, 1
      %v1705 = vadd.f32 %v1703, %v1704
      %v1706 = vsel %vm322, %v1696, 0.0
      %v1707 = vrot.slane %v1706, 4
      %v1708 = vadd.f32 %v1706, %v1707
      %v1709 = vrot.slane %v1708, 2
      %v1710 = vadd.f32 %v1708, %v1709
      %v1711 = vrot.slane %v1710, 1
      %v1712 = vadd.f32 %v1710, %v1711
      %v1713 = vsel %vm322, %v1697, 0.0
      %v1714 = vrot.slane %v1713, 4
      %v1715 = vadd.f32 %v1713, %v1714
      %v1716 = vrot.slane %v1715, 2
      %v1717 = vadd.f32 %v1715, %v1716
      %v1718 = vrot.slane %v1717, 1
      %v1719 = vadd.f32 %v1717, %v1718
      %v1720 = vsel %vm322, %v1698, 0.0
      %v1721 = vrot.slane %v1720, 4
      %v1722 = vadd.f32 %v1720, %v1721
      %v1723 = vrot.slane %v1722, 2
      %v1724 = vadd.f32 %v1722, %v1723
      %v1725 = vrot.slane %v1724, 1
      %v1726 = vadd.f32 %v1724, %v1725
      %v1727 = vadd.f32 %v1705, %v355
      %v1728 = vadd.f32 %v1712, %v359
      %v1729 = vadd.f32 %v1719, %v363
      %v1730 = vadd.f32 %v1726, %v367
      %v1735 = vcombine.low %v1727, %v1728
      %v1736 = vcombine.low %v1729, %v1730
      %v1738 = vunpack.c.l.s4 1966171168
      %v1739 = vunpack.c.0.s8 %v1738
      %v1740 = vlaneseq
      %v1741 = vshrl.u32 %v1740, 7
      %v1742 = vsub.s32 %v1739, %v1741
      %v1743 = vrot.slane %v1735, %v1742
      %v1745 = vunpack.c.l.s4 1966171168
      %v1746 = vunpack.c.0.s8 %v1745
      %v1747 = vlaneseq
      %v1748 = vshrl.u32 %v1747, 7
      %v1749 = vsub.s32 %v1746, %v1748
      %v1750 = vrot.slane %v1736, %v1749
      %v1751 = vcombine.low %v1743, %v1750
      %v1753 = vunpack.c.l.s4 1966171168
      %v1754 = vunpack.c.0.s8 %v1753
      %v1755 = vlaneseq
      %v1756 = vshrl.u32 %v1755, 7
      %v1757 = vsub.s32 %v1754, %v1756
      %v1758 = vrot.slane %v1751, %v1757
      %s1760 = scalar_lea.vmem [#allocation2], 65
      %1761 = vst.msk [vmem:[%s1760] ss:$8 sm:$0xf] %vm408, %v1758
      %1762 = vst.msk [vmem:[%s1760] ss:$8 sm:$0x0] %vm408, %v1758
      %v1763 = vmul.f32 %v1691, %v507
      %v1764 = vmul.f32 %v1692, %v511
      %v1765 = vmul.f32 %v1693, %v515
      %v1766 = vmul.f32 %v1694, %v519
      %v1767 = vadd.f32 %v1686, %v1763
      %v1768 = vadd.f32 %v1687, %v1764
      %v1769 = vadd.f32 %v1688, %v1765
      %v1770 = vadd.f32 %v1689, %v1766
      %s1771 = scalar_lea.vmem %s224, 512
      %v1772 = vld [vmem:[%s1771] sm:$0x7f]
      %v1773 = vld [vmem:[%s1771 + $0x8] sm:$0x7f]
      %v1774 = vld [vmem:[%s1771 + $0x10] sm:$0x7f]
      %v1775 = vld [vmem:[%s1771 + $0x18] sm:$0x7f]
      %v1776 = vmul.f32 %v1772, %v233
      %v1777 = vmul.f32 %v1773, %v234
      %v1778 = vmul.f32 %v1774, %v235
      %v1779 = vmul.f32 %v1775, %v236
      %v1780 = vsel %vm322, %v1776, 0.0
      %v1781 = vrot.slane %v1780, 4
      %v1782 = vadd.f32 %v1780, %v1781
      %v1783 = vrot.slane %v1782, 2
      %v1784 = vadd.f32 %v1782, %v1783
      %v1785 = vrot.slane %v1784, 1
      %v1786 = vadd.f32 %v1784, %v1785
      %v1787 = vsel %vm322, %v1777, 0.0
      %v1788 = vrot.slane %v1787, 4
      %v1789 = vadd.f32 %v1787, %v1788
      %v1790 = vrot.slane %v1789, 2
      %v1791 = vadd.f32 %v1789, %v1790
      %v1792 = vrot.slane %v1791, 1
      %v1793 = vadd.f32 %v1791, %v1792
      %v1794 = vsel %vm322, %v1778, 0.0
      %v1795 = vrot.slane %v1794, 4
      %v1796 = vadd.f32 %v1794, %v1795
      %v1797 = vrot.slane %v1796, 2
      %v1798 = vadd.f32 %v1796, %v1797
      %v1799 = vrot.slane %v1798, 1
      %v1800 = vadd.f32 %v1798, %v1799
      %v1801 = vsel %vm322, %v1779, 0.0
      %v1802 = vrot.slane %v1801, 4
      %v1803 = vadd.f32 %v1801, %v1802
      %v1804 = vrot.slane %v1803, 2
      %v1805 = vadd.f32 %v1803, %v1804
      %v1806 = vrot.slane %v1805, 1
      %v1807 = vadd.f32 %v1805, %v1806
      %v1808 = vadd.f32 %v1786, %v355
      %v1809 = vadd.f32 %v1793, %v359
      %v1810 = vadd.f32 %v1800, %v363
      %v1811 = vadd.f32 %v1807, %v367
      %v1816 = vcombine.low %v1808, %v1809
      %v1817 = vcombine.low %v1810, %v1811
      %v1819 = vunpack.c.l.s4 1966171168
      %v1820 = vunpack.c.0.s8 %v1819
      %v1821 = vlaneseq
      %v1822 = vshrl.u32 %v1821, 7
      %v1823 = vsub.s32 %v1820, %v1822
      %v1824 = vrot.slane %v1816, %v1823
      %v1826 = vunpack.c.l.s4 1966171168
      %v1827 = vunpack.c.0.s8 %v1826
      %v1828 = vlaneseq
      %v1829 = vshrl.u32 %v1828, 7
      %v1830 = vsub.s32 %v1827, %v1829
      %v1831 = vrot.slane %v1817, %v1830
      %v1832 = vcombine.low %v1824, %v1831
      %v1834 = vunpack.c.l.s4 1966171168
      %v1835 = vunpack.c.0.s8 %v1834
      %v1836 = vlaneseq
      %v1837 = vshrl.u32 %v1836, 7
      %v1838 = vsub.s32 %v1835, %v1837
      %v1839 = vrot.slane %v1832, %v1838
      %s1841 = scalar_lea.vmem [#allocation2], 66
      %1842 = vst.msk [vmem:[%s1841] ss:$8 sm:$0xf] %vm408, %v1839
      %1843 = vst.msk [vmem:[%s1841] ss:$8 sm:$0x0] %vm408, %v1839
      %v1844 = vmul.f32 %v1772, %v604
      %v1845 = vmul.f32 %v1773, %v608
      %v1846 = vmul.f32 %v1774, %v612
      %v1847 = vmul.f32 %v1775, %v616
      %v1848 = vadd.f32 %v1767, %v1844
      %v1849 = vadd.f32 %v1768, %v1845
      %v1850 = vadd.f32 %v1769, %v1846
      %v1851 = vadd.f32 %v1770, %v1847
      %s1852 = scalar_lea.vmem %s224, 544
      %v1853 = vld [vmem:[%s1852] sm:$0x7f]
      %v1854 = vld [vmem:[%s1852 + $0x8] sm:$0x7f]
      %v1855 = vld [vmem:[%s1852 + $0x10] sm:$0x7f]
      %v1856 = vld [vmem:[%s1852 + $0x18] sm:$0x7f]
      %v1857 = vmul.f32 %v1853, %v233
      %v1858 = vmul.f32 %v1854, %v234
      %v1859 = vmul.f32 %v1855, %v235
      %v1860 = vmul.f32 %v1856, %v236
      %v1861 = vsel %vm322, %v1857, 0.0
      %v1862 = vrot.slane %v1861, 4
      %v1863 = vadd.f32 %v1861, %v1862
      %v1864 = vrot.slane %v1863, 2
      %v1865 = vadd.f32 %v1863, %v1864
      %v1866 = vrot.slane %v1865, 1
      %v1867 = vadd.f32 %v1865, %v1866
      %v1868 = vsel %vm322, %v1858, 0.0
      %v1869 = vrot.slane %v1868, 4
      %v1870 = vadd.f32 %v1868, %v1869
      %v1871 = vrot.slane %v1870, 2
      %v1872 = vadd.f32 %v1870, %v1871
      %v1873 = vrot.slane %v1872, 1
      %v1874 = vadd.f32 %v1872, %v1873
      %v1875 = vsel %vm322, %v1859, 0.0
      %v1876 = vrot.slane %v1875, 4
      %v1877 = vadd.f32 %v1875, %v1876
      %v1878 = vrot.slane %v1877, 2
      %v1879 = vadd.f32 %v1877, %v1878
      %v1880 = vrot.slane %v1879, 1
      %v1881 = vadd.f32 %v1879, %v1880
      %v1882 = vsel %vm322, %v1860, 0.0
      %v1883 = vrot.slane %v1882, 4
      %v1884 = vadd.f32 %v1882, %v1883
      %v1885 = vrot.slane %v1884, 2
      %v1886 = vadd.f32 %v1884, %v1885
      %v1887 = vrot.slane %v1886, 1
      %v1888 = vadd.f32 %v1886, %v1887
      %v1889 = vadd.f32 %v1867, %v355
      %v1890 = vadd.f32 %v1874, %v359
      %v1891 = vadd.f32 %v1881, %v363
      %v1892 = vadd.f32 %v1888, %v367
      %v1897 = vcombine.low %v1889, %v1890
      %v1898 = vcombine.low %v1891, %v1892
      %v1900 = vunpack.c.l.s4 1966171168
      %v1901 = vunpack.c.0.s8 %v1900
      %v1902 = vlaneseq
      %v1903 = vshrl.u32 %v1902, 7
      %v1904 = vsub.s32 %v1901, %v1903
      %v1905 = vrot.slane %v1897, %v1904
      %v1907 = vunpack.c.l.s4 1966171168
      %v1908 = vunpack.c.0.s8 %v1907
      %v1909 = vlaneseq
      %v1910 = vshrl.u32 %v1909, 7
      %v1911 = vsub.s32 %v1908, %v1910
      %v1912 = vrot.slane %v1898, %v1911
      %v1913 = vcombine.low %v1905, %v1912
      %v1915 = vunpack.c.l.s4 1966171168
      %v1916 = vunpack.c.0.s8 %v1915
      %v1917 = vlaneseq
      %v1918 = vshrl.u32 %v1917, 7
      %v1919 = vsub.s32 %v1916, %v1918
      %v1920 = vrot.slane %v1913, %v1919
      %s1922 = scalar_lea.vmem [#allocation2], 67
      %1923 = vst.msk [vmem:[%s1922] ss:$8 sm:$0xf] %vm408, %v1920
      %1924 = vst.msk [vmem:[%s1922] ss:$8 sm:$0x0] %vm408, %v1920
      %v1925 = vmul.f32 %v1853, %v701
      %v1926 = vmul.f32 %v1854, %v705
      %v1927 = vmul.f32 %v1855, %v709
      %v1928 = vmul.f32 %v1856, %v713
      %v1929 = vadd.f32 %v1848, %v1925
      %v1930 = vadd.f32 %v1849, %v1926
      %v1931 = vadd.f32 %v1850, %v1927
      %v1932 = vadd.f32 %v1851, %v1928
      %s1933 = scalar_lea.vmem %s224, 576
      %v1934 = vld [vmem:[%s1933] sm:$0x7f]
      %v1935 = vld [vmem:[%s1933 + $0x8] sm:$0x7f]
      %v1936 = vld [vmem:[%s1933 + $0x10] sm:$0x7f]
      %v1937 = vld [vmem:[%s1933 + $0x18] sm:$0x7f]
      %v1938 = vmul.f32 %v1934, %v233
      %v1939 = vmul.f32 %v1935, %v234
      %v1940 = vmul.f32 %v1936, %v235
      %v1941 = vmul.f32 %v1937, %v236
      %v1942 = vsel %vm322, %v1938, 0.0
      %v1943 = vrot.slane %v1942, 4
      %v1944 = vadd.f32 %v1942, %v1943
      %v1945 = vrot.slane %v1944, 2
      %v1946 = vadd.f32 %v1944, %v1945
      %v1947 = vrot.slane %v1946, 1
      %v1948 = vadd.f32 %v1946, %v1947
      %v1949 = vsel %vm322, %v1939, 0.0
      %v1950 = vrot.slane %v1949, 4
      %v1951 = vadd.f32 %v1949, %v1950
      %v1952 = vrot.slane %v1951, 2
      %v1953 = vadd.f32 %v1951, %v1952
      %v1954 = vrot.slane %v1953, 1
      %v1955 = vadd.f32 %v1953, %v1954
      %v1956 = vsel %vm322, %v1940, 0.0
      %v1957 = vrot.slane %v1956, 4
      %v1958 = vadd.f32 %v1956, %v1957
      %v1959 = vrot.slane %v1958, 2
      %v1960 = vadd.f32 %v1958, %v1959
      %v1961 = vrot.slane %v1960, 1
      %v1962 = vadd.f32 %v1960, %v1961
      %v1963 = vsel %vm322, %v1941, 0.0
      %v1964 = vrot.slane %v1963, 4
      %v1965 = vadd.f32 %v1963, %v1964
      %v1966 = vrot.slane %v1965, 2
      %v1967 = vadd.f32 %v1965, %v1966
      %v1968 = vrot.slane %v1967, 1
      %v1969 = vadd.f32 %v1967, %v1968
      %v1970 = vadd.f32 %v1948, %v355
      %v1971 = vadd.f32 %v1955, %v359
      %v1972 = vadd.f32 %v1962, %v363
      %v1973 = vadd.f32 %v1969, %v367
      %v1978 = vcombine.low %v1970, %v1971
      %v1979 = vcombine.low %v1972, %v1973
      %v1981 = vunpack.c.l.s4 1966171168
      %v1982 = vunpack.c.0.s8 %v1981
      %v1983 = vlaneseq
      %v1984 = vshrl.u32 %v1983, 7
      %v1985 = vsub.s32 %v1982, %v1984
      %v1986 = vrot.slane %v1978, %v1985
      %v1988 = vunpack.c.l.s4 1966171168
      %v1989 = vunpack.c.0.s8 %v1988
      %v1990 = vlaneseq
      %v1991 = vshrl.u32 %v1990, 7
      %v1992 = vsub.s32 %v1989, %v1991
      %v1993 = vrot.slane %v1979, %v1992
      %v1994 = vcombine.low %v1986, %v1993
      %v1996 = vunpack.c.l.s4 1966171168
      %v1997 = vunpack.c.0.s8 %v1996
      %v1998 = vlaneseq
      %v1999 = vshrl.u32 %v1998, 7
      %v2000 = vsub.s32 %v1997, %v1999
      %v2001 = vrot.slane %v1994, %v2000
      %s2003 = scalar_lea.vmem [#allocation2], 68
      %2004 = vst.msk [vmem:[%s2003] ss:$8 sm:$0xf] %vm408, %v2001
      %2005 = vst.msk [vmem:[%s2003] ss:$8 sm:$0x0] %vm408, %v2001
      %v2006 = vmul.f32 %v1934, %v798
      %v2007 = vmul.f32 %v1935, %v802
      %v2008 = vmul.f32 %v1936, %v806
      %v2009 = vmul.f32 %v1937, %v810
      %v2010 = vadd.f32 %v1929, %v2006
      %v2011 = vadd.f32 %v1930, %v2007
      %v2012 = vadd.f32 %v1931, %v2008
      %v2013 = vadd.f32 %v1932, %v2009
      %s2014 = scalar_lea.vmem %s224, 608
      %v2015 = vld [vmem:[%s2014] sm:$0x7f]
      %v2016 = vld [vmem:[%s2014 + $0x8] sm:$0x7f]
      %v2017 = vld [vmem:[%s2014 + $0x10] sm:$0x7f]
      %v2018 = vld [vmem:[%s2014 + $0x18] sm:$0x7f]
      %v2019 = vmul.f32 %v2015, %v233
      %v2020 = vmul.f32 %v2016, %v234
      %v2021 = vmul.f32 %v2017, %v235
      %v2022 = vmul.f32 %v2018, %v236
      %v2023 = vsel %vm322, %v2019, 0.0
      %v2024 = vrot.slane %v2023, 4
      %v2025 = vadd.f32 %v2023, %v2024
      %v2026 = vrot.slane %v2025, 2
      %v2027 = vadd.f32 %v2025, %v2026
      %v2028 = vrot.slane %v2027, 1
      %v2029 = vadd.f32 %v2027, %v2028
      %v2030 = vsel %vm322, %v2020, 0.0
      %v2031 = vrot.slane %v2030, 4
      %v2032 = vadd.f32 %v2030, %v2031
      %v2033 = vrot.slane %v2032, 2
      %v2034 = vadd.f32 %v2032, %v2033
      %v2035 = vrot.slane %v2034, 1
      %v2036 = vadd.f32 %v2034, %v2035
      %v2037 = vsel %vm322, %v2021, 0.0
      %v2038 = vrot.slane %v2037, 4
      %v2039 = vadd.f32 %v2037, %v2038
      %v2040 = vrot.slane %v2039, 2
      %v2041 = vadd.f32 %v2039, %v2040
      %v2042 = vrot.slane %v2041, 1
      %v2043 = vadd.f32 %v2041, %v2042
      %v2044 = vsel %vm322, %v2022, 0.0
      %v2045 = vrot.slane %v2044, 4
      %v2046 = vadd.f32 %v2044, %v2045
      %v2047 = vrot.slane %v2046, 2
      %v2048 = vadd.f32 %v2046, %v2047
      %v2049 = vrot.slane %v2048, 1
      %v2050 = vadd.f32 %v2048, %v2049
      %v2051 = vadd.f32 %v2029, %v355
      %v2052 = vadd.f32 %v2036, %v359
      %v2053 = vadd.f32 %v2043, %v363
      %v2054 = vadd.f32 %v2050, %v367
      %v2059 = vcombine.low %v2051, %v2052
      %v2060 = vcombine.low %v2053, %v2054
      %v2062 = vunpack.c.l.s4 1966171168
      %v2063 = vunpack.c.0.s8 %v2062
      %v2064 = vlaneseq
      %v2065 = vshrl.u32 %v2064, 7
      %v2066 = vsub.s32 %v2063, %v2065
      %v2067 = vrot.slane %v2059, %v2066
      %v2069 = vunpack.c.l.s4 1966171168
      %v2070 = vunpack.c.0.s8 %v2069
      %v2071 = vlaneseq
      %v2072 = vshrl.u32 %v2071, 7
      %v2073 = vsub.s32 %v2070, %v2072
      %v2074 = vrot.slane %v2060, %v2073
      %v2075 = vcombine.low %v2067, %v2074
      %v2077 = vunpack.c.l.s4 1966171168
      %v2078 = vunpack.c.0.s8 %v2077
      %v2079 = vlaneseq
      %v2080 = vshrl.u32 %v2079, 7
      %v2081 = vsub.s32 %v2078, %v2080
      %v2082 = vrot.slane %v2075, %v2081
      %s2084 = scalar_lea.vmem [#allocation2], 69
      %2085 = vst.msk [vmem:[%s2084] ss:$8 sm:$0xf] %vm408, %v2082
      %2086 = vst.msk [vmem:[%s2084] ss:$8 sm:$0x0] %vm408, %v2082
      %v2087 = vmul.f32 %v2015, %v895
      %v2088 = vmul.f32 %v2016, %v899
      %v2089 = vmul.f32 %v2017, %v903
      %v2090 = vmul.f32 %v2018, %v907
      %v2091 = vadd.f32 %v2010, %v2087
      %v2092 = vadd.f32 %v2011, %v2088
      %v2093 = vadd.f32 %v2012, %v2089
      %v2094 = vadd.f32 %v2013, %v2090
      %s2095 = scalar_lea.vmem %s224, 640
      %v2096 = vld [vmem:[%s2095] sm:$0x7f]
      %v2097 = vld [vmem:[%s2095 + $0x8] sm:$0x7f]
      %v2098 = vld [vmem:[%s2095 + $0x10] sm:$0x7f]
      %v2099 = vld [vmem:[%s2095 + $0x18] sm:$0x7f]
      %v2100 = vmul.f32 %v2096, %v233
      %v2101 = vmul.f32 %v2097, %v234
      %v2102 = vmul.f32 %v2098, %v235
      %v2103 = vmul.f32 %v2099, %v236
      %v2104 = vsel %vm322, %v2100, 0.0
      %v2105 = vrot.slane %v2104, 4
      %v2106 = vadd.f32 %v2104, %v2105
      %v2107 = vrot.slane %v2106, 2
      %v2108 = vadd.f32 %v2106, %v2107
      %v2109 = vrot.slane %v2108, 1
      %v2110 = vadd.f32 %v2108, %v2109
      %v2111 = vsel %vm322, %v2101, 0.0
      %v2112 = vrot.slane %v2111, 4
      %v2113 = vadd.f32 %v2111, %v2112
      %v2114 = vrot.slane %v2113, 2
      %v2115 = vadd.f32 %v2113, %v2114
      %v2116 = vrot.slane %v2115, 1
      %v2117 = vadd.f32 %v2115, %v2116
      %v2118 = vsel %vm322, %v2102, 0.0
      %v2119 = vrot.slane %v2118, 4
      %v2120 = vadd.f32 %v2118, %v2119
      %v2121 = vrot.slane %v2120, 2
      %v2122 = vadd.f32 %v2120, %v2121
      %v2123 = vrot.slane %v2122, 1
      %v2124 = vadd.f32 %v2122, %v2123
      %v2125 = vsel %vm322, %v2103, 0.0
      %v2126 = vrot.slane %v2125, 4
      %v2127 = vadd.f32 %v2125, %v2126
      %v2128 = vrot.slane %v2127, 2
      %v2129 = vadd.f32 %v2127, %v2128
      %v2130 = vrot.slane %v2129, 1
      %v2131 = vadd.f32 %v2129, %v2130
      %v2132 = vadd.f32 %v2110, %v355
      %v2133 = vadd.f32 %v2117, %v359
      %v2134 = vadd.f32 %v2124, %v363
      %v2135 = vadd.f32 %v2131, %v367
      %v2140 = vcombine.low %v2132, %v2133
      %v2141 = vcombine.low %v2134, %v2135
      %v2143 = vunpack.c.l.s4 1966171168
      %v2144 = vunpack.c.0.s8 %v2143
      %v2145 = vlaneseq
      %v2146 = vshrl.u32 %v2145, 7
      %v2147 = vsub.s32 %v2144, %v2146
      %v2148 = vrot.slane %v2140, %v2147
      %v2150 = vunpack.c.l.s4 1966171168
      %v2151 = vunpack.c.0.s8 %v2150
      %v2152 = vlaneseq
      %v2153 = vshrl.u32 %v2152, 7
      %v2154 = vsub.s32 %v2151, %v2153
      %v2155 = vrot.slane %v2141, %v2154
      %v2156 = vcombine.low %v2148, %v2155
      %v2158 = vunpack.c.l.s4 1966171168
      %v2159 = vunpack.c.0.s8 %v2158
      %v2160 = vlaneseq
      %v2161 = vshrl.u32 %v2160, 7
      %v2162 = vsub.s32 %v2159, %v2161
      %v2163 = vrot.slane %v2156, %v2162
      %s2165 = scalar_lea.vmem [#allocation2], 70
      %2166 = vst.msk [vmem:[%s2165] ss:$8 sm:$0xf] %vm408, %v2163
      %2167 = vst.msk [vmem:[%s2165] ss:$8 sm:$0x0] %vm408, %v2163
      %v2168 = vmul.f32 %v2096, %v992
      %v2169 = vmul.f32 %v2097, %v996
      %v2170 = vmul.f32 %v2098, %v1000
      %v2171 = vmul.f32 %v2099, %v1004
      %v2172 = vadd.f32 %v2091, %v2168
      %v2173 = vadd.f32 %v2092, %v2169
      %v2174 = vadd.f32 %v2093, %v2170
      %v2175 = vadd.f32 %v2094, %v2171
      %v2176 = vadd.f32 %v2172, %v1017
      %v2177 = vadd.f32 %v2173, %v1021
      %v2178 = vadd.f32 %v2174, %v1025
      %v2179 = vadd.f32 %v2175, %v1029
      %2180 = vst [vmem:[#allocation2 + $0x140] sm:$0x7f] %v2176
      %2181 = vst [vmem:[#allocation2 + $0x148] sm:$0x7f] %v2177
      %2182 = vst [vmem:[#allocation2 + $0x150] sm:$0x7f] %v2178
      %2183 = vst [vmem:[#allocation2 + $0x158] sm:$0x7f] %v2179
      %s2184 = scalar_lea.vmem %s224, 672
      %v2185 = vld [vmem:[%s2184] sm:$0x7f]
      %v2186 = vld [vmem:[%s2184 + $0x8] sm:$0x7f]
      %v2187 = vld [vmem:[%s2184 + $0x10] sm:$0x7f]
      %v2188 = vld [vmem:[%s2184 + $0x18] sm:$0x7f]
      %v2189 = vmul.f32 %v2185, %v233
      %v2190 = vmul.f32 %v2186, %v234
      %v2191 = vmul.f32 %v2187, %v235
      %v2192 = vmul.f32 %v2188, %v236
      %v2193 = vsel %vm322, %v2189, 0.0
      %v2194 = vrot.slane %v2193, 4
      %v2195 = vadd.f32 %v2193, %v2194
      %v2196 = vrot.slane %v2195, 2
      %v2197 = vadd.f32 %v2195, %v2196
      %v2198 = vrot.slane %v2197, 1
      %v2199 = vadd.f32 %v2197, %v2198
      %v2200 = vsel %vm322, %v2190, 0.0
      %v2201 = vrot.slane %v2200, 4
      %v2202 = vadd.f32 %v2200, %v2201
      %v2203 = vrot.slane %v2202, 2
      %v2204 = vadd.f32 %v2202, %v2203
      %v2205 = vrot.slane %v2204, 1
      %v2206 = vadd.f32 %v2204, %v2205
      %v2207 = vsel %vm322, %v2191, 0.0
      %v2208 = vrot.slane %v2207, 4
      %v2209 = vadd.f32 %v2207, %v2208
      %v2210 = vrot.slane %v2209, 2
      %v2211 = vadd.f32 %v2209, %v2210
      %v2212 = vrot.slane %v2211, 1
      %v2213 = vadd.f32 %v2211, %v2212
      %v2214 = vsel %vm322, %v2192, 0.0
      %v2215 = vrot.slane %v2214, 4
      %v2216 = vadd.f32 %v2214, %v2215
      %v2217 = vrot.slane %v2216, 2
      %v2218 = vadd.f32 %v2216, %v2217
      %v2219 = vrot.slane %v2218, 1
      %v2220 = vadd.f32 %v2218, %v2219
      %v2221 = vadd.f32 %v2199, %v355
      %v2222 = vadd.f32 %v2206, %v359
      %v2223 = vadd.f32 %v2213, %v363
      %v2224 = vadd.f32 %v2220, %v367
      %v2229 = vcombine.low %v2221, %v2222
      %v2230 = vcombine.low %v2223, %v2224
      %v2232 = vunpack.c.l.s4 1966171168
      %v2233 = vunpack.c.0.s8 %v2232
      %v2234 = vlaneseq
      %v2235 = vshrl.u32 %v2234, 7
      %v2236 = vsub.s32 %v2233, %v2235
      %v2237 = vrot.slane %v2229, %v2236
      %v2239 = vunpack.c.l.s4 1966171168
      %v2240 = vunpack.c.0.s8 %v2239
      %v2241 = vlaneseq
      %v2242 = vshrl.u32 %v2241, 7
      %v2243 = vsub.s32 %v2240, %v2242
      %v2244 = vrot.slane %v2230, %v2243
      %v2245 = vcombine.low %v2237, %v2244
      %v2247 = vunpack.c.l.s4 1966171168
      %v2248 = vunpack.c.0.s8 %v2247
      %v2249 = vlaneseq
      %v2250 = vshrl.u32 %v2249, 7
      %v2251 = vsub.s32 %v2248, %v2250
      %v2252 = vrot.slane %v2245, %v2251
      %s2254 = scalar_lea.vmem [#allocation2], 96
      %2255 = vst.msk [vmem:[%s2254] ss:$8 sm:$0xf] %vm408, %v2252
      %2256 = vst.msk [vmem:[%s2254] ss:$8 sm:$0x0] %vm408, %v2252
      %v2257 = vmul.f32 %v2185, %v414
      %v2258 = vmul.f32 %v2186, %v418
      %v2259 = vmul.f32 %v2187, %v422
      %v2260 = vmul.f32 %v2188, %v426
      %s2261 = scalar_lea.vmem %s224, 704
      %v2262 = vld [vmem:[%s2261] sm:$0x7f]
      %v2263 = vld [vmem:[%s2261 + $0x8] sm:$0x7f]
      %v2264 = vld [vmem:[%s2261 + $0x10] sm:$0x7f]
      %v2265 = vld [vmem:[%s2261 + $0x18] sm:$0x7f]
      %v2266 = vmul.f32 %v2262, %v233
      %v2267 = vmul.f32 %v2263, %v234
      %v2268 = vmul.f32 %v2264, %v235
      %v2269 = vmul.f32 %v2265, %v236
      %v2270 = vsel %vm322, %v2266, 0.0
      %v2271 = vrot.slane %v2270, 4
      %v2272 = vadd.f32 %v2270, %v2271
      %v2273 = vrot.slane %v2272, 2
      %v2274 = vadd.f32 %v2272, %v2273
      %v2275 = vrot.slane %v2274, 1
      %v2276 = vadd.f32 %v2274, %v2275
      %v2277 = vsel %vm322, %v2267, 0.0
      %v2278 = vrot.slane %v2277, 4
      %v2279 = vadd.f32 %v2277, %v2278
      %v2280 = vrot.slane %v2279, 2
      %v2281 = vadd.f32 %v2279, %v2280
      %v2282 = vrot.slane %v2281, 1
      %v2283 = vadd.f32 %v2281, %v2282
      %v2284 = vsel %vm322, %v2268, 0.0
      %v2285 = vrot.slane %v2284, 4
      %v2286 = vadd.f32 %v2284, %v2285
      %v2287 = vrot.slane %v2286, 2
      %v2288 = vadd.f32 %v2286, %v2287
      %v2289 = vrot.slane %v2288, 1
      %v2290 = vadd.f32 %v2288, %v2289
      %v2291 = vsel %vm322, %v2269, 0.0
      %v2292 = vrot.slane %v2291, 4
      %v2293 = vadd.f32 %v2291, %v2292
      %v2294 = vrot.slane %v2293, 2
      %v2295 = vadd.f32 %v2293, %v2294
      %v2296 = vrot.slane %v2295, 1
      %v2297 = vadd.f32 %v2295, %v2296
      %v2298 = vadd.f32 %v2276, %v355
      %v2299 = vadd.f32 %v2283, %v359
      %v2300 = vadd.f32 %v2290, %v363
      %v2301 = vadd.f32 %v2297, %v367
      %v2306 = vcombine.low %v2298, %v2299
      %v2307 = vcombine.low %v2300, %v2301
      %v2309 = vunpack.c.l.s4 1966171168
      %v2310 = vunpack.c.0.s8 %v2309
      %v2311 = vlaneseq
      %v2312 = vshrl.u32 %v2311, 7
      %v2313 = vsub.s32 %v2310, %v2312
      %v2314 = vrot.slane %v2306, %v2313
      %v2316 = vunpack.c.l.s4 1966171168
      %v2317 = vunpack.c.0.s8 %v2316
      %v2318 = vlaneseq
      %v2319 = vshrl.u32 %v2318, 7
      %v2320 = vsub.s32 %v2317, %v2319
      %v2321 = vrot.slane %v2307, %v2320
      %v2322 = vcombine.low %v2314, %v2321
      %v2324 = vunpack.c.l.s4 1966171168
      %v2325 = vunpack.c.0.s8 %v2324
      %v2326 = vlaneseq
      %v2327 = vshrl.u32 %v2326, 7
      %v2328 = vsub.s32 %v2325, %v2327
      %v2329 = vrot.slane %v2322, %v2328
      %s2331 = scalar_lea.vmem [#allocation2], 97
      %2332 = vst.msk [vmem:[%s2331] ss:$8 sm:$0xf] %vm408, %v2329
      %2333 = vst.msk [vmem:[%s2331] ss:$8 sm:$0x0] %vm408, %v2329
      %v2334 = vmul.f32 %v2262, %v507
      %v2335 = vmul.f32 %v2263, %v511
      %v2336 = vmul.f32 %v2264, %v515
      %v2337 = vmul.f32 %v2265, %v519
      %v2338 = vadd.f32 %v2257, %v2334
      %v2339 = vadd.f32 %v2258, %v2335
      %v2340 = vadd.f32 %v2259, %v2336
      %v2341 = vadd.f32 %v2260, %v2337
      %s2342 = scalar_lea.vmem %s224, 736
      %v2343 = vld [vmem:[%s2342] sm:$0x7f]
      %v2344 = vld [vmem:[%s2342 + $0x8] sm:$0x7f]
      %v2345 = vld [vmem:[%s2342 + $0x10] sm:$0x7f]
      %v2346 = vld [vmem:[%s2342 + $0x18] sm:$0x7f]
      %v2347 = vmul.f32 %v2343, %v233
      %v2348 = vmul.f32 %v2344, %v234
      %v2349 = vmul.f32 %v2345, %v235
      %v2350 = vmul.f32 %v2346, %v236
      %v2351 = vsel %vm322, %v2347, 0.0
      %v2352 = vrot.slane %v2351, 4
      %v2353 = vadd.f32 %v2351, %v2352
      %v2354 = vrot.slane %v2353, 2
      %v2355 = vadd.f32 %v2353, %v2354
      %v2356 = vrot.slane %v2355, 1
      %v2357 = vadd.f32 %v2355, %v2356
      %v2358 = vsel %vm322, %v2348, 0.0
      %v2359 = vrot.slane %v2358, 4
      %v2360 = vadd.f32 %v2358, %v2359
      %v2361 = vrot.slane %v2360, 2
      %v2362 = vadd.f32 %v2360, %v2361
      %v2363 = vrot.slane %v2362, 1
      %v2364 = vadd.f32 %v2362, %v2363
      %v2365 = vsel %vm322, %v2349, 0.0
      %v2366 = vrot.slane %v2365, 4
      %v2367 = vadd.f32 %v2365, %v2366
      %v2368 = vrot.slane %v2367, 2
      %v2369 = vadd.f32 %v2367, %v2368
      %v2370 = vrot.slane %v2369, 1
      %v2371 = vadd.f32 %v2369, %v2370
      %v2372 = vsel %vm322, %v2350, 0.0
      %v2373 = vrot.slane %v2372, 4
      %v2374 = vadd.f32 %v2372, %v2373
      %v2375 = vrot.slane %v2374, 2
      %v2376 = vadd.f32 %v2374, %v2375
      %v2377 = vrot.slane %v2376, 1
      %v2378 = vadd.f32 %v2376, %v2377
      %v2379 = vadd.f32 %v2357, %v355
      %v2380 = vadd.f32 %v2364, %v359
      %v2381 = vadd.f32 %v2371, %v363
      %v2382 = vadd.f32 %v2378, %v367
      %v2387 = vcombine.low %v2379, %v2380
      %v2388 = vcombine.low %v2381, %v2382
      %v2390 = vunpack.c.l.s4 1966171168
      %v2391 = vunpack.c.0.s8 %v2390
      %v2392 = vlaneseq
      %v2393 = vshrl.u32 %v2392, 7
      %v2394 = vsub.s32 %v2391, %v2393
      %v2395 = vrot.slane %v2387, %v2394
      %v2397 = vunpack.c.l.s4 1966171168
      %v2398 = vunpack.c.0.s8 %v2397
      %v2399 = vlaneseq
      %v2400 = vshrl.u32 %v2399, 7
      %v2401 = vsub.s32 %v2398, %v2400
      %v2402 = vrot.slane %v2388, %v2401
      %v2403 = vcombine.low %v2395, %v2402
      %v2405 = vunpack.c.l.s4 1966171168
      %v2406 = vunpack.c.0.s8 %v2405
      %v2407 = vlaneseq
      %v2408 = vshrl.u32 %v2407, 7
      %v2409 = vsub.s32 %v2406, %v2408
      %v2410 = vrot.slane %v2403, %v2409
      %s2412 = scalar_lea.vmem [#allocation2], 98
      %2413 = vst.msk [vmem:[%s2412] ss:$8 sm:$0xf] %vm408, %v2410
      %2414 = vst.msk [vmem:[%s2412] ss:$8 sm:$0x0] %vm408, %v2410
      %v2415 = vmul.f32 %v2343, %v604
      %v2416 = vmul.f32 %v2344, %v608
      %v2417 = vmul.f32 %v2345, %v612
      %v2418 = vmul.f32 %v2346, %v616
      %v2419 = vadd.f32 %v2338, %v2415
      %v2420 = vadd.f32 %v2339, %v2416
      %v2421 = vadd.f32 %v2340, %v2417
      %v2422 = vadd.f32 %v2341, %v2418
      %s2423 = scalar_lea.vmem %s224, 768
      %v2424 = vld [vmem:[%s2423] sm:$0x7f]
      %v2425 = vld [vmem:[%s2423 + $0x8] sm:$0x7f]
      %v2426 = vld [vmem:[%s2423 + $0x10] sm:$0x7f]
      %v2427 = vld [vmem:[%s2423 + $0x18] sm:$0x7f]
      %v2428 = vmul.f32 %v2424, %v233
      %v2429 = vmul.f32 %v2425, %v234
      %v2430 = vmul.f32 %v2426, %v235
      %v2431 = vmul.f32 %v2427, %v236
      %v2432 = vsel %vm322, %v2428, 0.0
      %v2433 = vrot.slane %v2432, 4
      %v2434 = vadd.f32 %v2432, %v2433
      %v2435 = vrot.slane %v2434, 2
      %v2436 = vadd.f32 %v2434, %v2435
      %v2437 = vrot.slane %v2436, 1
      %v2438 = vadd.f32 %v2436, %v2437
      %v2439 = vsel %vm322, %v2429, 0.0
      %v2440 = vrot.slane %v2439, 4
      %v2441 = vadd.f32 %v2439, %v2440
      %v2442 = vrot.slane %v2441, 2
      %v2443 = vadd.f32 %v2441, %v2442
      %v2444 = vrot.slane %v2443, 1
      %v2445 = vadd.f32 %v2443, %v2444
      %v2446 = vsel %vm322, %v2430, 0.0
      %v2447 = vrot.slane %v2446, 4
      %v2448 = vadd.f32 %v2446, %v2447
      %v2449 = vrot.slane %v2448, 2
      %v2450 = vadd.f32 %v2448, %v2449
      %v2451 = vrot.slane %v2450, 1
      %v2452 = vadd.f32 %v2450, %v2451
      %v2453 = vsel %vm322, %v2431, 0.0
      %v2454 = vrot.slane %v2453, 4
      %v2455 = vadd.f32 %v2453, %v2454
      %v2456 = vrot.slane %v2455, 2
      %v2457 = vadd.f32 %v2455, %v2456
      %v2458 = vrot.slane %v2457, 1
      %v2459 = vadd.f32 %v2457, %v2458
      %v2460 = vadd.f32 %v2438, %v355
      %v2461 = vadd.f32 %v2445, %v359
      %v2462 = vadd.f32 %v2452, %v363
      %v2463 = vadd.f32 %v2459, %v367
      %v2468 = vcombine.low %v2460, %v2461
      %v2469 = vcombine.low %v2462, %v2463
      %v2471 = vunpack.c.l.s4 1966171168
      %v2472 = vunpack.c.0.s8 %v2471
      %v2473 = vlaneseq
      %v2474 = vshrl.u32 %v2473, 7
      %v2475 = vsub.s32 %v2472, %v2474
      %v2476 = vrot.slane %v2468, %v2475
      %v2478 = vunpack.c.l.s4 1966171168
      %v2479 = vunpack.c.0.s8 %v2478
      %v2480 = vlaneseq
      %v2481 = vshrl.u32 %v2480, 7
      %v2482 = vsub.s32 %v2479, %v2481
      %v2483 = vrot.slane %v2469, %v2482
      %v2484 = vcombine.low %v2476, %v2483
      %v2486 = vunpack.c.l.s4 1966171168
      %v2487 = vunpack.c.0.s8 %v2486
      %v2488 = vlaneseq
      %v2489 = vshrl.u32 %v2488, 7
      %v2490 = vsub.s32 %v2487, %v2489
      %v2491 = vrot.slane %v2484, %v2490
      %s2493 = scalar_lea.vmem [#allocation2], 99
      %2494 = vst.msk [vmem:[%s2493] ss:$8 sm:$0xf] %vm408, %v2491
      %2495 = vst.msk [vmem:[%s2493] ss:$8 sm:$0x0] %vm408, %v2491
      %v2496 = vmul.f32 %v2424, %v701
      %v2497 = vmul.f32 %v2425, %v705
      %v2498 = vmul.f32 %v2426, %v709
      %v2499 = vmul.f32 %v2427, %v713
      %v2500 = vadd.f32 %v2419, %v2496
      %v2501 = vadd.f32 %v2420, %v2497
      %v2502 = vadd.f32 %v2421, %v2498
      %v2503 = vadd.f32 %v2422, %v2499
      %s2504 = scalar_lea.vmem %s224, 800
      %v2505 = vld [vmem:[%s2504] sm:$0x7f]
      %v2506 = vld [vmem:[%s2504 + $0x8] sm:$0x7f]
      %v2507 = vld [vmem:[%s2504 + $0x10] sm:$0x7f]
      %v2508 = vld [vmem:[%s2504 + $0x18] sm:$0x7f]
      %v2509 = vmul.f32 %v2505, %v233
      %v2510 = vmul.f32 %v2506, %v234
      %v2511 = vmul.f32 %v2507, %v235
      %v2512 = vmul.f32 %v2508, %v236
      %v2513 = vsel %vm322, %v2509, 0.0
      %v2514 = vrot.slane %v2513, 4
      %v2515 = vadd.f32 %v2513, %v2514
      %v2516 = vrot.slane %v2515, 2
      %v2517 = vadd.f32 %v2515, %v2516
      %v2518 = vrot.slane %v2517, 1
      %v2519 = vadd.f32 %v2517, %v2518
      %v2520 = vsel %vm322, %v2510, 0.0
      %v2521 = vrot.slane %v2520, 4
      %v2522 = vadd.f32 %v2520, %v2521
      %v2523 = vrot.slane %v2522, 2
      %v2524 = vadd.f32 %v2522, %v2523
      %v2525 = vrot.slane %v2524, 1
      %v2526 = vadd.f32 %v2524, %v2525
      %v2527 = vsel %vm322, %v2511, 0.0
      %v2528 = vrot.slane %v2527, 4
      %v2529 = vadd.f32 %v2527, %v2528
      %v2530 = vrot.slane %v2529, 2
      %v2531 = vadd.f32 %v2529, %v2530
      %v2532 = vrot.slane %v2531, 1
      %v2533 = vadd.f32 %v2531, %v2532
      %v2534 = vsel %vm322, %v2512, 0.0
      %v2535 = vrot.slane %v2534, 4
      %v2536 = vadd.f32 %v2534, %v2535
      %v2537 = vrot.slane %v2536, 2
      %v2538 = vadd.f32 %v2536, %v2537
      %v2539 = vrot.slane %v2538, 1
      %v2540 = vadd.f32 %v2538, %v2539
      %v2541 = vadd.f32 %v2519, %v355
      %v2542 = vadd.f32 %v2526, %v359
      %v2543 = vadd.f32 %v2533, %v363
      %v2544 = vadd.f32 %v2540, %v367
      %v2549 = vcombine.low %v2541, %v2542
      %v2550 = vcombine.low %v2543, %v2544
      %v2552 = vunpack.c.l.s4 1966171168
      %v2553 = vunpack.c.0.s8 %v2552
      %v2554 = vlaneseq
      %v2555 = vshrl.u32 %v2554, 7
      %v2556 = vsub.s32 %v2553, %v2555
      %v2557 = vrot.slane %v2549, %v2556
      %v2559 = vunpack.c.l.s4 1966171168
      %v2560 = vunpack.c.0.s8 %v2559
      %v2561 = vlaneseq
      %v2562 = vshrl.u32 %v2561, 7
      %v2563 = vsub.s32 %v2560, %v2562
      %v2564 = vrot.slane %v2550, %v2563
      %v2565 = vcombine.low %v2557, %v2564
      %v2567 = vunpack.c.l.s4 1966171168
      %v2568 = vunpack.c.0.s8 %v2567
      %v2569 = vlaneseq
      %v2570 = vshrl.u32 %v2569, 7
      %v2571 = vsub.s32 %v2568, %v2570
      %v2572 = vrot.slane %v2565, %v2571
      %s2574 = scalar_lea.vmem [#allocation2], 100
      %2575 = vst.msk [vmem:[%s2574] ss:$8 sm:$0xf] %vm408, %v2572
      %2576 = vst.msk [vmem:[%s2574] ss:$8 sm:$0x0] %vm408, %v2572
      %v2577 = vmul.f32 %v2505, %v798
      %v2578 = vmul.f32 %v2506, %v802
      %v2579 = vmul.f32 %v2507, %v806
      %v2580 = vmul.f32 %v2508, %v810
      %v2581 = vadd.f32 %v2500, %v2577
      %v2582 = vadd.f32 %v2501, %v2578
      %v2583 = vadd.f32 %v2502, %v2579
      %v2584 = vadd.f32 %v2503, %v2580
      %s2585 = scalar_lea.vmem %s224, 832
      %v2586 = vld [vmem:[%s2585] sm:$0x7f]
      %v2587 = vld [vmem:[%s2585 + $0x8] sm:$0x7f]
      %v2588 = vld [vmem:[%s2585 + $0x10] sm:$0x7f]
      %v2589 = vld [vmem:[%s2585 + $0x18] sm:$0x7f]
      %v2590 = vmul.f32 %v2586, %v233
      %v2591 = vmul.f32 %v2587, %v234
      %v2592 = vmul.f32 %v2588, %v235
      %v2593 = vmul.f32 %v2589, %v236
      %v2594 = vsel %vm322, %v2590, 0.0
      %v2595 = vrot.slane %v2594, 4
      %v2596 = vadd.f32 %v2594, %v2595
      %v2597 = vrot.slane %v2596, 2
      %v2598 = vadd.f32 %v2596, %v2597
      %v2599 = vrot.slane %v2598, 1
      %v2600 = vadd.f32 %v2598, %v2599
      %v2601 = vsel %vm322, %v2591, 0.0
      %v2602 = vrot.slane %v2601, 4
      %v2603 = vadd.f32 %v2601, %v2602
      %v2604 = vrot.slane %v2603, 2
      %v2605 = vadd.f32 %v2603, %v2604
      %v2606 = vrot.slane %v2605, 1
      %v2607 = vadd.f32 %v2605, %v2606
      %v2608 = vsel %vm322, %v2592, 0.0
      %v2609 = vrot.slane %v2608, 4
      %v2610 = vadd.f32 %v2608, %v2609
      %v2611 = vrot.slane %v2610, 2
      %v2612 = vadd.f32 %v2610, %v2611
      %v2613 = vrot.slane %v2612, 1
      %v2614 = vadd.f32 %v2612, %v2613
      %v2615 = vsel %vm322, %v2593, 0.0
      %v2616 = vrot.slane %v2615, 4
      %v2617 = vadd.f32 %v2615, %v2616
      %v2618 = vrot.slane %v2617, 2
      %v2619 = vadd.f32 %v2617, %v2618
      %v2620 = vrot.slane %v2619, 1
      %v2621 = vadd.f32 %v2619, %v2620
      %v2622 = vadd.f32 %v2600, %v355
      %v2623 = vadd.f32 %v2607, %v359
      %v2624 = vadd.f32 %v2614, %v363
      %v2625 = vadd.f32 %v2621, %v367
      %v2630 = vcombine.low %v2622, %v2623
      %v2631 = vcombine.low %v2624, %v2625
      %v2633 = vunpack.c.l.s4 1966171168
      %v2634 = vunpack.c.0.s8 %v2633
      %v2635 = vlaneseq
      %v2636 = vshrl.u32 %v2635, 7
      %v2637 = vsub.s32 %v2634, %v2636
      %v2638 = vrot.slane %v2630, %v2637
      %v2640 = vunpack.c.l.s4 1966171168
      %v2641 = vunpack.c.0.s8 %v2640
      %v2642 = vlaneseq
      %v2643 = vshrl.u32 %v2642, 7
      %v2644 = vsub.s32 %v2641, %v2643
      %v2645 = vrot.slane %v2631, %v2644
      %v2646 = vcombine.low %v2638, %v2645
      %v2648 = vunpack.c.l.s4 1966171168
      %v2649 = vunpack.c.0.s8 %v2648
      %v2650 = vlaneseq
      %v2651 = vshrl.u32 %v2650, 7
      %v2652 = vsub.s32 %v2649, %v2651
      %v2653 = vrot.slane %v2646, %v2652
      %s2655 = scalar_lea.vmem [#allocation2], 101
      %2656 = vst.msk [vmem:[%s2655] ss:$8 sm:$0xf] %vm408, %v2653
      %2657 = vst.msk [vmem:[%s2655] ss:$8 sm:$0x0] %vm408, %v2653
      %v2658 = vmul.f32 %v2586, %v895
      %v2659 = vmul.f32 %v2587, %v899
      %v2660 = vmul.f32 %v2588, %v903
      %v2661 = vmul.f32 %v2589, %v907
      %v2662 = vadd.f32 %v2581, %v2658
      %v2663 = vadd.f32 %v2582, %v2659
      %v2664 = vadd.f32 %v2583, %v2660
      %v2665 = vadd.f32 %v2584, %v2661
      %s2666 = scalar_lea.vmem %s224, 864
      %v2667 = vld [vmem:[%s2666] sm:$0x7f]
      %v2668 = vld [vmem:[%s2666 + $0x8] sm:$0x7f]
      %v2669 = vld [vmem:[%s2666 + $0x10] sm:$0x7f]
      %v2670 = vld [vmem:[%s2666 + $0x18] sm:$0x7f]
      %v2671 = vmul.f32 %v2667, %v233
      %v2672 = vmul.f32 %v2668, %v234
      %v2673 = vmul.f32 %v2669, %v235
      %v2674 = vmul.f32 %v2670, %v236
      %v2675 = vsel %vm322, %v2671, 0.0
      %v2676 = vrot.slane %v2675, 4
      %v2677 = vadd.f32 %v2675, %v2676
      %v2678 = vrot.slane %v2677, 2
      %v2679 = vadd.f32 %v2677, %v2678
      %v2680 = vrot.slane %v2679, 1
      %v2681 = vadd.f32 %v2679, %v2680
      %v2682 = vsel %vm322, %v2672, 0.0
      %v2683 = vrot.slane %v2682, 4
      %v2684 = vadd.f32 %v2682, %v2683
      %v2685 = vrot.slane %v2684, 2
      %v2686 = vadd.f32 %v2684, %v2685
      %v2687 = vrot.slane %v2686, 1
      %v2688 = vadd.f32 %v2686, %v2687
      %v2689 = vsel %vm322, %v2673, 0.0
      %v2690 = vrot.slane %v2689, 4
      %v2691 = vadd.f32 %v2689, %v2690
      %v2692 = vrot.slane %v2691, 2
      %v2693 = vadd.f32 %v2691, %v2692
      %v2694 = vrot.slane %v2693, 1
      %v2695 = vadd.f32 %v2693, %v2694
      %v2696 = vsel %vm322, %v2674, 0.0
      %v2697 = vrot.slane %v2696, 4
      %v2698 = vadd.f32 %v2696, %v2697
      %v2699 = vrot.slane %v2698, 2
      %v2700 = vadd.f32 %v2698, %v2699
      %v2701 = vrot.slane %v2700, 1
      %v2702 = vadd.f32 %v2700, %v2701
      %v2703 = vadd.f32 %v2681, %v355
      %v2704 = vadd.f32 %v2688, %v359
      %v2705 = vadd.f32 %v2695, %v363
      %v2706 = vadd.f32 %v2702, %v367
      %v2711 = vcombine.low %v2703, %v2704
      %v2712 = vcombine.low %v2705, %v2706
      %v2714 = vunpack.c.l.s4 1966171168
      %v2715 = vunpack.c.0.s8 %v2714
      %v2716 = vlaneseq
      %v2717 = vshrl.u32 %v2716, 7
      %v2718 = vsub.s32 %v2715, %v2717
      %v2719 = vrot.slane %v2711, %v2718
      %v2721 = vunpack.c.l.s4 1966171168
      %v2722 = vunpack.c.0.s8 %v2721
      %v2723 = vlaneseq
      %v2724 = vshrl.u32 %v2723, 7
      %v2725 = vsub.s32 %v2722, %v2724
      %v2726 = vrot.slane %v2712, %v2725
      %v2727 = vcombine.low %v2719, %v2726
      %v2729 = vunpack.c.l.s4 1966171168
      %v2730 = vunpack.c.0.s8 %v2729
      %v2731 = vlaneseq
      %v2732 = vshrl.u32 %v2731, 7
      %v2733 = vsub.s32 %v2730, %v2732
      %v2734 = vrot.slane %v2727, %v2733
      %s2736 = scalar_lea.vmem [#allocation2], 102
      %2737 = vst.msk [vmem:[%s2736] ss:$8 sm:$0xf] %vm408, %v2734
      %2738 = vst.msk [vmem:[%s2736] ss:$8 sm:$0x0] %vm408, %v2734
      %v2739 = vmul.f32 %v2667, %v992
      %v2740 = vmul.f32 %v2668, %v996
      %v2741 = vmul.f32 %v2669, %v1000
      %v2742 = vmul.f32 %v2670, %v1004
      %v2743 = vadd.f32 %v2662, %v2739
      %v2744 = vadd.f32 %v2663, %v2740
      %v2745 = vadd.f32 %v2664, %v2741
      %v2746 = vadd.f32 %v2665, %v2742
      %v2747 = vadd.f32 %v2743, %v1017
      %v2748 = vadd.f32 %v2744, %v1021
      %v2749 = vadd.f32 %v2745, %v1025
      %v2750 = vadd.f32 %v2746, %v1029
      %2751 = vst [vmem:[#allocation2 + $0x160] sm:$0x7f] %v2747
      %2752 = vst [vmem:[#allocation2 + $0x168] sm:$0x7f] %v2748
      %2753 = vst [vmem:[#allocation2 + $0x170] sm:$0x7f] %v2749
      %2754 = vst [vmem:[#allocation2 + $0x178] sm:$0x7f] %v2750
      %s2755 = scalar_lea.vmem %s224, 896
      %v2756 = vld [vmem:[%s2755] sm:$0x7f]
      %v2757 = vld [vmem:[%s2755 + $0x8] sm:$0x7f]
      %v2758 = vld [vmem:[%s2755 + $0x10] sm:$0x7f]
      %v2759 = vld [vmem:[%s2755 + $0x18] sm:$0x7f]
      %v2760 = vmul.f32 %v2756, %v233
      %v2761 = vmul.f32 %v2757, %v234
      %v2762 = vmul.f32 %v2758, %v235
      %v2763 = vmul.f32 %v2759, %v236
      %v2764 = vsel %vm322, %v2760, 0.0
      %v2765 = vrot.slane %v2764, 4
      %v2766 = vadd.f32 %v2764, %v2765
      %v2767 = vrot.slane %v2766, 2
      %v2768 = vadd.f32 %v2766, %v2767
      %v2769 = vrot.slane %v2768, 1
      %v2770 = vadd.f32 %v2768, %v2769
      %v2771 = vsel %vm322, %v2761, 0.0
      %v2772 = vrot.slane %v2771, 4
      %v2773 = vadd.f32 %v2771, %v2772
      %v2774 = vrot.slane %v2773, 2
      %v2775 = vadd.f32 %v2773, %v2774
      %v2776 = vrot.slane %v2775, 1
      %v2777 = vadd.f32 %v2775, %v2776
      %v2778 = vsel %vm322, %v2762, 0.0
      %v2779 = vrot.slane %v2778, 4
      %v2780 = vadd.f32 %v2778, %v2779
      %v2781 = vrot.slane %v2780, 2
      %v2782 = vadd.f32 %v2780, %v2781
      %v2783 = vrot.slane %v2782, 1
      %v2784 = vadd.f32 %v2782, %v2783
      %v2785 = vsel %vm322, %v2763, 0.0
      %v2786 = vrot.slane %v2785, 4
      %v2787 = vadd.f32 %v2785, %v2786
      %v2788 = vrot.slane %v2787, 2
      %v2789 = vadd.f32 %v2787, %v2788
      %v2790 = vrot.slane %v2789, 1
      %v2791 = vadd.f32 %v2789, %v2790
      %v2792 = vadd.f32 %v2770, %v355
      %v2793 = vadd.f32 %v2777, %v359
      %v2794 = vadd.f32 %v2784, %v363
      %v2795 = vadd.f32 %v2791, %v367
      %v2800 = vcombine.low %v2792, %v2793
      %v2801 = vcombine.low %v2794, %v2795
      %v2803 = vunpack.c.l.s4 1966171168
      %v2804 = vunpack.c.0.s8 %v2803
      %v2805 = vlaneseq
      %v2806 = vshrl.u32 %v2805, 7
      %v2807 = vsub.s32 %v2804, %v2806
      %v2808 = vrot.slane %v2800, %v2807
      %v2810 = vunpack.c.l.s4 1966171168
      %v2811 = vunpack.c.0.s8 %v2810
      %v2812 = vlaneseq
      %v2813 = vshrl.u32 %v2812, 7
      %v2814 = vsub.s32 %v2811, %v2813
      %v2815 = vrot.slane %v2801, %v2814
      %v2816 = vcombine.low %v2808, %v2815
      %v2818 = vunpack.c.l.s4 1966171168
      %v2819 = vunpack.c.0.s8 %v2818
      %v2820 = vlaneseq
      %v2821 = vshrl.u32 %v2820, 7
      %v2822 = vsub.s32 %v2819, %v2821
      %v2823 = vrot.slane %v2816, %v2822
      %s2825 = scalar_lea.vmem [#allocation2], 128
      %2826 = vst.msk [vmem:[%s2825] ss:$8 sm:$0xf] %vm408, %v2823
      %2827 = vst.msk [vmem:[%s2825] ss:$8 sm:$0x0] %vm408, %v2823
      %v2828 = vmul.f32 %v2756, %v414
      %v2829 = vmul.f32 %v2757, %v418
      %v2830 = vmul.f32 %v2758, %v422
      %v2831 = vmul.f32 %v2759, %v426
      %s2832 = scalar_lea.vmem %s224, 928
      %v2833 = vld [vmem:[%s2832] sm:$0x7f]
      %v2834 = vld [vmem:[%s2832 + $0x8] sm:$0x7f]
      %v2835 = vld [vmem:[%s2832 + $0x10] sm:$0x7f]
      %v2836 = vld [vmem:[%s2832 + $0x18] sm:$0x7f]
      %v2837 = vmul.f32 %v2833, %v233
      %v2838 = vmul.f32 %v2834, %v234
      %v2839 = vmul.f32 %v2835, %v235
      %v2840 = vmul.f32 %v2836, %v236
      %v2841 = vsel %vm322, %v2837, 0.0
      %v2842 = vrot.slane %v2841, 4
      %v2843 = vadd.f32 %v2841, %v2842
      %v2844 = vrot.slane %v2843, 2
      %v2845 = vadd.f32 %v2843, %v2844
      %v2846 = vrot.slane %v2845, 1
      %v2847 = vadd.f32 %v2845, %v2846
      %v2848 = vsel %vm322, %v2838, 0.0
      %v2849 = vrot.slane %v2848, 4
      %v2850 = vadd.f32 %v2848, %v2849
      %v2851 = vrot.slane %v2850, 2
      %v2852 = vadd.f32 %v2850, %v2851
      %v2853 = vrot.slane %v2852, 1
      %v2854 = vadd.f32 %v2852, %v2853
      %v2855 = vsel %vm322, %v2839, 0.0
      %v2856 = vrot.slane %v2855, 4
      %v2857 = vadd.f32 %v2855, %v2856
      %v2858 = vrot.slane %v2857, 2
      %v2859 = vadd.f32 %v2857, %v2858
      %v2860 = vrot.slane %v2859, 1
      %v2861 = vadd.f32 %v2859, %v2860
      %v2862 = vsel %vm322, %v2840, 0.0
      %v2863 = vrot.slane %v2862, 4
      %v2864 = vadd.f32 %v2862, %v2863
      %v2865 = vrot.slane %v2864, 2
      %v2866 = vadd.f32 %v2864, %v2865
      %v2867 = vrot.slane %v2866, 1
      %v2868 = vadd.f32 %v2866, %v2867
      %v2869 = vadd.f32 %v2847, %v355
      %v2870 = vadd.f32 %v2854, %v359
      %v2871 = vadd.f32 %v2861, %v363
      %v2872 = vadd.f32 %v2868, %v367
      %v2877 = vcombine.low %v2869, %v2870
      %v2878 = vcombine.low %v2871, %v2872
      %v2880 = vunpack.c.l.s4 1966171168
      %v2881 = vunpack.c.0.s8 %v2880
      %v2882 = vlaneseq
      %v2883 = vshrl.u32 %v2882, 7
      %v2884 = vsub.s32 %v2881, %v2883
      %v2885 = vrot.slane %v2877, %v2884
      %v2887 = vunpack.c.l.s4 1966171168
      %v2888 = vunpack.c.0.s8 %v2887
      %v2889 = vlaneseq
      %v2890 = vshrl.u32 %v2889, 7
      %v2891 = vsub.s32 %v2888, %v2890
      %v2892 = vrot.slane %v2878, %v2891
      %v2893 = vcombine.low %v2885, %v2892
      %v2895 = vunpack.c.l.s4 1966171168
      %v2896 = vunpack.c.0.s8 %v2895
      %v2897 = vlaneseq
      %v2898 = vshrl.u32 %v2897, 7
      %v2899 = vsub.s32 %v2896, %v2898
      %v2900 = vrot.slane %v2893, %v2899
      %s2902 = scalar_lea.vmem [#allocation2], 129
      %2903 = vst.msk [vmem:[%s2902] ss:$8 sm:$0xf] %vm408, %v2900
      %2904 = vst.msk [vmem:[%s2902] ss:$8 sm:$0x0] %vm408, %v2900
      %v2905 = vmul.f32 %v2833, %v507
      %v2906 = vmul.f32 %v2834, %v511
      %v2907 = vmul.f32 %v2835, %v515
      %v2908 = vmul.f32 %v2836, %v519
      %v2909 = vadd.f32 %v2828, %v2905
      %v2910 = vadd.f32 %v2829, %v2906
      %v2911 = vadd.f32 %v2830, %v2907
      %v2912 = vadd.f32 %v2831, %v2908
      %s2913 = scalar_lea.vmem %s224, 960
      %v2914 = vld [vmem:[%s2913] sm:$0x7f]
      %v2915 = vld [vmem:[%s2913 + $0x8] sm:$0x7f]
      %v2916 = vld [vmem:[%s2913 + $0x10] sm:$0x7f]
      %v2917 = vld [vmem:[%s2913 + $0x18] sm:$0x7f]
      %v2918 = vmul.f32 %v2914, %v233
      %v2919 = vmul.f32 %v2915, %v234
      %v2920 = vmul.f32 %v2916, %v235
      %v2921 = vmul.f32 %v2917, %v236
      %v2922 = vsel %vm322, %v2918, 0.0
      %v2923 = vrot.slane %v2922, 4
      %v2924 = vadd.f32 %v2922, %v2923
      %v2925 = vrot.slane %v2924, 2
      %v2926 = vadd.f32 %v2924, %v2925
      %v2927 = vrot.slane %v2926, 1
      %v2928 = vadd.f32 %v2926, %v2927
      %v2929 = vsel %vm322, %v2919, 0.0
      %v2930 = vrot.slane %v2929, 4
      %v2931 = vadd.f32 %v2929, %v2930
      %v2932 = vrot.slane %v2931, 2
      %v2933 = vadd.f32 %v2931, %v2932
      %v2934 = vrot.slane %v2933, 1
      %v2935 = vadd.f32 %v2933, %v2934
      %v2936 = vsel %vm322, %v2920, 0.0
      %v2937 = vrot.slane %v2936, 4
      %v2938 = vadd.f32 %v2936, %v2937
      %v2939 = vrot.slane %v2938, 2
      %v2940 = vadd.f32 %v2938, %v2939
      %v2941 = vrot.slane %v2940, 1
      %v2942 = vadd.f32 %v2940, %v2941
      %v2943 = vsel %vm322, %v2921, 0.0
      %v2944 = vrot.slane %v2943, 4
      %v2945 = vadd.f32 %v2943, %v2944
      %v2946 = vrot.slane %v2945, 2
      %v2947 = vadd.f32 %v2945, %v2946
      %v2948 = vrot.slane %v2947, 1
      %v2949 = vadd.f32 %v2947, %v2948
      %v2950 = vadd.f32 %v2928, %v355
      %v2951 = vadd.f32 %v2935, %v359
      %v2952 = vadd.f32 %v2942, %v363
      %v2953 = vadd.f32 %v2949, %v367
      %v2958 = vcombine.low %v2950, %v2951
      %v2959 = vcombine.low %v2952, %v2953
      %v2961 = vunpack.c.l.s4 1966171168
      %v2962 = vunpack.c.0.s8 %v2961
      %v2963 = vlaneseq
      %v2964 = vshrl.u32 %v2963, 7
      %v2965 = vsub.s32 %v2962, %v2964
      %v2966 = vrot.slane %v2958, %v2965
      %v2968 = vunpack.c.l.s4 1966171168
      %v2969 = vunpack.c.0.s8 %v2968
      %v2970 = vlaneseq
      %v2971 = vshrl.u32 %v2970, 7
      %v2972 = vsub.s32 %v2969, %v2971
      %v2973 = vrot.slane %v2959, %v2972
      %v2974 = vcombine.low %v2966, %v2973
      %v2976 = vunpack.c.l.s4 1966171168
      %v2977 = vunpack.c.0.s8 %v2976
      %v2978 = vlaneseq
      %v2979 = vshrl.u32 %v2978, 7
      %v2980 = vsub.s32 %v2977, %v2979
      %v2981 = vrot.slane %v2974, %v2980
      %s2983 = scalar_lea.vmem [#allocation2], 130
      %2984 = vst.msk [vmem:[%s2983] ss:$8 sm:$0xf] %vm408, %v2981
      %2985 = vst.msk [vmem:[%s2983] ss:$8 sm:$0x0] %vm408, %v2981
      %v2986 = vmul.f32 %v2914, %v604
      %v2987 = vmul.f32 %v2915, %v608
      %v2988 = vmul.f32 %v2916, %v612
      %v2989 = vmul.f32 %v2917, %v616
      %v2990 = vadd.f32 %v2909, %v2986
      %v2991 = vadd.f32 %v2910, %v2987
      %v2992 = vadd.f32 %v2911, %v2988
      %v2993 = vadd.f32 %v2912, %v2989
      %s2994 = scalar_lea.vmem %s224, 992
      %v2995 = vld [vmem:[%s2994] sm:$0x7f]
      %v2996 = vld [vmem:[%s2994 + $0x8] sm:$0x7f]
      %v2997 = vld [vmem:[%s2994 + $0x10] sm:$0x7f]
      %v2998 = vld [vmem:[%s2994 + $0x18] sm:$0x7f]
      %v2999 = vmul.f32 %v2995, %v233
      %v3000 = vmul.f32 %v2996, %v234
      %v3001 = vmul.f32 %v2997, %v235
      %v3002 = vmul.f32 %v2998, %v236
      %v3003 = vsel %vm322, %v2999, 0.0
      %v3004 = vrot.slane %v3003, 4
      %v3005 = vadd.f32 %v3003, %v3004
      %v3006 = vrot.slane %v3005, 2
      %v3007 = vadd.f32 %v3005, %v3006
      %v3008 = vrot.slane %v3007, 1
      %v3009 = vadd.f32 %v3007, %v3008
      %v3010 = vsel %vm322, %v3000, 0.0
      %v3011 = vrot.slane %v3010, 4
      %v3012 = vadd.f32 %v3010, %v3011
      %v3013 = vrot.slane %v3012, 2
      %v3014 = vadd.f32 %v3012, %v3013
      %v3015 = vrot.slane %v3014, 1
      %v3016 = vadd.f32 %v3014, %v3015
      %v3017 = vsel %vm322, %v3001, 0.0
      %v3018 = vrot.slane %v3017, 4
      %v3019 = vadd.f32 %v3017, %v3018
      %v3020 = vrot.slane %v3019, 2
      %v3021 = vadd.f32 %v3019, %v3020
      %v3022 = vrot.slane %v3021, 1
      %v3023 = vadd.f32 %v3021, %v3022
      %v3024 = vsel %vm322, %v3002, 0.0
      %v3025 = vrot.slane %v3024, 4
      %v3026 = vadd.f32 %v3024, %v3025
      %v3027 = vrot.slane %v3026, 2
      %v3028 = vadd.f32 %v3026, %v3027
      %v3029 = vrot.slane %v3028, 1
      %v3030 = vadd.f32 %v3028, %v3029
      %v3031 = vadd.f32 %v3009, %v355
      %v3032 = vadd.f32 %v3016, %v359
      %v3033 = vadd.f32 %v3023, %v363
      %v3034 = vadd.f32 %v3030, %v367
      %v3039 = vcombine.low %v3031, %v3032
      %v3040 = vcombine.low %v3033, %v3034
      %v3042 = vunpack.c.l.s4 1966171168
      %v3043 = vunpack.c.0.s8 %v3042
      %v3044 = vlaneseq
      %v3045 = vshrl.u32 %v3044, 7
      %v3046 = vsub.s32 %v3043, %v3045
      %v3047 = vrot.slane %v3039, %v3046
      %v3049 = vunpack.c.l.s4 1966171168
      %v3050 = vunpack.c.0.s8 %v3049
      %v3051 = vlaneseq
      %v3052 = vshrl.u32 %v3051, 7
      %v3053 = vsub.s32 %v3050, %v3052
      %v3054 = vrot.slane %v3040, %v3053
      %v3055 = vcombine.low %v3047, %v3054
      %v3057 = vunpack.c.l.s4 1966171168
      %v3058 = vunpack.c.0.s8 %v3057
      %v3059 = vlaneseq
      %v3060 = vshrl.u32 %v3059, 7
      %v3061 = vsub.s32 %v3058, %v3060
      %v3062 = vrot.slane %v3055, %v3061
      %s3064 = scalar_lea.vmem [#allocation2], 131
      %3065 = vst.msk [vmem:[%s3064] ss:$8 sm:$0xf] %vm408, %v3062
      %3066 = vst.msk [vmem:[%s3064] ss:$8 sm:$0x0] %vm408, %v3062
      %v3067 = vmul.f32 %v2995, %v701
      %v3068 = vmul.f32 %v2996, %v705
      %v3069 = vmul.f32 %v2997, %v709
      %v3070 = vmul.f32 %v2998, %v713
      %v3071 = vadd.f32 %v2990, %v3067
      %v3072 = vadd.f32 %v2991, %v3068
      %v3073 = vadd.f32 %v2992, %v3069
      %v3074 = vadd.f32 %v2993, %v3070
      %s3075 = scalar_lea.vmem %s224, 1024
      %v3076 = vld [vmem:[%s3075] sm:$0x7f]
      %v3077 = vld [vmem:[%s3075 + $0x8] sm:$0x7f]
      %v3078 = vld [vmem:[%s3075 + $0x10] sm:$0x7f]
      %v3079 = vld [vmem:[%s3075 + $0x18] sm:$0x7f]
      %v3080 = vmul.f32 %v3076, %v233
      %v3081 = vmul.f32 %v3077, %v234
      %v3082 = vmul.f32 %v3078, %v235
      %v3083 = vmul.f32 %v3079, %v236
      %v3084 = vsel %vm322, %v3080, 0.0
      %v3085 = vrot.slane %v3084, 4
      %v3086 = vadd.f32 %v3084, %v3085
      %v3087 = vrot.slane %v3086, 2
      %v3088 = vadd.f32 %v3086, %v3087
      %v3089 = vrot.slane %v3088, 1
      %v3090 = vadd.f32 %v3088, %v3089
      %v3091 = vsel %vm322, %v3081, 0.0
      %v3092 = vrot.slane %v3091, 4
      %v3093 = vadd.f32 %v3091, %v3092
      %v3094 = vrot.slane %v3093, 2
      %v3095 = vadd.f32 %v3093, %v3094
      %v3096 = vrot.slane %v3095, 1
      %v3097 = vadd.f32 %v3095, %v3096
      %v3098 = vsel %vm322, %v3082, 0.0
      %v3099 = vrot.slane %v3098, 4
      %v3100 = vadd.f32 %v3098, %v3099
      %v3101 = vrot.slane %v3100, 2
      %v3102 = vadd.f32 %v3100, %v3101
      %v3103 = vrot.slane %v3102, 1
      %v3104 = vadd.f32 %v3102, %v3103
      %v3105 = vsel %vm322, %v3083, 0.0
      %v3106 = vrot.slane %v3105, 4
      %v3107 = vadd.f32 %v3105, %v3106
      %v3108 = vrot.slane %v3107, 2
      %v3109 = vadd.f32 %v3107, %v3108
      %v3110 = vrot.slane %v3109, 1
      %v3111 = vadd.f32 %v3109, %v3110
      %v3112 = vadd.f32 %v3090, %v355
      %v3113 = vadd.f32 %v3097, %v359
      %v3114 = vadd.f32 %v3104, %v363
      %v3115 = vadd.f32 %v3111, %v367
      %v3120 = vcombine.low %v3112, %v3113
      %v3121 = vcombine.low %v3114, %v3115
      %v3123 = vunpack.c.l.s4 1966171168
      %v3124 = vunpack.c.0.s8 %v3123
      %v3125 = vlaneseq
      %v3126 = vshrl.u32 %v3125, 7
      %v3127 = vsub.s32 %v3124, %v3126
      %v3128 = vrot.slane %v3120, %v3127
      %v3130 = vunpack.c.l.s4 1966171168
      %v3131 = vunpack.c.0.s8 %v3130
      %v3132 = vlaneseq
      %v3133 = vshrl.u32 %v3132, 7
      %v3134 = vsub.s32 %v3131, %v3133
      %v3135 = vrot.slane %v3121, %v3134
      %v3136 = vcombine.low %v3128, %v3135
      %v3138 = vunpack.c.l.s4 1966171168
      %v3139 = vunpack.c.0.s8 %v3138
      %v3140 = vlaneseq
      %v3141 = vshrl.u32 %v3140, 7
      %v3142 = vsub.s32 %v3139, %v3141
      %v3143 = vrot.slane %v3136, %v3142
      %s3145 = scalar_lea.vmem [#allocation2], 132
      %3146 = vst.msk [vmem:[%s3145] ss:$8 sm:$0xf] %vm408, %v3143
      %3147 = vst.msk [vmem:[%s3145] ss:$8 sm:$0x0] %vm408, %v3143
      %v3148 = vmul.f32 %v3076, %v798
      %v3149 = vmul.f32 %v3077, %v802
      %v3150 = vmul.f32 %v3078, %v806
      %v3151 = vmul.f32 %v3079, %v810
      %v3152 = vadd.f32 %v3071, %v3148
      %v3153 = vadd.f32 %v3072, %v3149
      %v3154 = vadd.f32 %v3073, %v3150
      %v3155 = vadd.f32 %v3074, %v3151
      %s3156 = scalar_lea.vmem %s224, 1056
      %v3157 = vld [vmem:[%s3156] sm:$0x7f]
      %v3158 = vld [vmem:[%s3156 + $0x8] sm:$0x7f]
      %v3159 = vld [vmem:[%s3156 + $0x10] sm:$0x7f]
      %v3160 = vld [vmem:[%s3156 + $0x18] sm:$0x7f]
      %v3161 = vmul.f32 %v3157, %v233
      %v3162 = vmul.f32 %v3158, %v234
      %v3163 = vmul.f32 %v3159, %v235
      %v3164 = vmul.f32 %v3160, %v236
      %v3165 = vsel %vm322, %v3161, 0.0
      %v3166 = vrot.slane %v3165, 4
      %v3167 = vadd.f32 %v3165, %v3166
      %v3168 = vrot.slane %v3167, 2
      %v3169 = vadd.f32 %v3167, %v3168
      %v3170 = vrot.slane %v3169, 1
      %v3171 = vadd.f32 %v3169, %v3170
      %v3172 = vsel %vm322, %v3162, 0.0
      %v3173 = vrot.slane %v3172, 4
      %v3174 = vadd.f32 %v3172, %v3173
      %v3175 = vrot.slane %v3174, 2
      %v3176 = vadd.f32 %v3174, %v3175
      %v3177 = vrot.slane %v3176, 1
      %v3178 = vadd.f32 %v3176, %v3177
      %v3179 = vsel %vm322, %v3163, 0.0
      %v3180 = vrot.slane %v3179, 4
      %v3181 = vadd.f32 %v3179, %v3180
      %v3182 = vrot.slane %v3181, 2
      %v3183 = vadd.f32 %v3181, %v3182
      %v3184 = vrot.slane %v3183, 1
      %v3185 = vadd.f32 %v3183, %v3184
      %v3186 = vsel %vm322, %v3164, 0.0
      %v3187 = vrot.slane %v3186, 4
      %v3188 = vadd.f32 %v3186, %v3187
      %v3189 = vrot.slane %v3188, 2
      %v3190 = vadd.f32 %v3188, %v3189
      %v3191 = vrot.slane %v3190, 1
      %v3192 = vadd.f32 %v3190, %v3191
      %v3193 = vadd.f32 %v3171, %v355
      %v3194 = vadd.f32 %v3178, %v359
      %v3195 = vadd.f32 %v3185, %v363
      %v3196 = vadd.f32 %v3192, %v367
      %v3201 = vcombine.low %v3193, %v3194
      %v3202 = vcombine.low %v3195, %v3196
      %v3204 = vunpack.c.l.s4 1966171168
      %v3205 = vunpack.c.0.s8 %v3204
      %v3206 = vlaneseq
      %v3207 = vshrl.u32 %v3206, 7
      %v3208 = vsub.s32 %v3205, %v3207
      %v3209 = vrot.slane %v3201, %v3208
      %v3211 = vunpack.c.l.s4 1966171168
      %v3212 = vunpack.c.0.s8 %v3211
      %v3213 = vlaneseq
      %v3214 = vshrl.u32 %v3213, 7
      %v3215 = vsub.s32 %v3212, %v3214
      %v3216 = vrot.slane %v3202, %v3215
      %v3217 = vcombine.low %v3209, %v3216
      %v3219 = vunpack.c.l.s4 1966171168
      %v3220 = vunpack.c.0.s8 %v3219
      %v3221 = vlaneseq
      %v3222 = vshrl.u32 %v3221, 7
      %v3223 = vsub.s32 %v3220, %v3222
      %v3224 = vrot.slane %v3217, %v3223
      %s3226 = scalar_lea.vmem [#allocation2], 133
      %3227 = vst.msk [vmem:[%s3226] ss:$8 sm:$0xf] %vm408, %v3224
      %3228 = vst.msk [vmem:[%s3226] ss:$8 sm:$0x0] %vm408, %v3224
      %v3229 = vmul.f32 %v3157, %v895
      %v3230 = vmul.f32 %v3158, %v899
      %v3231 = vmul.f32 %v3159, %v903
      %v3232 = vmul.f32 %v3160, %v907
      %v3233 = vadd.f32 %v3152, %v3229
      %v3234 = vadd.f32 %v3153, %v3230
      %v3235 = vadd.f32 %v3154, %v3231
      %v3236 = vadd.f32 %v3155, %v3232
      %s3237 = scalar_lea.vmem %s224, 1088
      %v3238 = vld [vmem:[%s3237] sm:$0x7f]
      %v3239 = vld [vmem:[%s3237 + $0x8] sm:$0x7f]
      %v3240 = vld [vmem:[%s3237 + $0x10] sm:$0x7f]
      %v3241 = vld [vmem:[%s3237 + $0x18] sm:$0x7f]
      %v3242 = vmul.f32 %v3238, %v233
      %v3243 = vmul.f32 %v3239, %v234
      %v3244 = vmul.f32 %v3240, %v235
      %v3245 = vmul.f32 %v3241, %v236
      %v3246 = vsel %vm322, %v3242, 0.0
      %v3247 = vrot.slane %v3246, 4
      %v3248 = vadd.f32 %v3246, %v3247
      %v3249 = vrot.slane %v3248, 2
      %v3250 = vadd.f32 %v3248, %v3249
      %v3251 = vrot.slane %v3250, 1
      %v3252 = vadd.f32 %v3250, %v3251
      %v3253 = vsel %vm322, %v3243, 0.0
      %v3254 = vrot.slane %v3253, 4
      %v3255 = vadd.f32 %v3253, %v3254
      %v3256 = vrot.slane %v3255, 2
      %v3257 = vadd.f32 %v3255, %v3256
      %v3258 = vrot.slane %v3257, 1
      %v3259 = vadd.f32 %v3257, %v3258
      %v3260 = vsel %vm322, %v3244, 0.0
      %v3261 = vrot.slane %v3260, 4
      %v3262 = vadd.f32 %v3260, %v3261
      %v3263 = vrot.slane %v3262, 2
      %v3264 = vadd.f32 %v3262, %v3263
      %v3265 = vrot.slane %v3264, 1
      %v3266 = vadd.f32 %v3264, %v3265
      %v3267 = vsel %vm322, %v3245, 0.0
      %v3268 = vrot.slane %v3267, 4
      %v3269 = vadd.f32 %v3267, %v3268
      %v3270 = vrot.slane %v3269, 2
      %v3271 = vadd.f32 %v3269, %v3270
      %v3272 = vrot.slane %v3271, 1
      %v3273 = vadd.f32 %v3271, %v3272
      %v3274 = vadd.f32 %v3252, %v355
      %v3275 = vadd.f32 %v3259, %v359
      %v3276 = vadd.f32 %v3266, %v363
      %v3277 = vadd.f32 %v3273, %v367
      %v3282 = vcombine.low %v3274, %v3275
      %v3283 = vcombine.low %v3276, %v3277
      %v3285 = vunpack.c.l.s4 1966171168
      %v3286 = vunpack.c.0.s8 %v3285
      %v3287 = vlaneseq
      %v3288 = vshrl.u32 %v3287, 7
      %v3289 = vsub.s32 %v3286, %v3288
      %v3290 = vrot.slane %v3282, %v3289
      %v3292 = vunpack.c.l.s4 1966171168
      %v3293 = vunpack.c.0.s8 %v3292
      %v3294 = vlaneseq
      %v3295 = vshrl.u32 %v3294, 7
      %v3296 = vsub.s32 %v3293, %v3295
      %v3297 = vrot.slane %v3283, %v3296
      %v3298 = vcombine.low %v3290, %v3297
      %v3300 = vunpack.c.l.s4 1966171168
      %v3301 = vunpack.c.0.s8 %v3300
      %v3302 = vlaneseq
      %v3303 = vshrl.u32 %v3302, 7
      %v3304 = vsub.s32 %v3301, %v3303
      %v3305 = vrot.slane %v3298, %v3304
      %s3307 = scalar_lea.vmem [#allocation2], 134
      %3308 = vst.msk [vmem:[%s3307] ss:$8 sm:$0xf] %vm408, %v3305
      %3309 = vst.msk [vmem:[%s3307] ss:$8 sm:$0x0] %vm408, %v3305
      %v3310 = vmul.f32 %v3238, %v992
      %v3311 = vmul.f32 %v3239, %v996
      %v3312 = vmul.f32 %v3240, %v1000
      %v3313 = vmul.f32 %v3241, %v1004
      %v3314 = vadd.f32 %v3233, %v3310
      %v3315 = vadd.f32 %v3234, %v3311
      %v3316 = vadd.f32 %v3235, %v3312
      %v3317 = vadd.f32 %v3236, %v3313
      %v3318 = vadd.f32 %v3314, %v1017
      %v3319 = vadd.f32 %v3315, %v1021
      %v3320 = vadd.f32 %v3316, %v1025
      %v3321 = vadd.f32 %v3317, %v1029
      %3322 = vst [vmem:[#allocation2 + $0x180] sm:$0x7f] %v3318
      %3323 = vst [vmem:[#allocation2 + $0x188] sm:$0x7f] %v3319
      %3324 = vst [vmem:[#allocation2 + $0x190] sm:$0x7f] %v3320
      %3325 = vst [vmem:[#allocation2 + $0x198] sm:$0x7f] %v3321
      %s3326 = scalar_lea.vmem %s224, 1120
      %v3327 = vld [vmem:[%s3326] sm:$0x7f]
      %v3328 = vld [vmem:[%s3326 + $0x8] sm:$0x7f]
      %v3329 = vld [vmem:[%s3326 + $0x10] sm:$0x7f]
      %v3330 = vld [vmem:[%s3326 + $0x18] sm:$0x7f]
      %v3331 = vmul.f32 %v3327, %v233
      %v3332 = vmul.f32 %v3328, %v234
      %v3333 = vmul.f32 %v3329, %v235
      %v3334 = vmul.f32 %v3330, %v236
      %v3335 = vsel %vm322, %v3331, 0.0
      %v3336 = vrot.slane %v3335, 4
      %v3337 = vadd.f32 %v3335, %v3336
      %v3338 = vrot.slane %v3337, 2
      %v3339 = vadd.f32 %v3337, %v3338
      %v3340 = vrot.slane %v3339, 1
      %v3341 = vadd.f32 %v3339, %v3340
      %v3342 = vsel %vm322, %v3332, 0.0
      %v3343 = vrot.slane %v3342, 4
      %v3344 = vadd.f32 %v3342, %v3343
      %v3345 = vrot.slane %v3344, 2
      %v3346 = vadd.f32 %v3344, %v3345
      %v3347 = vrot.slane %v3346, 1
      %v3348 = vadd.f32 %v3346, %v3347
      %v3349 = vsel %vm322, %v3333, 0.0
      %v3350 = vrot.slane %v3349, 4
      %v3351 = vadd.f32 %v3349, %v3350
      %v3352 = vrot.slane %v3351, 2
      %v3353 = vadd.f32 %v3351, %v3352
      %v3354 = vrot.slane %v3353, 1
      %v3355 = vadd.f32 %v3353, %v3354
      %v3356 = vsel %vm322, %v3334, 0.0
      %v3357 = vrot.slane %v3356, 4
      %v3358 = vadd.f32 %v3356, %v3357
      %v3359 = vrot.slane %v3358, 2
      %v3360 = vadd.f32 %v3358, %v3359
      %v3361 = vrot.slane %v3360, 1
      %v3362 = vadd.f32 %v3360, %v3361
      %v3363 = vadd.f32 %v3341, %v355
      %v3364 = vadd.f32 %v3348, %v359
      %v3365 = vadd.f32 %v3355, %v363
      %v3366 = vadd.f32 %v3362, %v367
      %v3371 = vcombine.low %v3363, %v3364
      %v3372 = vcombine.low %v3365, %v3366
      %v3374 = vunpack.c.l.s4 1966171168
      %v3375 = vunpack.c.0.s8 %v3374
      %v3376 = vlaneseq
      %v3377 = vshrl.u32 %v3376, 7
      %v3378 = vsub.s32 %v3375, %v3377
      %v3379 = vrot.slane %v3371, %v3378
      %v3381 = vunpack.c.l.s4 1966171168
      %v3382 = vunpack.c.0.s8 %v3381
      %v3383 = vlaneseq
      %v3384 = vshrl.u32 %v3383, 7
      %v3385 = vsub.s32 %v3382, %v3384
      %v3386 = vrot.slane %v3372, %v3385
      %v3387 = vcombine.low %v3379, %v3386
      %v3389 = vunpack.c.l.s4 1966171168
      %v3390 = vunpack.c.0.s8 %v3389
      %v3391 = vlaneseq
      %v3392 = vshrl.u32 %v3391, 7
      %v3393 = vsub.s32 %v3390, %v3392
      %v3394 = vrot.slane %v3387, %v3393
      %s3396 = scalar_lea.vmem [#allocation2], 160
      %3397 = vst.msk [vmem:[%s3396] ss:$8 sm:$0xf] %vm408, %v3394
      %3398 = vst.msk [vmem:[%s3396] ss:$8 sm:$0x0] %vm408, %v3394
      %v3399 = vmul.f32 %v3327, %v414
      %v3400 = vmul.f32 %v3328, %v418
      %v3401 = vmul.f32 %v3329, %v422
      %v3402 = vmul.f32 %v3330, %v426
      %s3403 = scalar_lea.vmem %s224, 1152
      %v3404 = vld [vmem:[%s3403] sm:$0x7f]
      %v3405 = vld [vmem:[%s3403 + $0x8] sm:$0x7f]
      %v3406 = vld [vmem:[%s3403 + $0x10] sm:$0x7f]
      %v3407 = vld [vmem:[%s3403 + $0x18] sm:$0x7f]
      %v3408 = vmul.f32 %v3404, %v233
      %v3409 = vmul.f32 %v3405, %v234
      %v3410 = vmul.f32 %v3406, %v235
      %v3411 = vmul.f32 %v3407, %v236
      %v3412 = vsel %vm322, %v3408, 0.0
      %v3413 = vrot.slane %v3412, 4
      %v3414 = vadd.f32 %v3412, %v3413
      %v3415 = vrot.slane %v3414, 2
      %v3416 = vadd.f32 %v3414, %v3415
      %v3417 = vrot.slane %v3416, 1
      %v3418 = vadd.f32 %v3416, %v3417
      %v3419 = vsel %vm322, %v3409, 0.0
      %v3420 = vrot.slane %v3419, 4
      %v3421 = vadd.f32 %v3419, %v3420
      %v3422 = vrot.slane %v3421, 2
      %v3423 = vadd.f32 %v3421, %v3422
      %v3424 = vrot.slane %v3423, 1
      %v3425 = vadd.f32 %v3423, %v3424
      %v3426 = vsel %vm322, %v3410, 0.0
      %v3427 = vrot.slane %v3426, 4
      %v3428 = vadd.f32 %v3426, %v3427
      %v3429 = vrot.slane %v3428, 2
      %v3430 = vadd.f32 %v3428, %v3429
      %v3431 = vrot.slane %v3430, 1
      %v3432 = vadd.f32 %v3430, %v3431
      %v3433 = vsel %vm322, %v3411, 0.0
      %v3434 = vrot.slane %v3433, 4
      %v3435 = vadd.f32 %v3433, %v3434
      %v3436 = vrot.slane %v3435, 2
      %v3437 = vadd.f32 %v3435, %v3436
      %v3438 = vrot.slane %v3437, 1
      %v3439 = vadd.f32 %v3437, %v3438
      %v3440 = vadd.f32 %v3418, %v355
      %v3441 = vadd.f32 %v3425, %v359
      %v3442 = vadd.f32 %v3432, %v363
      %v3443 = vadd.f32 %v3439, %v367
      %v3448 = vcombine.low %v3440, %v3441
      %v3449 = vcombine.low %v3442, %v3443
      %v3451 = vunpack.c.l.s4 1966171168
      %v3452 = vunpack.c.0.s8 %v3451
      %v3453 = vlaneseq
      %v3454 = vshrl.u32 %v3453, 7
      %v3455 = vsub.s32 %v3452, %v3454
      %v3456 = vrot.slane %v3448, %v3455
      %v3458 = vunpack.c.l.s4 1966171168
      %v3459 = vunpack.c.0.s8 %v3458
      %v3460 = vlaneseq
      %v3461 = vshrl.u32 %v3460, 7
      %v3462 = vsub.s32 %v3459, %v3461
      %v3463 = vrot.slane %v3449, %v3462
      %v3464 = vcombine.low %v3456, %v3463
      %v3466 = vunpack.c.l.s4 1966171168
      %v3467 = vunpack.c.0.s8 %v3466
      %v3468 = vlaneseq
      %v3469 = vshrl.u32 %v3468, 7
      %v3470 = vsub.s32 %v3467, %v3469
      %v3471 = vrot.slane %v3464, %v3470
      %s3473 = scalar_lea.vmem [#allocation2], 161
      %3474 = vst.msk [vmem:[%s3473] ss:$8 sm:$0xf] %vm408, %v3471
      %3475 = vst.msk [vmem:[%s3473] ss:$8 sm:$0x0] %vm408, %v3471
      %v3476 = vmul.f32 %v3404, %v507
      %v3477 = vmul.f32 %v3405, %v511
      %v3478 = vmul.f32 %v3406, %v515
      %v3479 = vmul.f32 %v3407, %v519
      %v3480 = vadd.f32 %v3399, %v3476
      %v3481 = vadd.f32 %v3400, %v3477
      %v3482 = vadd.f32 %v3401, %v3478
      %v3483 = vadd.f32 %v3402, %v3479
      %s3484 = scalar_lea.vmem %s224, 1184
      %v3485 = vld [vmem:[%s3484] sm:$0x7f]
      %v3486 = vld [vmem:[%s3484 + $0x8] sm:$0x7f]
      %v3487 = vld [vmem:[%s3484 + $0x10] sm:$0x7f]
      %v3488 = vld [vmem:[%s3484 + $0x18] sm:$0x7f]
      %v3489 = vmul.f32 %v3485, %v233
      %v3490 = vmul.f32 %v3486, %v234
      %v3491 = vmul.f32 %v3487, %v235
      %v3492 = vmul.f32 %v3488, %v236
      %v3493 = vsel %vm322, %v3489, 0.0
      %v3494 = vrot.slane %v3493, 4
      %v3495 = vadd.f32 %v3493, %v3494
      %v3496 = vrot.slane %v3495, 2
      %v3497 = vadd.f32 %v3495, %v3496
      %v3498 = vrot.slane %v3497, 1
      %v3499 = vadd.f32 %v3497, %v3498
      %v3500 = vsel %vm322, %v3490, 0.0
      %v3501 = vrot.slane %v3500, 4
      %v3502 = vadd.f32 %v3500, %v3501
      %v3503 = vrot.slane %v3502, 2
      %v3504 = vadd.f32 %v3502, %v3503
      %v3505 = vrot.slane %v3504, 1
      %v3506 = vadd.f32 %v3504, %v3505
      %v3507 = vsel %vm322, %v3491, 0.0
      %v3508 = vrot.slane %v3507, 4
      %v3509 = vadd.f32 %v3507, %v3508
      %v3510 = vrot.slane %v3509, 2
      %v3511 = vadd.f32 %v3509, %v3510
      %v3512 = vrot.slane %v3511, 1
      %v3513 = vadd.f32 %v3511, %v3512
      %v3514 = vsel %vm322, %v3492, 0.0
      %v3515 = vrot.slane %v3514, 4
      %v3516 = vadd.f32 %v3514, %v3515
      %v3517 = vrot.slane %v3516, 2
      %v3518 = vadd.f32 %v3516, %v3517
      %v3519 = vrot.slane %v3518, 1
      %v3520 = vadd.f32 %v3518, %v3519
      %v3521 = vadd.f32 %v3499, %v355
      %v3522 = vadd.f32 %v3506, %v359
      %v3523 = vadd.f32 %v3513, %v363
      %v3524 = vadd.f32 %v3520, %v367
      %v3529 = vcombine.low %v3521, %v3522
      %v3530 = vcombine.low %v3523, %v3524
      %v3532 = vunpack.c.l.s4 1966171168
      %v3533 = vunpack.c.0.s8 %v3532
      %v3534 = vlaneseq
      %v3535 = vshrl.u32 %v3534, 7
      %v3536 = vsub.s32 %v3533, %v3535
      %v3537 = vrot.slane %v3529, %v3536
      %v3539 = vunpack.c.l.s4 1966171168
      %v3540 = vunpack.c.0.s8 %v3539
      %v3541 = vlaneseq
      %v3542 = vshrl.u32 %v3541, 7
      %v3543 = vsub.s32 %v3540, %v3542
      %v3544 = vrot.slane %v3530, %v3543
      %v3545 = vcombine.low %v3537, %v3544
      %v3547 = vunpack.c.l.s4 1966171168
      %v3548 = vunpack.c.0.s8 %v3547
      %v3549 = vlaneseq
      %v3550 = vshrl.u32 %v3549, 7
      %v3551 = vsub.s32 %v3548, %v3550
      %v3552 = vrot.slane %v3545, %v3551
      %s3554 = scalar_lea.vmem [#allocation2], 162
      %3555 = vst.msk [vmem:[%s3554] ss:$8 sm:$0xf] %vm408, %v3552
      %3556 = vst.msk [vmem:[%s3554] ss:$8 sm:$0x0] %vm408, %v3552
      %v3557 = vmul.f32 %v3485, %v604
      %v3558 = vmul.f32 %v3486, %v608
      %v3559 = vmul.f32 %v3487, %v612
      %v3560 = vmul.f32 %v3488, %v616
      %v3561 = vadd.f32 %v3480, %v3557
      %v3562 = vadd.f32 %v3481, %v3558
      %v3563 = vadd.f32 %v3482, %v3559
      %v3564 = vadd.f32 %v3483, %v3560
      %s3565 = scalar_lea.vmem %s224, 1216
      %v3566 = vld [vmem:[%s3565] sm:$0x7f]
      %v3567 = vld [vmem:[%s3565 + $0x8] sm:$0x7f]
      %v3568 = vld [vmem:[%s3565 + $0x10] sm:$0x7f]
      %v3569 = vld [vmem:[%s3565 + $0x18] sm:$0x7f]
      %v3570 = vmul.f32 %v3566, %v233
      %v3571 = vmul.f32 %v3567, %v234
      %v3572 = vmul.f32 %v3568, %v235
      %v3573 = vmul.f32 %v3569, %v236
      %v3574 = vsel %vm322, %v3570, 0.0
      %v3575 = vrot.slane %v3574, 4
      %v3576 = vadd.f32 %v3574, %v3575
      %v3577 = vrot.slane %v3576, 2
      %v3578 = vadd.f32 %v3576, %v3577
      %v3579 = vrot.slane %v3578, 1
      %v3580 = vadd.f32 %v3578, %v3579
      %v3581 = vsel %vm322, %v3571, 0.0
      %v3582 = vrot.slane %v3581, 4
      %v3583 = vadd.f32 %v3581, %v3582
      %v3584 = vrot.slane %v3583, 2
      %v3585 = vadd.f32 %v3583, %v3584
      %v3586 = vrot.slane %v3585, 1
      %v3587 = vadd.f32 %v3585, %v3586
      %v3588 = vsel %vm322, %v3572, 0.0
      %v3589 = vrot.slane %v3588, 4
      %v3590 = vadd.f32 %v3588, %v3589
      %v3591 = vrot.slane %v3590, 2
      %v3592 = vadd.f32 %v3590, %v3591
      %v3593 = vrot.slane %v3592, 1
      %v3594 = vadd.f32 %v3592, %v3593
      %v3595 = vsel %vm322, %v3573, 0.0
      %v3596 = vrot.slane %v3595, 4
      %v3597 = vadd.f32 %v3595, %v3596
      %v3598 = vrot.slane %v3597, 2
      %v3599 = vadd.f32 %v3597, %v3598
      %v3600 = vrot.slane %v3599, 1
      %v3601 = vadd.f32 %v3599, %v3600
      %v3602 = vadd.f32 %v3580, %v355
      %v3603 = vadd.f32 %v3587, %v359
      %v3604 = vadd.f32 %v3594, %v363
      %v3605 = vadd.f32 %v3601, %v367
      %v3610 = vcombine.low %v3602, %v3603
      %v3611 = vcombine.low %v3604, %v3605
      %v3613 = vunpack.c.l.s4 1966171168
      %v3614 = vunpack.c.0.s8 %v3613
      %v3615 = vlaneseq
      %v3616 = vshrl.u32 %v3615, 7
      %v3617 = vsub.s32 %v3614, %v3616
      %v3618 = vrot.slane %v3610, %v3617
      %v3620 = vunpack.c.l.s4 1966171168
      %v3621 = vunpack.c.0.s8 %v3620
      %v3622 = vlaneseq
      %v3623 = vshrl.u32 %v3622, 7
      %v3624 = vsub.s32 %v3621, %v3623
      %v3625 = vrot.slane %v3611, %v3624
      %v3626 = vcombine.low %v3618, %v3625
      %v3628 = vunpack.c.l.s4 1966171168
      %v3629 = vunpack.c.0.s8 %v3628
      %v3630 = vlaneseq
      %v3631 = vshrl.u32 %v3630, 7
      %v3632 = vsub.s32 %v3629, %v3631
      %v3633 = vrot.slane %v3626, %v3632
      %s3635 = scalar_lea.vmem [#allocation2], 163
      %3636 = vst.msk [vmem:[%s3635] ss:$8 sm:$0xf] %vm408, %v3633
      %3637 = vst.msk [vmem:[%s3635] ss:$8 sm:$0x0] %vm408, %v3633
      %v3638 = vmul.f32 %v3566, %v701
      %v3639 = vmul.f32 %v3567, %v705
      %v3640 = vmul.f32 %v3568, %v709
      %v3641 = vmul.f32 %v3569, %v713
      %v3642 = vadd.f32 %v3561, %v3638
      %v3643 = vadd.f32 %v3562, %v3639
      %v3644 = vadd.f32 %v3563, %v3640
      %v3645 = vadd.f32 %v3564, %v3641
      %s3646 = scalar_lea.vmem %s224, 1248
      %v3647 = vld [vmem:[%s3646] sm:$0x7f]
      %v3648 = vld [vmem:[%s3646 + $0x8] sm:$0x7f]
      %v3649 = vld [vmem:[%s3646 + $0x10] sm:$0x7f]
      %v3650 = vld [vmem:[%s3646 + $0x18] sm:$0x7f]
      %v3651 = vmul.f32 %v3647, %v233
      %v3652 = vmul.f32 %v3648, %v234
      %v3653 = vmul.f32 %v3649, %v235
      %v3654 = vmul.f32 %v3650, %v236
      %v3655 = vsel %vm322, %v3651, 0.0
      %v3656 = vrot.slane %v3655, 4
      %v3657 = vadd.f32 %v3655, %v3656
      %v3658 = vrot.slane %v3657, 2
      %v3659 = vadd.f32 %v3657, %v3658
      %v3660 = vrot.slane %v3659, 1
      %v3661 = vadd.f32 %v3659, %v3660
      %v3662 = vsel %vm322, %v3652, 0.0
      %v3663 = vrot.slane %v3662, 4
      %v3664 = vadd.f32 %v3662, %v3663
      %v3665 = vrot.slane %v3664, 2
      %v3666 = vadd.f32 %v3664, %v3665
      %v3667 = vrot.slane %v3666, 1
      %v3668 = vadd.f32 %v3666, %v3667
      %v3669 = vsel %vm322, %v3653, 0.0
      %v3670 = vrot.slane %v3669, 4
      %v3671 = vadd.f32 %v3669, %v3670
      %v3672 = vrot.slane %v3671, 2
      %v3673 = vadd.f32 %v3671, %v3672
      %v3674 = vrot.slane %v3673, 1
      %v3675 = vadd.f32 %v3673, %v3674
      %v3676 = vsel %vm322, %v3654, 0.0
      %v3677 = vrot.slane %v3676, 4
      %v3678 = vadd.f32 %v3676, %v3677
      %v3679 = vrot.slane %v3678, 2
      %v3680 = vadd.f32 %v3678, %v3679
      %v3681 = vrot.slane %v3680, 1
      %v3682 = vadd.f32 %v3680, %v3681
      %v3683 = vadd.f32 %v3661, %v355
      %v3684 = vadd.f32 %v3668, %v359
      %v3685 = vadd.f32 %v3675, %v363
      %v3686 = vadd.f32 %v3682, %v367
      %v3691 = vcombine.low %v3683, %v3684
      %v3692 = vcombine.low %v3685, %v3686
      %v3694 = vunpack.c.l.s4 1966171168
      %v3695 = vunpack.c.0.s8 %v3694
      %v3696 = vlaneseq
      %v3697 = vshrl.u32 %v3696, 7
      %v3698 = vsub.s32 %v3695, %v3697
      %v3699 = vrot.slane %v3691, %v3698
      %v3701 = vunpack.c.l.s4 1966171168
      %v3702 = vunpack.c.0.s8 %v3701
      %v3703 = vlaneseq
      %v3704 = vshrl.u32 %v3703, 7
      %v3705 = vsub.s32 %v3702, %v3704
      %v3706 = vrot.slane %v3692, %v3705
      %v3707 = vcombine.low %v3699, %v3706
      %v3709 = vunpack.c.l.s4 1966171168
      %v3710 = vunpack.c.0.s8 %v3709
      %v3711 = vlaneseq
      %v3712 = vshrl.u32 %v3711, 7
      %v3713 = vsub.s32 %v3710, %v3712
      %v3714 = vrot.slane %v3707, %v3713
      %s3716 = scalar_lea.vmem [#allocation2], 164
      %3717 = vst.msk [vmem:[%s3716] ss:$8 sm:$0xf] %vm408, %v3714
      %3718 = vst.msk [vmem:[%s3716] ss:$8 sm:$0x0] %vm408, %v3714
      %v3719 = vmul.f32 %v3647, %v798
      %v3720 = vmul.f32 %v3648, %v802
      %v3721 = vmul.f32 %v3649, %v806
      %v3722 = vmul.f32 %v3650, %v810
      %v3723 = vadd.f32 %v3642, %v3719
      %v3724 = vadd.f32 %v3643, %v3720
      %v3725 = vadd.f32 %v3644, %v3721
      %v3726 = vadd.f32 %v3645, %v3722
      %s3727 = scalar_lea.vmem %s224, 1280
      %v3728 = vld [vmem:[%s3727] sm:$0x7f]
      %v3729 = vld [vmem:[%s3727 + $0x8] sm:$0x7f]
      %v3730 = vld [vmem:[%s3727 + $0x10] sm:$0x7f]
      %v3731 = vld [vmem:[%s3727 + $0x18] sm:$0x7f]
      %v3732 = vmul.f32 %v3728, %v233
      %v3733 = vmul.f32 %v3729, %v234
      %v3734 = vmul.f32 %v3730, %v235
      %v3735 = vmul.f32 %v3731, %v236
      %v3736 = vsel %vm322, %v3732, 0.0
      %v3737 = vrot.slane %v3736, 4
      %v3738 = vadd.f32 %v3736, %v3737
      %v3739 = vrot.slane %v3738, 2
      %v3740 = vadd.f32 %v3738, %v3739
      %v3741 = vrot.slane %v3740, 1
      %v3742 = vadd.f32 %v3740, %v3741
      %v3743 = vsel %vm322, %v3733, 0.0
      %v3744 = vrot.slane %v3743, 4
      %v3745 = vadd.f32 %v3743, %v3744
      %v3746 = vrot.slane %v3745, 2
      %v3747 = vadd.f32 %v3745, %v3746
      %v3748 = vrot.slane %v3747, 1
      %v3749 = vadd.f32 %v3747, %v3748
      %v3750 = vsel %vm322, %v3734, 0.0
      %v3751 = vrot.slane %v3750, 4
      %v3752 = vadd.f32 %v3750, %v3751
      %v3753 = vrot.slane %v3752, 2
      %v3754 = vadd.f32 %v3752, %v3753
      %v3755 = vrot.slane %v3754, 1
      %v3756 = vadd.f32 %v3754, %v3755
      %v3757 = vsel %vm322, %v3735, 0.0
      %v3758 = vrot.slane %v3757, 4
      %v3759 = vadd.f32 %v3757, %v3758
      %v3760 = vrot.slane %v3759, 2
      %v3761 = vadd.f32 %v3759, %v3760
      %v3762 = vrot.slane %v3761, 1
      %v3763 = vadd.f32 %v3761, %v3762
      %v3764 = vadd.f32 %v3742, %v355
      %v3765 = vadd.f32 %v3749, %v359
      %v3766 = vadd.f32 %v3756, %v363
      %v3767 = vadd.f32 %v3763, %v367
      %v3772 = vcombine.low %v3764, %v3765
      %v3773 = vcombine.low %v3766, %v3767
      %v3775 = vunpack.c.l.s4 1966171168
      %v3776 = vunpack.c.0.s8 %v3775
      %v3777 = vlaneseq
      %v3778 = vshrl.u32 %v3777, 7
      %v3779 = vsub.s32 %v3776, %v3778
      %v3780 = vrot.slane %v3772, %v3779
      %v3782 = vunpack.c.l.s4 1966171168
      %v3783 = vunpack.c.0.s8 %v3782
      %v3784 = vlaneseq
      %v3785 = vshrl.u32 %v3784, 7
      %v3786 = vsub.s32 %v3783, %v3785
      %v3787 = vrot.slane %v3773, %v3786
      %v3788 = vcombine.low %v3780, %v3787
      %v3790 = vunpack.c.l.s4 1966171168
      %v3791 = vunpack.c.0.s8 %v3790
      %v3792 = vlaneseq
      %v3793 = vshrl.u32 %v3792, 7
      %v3794 = vsub.s32 %v3791, %v3793
      %v3795 = vrot.slane %v3788, %v3794
      %s3797 = scalar_lea.vmem [#allocation2], 165
      %3798 = vst.msk [vmem:[%s3797] ss:$8 sm:$0xf] %vm408, %v3795
      %3799 = vst.msk [vmem:[%s3797] ss:$8 sm:$0x0] %vm408, %v3795
      %v3800 = vmul.f32 %v3728, %v895
      %v3801 = vmul.f32 %v3729, %v899
      %v3802 = vmul.f32 %v3730, %v903
      %v3803 = vmul.f32 %v3731, %v907
      %v3804 = vadd.f32 %v3723, %v3800
      %v3805 = vadd.f32 %v3724, %v3801
      %v3806 = vadd.f32 %v3725, %v3802
      %v3807 = vadd.f32 %v3726, %v3803
      %s3808 = scalar_lea.vmem %s224, 1312
      %v3809 = vld [vmem:[%s3808] sm:$0x7f]
      %v3810 = vld [vmem:[%s3808 + $0x8] sm:$0x7f]
      %v3811 = vld [vmem:[%s3808 + $0x10] sm:$0x7f]
      %v3812 = vld [vmem:[%s3808 + $0x18] sm:$0x7f]
      %v3813 = vmul.f32 %v3809, %v233
      %v3814 = vmul.f32 %v3810, %v234
      %v3815 = vmul.f32 %v3811, %v235
      %v3816 = vmul.f32 %v3812, %v236
      %v3817 = vsel %vm322, %v3813, 0.0
      %v3818 = vrot.slane %v3817, 4
      %v3819 = vadd.f32 %v3817, %v3818
      %v3820 = vrot.slane %v3819, 2
      %v3821 = vadd.f32 %v3819, %v3820
      %v3822 = vrot.slane %v3821, 1
      %v3823 = vadd.f32 %v3821, %v3822
      %v3824 = vsel %vm322, %v3814, 0.0
      %v3825 = vrot.slane %v3824, 4
      %v3826 = vadd.f32 %v3824, %v3825
      %v3827 = vrot.slane %v3826, 2
      %v3828 = vadd.f32 %v3826, %v3827
      %v3829 = vrot.slane %v3828, 1
      %v3830 = vadd.f32 %v3828, %v3829
      %v3831 = vsel %vm322, %v3815, 0.0
      %v3832 = vrot.slane %v3831, 4
      %v3833 = vadd.f32 %v3831, %v3832
      %v3834 = vrot.slane %v3833, 2
      %v3835 = vadd.f32 %v3833, %v3834
      %v3836 = vrot.slane %v3835, 1
      %v3837 = vadd.f32 %v3835, %v3836
      %v3838 = vsel %vm322, %v3816, 0.0
      %v3839 = vrot.slane %v3838, 4
      %v3840 = vadd.f32 %v3838, %v3839
      %v3841 = vrot.slane %v3840, 2
      %v3842 = vadd.f32 %v3840, %v3841
      %v3843 = vrot.slane %v3842, 1
      %v3844 = vadd.f32 %v3842, %v3843
      %v3845 = vadd.f32 %v3823, %v355
      %v3846 = vadd.f32 %v3830, %v359
      %v3847 = vadd.f32 %v3837, %v363
      %v3848 = vadd.f32 %v3844, %v367
      %v3853 = vcombine.low %v3845, %v3846
      %v3854 = vcombine.low %v3847, %v3848
      %v3856 = vunpack.c.l.s4 1966171168
      %v3857 = vunpack.c.0.s8 %v3856
      %v3858 = vlaneseq
      %v3859 = vshrl.u32 %v3858, 7
      %v3860 = vsub.s32 %v3857, %v3859
      %v3861 = vrot.slane %v3853, %v3860
      %v3863 = vunpack.c.l.s4 1966171168
      %v3864 = vunpack.c.0.s8 %v3863
      %v3865 = vlaneseq
      %v3866 = vshrl.u32 %v3865, 7
      %v3867 = vsub.s32 %v3864, %v3866
      %v3868 = vrot.slane %v3854, %v3867
      %v3869 = vcombine.low %v3861, %v3868
      %v3871 = vunpack.c.l.s4 1966171168
      %v3872 = vunpack.c.0.s8 %v3871
      %v3873 = vlaneseq
      %v3874 = vshrl.u32 %v3873, 7
      %v3875 = vsub.s32 %v3872, %v3874
      %v3876 = vrot.slane %v3869, %v3875
      %s3878 = scalar_lea.vmem [#allocation2], 166
      %3879 = vst.msk [vmem:[%s3878] ss:$8 sm:$0xf] %vm408, %v3876
      %3880 = vst.msk [vmem:[%s3878] ss:$8 sm:$0x0] %vm408, %v3876
      %v3881 = vmul.f32 %v3809, %v992
      %v3882 = vmul.f32 %v3810, %v996
      %v3883 = vmul.f32 %v3811, %v1000
      %v3884 = vmul.f32 %v3812, %v1004
      %v3885 = vadd.f32 %v3804, %v3881
      %v3886 = vadd.f32 %v3805, %v3882
      %v3887 = vadd.f32 %v3806, %v3883
      %v3888 = vadd.f32 %v3807, %v3884
      %v3889 = vadd.f32 %v3885, %v1017
      %v3890 = vadd.f32 %v3886, %v1021
      %v3891 = vadd.f32 %v3887, %v1025
      %v3892 = vadd.f32 %v3888, %v1029
      %3893 = vst [vmem:[#allocation2 + $0x1a0] sm:$0x7f] %v3889
      %3894 = vst [vmem:[#allocation2 + $0x1a8] sm:$0x7f] %v3890
      %3895 = vst [vmem:[#allocation2 + $0x1b0] sm:$0x7f] %v3891
      %3896 = vst [vmem:[#allocation2 + $0x1b8] sm:$0x7f] %v3892
      %s3897 = scalar_lea.vmem %s224, 1344
      %v3898 = vld [vmem:[%s3897] sm:$0x7f]
      %v3899 = vld [vmem:[%s3897 + $0x8] sm:$0x7f]
      %v3900 = vld [vmem:[%s3897 + $0x10] sm:$0x7f]
      %v3901 = vld [vmem:[%s3897 + $0x18] sm:$0x7f]
      %v3902 = vmul.f32 %v3898, %v233
      %v3903 = vmul.f32 %v3899, %v234
      %v3904 = vmul.f32 %v3900, %v235
      %v3905 = vmul.f32 %v3901, %v236
      %v3906 = vsel %vm322, %v3902, 0.0
      %v3907 = vrot.slane %v3906, 4
      %v3908 = vadd.f32 %v3906, %v3907
      %v3909 = vrot.slane %v3908, 2
      %v3910 = vadd.f32 %v3908, %v3909
      %v3911 = vrot.slane %v3910, 1
      %v3912 = vadd.f32 %v3910, %v3911
      %v3913 = vsel %vm322, %v3903, 0.0
      %v3914 = vrot.slane %v3913, 4
      %v3915 = vadd.f32 %v3913, %v3914
      %v3916 = vrot.slane %v3915, 2
      %v3917 = vadd.f32 %v3915, %v3916
      %v3918 = vrot.slane %v3917, 1
      %v3919 = vadd.f32 %v3917, %v3918
      %v3920 = vsel %vm322, %v3904, 0.0
      %v3921 = vrot.slane %v3920, 4
      %v3922 = vadd.f32 %v3920, %v3921
      %v3923 = vrot.slane %v3922, 2
      %v3924 = vadd.f32 %v3922, %v3923
      %v3925 = vrot.slane %v3924, 1
      %v3926 = vadd.f32 %v3924, %v3925
      %v3927 = vsel %vm322, %v3905, 0.0
      %v3928 = vrot.slane %v3927, 4
      %v3929 = vadd.f32 %v3927, %v3928
      %v3930 = vrot.slane %v3929, 2
      %v3931 = vadd.f32 %v3929, %v3930
      %v3932 = vrot.slane %v3931, 1
      %v3933 = vadd.f32 %v3931, %v3932
      %v3934 = vadd.f32 %v3912, %v355
      %v3935 = vadd.f32 %v3919, %v359
      %v3936 = vadd.f32 %v3926, %v363
      %v3937 = vadd.f32 %v3933, %v367
      %v3942 = vcombine.low %v3934, %v3935
      %v3943 = vcombine.low %v3936, %v3937
      %v3945 = vunpack.c.l.s4 1966171168
      %v3946 = vunpack.c.0.s8 %v3945
      %v3947 = vlaneseq
      %v3948 = vshrl.u32 %v3947, 7
      %v3949 = vsub.s32 %v3946, %v3948
      %v3950 = vrot.slane %v3942, %v3949
      %v3952 = vunpack.c.l.s4 1966171168
      %v3953 = vunpack.c.0.s8 %v3952
      %v3954 = vlaneseq
      %v3955 = vshrl.u32 %v3954, 7
      %v3956 = vsub.s32 %v3953, %v3955
      %v3957 = vrot.slane %v3943, %v3956
      %v3958 = vcombine.low %v3950, %v3957
      %v3960 = vunpack.c.l.s4 1966171168
      %v3961 = vunpack.c.0.s8 %v3960
      %v3962 = vlaneseq
      %v3963 = vshrl.u32 %v3962, 7
      %v3964 = vsub.s32 %v3961, %v3963
      %v3965 = vrot.slane %v3958, %v3964
      %s3967 = scalar_lea.vmem [#allocation2], 192
      %3968 = vst.msk [vmem:[%s3967] ss:$8 sm:$0xf] %vm408, %v3965
      %3969 = vst.msk [vmem:[%s3967] ss:$8 sm:$0x0] %vm408, %v3965
      %v3970 = vmul.f32 %v3898, %v414
      %v3971 = vmul.f32 %v3899, %v418
      %v3972 = vmul.f32 %v3900, %v422
      %v3973 = vmul.f32 %v3901, %v426
      %s3974 = scalar_lea.vmem %s224, 1376
      %v3975 = vld [vmem:[%s3974] sm:$0x7f]
      %v3976 = vld [vmem:[%s3974 + $0x8] sm:$0x7f]
      %v3977 = vld [vmem:[%s3974 + $0x10] sm:$0x7f]
      %v3978 = vld [vmem:[%s3974 + $0x18] sm:$0x7f]
      %v3979 = vmul.f32 %v3975, %v233
      %v3980 = vmul.f32 %v3976, %v234
      %v3981 = vmul.f32 %v3977, %v235
      %v3982 = vmul.f32 %v3978, %v236
      %v3983 = vsel %vm322, %v3979, 0.0
      %v3984 = vrot.slane %v3983, 4
      %v3985 = vadd.f32 %v3983, %v3984
      %v3986 = vrot.slane %v3985, 2
      %v3987 = vadd.f32 %v3985, %v3986
      %v3988 = vrot.slane %v3987, 1
      %v3989 = vadd.f32 %v3987, %v3988
      %v3990 = vsel %vm322, %v3980, 0.0
      %v3991 = vrot.slane %v3990, 4
      %v3992 = vadd.f32 %v3990, %v3991
      %v3993 = vrot.slane %v3992, 2
      %v3994 = vadd.f32 %v3992, %v3993
      %v3995 = vrot.slane %v3994, 1
      %v3996 = vadd.f32 %v3994, %v3995
      %v3997 = vsel %vm322, %v3981, 0.0
      %v3998 = vrot.slane %v3997, 4
      %v3999 = vadd.f32 %v3997, %v3998
      %v4000 = vrot.slane %v3999, 2
      %v4001 = vadd.f32 %v3999, %v4000
      %v4002 = vrot.slane %v4001, 1
      %v4003 = vadd.f32 %v4001, %v4002
      %v4004 = vsel %vm322, %v3982, 0.0
      %v4005 = vrot.slane %v4004, 4
      %v4006 = vadd.f32 %v4004, %v4005
      %v4007 = vrot.slane %v4006, 2
      %v4008 = vadd.f32 %v4006, %v4007
      %v4009 = vrot.slane %v4008, 1
      %v4010 = vadd.f32 %v4008, %v4009
      %v4011 = vadd.f32 %v3989, %v355
      %v4012 = vadd.f32 %v3996, %v359
      %v4013 = vadd.f32 %v4003, %v363
      %v4014 = vadd.f32 %v4010, %v367
      %v4019 = vcombine.low %v4011, %v4012
      %v4020 = vcombine.low %v4013, %v4014
      %v4022 = vunpack.c.l.s4 1966171168
      %v4023 = vunpack.c.0.s8 %v4022
      %v4024 = vlaneseq
      %v4025 = vshrl.u32 %v4024, 7
      %v4026 = vsub.s32 %v4023, %v4025
      %v4027 = vrot.slane %v4019, %v4026
      %v4029 = vunpack.c.l.s4 1966171168
      %v4030 = vunpack.c.0.s8 %v4029
      %v4031 = vlaneseq
      %v4032 = vshrl.u32 %v4031, 7
      %v4033 = vsub.s32 %v4030, %v4032
      %v4034 = vrot.slane %v4020, %v4033
      %v4035 = vcombine.low %v4027, %v4034
      %v4037 = vunpack.c.l.s4 1966171168
      %v4038 = vunpack.c.0.s8 %v4037
      %v4039 = vlaneseq
      %v4040 = vshrl.u32 %v4039, 7
      %v4041 = vsub.s32 %v4038, %v4040
      %v4042 = vrot.slane %v4035, %v4041
      %s4044 = scalar_lea.vmem [#allocation2], 193
      %4045 = vst.msk [vmem:[%s4044] ss:$8 sm:$0xf] %vm408, %v4042
      %4046 = vst.msk [vmem:[%s4044] ss:$8 sm:$0x0] %vm408, %v4042
      %v4047 = vmul.f32 %v3975, %v507
      %v4048 = vmul.f32 %v3976, %v511
      %v4049 = vmul.f32 %v3977, %v515
      %v4050 = vmul.f32 %v3978, %v519
      %v4051 = vadd.f32 %v3970, %v4047
      %v4052 = vadd.f32 %v3971, %v4048
      %v4053 = vadd.f32 %v3972, %v4049
      %v4054 = vadd.f32 %v3973, %v4050
      %s4055 = scalar_lea.vmem %s224, 1408
      %v4056 = vld [vmem:[%s4055] sm:$0x7f]
      %v4057 = vld [vmem:[%s4055 + $0x8] sm:$0x7f]
      %v4058 = vld [vmem:[%s4055 + $0x10] sm:$0x7f]
      %v4059 = vld [vmem:[%s4055 + $0x18] sm:$0x7f]
      %v4060 = vmul.f32 %v4056, %v233
      %v4061 = vmul.f32 %v4057, %v234
      %v4062 = vmul.f32 %v4058, %v235
      %v4063 = vmul.f32 %v4059, %v236
      %v4064 = vsel %vm322, %v4060, 0.0
      %v4065 = vrot.slane %v4064, 4
      %v4066 = vadd.f32 %v4064, %v4065
      %v4067 = vrot.slane %v4066, 2
      %v4068 = vadd.f32 %v4066, %v4067
      %v4069 = vrot.slane %v4068, 1
      %v4070 = vadd.f32 %v4068, %v4069
      %v4071 = vsel %vm322, %v4061, 0.0
      %v4072 = vrot.slane %v4071, 4
      %v4073 = vadd.f32 %v4071, %v4072
      %v4074 = vrot.slane %v4073, 2
      %v4075 = vadd.f32 %v4073, %v4074
      %v4076 = vrot.slane %v4075, 1
      %v4077 = vadd.f32 %v4075, %v4076
      %v4078 = vsel %vm322, %v4062, 0.0
      %v4079 = vrot.slane %v4078, 4
      %v4080 = vadd.f32 %v4078, %v4079
      %v4081 = vrot.slane %v4080, 2
      %v4082 = vadd.f32 %v4080, %v4081
      %v4083 = vrot.slane %v4082, 1
      %v4084 = vadd.f32 %v4082, %v4083
      %v4085 = vsel %vm322, %v4063, 0.0
      %v4086 = vrot.slane %v4085, 4
      %v4087 = vadd.f32 %v4085, %v4086
      %v4088 = vrot.slane %v4087, 2
      %v4089 = vadd.f32 %v4087, %v4088
      %v4090 = vrot.slane %v4089, 1
      %v4091 = vadd.f32 %v4089, %v4090
      %v4092 = vadd.f32 %v4070, %v355
      %v4093 = vadd.f32 %v4077, %v359
      %v4094 = vadd.f32 %v4084, %v363
      %v4095 = vadd.f32 %v4091, %v367
      %v4100 = vcombine.low %v4092, %v4093
      %v4101 = vcombine.low %v4094, %v4095
      %v4103 = vunpack.c.l.s4 1966171168
      %v4104 = vunpack.c.0.s8 %v4103
      %v4105 = vlaneseq
      %v4106 = vshrl.u32 %v4105, 7
      %v4107 = vsub.s32 %v4104, %v4106
      %v4108 = vrot.slane %v4100, %v4107
      %v4110 = vunpack.c.l.s4 1966171168
      %v4111 = vunpack.c.0.s8 %v4110
      %v4112 = vlaneseq
      %v4113 = vshrl.u32 %v4112, 7
      %v4114 = vsub.s32 %v4111, %v4113
      %v4115 = vrot.slane %v4101, %v4114
      %v4116 = vcombine.low %v4108, %v4115
      %v4118 = vunpack.c.l.s4 1966171168
      %v4119 = vunpack.c.0.s8 %v4118
      %v4120 = vlaneseq
      %v4121 = vshrl.u32 %v4120, 7
      %v4122 = vsub.s32 %v4119, %v4121
      %v4123 = vrot.slane %v4116, %v4122
      %s4125 = scalar_lea.vmem [#allocation2], 194
      %4126 = vst.msk [vmem:[%s4125] ss:$8 sm:$0xf] %vm408, %v4123
      %4127 = vst.msk [vmem:[%s4125] ss:$8 sm:$0x0] %vm408, %v4123
      %v4128 = vmul.f32 %v4056, %v604
      %v4129 = vmul.f32 %v4057, %v608
      %v4130 = vmul.f32 %v4058, %v612
      %v4131 = vmul.f32 %v4059, %v616
      %v4132 = vadd.f32 %v4051, %v4128
      %v4133 = vadd.f32 %v4052, %v4129
      %v4134 = vadd.f32 %v4053, %v4130
      %v4135 = vadd.f32 %v4054, %v4131
      %s4136 = scalar_lea.vmem %s224, 1440
      %v4137 = vld [vmem:[%s4136] sm:$0x7f]
      %v4138 = vld [vmem:[%s4136 + $0x8] sm:$0x7f]
      %v4139 = vld [vmem:[%s4136 + $0x10] sm:$0x7f]
      %v4140 = vld [vmem:[%s4136 + $0x18] sm:$0x7f]
      %v4141 = vmul.f32 %v4137, %v233
      %v4142 = vmul.f32 %v4138, %v234
      %v4143 = vmul.f32 %v4139, %v235
      %v4144 = vmul.f32 %v4140, %v236
      %v4145 = vsel %vm322, %v4141, 0.0
      %v4146 = vrot.slane %v4145, 4
      %v4147 = vadd.f32 %v4145, %v4146
      %v4148 = vrot.slane %v4147, 2
      %v4149 = vadd.f32 %v4147, %v4148
      %v4150 = vrot.slane %v4149, 1
      %v4151 = vadd.f32 %v4149, %v4150
      %v4152 = vsel %vm322, %v4142, 0.0
      %v4153 = vrot.slane %v4152, 4
      %v4154 = vadd.f32 %v4152, %v4153
      %v4155 = vrot.slane %v4154, 2
      %v4156 = vadd.f32 %v4154, %v4155
      %v4157 = vrot.slane %v4156, 1
      %v4158 = vadd.f32 %v4156, %v4157
      %v4159 = vsel %vm322, %v4143, 0.0
      %v4160 = vrot.slane %v4159, 4
      %v4161 = vadd.f32 %v4159, %v4160
      %v4162 = vrot.slane %v4161, 2
      %v4163 = vadd.f32 %v4161, %v4162
      %v4164 = vrot.slane %v4163, 1
      %v4165 = vadd.f32 %v4163, %v4164
      %v4166 = vsel %vm322, %v4144, 0.0
      %v4167 = vrot.slane %v4166, 4
      %v4168 = vadd.f32 %v4166, %v4167
      %v4169 = vrot.slane %v4168, 2
      %v4170 = vadd.f32 %v4168, %v4169
      %v4171 = vrot.slane %v4170, 1
      %v4172 = vadd.f32 %v4170, %v4171
      %v4173 = vadd.f32 %v4151, %v355
      %v4174 = vadd.f32 %v4158, %v359
      %v4175 = vadd.f32 %v4165, %v363
      %v4176 = vadd.f32 %v4172, %v367
      %v4181 = vcombine.low %v4173, %v4174
      %v4182 = vcombine.low %v4175, %v4176
      %v4184 = vunpack.c.l.s4 1966171168
      %v4185 = vunpack.c.0.s8 %v4184
      %v4186 = vlaneseq
      %v4187 = vshrl.u32 %v4186, 7
      %v4188 = vsub.s32 %v4185, %v4187
      %v4189 = vrot.slane %v4181, %v4188
      %v4191 = vunpack.c.l.s4 1966171168
      %v4192 = vunpack.c.0.s8 %v4191
      %v4193 = vlaneseq
      %v4194 = vshrl.u32 %v4193, 7
      %v4195 = vsub.s32 %v4192, %v4194
      %v4196 = vrot.slane %v4182, %v4195
      %v4197 = vcombine.low %v4189, %v4196
      %v4199 = vunpack.c.l.s4 1966171168
      %v4200 = vunpack.c.0.s8 %v4199
      %v4201 = vlaneseq
      %v4202 = vshrl.u32 %v4201, 7
      %v4203 = vsub.s32 %v4200, %v4202
      %v4204 = vrot.slane %v4197, %v4203
      %s4206 = scalar_lea.vmem [#allocation2], 195
      %4207 = vst.msk [vmem:[%s4206] ss:$8 sm:$0xf] %vm408, %v4204
      %4208 = vst.msk [vmem:[%s4206] ss:$8 sm:$0x0] %vm408, %v4204
      %v4209 = vmul.f32 %v4137, %v701
      %v4210 = vmul.f32 %v4138, %v705
      %v4211 = vmul.f32 %v4139, %v709
      %v4212 = vmul.f32 %v4140, %v713
      %v4213 = vadd.f32 %v4132, %v4209
      %v4214 = vadd.f32 %v4133, %v4210
      %v4215 = vadd.f32 %v4134, %v4211
      %v4216 = vadd.f32 %v4135, %v4212
      %s4217 = scalar_lea.vmem %s224, 1472
      %v4218 = vld [vmem:[%s4217] sm:$0x7f]
      %v4219 = vld [vmem:[%s4217 + $0x8] sm:$0x7f]
      %v4220 = vld [vmem:[%s4217 + $0x10] sm:$0x7f]
      %v4221 = vld [vmem:[%s4217 + $0x18] sm:$0x7f]
      %v4222 = vmul.f32 %v4218, %v233
      %v4223 = vmul.f32 %v4219, %v234
      %v4224 = vmul.f32 %v4220, %v235
      %v4225 = vmul.f32 %v4221, %v236
      %v4226 = vsel %vm322, %v4222, 0.0
      %v4227 = vrot.slane %v4226, 4
      %v4228 = vadd.f32 %v4226, %v4227
      %v4229 = vrot.slane %v4228, 2
      %v4230 = vadd.f32 %v4228, %v4229
      %v4231 = vrot.slane %v4230, 1
      %v4232 = vadd.f32 %v4230, %v4231
      %v4233 = vsel %vm322, %v4223, 0.0
      %v4234 = vrot.slane %v4233, 4
      %v4235 = vadd.f32 %v4233, %v4234
      %v4236 = vrot.slane %v4235, 2
      %v4237 = vadd.f32 %v4235, %v4236
      %v4238 = vrot.slane %v4237, 1
      %v4239 = vadd.f32 %v4237, %v4238
      %v4240 = vsel %vm322, %v4224, 0.0
      %v4241 = vrot.slane %v4240, 4
      %v4242 = vadd.f32 %v4240, %v4241
      %v4243 = vrot.slane %v4242, 2
      %v4244 = vadd.f32 %v4242, %v4243
      %v4245 = vrot.slane %v4244, 1
      %v4246 = vadd.f32 %v4244, %v4245
      %v4247 = vsel %vm322, %v4225, 0.0
      %v4248 = vrot.slane %v4247, 4
      %v4249 = vadd.f32 %v4247, %v4248
      %v4250 = vrot.slane %v4249, 2
      %v4251 = vadd.f32 %v4249, %v4250
      %v4252 = vrot.slane %v4251, 1
      %v4253 = vadd.f32 %v4251, %v4252
      %v4254 = vadd.f32 %v4232, %v355
      %v4255 = vadd.f32 %v4239, %v359
      %v4256 = vadd.f32 %v4246, %v363
      %v4257 = vadd.f32 %v4253, %v367
      %v4262 = vcombine.low %v4254, %v4255
      %v4263 = vcombine.low %v4256, %v4257
      %v4265 = vunpack.c.l.s4 1966171168
      %v4266 = vunpack.c.0.s8 %v4265
      %v4267 = vlaneseq
      %v4268 = vshrl.u32 %v4267, 7
      %v4269 = vsub.s32 %v4266, %v4268
      %v4270 = vrot.slane %v4262, %v4269
      %v4272 = vunpack.c.l.s4 1966171168
      %v4273 = vunpack.c.0.s8 %v4272
      %v4274 = vlaneseq
      %v4275 = vshrl.u32 %v4274, 7
      %v4276 = vsub.s32 %v4273, %v4275
      %v4277 = vrot.slane %v4263, %v4276
      %v4278 = vcombine.low %v4270, %v4277
      %v4280 = vunpack.c.l.s4 1966171168
      %v4281 = vunpack.c.0.s8 %v4280
      %v4282 = vlaneseq
      %v4283 = vshrl.u32 %v4282, 7
      %v4284 = vsub.s32 %v4281, %v4283
      %v4285 = vrot.slane %v4278, %v4284
      %s4287 = scalar_lea.vmem [#allocation2], 196
      %4288 = vst.msk [vmem:[%s4287] ss:$8 sm:$0xf] %vm408, %v4285
      %4289 = vst.msk [vmem:[%s4287] ss:$8 sm:$0x0] %vm408, %v4285
      %v4290 = vmul.f32 %v4218, %v798
      %v4291 = vmul.f32 %v4219, %v802
      %v4292 = vmul.f32 %v4220, %v806
      %v4293 = vmul.f32 %v4221, %v810
      %v4294 = vadd.f32 %v4213, %v4290
      %v4295 = vadd.f32 %v4214, %v4291
      %v4296 = vadd.f32 %v4215, %v4292
      %v4297 = vadd.f32 %v4216, %v4293
      %s4298 = scalar_lea.vmem %s224, 1504
      %v4299 = vld [vmem:[%s4298] sm:$0x7f]
      %v4300 = vld [vmem:[%s4298 + $0x8] sm:$0x7f]
      %v4301 = vld [vmem:[%s4298 + $0x10] sm:$0x7f]
      %v4302 = vld [vmem:[%s4298 + $0x18] sm:$0x7f]
      %v4303 = vmul.f32 %v4299, %v233
      %v4304 = vmul.f32 %v4300, %v234
      %v4305 = vmul.f32 %v4301, %v235
      %v4306 = vmul.f32 %v4302, %v236
      %v4307 = vsel %vm322, %v4303, 0.0
      %v4308 = vrot.slane %v4307, 4
      %v4309 = vadd.f32 %v4307, %v4308
      %v4310 = vrot.slane %v4309, 2
      %v4311 = vadd.f32 %v4309, %v4310
      %v4312 = vrot.slane %v4311, 1
      %v4313 = vadd.f32 %v4311, %v4312
      %v4314 = vsel %vm322, %v4304, 0.0
      %v4315 = vrot.slane %v4314, 4
      %v4316 = vadd.f32 %v4314, %v4315
      %v4317 = vrot.slane %v4316, 2
      %v4318 = vadd.f32 %v4316, %v4317
      %v4319 = vrot.slane %v4318, 1
      %v4320 = vadd.f32 %v4318, %v4319
      %v4321 = vsel %vm322, %v4305, 0.0
      %v4322 = vrot.slane %v4321, 4
      %v4323 = vadd.f32 %v4321, %v4322
      %v4324 = vrot.slane %v4323, 2
      %v4325 = vadd.f32 %v4323, %v4324
      %v4326 = vrot.slane %v4325, 1
      %v4327 = vadd.f32 %v4325, %v4326
      %v4328 = vsel %vm322, %v4306, 0.0
      %v4329 = vrot.slane %v4328, 4
      %v4330 = vadd.f32 %v4328, %v4329
      %v4331 = vrot.slane %v4330, 2
      %v4332 = vadd.f32 %v4330, %v4331
      %v4333 = vrot.slane %v4332, 1
      %v4334 = vadd.f32 %v4332, %v4333
      %v4335 = vadd.f32 %v4313, %v355
      %v4336 = vadd.f32 %v4320, %v359
      %v4337 = vadd.f32 %v4327, %v363
      %v4338 = vadd.f32 %v4334, %v367
      %v4343 = vcombine.low %v4335, %v4336
      %v4344 = vcombine.low %v4337, %v4338
      %v4346 = vunpack.c.l.s4 1966171168
      %v4347 = vunpack.c.0.s8 %v4346
      %v4348 = vlaneseq
      %v4349 = vshrl.u32 %v4348, 7
      %v4350 = vsub.s32 %v4347, %v4349
      %v4351 = vrot.slane %v4343, %v4350
      %v4353 = vunpack.c.l.s4 1966171168
      %v4354 = vunpack.c.0.s8 %v4353
      %v4355 = vlaneseq
      %v4356 = vshrl.u32 %v4355, 7
      %v4357 = vsub.s32 %v4354, %v4356
      %v4358 = vrot.slane %v4344, %v4357
      %v4359 = vcombine.low %v4351, %v4358
      %v4361 = vunpack.c.l.s4 1966171168
      %v4362 = vunpack.c.0.s8 %v4361
      %v4363 = vlaneseq
      %v4364 = vshrl.u32 %v4363, 7
      %v4365 = vsub.s32 %v4362, %v4364
      %v4366 = vrot.slane %v4359, %v4365
      %s4368 = scalar_lea.vmem [#allocation2], 197
      %4369 = vst.msk [vmem:[%s4368] ss:$8 sm:$0xf] %vm408, %v4366
      %4370 = vst.msk [vmem:[%s4368] ss:$8 sm:$0x0] %vm408, %v4366
      %v4371 = vmul.f32 %v4299, %v895
      %v4372 = vmul.f32 %v4300, %v899
      %v4373 = vmul.f32 %v4301, %v903
      %v4374 = vmul.f32 %v4302, %v907
      %v4375 = vadd.f32 %v4294, %v4371
      %v4376 = vadd.f32 %v4295, %v4372
      %v4377 = vadd.f32 %v4296, %v4373
      %v4378 = vadd.f32 %v4297, %v4374
      %s4379 = scalar_lea.vmem %s224, 1536
      %v4380 = vld [vmem:[%s4379] sm:$0x7f]
      %v4381 = vld [vmem:[%s4379 + $0x8] sm:$0x7f]
      %v4382 = vld [vmem:[%s4379 + $0x10] sm:$0x7f]
      %v4383 = vld [vmem:[%s4379 + $0x18] sm:$0x7f]
      %v4384 = vmul.f32 %v4380, %v233
      %v4385 = vmul.f32 %v4381, %v234
      %v4386 = vmul.f32 %v4382, %v235
      %v4387 = vmul.f32 %v4383, %v236
      %v4388 = vsel %vm322, %v4384, 0.0
      %v4389 = vrot.slane %v4388, 4
      %v4390 = vadd.f32 %v4388, %v4389
      %v4391 = vrot.slane %v4390, 2
      %v4392 = vadd.f32 %v4390, %v4391
      %v4393 = vrot.slane %v4392, 1
      %v4394 = vadd.f32 %v4392, %v4393
      %v4395 = vsel %vm322, %v4385, 0.0
      %v4396 = vrot.slane %v4395, 4
      %v4397 = vadd.f32 %v4395, %v4396
      %v4398 = vrot.slane %v4397, 2
      %v4399 = vadd.f32 %v4397, %v4398
      %v4400 = vrot.slane %v4399, 1
      %v4401 = vadd.f32 %v4399, %v4400
      %v4402 = vsel %vm322, %v4386, 0.0
      %v4403 = vrot.slane %v4402, 4
      %v4404 = vadd.f32 %v4402, %v4403
      %v4405 = vrot.slane %v4404, 2
      %v4406 = vadd.f32 %v4404, %v4405
      %v4407 = vrot.slane %v4406, 1
      %v4408 = vadd.f32 %v4406, %v4407
      %v4409 = vsel %vm322, %v4387, 0.0
      %v4410 = vrot.slane %v4409, 4
      %v4411 = vadd.f32 %v4409, %v4410
      %v4412 = vrot.slane %v4411, 2
      %v4413 = vadd.f32 %v4411, %v4412
      %v4414 = vrot.slane %v4413, 1
      %v4415 = vadd.f32 %v4413, %v4414
      %v4416 = vadd.f32 %v4394, %v355
      %v4417 = vadd.f32 %v4401, %v359
      %v4418 = vadd.f32 %v4408, %v363
      %v4419 = vadd.f32 %v4415, %v367
      %v4424 = vcombine.low %v4416, %v4417
      %v4425 = vcombine.low %v4418, %v4419
      %v4427 = vunpack.c.l.s4 1966171168
      %v4428 = vunpack.c.0.s8 %v4427
      %v4429 = vlaneseq
      %v4430 = vshrl.u32 %v4429, 7
      %v4431 = vsub.s32 %v4428, %v4430
      %v4432 = vrot.slane %v4424, %v4431
      %v4434 = vunpack.c.l.s4 1966171168
      %v4435 = vunpack.c.0.s8 %v4434
      %v4436 = vlaneseq
      %v4437 = vshrl.u32 %v4436, 7
      %v4438 = vsub.s32 %v4435, %v4437
      %v4439 = vrot.slane %v4425, %v4438
      %v4440 = vcombine.low %v4432, %v4439
      %v4442 = vunpack.c.l.s4 1966171168
      %v4443 = vunpack.c.0.s8 %v4442
      %v4444 = vlaneseq
      %v4445 = vshrl.u32 %v4444, 7
      %v4446 = vsub.s32 %v4443, %v4445
      %v4447 = vrot.slane %v4440, %v4446
      %s4449 = scalar_lea.vmem [#allocation2], 198
      %4450 = vst.msk [vmem:[%s4449] ss:$8 sm:$0xf] %vm408, %v4447
      %4451 = vst.msk [vmem:[%s4449] ss:$8 sm:$0x0] %vm408, %v4447
      %v4452 = vmul.f32 %v4380, %v992
      %v4453 = vmul.f32 %v4381, %v996
      %v4454 = vmul.f32 %v4382, %v1000
      %v4455 = vmul.f32 %v4383, %v1004
      %v4456 = vadd.f32 %v4375, %v4452
      %v4457 = vadd.f32 %v4376, %v4453
      %v4458 = vadd.f32 %v4377, %v4454
      %v4459 = vadd.f32 %v4378, %v4455
      %v4460 = vadd.f32 %v4456, %v1017
      %v4461 = vadd.f32 %v4457, %v1021
      %v4462 = vadd.f32 %v4458, %v1025
      %v4463 = vadd.f32 %v4459, %v1029
      %4464 = vst [vmem:[#allocation2 + $0x1c0] sm:$0x7f] %v4460
      %4465 = vst [vmem:[#allocation2 + $0x1c8] sm:$0x7f] %v4461
      %4466 = vst [vmem:[#allocation2 + $0x1d0] sm:$0x7f] %v4462
      %4467 = vst [vmem:[#allocation2 + $0x1d8] sm:$0x7f] %v4463
      %s4468 = scalar_lea.vmem %s224, 1568
      %v4469 = vld [vmem:[%s4468] sm:$0x7f]
      %v4470 = vld [vmem:[%s4468 + $0x8] sm:$0x7f]
      %v4471 = vld [vmem:[%s4468 + $0x10] sm:$0x7f]
      %v4472 = vld [vmem:[%s4468 + $0x18] sm:$0x7f]
      %v4473 = vmul.f32 %v4469, %v233
      %v4474 = vmul.f32 %v4470, %v234
      %v4475 = vmul.f32 %v4471, %v235
      %v4476 = vmul.f32 %v4472, %v236
      %v4477 = vsel %vm322, %v4473, 0.0
      %v4478 = vrot.slane %v4477, 4
      %v4479 = vadd.f32 %v4477, %v4478
      %v4480 = vrot.slane %v4479, 2
      %v4481 = vadd.f32 %v4479, %v4480
      %v4482 = vrot.slane %v4481, 1
      %v4483 = vadd.f32 %v4481, %v4482
      %v4484 = vsel %vm322, %v4474, 0.0
      %v4485 = vrot.slane %v4484, 4
      %v4486 = vadd.f32 %v4484, %v4485
      %v4487 = vrot.slane %v4486, 2
      %v4488 = vadd.f32 %v4486, %v4487
      %v4489 = vrot.slane %v4488, 1
      %v4490 = vadd.f32 %v4488, %v4489
      %v4491 = vsel %vm322, %v4475, 0.0
      %v4492 = vrot.slane %v4491, 4
      %v4493 = vadd.f32 %v4491, %v4492
      %v4494 = vrot.slane %v4493, 2
      %v4495 = vadd.f32 %v4493, %v4494
      %v4496 = vrot.slane %v4495, 1
      %v4497 = vadd.f32 %v4495, %v4496
      %v4498 = vsel %vm322, %v4476, 0.0
      %v4499 = vrot.slane %v4498, 4
      %v4500 = vadd.f32 %v4498, %v4499
      %v4501 = vrot.slane %v4500, 2
      %v4502 = vadd.f32 %v4500, %v4501
      %v4503 = vrot.slane %v4502, 1
      %v4504 = vadd.f32 %v4502, %v4503
      %v4505 = vadd.f32 %v4483, %v355
      %v4506 = vadd.f32 %v4490, %v359
      %v4507 = vadd.f32 %v4497, %v363
      %v4508 = vadd.f32 %v4504, %v367
      %v4513 = vcombine.low %v4505, %v4506
      %v4514 = vcombine.low %v4507, %v4508
      %v4516 = vunpack.c.l.s4 1966171168
      %v4517 = vunpack.c.0.s8 %v4516
      %v4518 = vlaneseq
      %v4519 = vshrl.u32 %v4518, 7
      %v4520 = vsub.s32 %v4517, %v4519
      %v4521 = vrot.slane %v4513, %v4520
      %v4523 = vunpack.c.l.s4 1966171168
      %v4524 = vunpack.c.0.s8 %v4523
      %v4525 = vlaneseq
      %v4526 = vshrl.u32 %v4525, 7
      %v4527 = vsub.s32 %v4524, %v4526
      %v4528 = vrot.slane %v4514, %v4527
      %v4529 = vcombine.low %v4521, %v4528
      %v4531 = vunpack.c.l.s4 1966171168
      %v4532 = vunpack.c.0.s8 %v4531
      %v4533 = vlaneseq
      %v4534 = vshrl.u32 %v4533, 7
      %v4535 = vsub.s32 %v4532, %v4534
      %v4536 = vrot.slane %v4529, %v4535
      %s4538 = scalar_lea.vmem [#allocation2], 224
      %4539 = vst.msk [vmem:[%s4538] ss:$8 sm:$0xf] %vm408, %v4536
      %4540 = vst.msk [vmem:[%s4538] ss:$8 sm:$0x0] %vm408, %v4536
      %v4541 = vmul.f32 %v4469, %v414
      %v4542 = vmul.f32 %v4470, %v418
      %v4543 = vmul.f32 %v4471, %v422
      %v4544 = vmul.f32 %v4472, %v426
      %s4545 = scalar_lea.vmem %s224, 1600
      %v4546 = vld [vmem:[%s4545] sm:$0x7f]
      %v4547 = vld [vmem:[%s4545 + $0x8] sm:$0x7f]
      %v4548 = vld [vmem:[%s4545 + $0x10] sm:$0x7f]
      %v4549 = vld [vmem:[%s4545 + $0x18] sm:$0x7f]
      %v4550 = vmul.f32 %v4546, %v233
      %v4551 = vmul.f32 %v4547, %v234
      %v4552 = vmul.f32 %v4548, %v235
      %v4553 = vmul.f32 %v4549, %v236
      %v4554 = vsel %vm322, %v4550, 0.0
      %v4555 = vrot.slane %v4554, 4
      %v4556 = vadd.f32 %v4554, %v4555
      %v4557 = vrot.slane %v4556, 2
      %v4558 = vadd.f32 %v4556, %v4557
      %v4559 = vrot.slane %v4558, 1
      %v4560 = vadd.f32 %v4558, %v4559
      %v4561 = vsel %vm322, %v4551, 0.0
      %v4562 = vrot.slane %v4561, 4
      %v4563 = vadd.f32 %v4561, %v4562
      %v4564 = vrot.slane %v4563, 2
      %v4565 = vadd.f32 %v4563, %v4564
      %v4566 = vrot.slane %v4565, 1
      %v4567 = vadd.f32 %v4565, %v4566
      %v4568 = vsel %vm322, %v4552, 0.0
      %v4569 = vrot.slane %v4568, 4
      %v4570 = vadd.f32 %v4568, %v4569
      %v4571 = vrot.slane %v4570, 2
      %v4572 = vadd.f32 %v4570, %v4571
      %v4573 = vrot.slane %v4572, 1
      %v4574 = vadd.f32 %v4572, %v4573
      %v4575 = vsel %vm322, %v4553, 0.0
      %v4576 = vrot.slane %v4575, 4
      %v4577 = vadd.f32 %v4575, %v4576
      %v4578 = vrot.slane %v4577, 2
      %v4579 = vadd.f32 %v4577, %v4578
      %v4580 = vrot.slane %v4579, 1
      %v4581 = vadd.f32 %v4579, %v4580
      %v4582 = vadd.f32 %v4560, %v355
      %v4583 = vadd.f32 %v4567, %v359
      %v4584 = vadd.f32 %v4574, %v363
      %v4585 = vadd.f32 %v4581, %v367
      %v4590 = vcombine.low %v4582, %v4583
      %v4591 = vcombine.low %v4584, %v4585
      %v4593 = vunpack.c.l.s4 1966171168
      %v4594 = vunpack.c.0.s8 %v4593
      %v4595 = vlaneseq
      %v4596 = vshrl.u32 %v4595, 7
      %v4597 = vsub.s32 %v4594, %v4596
      %v4598 = vrot.slane %v4590, %v4597
      %v4600 = vunpack.c.l.s4 1966171168
      %v4601 = vunpack.c.0.s8 %v4600
      %v4602 = vlaneseq
      %v4603 = vshrl.u32 %v4602, 7
      %v4604 = vsub.s32 %v4601, %v4603
      %v4605 = vrot.slane %v4591, %v4604
      %v4606 = vcombine.low %v4598, %v4605
      %v4608 = vunpack.c.l.s4 1966171168
      %v4609 = vunpack.c.0.s8 %v4608
      %v4610 = vlaneseq
      %v4611 = vshrl.u32 %v4610, 7
      %v4612 = vsub.s32 %v4609, %v4611
      %v4613 = vrot.slane %v4606, %v4612
      %s4615 = scalar_lea.vmem [#allocation2], 225
      %4616 = vst.msk [vmem:[%s4615] ss:$8 sm:$0xf] %vm408, %v4613
      %4617 = vst.msk [vmem:[%s4615] ss:$8 sm:$0x0] %vm408, %v4613
      %v4618 = vmul.f32 %v4546, %v507
      %v4619 = vmul.f32 %v4547, %v511
      %v4620 = vmul.f32 %v4548, %v515
      %v4621 = vmul.f32 %v4549, %v519
      %v4622 = vadd.f32 %v4541, %v4618
      %v4623 = vadd.f32 %v4542, %v4619
      %v4624 = vadd.f32 %v4543, %v4620
      %v4625 = vadd.f32 %v4544, %v4621
      %s4626 = scalar_lea.vmem %s224, 1632
      %v4627 = vld [vmem:[%s4626] sm:$0x7f]
      %v4628 = vld [vmem:[%s4626 + $0x8] sm:$0x7f]
      %v4629 = vld [vmem:[%s4626 + $0x10] sm:$0x7f]
      %v4630 = vld [vmem:[%s4626 + $0x18] sm:$0x7f]
      %v4631 = vmul.f32 %v4627, %v233
      %v4632 = vmul.f32 %v4628, %v234
      %v4633 = vmul.f32 %v4629, %v235
      %v4634 = vmul.f32 %v4630, %v236
      %v4635 = vsel %vm322, %v4631, 0.0
      %v4636 = vrot.slane %v4635, 4
      %v4637 = vadd.f32 %v4635, %v4636
      %v4638 = vrot.slane %v4637, 2
      %v4639 = vadd.f32 %v4637, %v4638
      %v4640 = vrot.slane %v4639, 1
      %v4641 = vadd.f32 %v4639, %v4640
      %v4642 = vsel %vm322, %v4632, 0.0
      %v4643 = vrot.slane %v4642, 4
      %v4644 = vadd.f32 %v4642, %v4643
      %v4645 = vrot.slane %v4644, 2
      %v4646 = vadd.f32 %v4644, %v4645
      %v4647 = vrot.slane %v4646, 1
      %v4648 = vadd.f32 %v4646, %v4647
      %v4649 = vsel %vm322, %v4633, 0.0
      %v4650 = vrot.slane %v4649, 4
      %v4651 = vadd.f32 %v4649, %v4650
      %v4652 = vrot.slane %v4651, 2
      %v4653 = vadd.f32 %v4651, %v4652
      %v4654 = vrot.slane %v4653, 1
      %v4655 = vadd.f32 %v4653, %v4654
      %v4656 = vsel %vm322, %v4634, 0.0
      %v4657 = vrot.slane %v4656, 4
      %v4658 = vadd.f32 %v4656, %v4657
      %v4659 = vrot.slane %v4658, 2
      %v4660 = vadd.f32 %v4658, %v4659
      %v4661 = vrot.slane %v4660, 1
      %v4662 = vadd.f32 %v4660, %v4661
      %v4663 = vadd.f32 %v4641, %v355
      %v4664 = vadd.f32 %v4648, %v359
      %v4665 = vadd.f32 %v4655, %v363
      %v4666 = vadd.f32 %v4662, %v367
      %v4671 = vcombine.low %v4663, %v4664
      %v4672 = vcombine.low %v4665, %v4666
      %v4674 = vunpack.c.l.s4 1966171168
      %v4675 = vunpack.c.0.s8 %v4674
      %v4676 = vlaneseq
      %v4677 = vshrl.u32 %v4676, 7
      %v4678 = vsub.s32 %v4675, %v4677
      %v4679 = vrot.slane %v4671, %v4678
      %v4681 = vunpack.c.l.s4 1966171168
      %v4682 = vunpack.c.0.s8 %v4681
      %v4683 = vlaneseq
      %v4684 = vshrl.u32 %v4683, 7
      %v4685 = vsub.s32 %v4682, %v4684
      %v4686 = vrot.slane %v4672, %v4685
      %v4687 = vcombine.low %v4679, %v4686
      %v4689 = vunpack.c.l.s4 1966171168
      %v4690 = vunpack.c.0.s8 %v4689
      %v4691 = vlaneseq
      %v4692 = vshrl.u32 %v4691, 7
      %v4693 = vsub.s32 %v4690, %v4692
      %v4694 = vrot.slane %v4687, %v4693
      %s4696 = scalar_lea.vmem [#allocation2], 226
      %4697 = vst.msk [vmem:[%s4696] ss:$8 sm:$0xf] %vm408, %v4694
      %4698 = vst.msk [vmem:[%s4696] ss:$8 sm:$0x0] %vm408, %v4694
      %v4699 = vmul.f32 %v4627, %v604
      %v4700 = vmul.f32 %v4628, %v608
      %v4701 = vmul.f32 %v4629, %v612
      %v4702 = vmul.f32 %v4630, %v616
      %v4703 = vadd.f32 %v4622, %v4699
      %v4704 = vadd.f32 %v4623, %v4700
      %v4705 = vadd.f32 %v4624, %v4701
      %v4706 = vadd.f32 %v4625, %v4702
      %s4707 = scalar_lea.vmem %s224, 1664
      %v4708 = vld [vmem:[%s4707] sm:$0x7f]
      %v4709 = vld [vmem:[%s4707 + $0x8] sm:$0x7f]
      %v4710 = vld [vmem:[%s4707 + $0x10] sm:$0x7f]
      %v4711 = vld [vmem:[%s4707 + $0x18] sm:$0x7f]
      %v4712 = vmul.f32 %v4708, %v233
      %v4713 = vmul.f32 %v4709, %v234
      %v4714 = vmul.f32 %v4710, %v235
      %v4715 = vmul.f32 %v4711, %v236
      %v4716 = vsel %vm322, %v4712, 0.0
      %v4717 = vrot.slane %v4716, 4
      %v4718 = vadd.f32 %v4716, %v4717
      %v4719 = vrot.slane %v4718, 2
      %v4720 = vadd.f32 %v4718, %v4719
      %v4721 = vrot.slane %v4720, 1
      %v4722 = vadd.f32 %v4720, %v4721
      %v4723 = vsel %vm322, %v4713, 0.0
      %v4724 = vrot.slane %v4723, 4
      %v4725 = vadd.f32 %v4723, %v4724
      %v4726 = vrot.slane %v4725, 2
      %v4727 = vadd.f32 %v4725, %v4726
      %v4728 = vrot.slane %v4727, 1
      %v4729 = vadd.f32 %v4727, %v4728
      %v4730 = vsel %vm322, %v4714, 0.0
      %v4731 = vrot.slane %v4730, 4
      %v4732 = vadd.f32 %v4730, %v4731
      %v4733 = vrot.slane %v4732, 2
      %v4734 = vadd.f32 %v4732, %v4733
      %v4735 = vrot.slane %v4734, 1
      %v4736 = vadd.f32 %v4734, %v4735
      %v4737 = vsel %vm322, %v4715, 0.0
      %v4738 = vrot.slane %v4737, 4
      %v4739 = vadd.f32 %v4737, %v4738
      %v4740 = vrot.slane %v4739, 2
      %v4741 = vadd.f32 %v4739, %v4740
      %v4742 = vrot.slane %v4741, 1
      %v4743 = vadd.f32 %v4741, %v4742
      %v4744 = vadd.f32 %v4722, %v355
      %v4745 = vadd.f32 %v4729, %v359
      %v4746 = vadd.f32 %v4736, %v363
      %v4747 = vadd.f32 %v4743, %v367
      %v4752 = vcombine.low %v4744, %v4745
      %v4753 = vcombine.low %v4746, %v4747
      %v4755 = vunpack.c.l.s4 1966171168
      %v4756 = vunpack.c.0.s8 %v4755
      %v4757 = vlaneseq
      %v4758 = vshrl.u32 %v4757, 7
      %v4759 = vsub.s32 %v4756, %v4758
      %v4760 = vrot.slane %v4752, %v4759
      %v4762 = vunpack.c.l.s4 1966171168
      %v4763 = vunpack.c.0.s8 %v4762
      %v4764 = vlaneseq
      %v4765 = vshrl.u32 %v4764, 7
      %v4766 = vsub.s32 %v4763, %v4765
      %v4767 = vrot.slane %v4753, %v4766
      %v4768 = vcombine.low %v4760, %v4767
      %v4770 = vunpack.c.l.s4 1966171168
      %v4771 = vunpack.c.0.s8 %v4770
      %v4772 = vlaneseq
      %v4773 = vshrl.u32 %v4772, 7
      %v4774 = vsub.s32 %v4771, %v4773
      %v4775 = vrot.slane %v4768, %v4774
      %s4777 = scalar_lea.vmem [#allocation2], 227
      %4778 = vst.msk [vmem:[%s4777] ss:$8 sm:$0xf] %vm408, %v4775
      %4779 = vst.msk [vmem:[%s4777] ss:$8 sm:$0x0] %vm408, %v4775
      %v4780 = vmul.f32 %v4708, %v701
      %v4781 = vmul.f32 %v4709, %v705
      %v4782 = vmul.f32 %v4710, %v709
      %v4783 = vmul.f32 %v4711, %v713
      %v4784 = vadd.f32 %v4703, %v4780
      %v4785 = vadd.f32 %v4704, %v4781
      %v4786 = vadd.f32 %v4705, %v4782
      %v4787 = vadd.f32 %v4706, %v4783
      %s4788 = scalar_lea.vmem %s224, 1696
      %v4789 = vld [vmem:[%s4788] sm:$0x7f]
      %v4790 = vld [vmem:[%s4788 + $0x8] sm:$0x7f]
      %v4791 = vld [vmem:[%s4788 + $0x10] sm:$0x7f]
      %v4792 = vld [vmem:[%s4788 + $0x18] sm:$0x7f]
      %v4793 = vmul.f32 %v4789, %v233
      %v4794 = vmul.f32 %v4790, %v234
      %v4795 = vmul.f32 %v4791, %v235
      %v4796 = vmul.f32 %v4792, %v236
      %v4797 = vsel %vm322, %v4793, 0.0
      %v4798 = vrot.slane %v4797, 4
      %v4799 = vadd.f32 %v4797, %v4798
      %v4800 = vrot.slane %v4799, 2
      %v4801 = vadd.f32 %v4799, %v4800
      %v4802 = vrot.slane %v4801, 1
      %v4803 = vadd.f32 %v4801, %v4802
      %v4804 = vsel %vm322, %v4794, 0.0
      %v4805 = vrot.slane %v4804, 4
      %v4806 = vadd.f32 %v4804, %v4805
      %v4807 = vrot.slane %v4806, 2
      %v4808 = vadd.f32 %v4806, %v4807
      %v4809 = vrot.slane %v4808, 1
      %v4810 = vadd.f32 %v4808, %v4809
      %v4811 = vsel %vm322, %v4795, 0.0
      %v4812 = vrot.slane %v4811, 4
      %v4813 = vadd.f32 %v4811, %v4812
      %v4814 = vrot.slane %v4813, 2
      %v4815 = vadd.f32 %v4813, %v4814
      %v4816 = vrot.slane %v4815, 1
      %v4817 = vadd.f32 %v4815, %v4816
      %v4818 = vsel %vm322, %v4796, 0.0
      %v4819 = vrot.slane %v4818, 4
      %v4820 = vadd.f32 %v4818, %v4819
      %v4821 = vrot.slane %v4820, 2
      %v4822 = vadd.f32 %v4820, %v4821
      %v4823 = vrot.slane %v4822, 1
      %v4824 = vadd.f32 %v4822, %v4823
      %v4825 = vadd.f32 %v4803, %v355
      %v4826 = vadd.f32 %v4810, %v359
      %v4827 = vadd.f32 %v4817, %v363
      %v4828 = vadd.f32 %v4824, %v367
      %v4833 = vcombine.low %v4825, %v4826
      %v4834 = vcombine.low %v4827, %v4828
      %v4836 = vunpack.c.l.s4 1966171168
      %v4837 = vunpack.c.0.s8 %v4836
      %v4838 = vlaneseq
      %v4839 = vshrl.u32 %v4838, 7
      %v4840 = vsub.s32 %v4837, %v4839
      %v4841 = vrot.slane %v4833, %v4840
      %v4843 = vunpack.c.l.s4 1966171168
      %v4844 = vunpack.c.0.s8 %v4843
      %v4845 = vlaneseq
      %v4846 = vshrl.u32 %v4845, 7
      %v4847 = vsub.s32 %v4844, %v4846
      %v4848 = vrot.slane %v4834, %v4847
      %v4849 = vcombine.low %v4841, %v4848
      %v4851 = vunpack.c.l.s4 1966171168
      %v4852 = vunpack.c.0.s8 %v4851
      %v4853 = vlaneseq
      %v4854 = vshrl.u32 %v4853, 7
      %v4855 = vsub.s32 %v4852, %v4854
      %v4856 = vrot.slane %v4849, %v4855
      %s4858 = scalar_lea.vmem [#allocation2], 228
      %4859 = vst.msk [vmem:[%s4858] ss:$8 sm:$0xf] %vm408, %v4856
      %4860 = vst.msk [vmem:[%s4858] ss:$8 sm:$0x0] %vm408, %v4856
      %v4861 = vmul.f32 %v4789, %v798
      %v4862 = vmul.f32 %v4790, %v802
      %v4863 = vmul.f32 %v4791, %v806
      %v4864 = vmul.f32 %v4792, %v810
      %v4865 = vadd.f32 %v4784, %v4861
      %v4866 = vadd.f32 %v4785, %v4862
      %v4867 = vadd.f32 %v4786, %v4863
      %v4868 = vadd.f32 %v4787, %v4864
      %s4869 = scalar_lea.vmem %s224, 1728
      %v4870 = vld [vmem:[%s4869] sm:$0x7f]
      %v4871 = vld [vmem:[%s4869 + $0x8] sm:$0x7f]
      %v4872 = vld [vmem:[%s4869 + $0x10] sm:$0x7f]
      %v4873 = vld [vmem:[%s4869 + $0x18] sm:$0x7f]
      %v4874 = vmul.f32 %v4870, %v233
      %v4875 = vmul.f32 %v4871, %v234
      %v4876 = vmul.f32 %v4872, %v235
      %v4877 = vmul.f32 %v4873, %v236
      %v4878 = vsel %vm322, %v4874, 0.0
      %v4879 = vrot.slane %v4878, 4
      %v4880 = vadd.f32 %v4878, %v4879
      %v4881 = vrot.slane %v4880, 2
      %v4882 = vadd.f32 %v4880, %v4881
      %v4883 = vrot.slane %v4882, 1
      %v4884 = vadd.f32 %v4882, %v4883
      %v4885 = vsel %vm322, %v4875, 0.0
      %v4886 = vrot.slane %v4885, 4
      %v4887 = vadd.f32 %v4885, %v4886
      %v4888 = vrot.slane %v4887, 2
      %v4889 = vadd.f32 %v4887, %v4888
      %v4890 = vrot.slane %v4889, 1
      %v4891 = vadd.f32 %v4889, %v4890
      %v4892 = vsel %vm322, %v4876, 0.0
      %v4893 = vrot.slane %v4892, 4
      %v4894 = vadd.f32 %v4892, %v4893
      %v4895 = vrot.slane %v4894, 2
      %v4896 = vadd.f32 %v4894, %v4895
      %v4897 = vrot.slane %v4896, 1
      %v4898 = vadd.f32 %v4896, %v4897
      %v4899 = vsel %vm322, %v4877, 0.0
      %v4900 = vrot.slane %v4899, 4
      %v4901 = vadd.f32 %v4899, %v4900
      %v4902 = vrot.slane %v4901, 2
      %v4903 = vadd.f32 %v4901, %v4902
      %v4904 = vrot.slane %v4903, 1
      %v4905 = vadd.f32 %v4903, %v4904
      %v4906 = vadd.f32 %v4884, %v355
      %v4907 = vadd.f32 %v4891, %v359
      %v4908 = vadd.f32 %v4898, %v363
      %v4909 = vadd.f32 %v4905, %v367
      %v4914 = vcombine.low %v4906, %v4907
      %v4915 = vcombine.low %v4908, %v4909
      %v4917 = vunpack.c.l.s4 1966171168
      %v4918 = vunpack.c.0.s8 %v4917
      %v4919 = vlaneseq
      %v4920 = vshrl.u32 %v4919, 7
      %v4921 = vsub.s32 %v4918, %v4920
      %v4922 = vrot.slane %v4914, %v4921
      %v4924 = vunpack.c.l.s4 1966171168
      %v4925 = vunpack.c.0.s8 %v4924
      %v4926 = vlaneseq
      %v4927 = vshrl.u32 %v4926, 7
      %v4928 = vsub.s32 %v4925, %v4927
      %v4929 = vrot.slane %v4915, %v4928
      %v4930 = vcombine.low %v4922, %v4929
      %v4932 = vunpack.c.l.s4 1966171168
      %v4933 = vunpack.c.0.s8 %v4932
      %v4934 = vlaneseq
      %v4935 = vshrl.u32 %v4934, 7
      %v4936 = vsub.s32 %v4933, %v4935
      %v4937 = vrot.slane %v4930, %v4936
      %s4939 = scalar_lea.vmem [#allocation2], 229
      %4940 = vst.msk [vmem:[%s4939] ss:$8 sm:$0xf] %vm408, %v4937
      %4941 = vst.msk [vmem:[%s4939] ss:$8 sm:$0x0] %vm408, %v4937
      %v4942 = vmul.f32 %v4870, %v895
      %v4943 = vmul.f32 %v4871, %v899
      %v4944 = vmul.f32 %v4872, %v903
      %v4945 = vmul.f32 %v4873, %v907
      %v4946 = vadd.f32 %v4865, %v4942
      %v4947 = vadd.f32 %v4866, %v4943
      %v4948 = vadd.f32 %v4867, %v4944
      %v4949 = vadd.f32 %v4868, %v4945
      %s4950 = scalar_lea.vmem %s224, 1760
      %v4951 = vld [vmem:[%s4950] sm:$0x7f]
      %v4952 = vld [vmem:[%s4950 + $0x8] sm:$0x7f]
      %v4953 = vld [vmem:[%s4950 + $0x10] sm:$0x7f]
      %v4954 = vld [vmem:[%s4950 + $0x18] sm:$0x7f]
      %v4955 = vmul.f32 %v4951, %v233
      %v4956 = vmul.f32 %v4952, %v234
      %v4957 = vmul.f32 %v4953, %v235
      %v4958 = vmul.f32 %v4954, %v236
      %v4959 = vsel %vm322, %v4955, 0.0
      %v4960 = vrot.slane %v4959, 4
      %v4961 = vadd.f32 %v4959, %v4960
      %v4962 = vrot.slane %v4961, 2
      %v4963 = vadd.f32 %v4961, %v4962
      %v4964 = vrot.slane %v4963, 1
      %v4965 = vadd.f32 %v4963, %v4964
      %v4966 = vsel %vm322, %v4956, 0.0
      %v4967 = vrot.slane %v4966, 4
      %v4968 = vadd.f32 %v4966, %v4967
      %v4969 = vrot.slane %v4968, 2
      %v4970 = vadd.f32 %v4968, %v4969
      %v4971 = vrot.slane %v4970, 1
      %v4972 = vadd.f32 %v4970, %v4971
      %v4973 = vsel %vm322, %v4957, 0.0
      %v4974 = vrot.slane %v4973, 4
      %v4975 = vadd.f32 %v4973, %v4974
      %v4976 = vrot.slane %v4975, 2
      %v4977 = vadd.f32 %v4975, %v4976
      %v4978 = vrot.slane %v4977, 1
      %v4979 = vadd.f32 %v4977, %v4978
      %v4980 = vsel %vm322, %v4958, 0.0
      %v4981 = vrot.slane %v4980, 4
      %v4982 = vadd.f32 %v4980, %v4981
      %v4983 = vrot.slane %v4982, 2
      %v4984 = vadd.f32 %v4982, %v4983
      %v4985 = vrot.slane %v4984, 1
      %v4986 = vadd.f32 %v4984, %v4985
      %v4987 = vadd.f32 %v4965, %v355
      %v4988 = vadd.f32 %v4972, %v359
      %v4989 = vadd.f32 %v4979, %v363
      %v4990 = vadd.f32 %v4986, %v367
      %v4995 = vcombine.low %v4987, %v4988
      %v4996 = vcombine.low %v4989, %v4990
      %v4998 = vunpack.c.l.s4 1966171168
      %v4999 = vunpack.c.0.s8 %v4998
      %v5000 = vlaneseq
      %v5001 = vshrl.u32 %v5000, 7
      %v5002 = vsub.s32 %v4999, %v5001
      %v5003 = vrot.slane %v4995, %v5002
      %v5005 = vunpack.c.l.s4 1966171168
      %v5006 = vunpack.c.0.s8 %v5005
      %v5007 = vlaneseq
      %v5008 = vshrl.u32 %v5007, 7
      %v5009 = vsub.s32 %v5006, %v5008
      %v5010 = vrot.slane %v4996, %v5009
      %v5011 = vcombine.low %v5003, %v5010
      %v5013 = vunpack.c.l.s4 1966171168
      %v5014 = vunpack.c.0.s8 %v5013
      %v5015 = vlaneseq
      %v5016 = vshrl.u32 %v5015, 7
      %v5017 = vsub.s32 %v5014, %v5016
      %v5018 = vrot.slane %v5011, %v5017
      %s5020 = scalar_lea.vmem [#allocation2], 230
      %5021 = vst.msk [vmem:[%s5020] ss:$8 sm:$0xf] %vm408, %v5018
      %5022 = vst.msk [vmem:[%s5020] ss:$8 sm:$0x0] %vm408, %v5018
      %v5023 = vmul.f32 %v4951, %v992
      %v5024 = vmul.f32 %v4952, %v996
      %v5025 = vmul.f32 %v4953, %v1000
      %v5026 = vmul.f32 %v4954, %v1004
      %v5027 = vadd.f32 %v4946, %v5023
      %v5028 = vadd.f32 %v4947, %v5024
      %v5029 = vadd.f32 %v4948, %v5025
      %v5030 = vadd.f32 %v4949, %v5026
      %v5031 = vadd.f32 %v5027, %v1017
      %v5032 = vadd.f32 %v5028, %v1021
      %v5033 = vadd.f32 %v5029, %v1025
      %v5034 = vadd.f32 %v5030, %v1029
      %5035 = vst [vmem:[#allocation2 + $0x1e0] sm:$0x7f] %v5031
      %5036 = vst [vmem:[#allocation2 + $0x1e8] sm:$0x7f] %v5032
      %5037 = vst [vmem:[#allocation2 + $0x1f0] sm:$0x7f] %v5033
      %5038 = vst [vmem:[#allocation2 + $0x1f8] sm:$0x7f] %v5034
      %v5039 = vld [vmem:[#allocation2] sm:$0xff]
      %v5040 = vld [vmem:[#allocation2 + $0x8] sm:$0xff]
      %v5041 = vld [vmem:[#allocation2 + $0x10] sm:$0xff]
      %v5042 = vld [vmem:[#allocation2 + $0x18] sm:$0xff]
      %v5043 = vld [vmem:[#allocation2 + $0x20] sm:$0xff]
      %v5044 = vld [vmem:[#allocation2 + $0x28] sm:$0xff]
      %v5045 = vld [vmem:[#allocation2 + $0x30] sm:$0xff]
      %v5046 = vld [vmem:[#allocation2 + $0x38] sm:$0xff]
      %v5047 = vld [vmem:[#allocation2 + $0x40] sm:$0xff]
      %v5048 = vld [vmem:[#allocation2 + $0x48] sm:$0xff]
      %v5049 = vld [vmem:[#allocation2 + $0x50] sm:$0xff]
      %v5050 = vld [vmem:[#allocation2 + $0x58] sm:$0xff]
      %v5051 = vld [vmem:[#allocation2 + $0x60] sm:$0xff]
      %v5052 = vld [vmem:[#allocation2 + $0x68] sm:$0xff]
      %v5053 = vld [vmem:[#allocation2 + $0x70] sm:$0xff]
      %v5054 = vld [vmem:[#allocation2 + $0x78] sm:$0xff]
      %v5055 = vld [vmem:[#allocation2 + $0x80] sm:$0xff]
      %v5056 = vld [vmem:[#allocation2 + $0x88] sm:$0xff]
      %v5057 = vld [vmem:[#allocation2 + $0x90] sm:$0xff]
      %v5058 = vld [vmem:[#allocation2 + $0x98] sm:$0xff]
      %v5059 = vld [vmem:[#allocation2 + $0xa0] sm:$0xff]
      %v5060 = vld [vmem:[#allocation2 + $0xa8] sm:$0xff]
      %v5061 = vld [vmem:[#allocation2 + $0xb0] sm:$0xff]
      %v5062 = vld [vmem:[#allocation2 + $0xb8] sm:$0xff]
      %v5063 = vld [vmem:[#allocation2 + $0xc0] sm:$0xff]
      %v5064 = vld [vmem:[#allocation2 + $0xc8] sm:$0xff]
      %v5065 = vld [vmem:[#allocation2 + $0xd0] sm:$0xff]
      %v5066 = vld [vmem:[#allocation2 + $0xd8] sm:$0xff]
      %v5067 = vld [vmem:[#allocation2 + $0xe0] sm:$0xff]
      %v5068 = vld [vmem:[#allocation2 + $0xe8] sm:$0xff]
      %v5069 = vld [vmem:[#allocation2 + $0xf0] sm:$0xff]
      %v5070 = vld [vmem:[#allocation2 + $0xf8] sm:$0xff]
      %v5071 = vld [vmem:[#allocation2 + $0x100] sm:$0xff]
      %v5072 = vld [vmem:[#allocation2 + $0x108] sm:$0xff]
      %v5073 = vld [vmem:[#allocation2 + $0x110] sm:$0xff]
      %v5074 = vld [vmem:[#allocation2 + $0x118] sm:$0xff]
      %v5075 = vld [vmem:[#allocation2 + $0x120] sm:$0xff]
      %v5076 = vld [vmem:[#allocation2 + $0x128] sm:$0xff]
      %v5077 = vld [vmem:[#allocation2 + $0x130] sm:$0xff]
      %v5078 = vld [vmem:[#allocation2 + $0x138] sm:$0xff]
      %v5079 = vld [vmem:[#allocation2 + $0x140] sm:$0xff]
      %v5080 = vld [vmem:[#allocation2 + $0x148] sm:$0xff]
      %v5081 = vld [vmem:[#allocation2 + $0x150] sm:$0xff]
      %v5082 = vld [vmem:[#allocation2 + $0x158] sm:$0xff]
      %v5083 = vld [vmem:[#allocation2 + $0x160] sm:$0xff]
      %v5084 = vld [vmem:[#allocation2 + $0x168] sm:$0xff]
      %v5085 = vld [vmem:[#allocation2 + $0x170] sm:$0xff]
      %v5086 = vld [vmem:[#allocation2 + $0x178] sm:$0xff]
      %v5087 = vld [vmem:[#allocation2 + $0x180] sm:$0xff]
      %v5088 = vld [vmem:[#allocation2 + $0x188] sm:$0xff]
      %v5089 = vld [vmem:[#allocation2 + $0x190] sm:$0xff]
      %v5090 = vld [vmem:[#allocation2 + $0x198] sm:$0xff]
      %v5091 = vld [vmem:[#allocation2 + $0x1a0] sm:$0xff]
      %v5092 = vld [vmem:[#allocation2 + $0x1a8] sm:$0xff]
      %v5093 = vld [vmem:[#allocation2 + $0x1b0] sm:$0xff]
      %v5094 = vld [vmem:[#allocation2 + $0x1b8] sm:$0xff]
      %v5095 = vld [vmem:[#allocation2 + $0x1c0] sm:$0xff]
      %v5096 = vld [vmem:[#allocation2 + $0x1c8] sm:$0xff]
      %v5097 = vld [vmem:[#allocation2 + $0x1d0] sm:$0xff]
      %v5098 = vld [vmem:[#allocation2 + $0x1d8] sm:$0xff]
      %v5099 = vld [vmem:[#allocation2 + $0x1e0] sm:$0xff]
      %v5100 = vld [vmem:[#allocation2 + $0x1e8] sm:$0xff]
      %v5101 = vld [vmem:[#allocation2 + $0x1f0] sm:$0xff]
      %v5102 = vld [vmem:[#allocation2 + $0x1f8] sm:$0xff]
      %v5103 = vld [vmem:[%s2] sm:$0xff]
      %v5104 = vld [vmem:[%s2 + $0x8] sm:$0xff]
      %v5105 = vld [vmem:[%s2 + $0x10] sm:$0xff]
      %v5106 = vld [vmem:[%s2 + $0x18] sm:$0xff]
      %v5107 = vld [vmem:[%s2 + $0x20] sm:$0xff]
      %v5108 = vld [vmem:[%s2 + $0x28] sm:$0xff]
      %v5109 = vld [vmem:[%s2 + $0x30] sm:$0xff]
      %v5110 = vld [vmem:[%s2 + $0x38] sm:$0xff]
      %v5111 = vld [vmem:[%s2 + $0x40] sm:$0xff]
      %v5112 = vld [vmem:[%s2 + $0x48] sm:$0xff]
      %v5113 = vld [vmem:[%s2 + $0x50] sm:$0xff]
      %v5114 = vld [vmem:[%s2 + $0x58] sm:$0xff]
      %v5115 = vld [vmem:[%s2 + $0x60] sm:$0xff]
      %v5116 = vld [vmem:[%s2 + $0x68] sm:$0xff]
      %v5117 = vld [vmem:[%s2 + $0x70] sm:$0xff]
      %v5118 = vld [vmem:[%s2 + $0x78] sm:$0xff]
      %v5119 = vld [vmem:[%s2 + $0x80] sm:$0xff]
      %v5120 = vld [vmem:[%s2 + $0x88] sm:$0xff]
      %v5121 = vld [vmem:[%s2 + $0x90] sm:$0xff]
      %v5122 = vld [vmem:[%s2 + $0x98] sm:$0xff]
      %v5123 = vld [vmem:[%s2 + $0xa0] sm:$0xff]
      %v5124 = vld [vmem:[%s2 + $0xa8] sm:$0xff]
      %v5125 = vld [vmem:[%s2 + $0xb0] sm:$0xff]
      %v5126 = vld [vmem:[%s2 + $0xb8] sm:$0xff]
      %v5127 = vld [vmem:[%s2 + $0xc0] sm:$0xff]
      %v5128 = vld [vmem:[%s2 + $0xc8] sm:$0xff]
      %v5129 = vld [vmem:[%s2 + $0xd0] sm:$0xff]
      %v5130 = vld [vmem:[%s2 + $0xd8] sm:$0xff]
      %v5131 = vld [vmem:[%s2 + $0xe0] sm:$0xff]
      %v5132 = vld [vmem:[%s2 + $0xe8] sm:$0xff]
      %v5133 = vld [vmem:[%s2 + $0xf0] sm:$0xff]
      %v5134 = vld [vmem:[%s2 + $0xf8] sm:$0xff]
      %v5135 = vld [vmem:[%s2 + $0x100] sm:$0xff]
      %v5136 = vld [vmem:[%s2 + $0x108] sm:$0xff]
      %v5137 = vld [vmem:[%s2 + $0x110] sm:$0xff]
      %v5138 = vld [vmem:[%s2 + $0x118] sm:$0xff]
      %v5139 = vld [vmem:[%s2 + $0x120] sm:$0xff]
      %v5140 = vld [vmem:[%s2 + $0x128] sm:$0xff]
      %v5141 = vld [vmem:[%s2 + $0x130] sm:$0xff]
      %v5142 = vld [vmem:[%s2 + $0x138] sm:$0xff]
      %v5143 = vld [vmem:[%s2 + $0x140] sm:$0xff]
      %v5144 = vld [vmem:[%s2 + $0x148] sm:$0xff]
      %v5145 = vld [vmem:[%s2 + $0x150] sm:$0xff]
      %v5146 = vld [vmem:[%s2 + $0x158] sm:$0xff]
      %v5147 = vld [vmem:[%s2 + $0x160] sm:$0xff]
      %v5148 = vld [vmem:[%s2 + $0x168] sm:$0xff]
      %v5149 = vld [vmem:[%s2 + $0x170] sm:$0xff]
      %v5150 = vld [vmem:[%s2 + $0x178] sm:$0xff]
      %v5151 = vld [vmem:[%s2 + $0x180] sm:$0xff]
      %v5152 = vld [vmem:[%s2 + $0x188] sm:$0xff]
      %v5153 = vld [vmem:[%s2 + $0x190] sm:$0xff]
      %v5154 = vld [vmem:[%s2 + $0x198] sm:$0xff]
      %v5155 = vld [vmem:[%s2 + $0x1a0] sm:$0xff]
      %v5156 = vld [vmem:[%s2 + $0x1a8] sm:$0xff]
      %v5157 = vld [vmem:[%s2 + $0x1b0] sm:$0xff]
      %v5158 = vld [vmem:[%s2 + $0x1b8] sm:$0xff]
      %v5159 = vld [vmem:[%s2 + $0x1c0] sm:$0xff]
      %v5160 = vld [vmem:[%s2 + $0x1c8] sm:$0xff]
      %v5161 = vld [vmem:[%s2 + $0x1d0] sm:$0xff]
      %v5162 = vld [vmem:[%s2 + $0x1d8] sm:$0xff]
      %v5163 = vld [vmem:[%s2 + $0x1e0] sm:$0xff]
      %v5164 = vld [vmem:[%s2 + $0x1e8] sm:$0xff]
      %v5165 = vld [vmem:[%s2 + $0x1f0] sm:$0xff]
      %v5166 = vld [vmem:[%s2 + $0x1f8] sm:$0xff]
      %5167 = vmatprep.subr.mxu0 0.0
      %5168 = vmatpush1.msra.mxu0 %v5103
      %5169 = vmatprep.subr.mxu0 0.0
      %5170 = vmatpush1.msra.mxu0 %v5104
      %5171 = vmatprep.subr.mxu0 0.0
      %5172 = vmatpush1.msra.mxu0 %v5105
      %5173 = vmatprep.subr.mxu0 0.0
      %5174 = vmatpush1.msra.mxu0 %v5106
      %5175 = vmatprep.subr.mxu0 0.0
      %5176 = vmatpush1.msra.mxu0 %v5107
      %5177 = vmatprep.subr.mxu0 0.0
      %5178 = vmatpush1.msra.mxu0 %v5108
      %5179 = vmatprep.subr.mxu0 0.0
      %5180 = vmatpush1.msra.mxu0 %v5109
      %5181 = vmatprep.subr.mxu0 0.0
      %5182 = vmatpush1.msra.mxu0 %v5110
      %5183 = vmatprep.subr.mxu0 0.0
      %5184 = vmatpush1.msra.mxu0 %v5111
      %5185 = vmatprep.subr.mxu0 0.0
      %5186 = vmatpush1.msra.mxu0 %v5112
      %5187 = vmatprep.subr.mxu0 0.0
      %5188 = vmatpush1.msra.mxu0 %v5113
      %5189 = vmatprep.subr.mxu0 0.0
      %5190 = vmatpush1.msra.mxu0 %v5114
      %5191 = vmatprep.subr.mxu0 0.0
      %5192 = vmatpush1.msra.mxu0 %v5115
      %5193 = vmatprep.subr.mxu0 0.0
      %5194 = vmatpush1.msra.mxu0 %v5116
      %5195 = vmatprep.subr.mxu0 0.0
      %5196 = vmatpush1.msra.mxu0 %v5117
      %5197 = vmatprep.subr.mxu0 0.0
      %5198 = vmatpush1.msra.mxu0 %v5118
      %5199 = vmatprep.subr.mxu0 0.0
      %5200 = vmatpush1.msra.mxu0 %v5119
      %5201 = vmatprep.subr.mxu0 0.0
      %5202 = vmatpush1.msra.mxu0 %v5120
      %5203 = vmatprep.subr.mxu0 0.0
      %5204 = vmatpush1.msra.mxu0 %v5121
      %5205 = vmatprep.subr.mxu0 0.0
      %5206 = vmatpush1.msra.mxu0 %v5122
      %5207 = vmatprep.subr.mxu0 0.0
      %5208 = vmatpush1.msra.mxu0 %v5123
      %5209 = vmatprep.subr.mxu0 0.0
      %5210 = vmatpush1.msra.mxu0 %v5124
      %5211 = vmatprep.subr.mxu0 0.0
      %5212 = vmatpush1.msra.mxu0 %v5125
      %5213 = vmatprep.subr.mxu0 0.0
      %5214 = vmatpush1.msra.mxu0 %v5126
      %5215 = vmatprep.subr.mxu0 0.0
      %5216 = vmatpush1.msra.mxu0 %v5127
      %5217 = vmatprep.subr.mxu0 0.0
      %5218 = vmatpush1.msra.mxu0 %v5128
      %5219 = vmatprep.subr.mxu0 0.0
      %5220 = vmatpush1.msra.mxu0 %v5129
      %5221 = vmatprep.subr.mxu0 0.0
      %5222 = vmatpush1.msra.mxu0 %v5130
      %5223 = vmatprep.subr.mxu0 0.0
      %5224 = vmatpush1.msra.mxu0 %v5131
      %5225 = vmatprep.subr.mxu0 0.0
      %5226 = vmatpush1.msra.mxu0 %v5132
      %5227 = vmatprep.subr.mxu0 0.0
      %5228 = vmatpush1.msra.mxu0 %v5133
      %5229 = vmatprep.subr.mxu0 0.0
      %5230 = vmatpush1.msra.mxu0 %v5134
      %5231 = vmatprep.mubr.f32.mxu0 %v5040
      %5232 = vmatmul.mubr.f32.gmra.mrb[0].mxu0 %v5039
      %v5233 = vpop.f32.mrb[0].mxu0
      %v5234 = vadd.f32 %v249, %v5233
      %v5235 = vpop.f32.mrb[0].mxu0
      %5236 = vmatprep.mubr.f32.mxu0 %v5044
      %5237 = vmatmul.mubr.f32.gmra.mrb[0].mxu0 %v5043
      %v5238 = vpop.f32.mrb[0].mxu0
      %v5239 = vadd.f32 %v249, %v5238
      %v5240 = vpop.f32.mrb[0].mxu0
      %5241 = vmatprep.mubr.f32.mxu0 %v5048
      %5242 = vmatmul.mubr.f32.gmra.mrb[0].mxu0 %v5047
      %v5243 = vpop.f32.mrb[0].mxu0
      %v5244 = vadd.f32 %v249, %v5243
      %v5245 = vpop.f32.mrb[0].mxu0
      %5246 = vmatprep.mubr.f32.mxu0 %v5052
      %5247 = vmatmul.mubr.f32.gmra.mrb[0].mxu0 %v5051
      %v5248 = vpop.f32.mrb[0].mxu0
      %v5249 = vadd.f32 %v249, %v5248
      %v5250 = vpop.f32.mrb[0].mxu0
      %5251 = vmatprep.mubr.f32.mxu0 %v5056
      %5252 = vmatmul.mubr.f32.gmra.mrb[0].mxu0 %v5055
      %v5253 = vpop.f32.mrb[0].mxu0
      %v5254 = vadd.f32 %v249, %v5253
      %v5255 = vpop.f32.mrb[0].mxu0
      %5256 = vmatprep.mubr.f32.mxu0 %v5060
      %5257 = vmatmul.mubr.f32.gmra.mrb[0].mxu0 %v5059
      %v5258 = vpop.f32.mrb[0].mxu0
      %v5259 = vadd.f32 %v249, %v5258
      %v5260 = vpop.f32.mrb[0].mxu0
      %5261 = vmatprep.mubr.f32.mxu0 %v5064
      %5262 = vmatmul.mubr.f32.gmra.mrb[0].mxu0 %v5063
      %v5263 = vpop.f32.mrb[0].mxu0
      %v5264 = vadd.f32 %v249, %v5263
      %v5265 = vpop.f32.mrb[0].mxu0
      %5266 = vmatprep.mubr.f32.mxu0 %v5068
      %5267 = vmatmul.mubr.f32.gmra.mrb[0].mxu0 %v5067
      %v5268 = vpop.f32.mrb[0].mxu0
      %v5269 = vadd.f32 %v249, %v5268
      %v5270 = vpop.f32.mrb[0].mxu0
      %5271 = vmatprep.mubr.f32.mxu0 %v5072
      %5272 = vmatmul.mubr.f32.gmra.mrb[0].mxu0 %v5071
      %v5273 = vpop.f32.mrb[0].mxu0
      %v5274 = vadd.f32 %v249, %v5273
      %v5275 = vpop.f32.mrb[0].mxu0
      %5276 = vmatprep.mubr.f32.mxu0 %v5076
      %5277 = vmatmul.mubr.f32.gmra.mrb[0].mxu0 %v5075
      %v5278 = vpop.f32.mrb[0].mxu0
      %v5279 = vadd.f32 %v249, %v5278
      %v5280 = vpop.f32.mrb[0].mxu0
      %5281 = vmatprep.mubr.f32.mxu0 %v5080
      %5282 = vmatmul.mubr.f32.gmra.mrb[0].mxu0 %v5079
      %v5283 = vpop.f32.mrb[0].mxu0
      %v5284 = vadd.f32 %v249, %v5283
      %v5285 = vpop.f32.mrb[0].mxu0
      %5286 = vmatprep.mubr.f32.mxu0 %v5084
      %5287 = vmatmul.mubr.f32.gmra.mrb[0].mxu0 %v5083
      %v5288 = vpop.f32.mrb[0].mxu0
      %v5289 = vadd.f32 %v249, %v5288
      %v5290 = vpop.f32.mrb[0].mxu0
      %5291 = vmatprep.mubr.f32.mxu0 %v5088
      %5292 = vmatmul.mubr.f32.gmra.mrb[0].mxu0 %v5087
      %v5293 = vpop.f32.mrb[0].mxu0
      %v5294 = vadd.f32 %v249, %v5293
      %v5295 = vpop.f32.mrb[0].mxu0
      %5296 = vmatprep.mubr.f32.mxu0 %v5092
      %5297 = vmatmul.mubr.f32.gmra.mrb[0].mxu0 %v5091
      %v5298 = vpop.f32.mrb[0].mxu0
      %v5299 = vadd.f32 %v249, %v5298
      %v5300 = vpop.f32.mrb[0].mxu0
      %5301 = vmatprep.mubr.f32.mxu0 %v5096
      %5302 = vmatmul.mubr.f32.gmra.mrb[0].mxu0 %v5095
      %v5303 = vpop.f32.mrb[0].mxu0
      %v5304 = vadd.f32 %v249, %v5303
      %v5305 = vpop.f32.mrb[0].mxu0
      %5306 = vmatprep.mubr.f32.mxu0 %v5100
      %5307 = vmatmul.mubr.f32.gmra.mrb[0].mxu0 %v5099
      %v5308 = vpop.f32.mrb[0].mxu0
      %v5309 = vadd.f32 %v249, %v5308
      %v5310 = vpop.f32.mrb[0].mxu0
      %5311 = vdwg.mxu0
      %5312 = vmatprep.subr.mxu0 0.0
      %5313 = vmatpush1.msra.mxu0 %v5135
      %5314 = vmatprep.subr.mxu0 0.0
      %5315 = vmatpush1.msra.mxu0 %v5136
      %5316 = vmatprep.subr.mxu0 0.0
      %5317 = vmatpush1.msra.mxu0 %v5137
      %5318 = vmatprep.subr.mxu0 0.0
      %5319 = vmatpush1.msra.mxu0 %v5138
      %5320 = vmatprep.subr.mxu0 0.0
      %5321 = vmatpush1.msra.mxu0 %v5139
      %5322 = vmatprep.subr.mxu0 0.0
      %5323 = vmatpush1.msra.mxu0 %v5140
      %5324 = vmatprep.subr.mxu0 0.0
      %5325 = vmatpush1.msra.mxu0 %v5141
      %5326 = vmatprep.subr.mxu0 0.0
      %5327 = vmatpush1.msra.mxu0 %v5142
      %5328 = vmatprep.subr.mxu0 0.0
      %5329 = vmatpush1.msra.mxu0 %v5143
      %5330 = vmatprep.subr.mxu0 0.0
      %5331 = vmatpush1.msra.mxu0 %v5144
      %5332 = vmatprep.subr.mxu0 0.0
      %5333 = vmatpush1.msra.mxu0 %v5145
      %5334 = vmatprep.subr.mxu0 0.0
      %5335 = vmatpush1.msra.mxu0 %v5146
      %5336 = vmatprep.subr.mxu0 0.0
      %5337 = vmatpush1.msra.mxu0 %v5147
      %5338 = vmatprep.subr.mxu0 0.0
      %5339 = vmatpush1.msra.mxu0 %v5148
      %5340 = vmatprep.subr.mxu0 0.0
      %5341 = vmatpush1.msra.mxu0 %v5149
      %5342 = vmatprep.subr.mxu0 0.0
      %5343 = vmatpush1.msra.mxu0 %v5150
      %5344 = vmatprep.subr.mxu0 0.0
      %5345 = vmatpush1.msra.mxu0 %v5151
      %5346 = vmatprep.subr.mxu0 0.0
      %5347 = vmatpush1.msra.mxu0 %v5152
      %5348 = vmatprep.subr.mxu0 0.0
      %5349 = vmatpush1.msra.mxu0 %v5153
      %5350 = vmatprep.subr.mxu0 0.0
      %5351 = vmatpush1.msra.mxu0 %v5154
      %5352 = vmatprep.subr.mxu0 0.0
      %5353 = vmatpush1.msra.mxu0 %v5155
      %5354 = vmatprep.subr.mxu0 0.0
      %5355 = vmatpush1.msra.mxu0 %v5156
      %5356 = vmatprep.subr.mxu0 0.0
      %5357 = vmatpush1.msra.mxu0 %v5157
      %5358 = vmatprep.subr.mxu0 0.0
      %5359 = vmatpush1.msra.mxu0 %v5158
      %5360 = vmatprep.subr.mxu0 0.0
      %5361 = vmatpush1.msra.mxu0 %v5159
      %5362 = vmatprep.subr.mxu0 0.0
      %5363 = vmatpush1.msra.mxu0 %v5160
      %5364 = vmatprep.subr.mxu0 0.0
      %5365 = vmatpush1.msra.mxu0 %v5161
      %5366 = vmatprep.subr.mxu0 0.0
      %5367 = vmatpush1.msra.mxu0 %v5162
      %5368 = vmatprep.subr.mxu0 0.0
      %5369 = vmatpush1.msra.mxu0 %v5163
      %5370 = vmatprep.subr.mxu0 0.0
      %5371 = vmatpush1.msra.mxu0 %v5164
      %5372 = vmatprep.subr.mxu0 0.0
      %5373 = vmatpush1.msra.mxu0 %v5165
      %5374 = vmatprep.subr.mxu0 0.0
      %5375 = vmatpush1.msra.mxu0 %v5166
      %5376 = vmatprep.mubr.f32.mxu0 %v5042
      %5377 = vmatmul.mubr.f32.gmra.mrb[0].mxu0 %v5041
      %v5378 = vpop.f32.mrb[0].mxu0
      %v5379 = vadd.f32 %v5234, %v5378
      %v5380 = vpop.f32.mrb[0].mxu0
      %5381 = vmatprep.mubr.f32.mxu0 %v5046
      %5382 = vmatmul.mubr.f32.gmra.mrb[0].mxu0 %v5045
      %v5383 = vpop.f32.mrb[0].mxu0
      %v5384 = vadd.f32 %v5239, %v5383
      %v5385 = vpop.f32.mrb[0].mxu0
      %5386 = vmatprep.mubr.f32.mxu0 %v5050
      %5387 = vmatmul.mubr.f32.gmra.mrb[0].mxu0 %v5049
      %v5388 = vpop.f32.mrb[0].mxu0
      %v5389 = vadd.f32 %v5244, %v5388
      %v5390 = vpop.f32.mrb[0].mxu0
      %5391 = vmatprep.mubr.f32.mxu0 %v5054
      %5392 = vmatmul.mubr.f32.gmra.mrb[0].mxu0 %v5053
      %v5393 = vpop.f32.mrb[0].mxu0
      %v5394 = vadd.f32 %v5249, %v5393
      %v5395 = vpop.f32.mrb[0].mxu0
      %5396 = vmatprep.mubr.f32.mxu0 %v5058
      %5397 = vmatmul.mubr.f32.gmra.mrb[0].mxu0 %v5057
      %v5398 = vpop.f32.mrb[0].mxu0
      %v5399 = vadd.f32 %v5254, %v5398
      %v5400 = vpop.f32.mrb[0].mxu0
      %5401 = vmatprep.mubr.f32.mxu0 %v5062
      %5402 = vmatmul.mubr.f32.gmra.mrb[0].mxu0 %v5061
      %v5403 = vpop.f32.mrb[0].mxu0
      %v5404 = vadd.f32 %v5259, %v5403
      %v5405 = vpop.f32.mrb[0].mxu0
      %5406 = vmatprep.mubr.f32.mxu0 %v5066
      %5407 = vmatmul.mubr.f32.gmra.mrb[0].mxu0 %v5065
      %v5408 = vpop.f32.mrb[0].mxu0
      %v5409 = vadd.f32 %v5264, %v5408
      %v5410 = vpop.f32.mrb[0].mxu0
      %5411 = vmatprep.mubr.f32.mxu0 %v5070
      %5412 = vmatmul.mubr.f32.gmra.mrb[0].mxu0 %v5069
      %v5413 = vpop.f32.mrb[0].mxu0
      %v5414 = vadd.f32 %v5269, %v5413
      %v5415 = vpop.f32.mrb[0].mxu0
      %5416 = vmatprep.mubr.f32.mxu0 %v5074
      %5417 = vmatmul.mubr.f32.gmra.mrb[0].mxu0 %v5073
      %v5418 = vpop.f32.mrb[0].mxu0
      %v5419 = vadd.f32 %v5274, %v5418
      %v5420 = vpop.f32.mrb[0].mxu0
      %5421 = vmatprep.mubr.f32.mxu0 %v5078
      %5422 = vmatmul.mubr.f32.gmra.mrb[0].mxu0 %v5077
      %v5423 = vpop.f32.mrb[0].mxu0
      %v5424 = vadd.f32 %v5279, %v5423
      %v5425 = vpop.f32.mrb[0].mxu0
      %5426 = vmatprep.mubr.f32.mxu0 %v5082
      %5427 = vmatmul.mubr.f32.gmra.mrb[0].mxu0 %v5081
      %v5428 = vpop.f32.mrb[0].mxu0
      %v5429 = vadd.f32 %v5284, %v5428
      %v5430 = vpop.f32.mrb[0].mxu0
      %5431 = vmatprep.mubr.f32.mxu0 %v5086
      %5432 = vmatmul.mubr.f32.gmra.mrb[0].mxu0 %v5085
      %v5433 = vpop.f32.mrb[0].mxu0
      %v5434 = vadd.f32 %v5289, %v5433
      %v5435 = vpop.f32.mrb[0].mxu0
      %5436 = vmatprep.mubr.f32.mxu0 %v5090
      %5437 = vmatmul.mubr.f32.gmra.mrb[0].mxu0 %v5089
      %v5438 = vpop.f32.mrb[0].mxu0
      %v5439 = vadd.f32 %v5294, %v5438
      %v5440 = vpop.f32.mrb[0].mxu0
      %5441 = vmatprep.mubr.f32.mxu0 %v5094
      %5442 = vmatmul.mubr.f32.gmra.mrb[0].mxu0 %v5093
      %v5443 = vpop.f32.mrb[0].mxu0
      %v5444 = vadd.f32 %v5299, %v5443
      %v5445 = vpop.f32.mrb[0].mxu0
      %5446 = vmatprep.mubr.f32.mxu0 %v5098
      %5447 = vmatmul.mubr.f32.gmra.mrb[0].mxu0 %v5097
      %v5448 = vpop.f32.mrb[0].mxu0
      %v5449 = vadd.f32 %v5304, %v5448
      %v5450 = vpop.f32.mrb[0].mxu0
      %5451 = vmatprep.mubr.f32.mxu0 %v5102
      %5452 = vmatmul.mubr.f32.gmra.mrb[0].mxu0 %v5101
      %v5453 = vpop.f32.mrb[0].mxu0
      %v5454 = vadd.f32 %v5309, %v5453
      %v5455 = vpop.f32.mrb[0].mxu0
      %5456 = vdwg.mxu0
      %v5457 = vadd.f32 %v5379, 3.0
      %v5458 = vadd.f32 %v5384, 3.0
      %v5459 = vadd.f32 %v5389, 3.0
      %v5460 = vadd.f32 %v5394, 3.0
      %v5461 = vadd.f32 %v5399, 3.0
      %v5462 = vadd.f32 %v5404, 3.0
      %v5463 = vadd.f32 %v5409, 3.0
      %v5464 = vadd.f32 %v5414, 3.0
      %v5465 = vadd.f32 %v5419, 3.0
      %v5466 = vadd.f32 %v5424, 3.0
      %v5467 = vadd.f32 %v5429, 3.0
      %v5468 = vadd.f32 %v5434, 3.0
      %v5469 = vadd.f32 %v5439, 3.0
      %v5470 = vadd.f32 %v5444, 3.0
      %v5471 = vadd.f32 %v5449, 3.0
      %v5472 = vadd.f32 %v5454, 3.0
      %v5473 = vmax.f32 %v5457, 0.0
      %v5474 = vmax.f32 %v5458, 0.0
      %v5475 = vmax.f32 %v5459, 0.0
      %v5476 = vmax.f32 %v5460, 0.0
      %v5477 = vmax.f32 %v5461, 0.0
      %v5478 = vmax.f32 %v5462, 0.0
      %v5479 = vmax.f32 %v5463, 0.0
      %v5480 = vmax.f32 %v5464, 0.0
      %v5481 = vmax.f32 %v5465, 0.0
      %v5482 = vmax.f32 %v5466, 0.0
      %v5483 = vmax.f32 %v5467, 0.0
      %v5484 = vmax.f32 %v5468, 0.0
      %v5485 = vmax.f32 %v5469, 0.0
      %v5486 = vmax.f32 %v5470, 0.0
      %v5487 = vmax.f32 %v5471, 0.0
      %v5488 = vmax.f32 %v5472, 0.0
      %v5489 = vmin.f32 %v5473, 6.0
      %v5490 = vmin.f32 %v5474, 6.0
      %v5491 = vmin.f32 %v5475, 6.0
      %v5492 = vmin.f32 %v5476, 6.0
      %v5493 = vmin.f32 %v5477, 6.0
      %v5494 = vmin.f32 %v5478, 6.0
      %v5495 = vmin.f32 %v5479, 6.0
      %v5496 = vmin.f32 %v5480, 6.0
      %v5497 = vmin.f32 %v5481, 6.0
      %v5498 = vmin.f32 %v5482, 6.0
      %v5499 = vmin.f32 %v5483, 6.0
      %v5500 = vmin.f32 %v5484, 6.0
      %v5501 = vmin.f32 %v5485, 6.0
      %v5502 = vmin.f32 %v5486, 6.0
      %v5503 = vmin.f32 %v5487, 6.0
      %v5504 = vmin.f32 %v5488, 6.0
      %v5505 = vmul.f32 %v5489, 0.16666667
      %v5506 = vmul.f32 %v5490, 0.16666667
      %v5507 = vmul.f32 %v5491, 0.16666667
      %v5508 = vmul.f32 %v5492, 0.16666667
      %v5509 = vmul.f32 %v5493, 0.16666667
      %v5510 = vmul.f32 %v5494, 0.16666667
      %v5511 = vmul.f32 %v5495, 0.16666667
      %v5512 = vmul.f32 %v5496, 0.16666667
      %v5513 = vmul.f32 %v5497, 0.16666667
      %v5514 = vmul.f32 %v5498, 0.16666667
      %v5515 = vmul.f32 %v5499, 0.16666667
      %v5516 = vmul.f32 %v5500, 0.16666667
      %v5517 = vmul.f32 %v5501, 0.16666667
      %v5518 = vmul.f32 %v5502, 0.16666667
      %v5519 = vmul.f32 %v5503, 0.16666667
      %v5520 = vmul.f32 %v5504, 0.16666667
      %v5521 = vmul.f32 %v5379, %v5505
      %v5522 = vmul.f32 %v5384, %v5506
      %v5523 = vmul.f32 %v5389, %v5507
      %v5524 = vmul.f32 %v5394, %v5508
      %v5525 = vmul.f32 %v5399, %v5509
      %v5526 = vmul.f32 %v5404, %v5510
      %v5527 = vmul.f32 %v5409, %v5511
      %v5528 = vmul.f32 %v5414, %v5512
      %v5529 = vmul.f32 %v5419, %v5513
      %v5530 = vmul.f32 %v5424, %v5514
      %v5531 = vmul.f32 %v5429, %v5515
      %v5532 = vmul.f32 %v5434, %v5516
      %v5533 = vmul.f32 %v5439, %v5517
      %v5534 = vmul.f32 %v5444, %v5518
      %v5535 = vmul.f32 %v5449, %v5519
      %v5536 = vmul.f32 %v5454, %v5520
      %v5537 = vld [vmem:[%s3] sm:$0xff]
      %v5538 = vld [vmem:[%s3 + $0x8] sm:$0xff]
      %v5539 = vld [vmem:[%s3 + $0x10] sm:$0xff]
      %v5540 = vld [vmem:[%s3 + $0x18] sm:$0xff]
      %v5541 = vld [vmem:[%s3 + $0x20] sm:$0xff]
      %v5542 = vld [vmem:[%s3 + $0x28] sm:$0xff]
      %v5543 = vld [vmem:[%s3 + $0x30] sm:$0xff]
      %v5544 = vld [vmem:[%s3 + $0x38] sm:$0xff]
      %v5546 = vlaneseq
      %v5547 = vshrl.u32 %v5546, 7
      %v5548 = vsub.s32 0, %v5547
      %v5549 = vrot.slane %v246, %v5548
      %v5550 = vlaneseq
      %v5551 = vshrl.u32 %v5550, 7
      %v5552 = vsub.s32 1, %v5551
      %v5553 = vrot.slane %v246, %v5552
      %v5554 = vlaneseq
      %v5555 = vshrl.u32 %v5554, 7
      %v5556 = vsub.s32 2, %v5555
      %v5557 = vrot.slane %v246, %v5556
      %v5558 = vlaneseq
      %v5559 = vshrl.u32 %v5558, 7
      %v5560 = vsub.s32 3, %v5559
      %v5561 = vrot.slane %v246, %v5560
      %vm5566 = vcmask 130048
      %v5568 = vsel %vm5566, %v5521, 0
      %v5571 = vsel %vm5566, %v5522, 0
      %v5574 = vsel %vm5566, %v5523, 0
      %v5577 = vsel %vm5566, %v5524, 0
      %v5580 = vsel %vm5566, %v5525, 0
      %v5583 = vsel %vm5566, %v5526, 0
      %v5586 = vsel %vm5566, %v5527, 0
      %v5589 = vsel %vm5566, %v5528, 0
      %5591 = vmatprep.subr.mxu0 %v5538
      %5592 = vmatpush1.msra.mxu0 %v5537
      %5593 = vmatprep.subr.mxu0 %v5542
      %5594 = vmatpush1.msra.mxu0 %v5541
      %5595 = vmatprep.subr.mxu0 0.0
      %5596 = vmatpush1.msra.mxu0 0.0
      %5597 = vmatprep.subr.mxu0 0.0
      %5598 = vmatpush1.msra.mxu0 0.0
      %5599 = vmatprep.subr.mxu0 0.0
      %5600 = vmatpush1.msra.mxu0 0.0
      %5601 = vmatprep.subr.mxu0 0.0
      %5602 = vmatpush1.msra.mxu0 0.0
      %5603 = vmatprep.subr.mxu0 0.0
      %5604 = vmatpush1.msra.mxu0 0.0
      %5605 = vmatprep.subr.mxu0 0.0
      %5606 = vmatpush1.msra.mxu0 0.0
      %5607 = vmatprep.subr.mxu0 0.0
      %5608 = vmatpush1.msra.mxu0 0.0
      %5609 = vmatprep.subr.mxu0 0.0
      %5610 = vmatpush1.msra.mxu0 0.0
      %5611 = vmatprep.subr.mxu0 0.0
      %5612 = vmatpush1.msra.mxu0 0.0
      %5613 = vmatprep.subr.mxu0 0.0
      %5614 = vmatpush1.msra.mxu0 0.0
      %5615 = vmatprep.subr.mxu0 0.0
      %5616 = vmatpush1.msra.mxu0 0.0
      %5617 = vmatprep.subr.mxu0 0.0
      %5618 = vmatpush1.msra.mxu0 0.0
      %5619 = vmatprep.subr.mxu0 0.0
      %5620 = vmatpush1.msra.mxu0 0.0
      %5621 = vmatprep.subr.mxu0 0.0
      %5622 = vmatpush1.msra.mxu0 0.0
      %5623 = vmatprep.subr.mxu0 0.0
      %5624 = vmatpush1.msra.mxu0 0.0
      %5625 = vmatprep.subr.mxu0 0.0
      %5626 = vmatpush1.msra.mxu0 0.0
      %5627 = vmatprep.subr.mxu0 0.0
      %5628 = vmatpush1.msra.mxu0 0.0
      %5629 = vmatprep.subr.mxu0 0.0
      %5630 = vmatpush1.msra.mxu0 0.0
      %5631 = vmatprep.subr.mxu0 0.0
      %5632 = vmatpush1.msra.mxu0 0.0
      %5633 = vmatprep.subr.mxu0 0.0
      %5634 = vmatpush1.msra.mxu0 0.0
      %5635 = vmatprep.subr.mxu0 0.0
      %5636 = vmatpush1.msra.mxu0 0.0
      %5637 = vmatprep.subr.mxu0 0.0
      %5638 = vmatpush1.msra.mxu0 0.0
      %5639 = vmatprep.subr.mxu0 0.0
      %5640 = vmatpush1.msra.mxu0 0.0
      %5641 = vmatprep.subr.mxu0 0.0
      %5642 = vmatpush1.msra.mxu0 0.0
      %5643 = vmatprep.subr.mxu0 0.0
      %5644 = vmatpush1.msra.mxu0 0.0
      %5645 = vmatprep.subr.mxu0 0.0
      %5646 = vmatpush1.msra.mxu0 0.0
      %5647 = vmatprep.subr.mxu0 0.0
      %5648 = vmatpush1.msra.mxu0 0.0
      %5649 = vmatprep.subr.mxu0 0.0
      %5650 = vmatpush1.msra.mxu0 0.0
      %5651 = vmatprep.subr.mxu0 0.0
      %5652 = vmatpush1.msra.mxu0 0.0
      %5653 = vmatprep.subr.mxu0 0.0
      %5654 = vmatpush1.msra.mxu0 0.0
      %5655 = vmatprep.mubr.f32.mxu0 0.0
      %5656 = vmatmul.mubr.f32.gmra.mrb[0].mxu0 %v5568
      %v5657 = vpop.f32.mrb[0].mxu0
      %v5658 = vadd.f32 %v5549, %v5657
      %v5659 = vpop.f32.mrb[0].mxu0
      %v5660 = vadd.f32 %v5553, %v5659
      %5661 = vmatprep.mubr.f32.mxu0 0.0
      %5662 = vmatmul.mubr.f32.gmra.mrb[0].mxu0 %v5571
      %v5663 = vpop.f32.mrb[0].mxu0
      %v5664 = vadd.f32 %v5549, %v5663
      %v5665 = vpop.f32.mrb[0].mxu0
      %v5666 = vadd.f32 %v5553, %v5665
      %5667 = vmatprep.mubr.f32.mxu0 0.0
      %5668 = vmatmul.mubr.f32.gmra.mrb[0].mxu0 %v5574
      %v5669 = vpop.f32.mrb[0].mxu0
      %v5670 = vadd.f32 %v5549, %v5669
      %v5671 = vpop.f32.mrb[0].mxu0
      %v5672 = vadd.f32 %v5553, %v5671
      %5673 = vmatprep.mubr.f32.mxu0 0.0
      %5674 = vmatmul.mubr.f32.gmra.mrb[0].mxu0 %v5577
      %v5675 = vpop.f32.mrb[0].mxu0
      %v5676 = vadd.f32 %v5549, %v5675
      %v5677 = vpop.f32.mrb[0].mxu0
      %v5678 = vadd.f32 %v5553, %v5677
      %5679 = vmatprep.mubr.f32.mxu0 0.0
      %5680 = vmatmul.mubr.f32.gmra.mrb[0].mxu0 %v5580
      %v5681 = vpop.f32.mrb[0].mxu0
      %v5682 = vadd.f32 %v5549, %v5681
      %v5683 = vpop.f32.mrb[0].mxu0
      %v5684 = vadd.f32 %v5553, %v5683
      %5685 = vmatprep.mubr.f32.mxu0 0.0
      %5686 = vmatmul.mubr.f32.gmra.mrb[0].mxu0 %v5583
      %v5687 = vpop.f32.mrb[0].mxu0
      %v5688 = vadd.f32 %v5549, %v5687
      %v5689 = vpop.f32.mrb[0].mxu0
      %v5690 = vadd.f32 %v5553, %v5689
      %5691 = vmatprep.mubr.f32.mxu0 0.0
      %5692 = vmatmul.mubr.f32.gmra.mrb[0].mxu0 %v5586
      %v5693 = vpop.f32.mrb[0].mxu0
      %v5694 = vadd.f32 %v5549, %v5693
      %v5695 = vpop.f32.mrb[0].mxu0
      %v5696 = vadd.f32 %v5553, %v5695
      %5697 = vmatprep.mubr.f32.mxu0 0.0
      %5698 = vmatmul.mubr.f32.gmra.mrb[0].mxu0 %v5589
      %v5699 = vpop.f32.mrb[0].mxu0
      %v5700 = vadd.f32 %v5549, %v5699
      %v5701 = vpop.f32.mrb[0].mxu0
      %v5702 = vadd.f32 %v5553, %v5701
      %5703 = vdwg.mxu0
      %5704 = vmatprep.subr.mxu0 %v5540
      %5705 = vmatpush1.msra.mxu0 %v5539
      %5706 = vmatprep.subr.mxu0 %v5544
      %5707 = vmatpush1.msra.mxu0 %v5543
      %5708 = vmatprep.subr.mxu0 0.0
      %5709 = vmatpush1.msra.mxu0 0.0
      %5710 = vmatprep.subr.mxu0 0.0
      %5711 = vmatpush1.msra.mxu0 0.0
      %5712 = vmatprep.subr.mxu0 0.0
      %5713 = vmatpush1.msra.mxu0 0.0
      %5714 = vmatprep.subr.mxu0 0.0
      %5715 = vmatpush1.msra.mxu0 0.0
      %5716 = vmatprep.subr.mxu0 0.0
      %5717 = vmatpush1.msra.mxu0 0.0
      %5718 = vmatprep.subr.mxu0 0.0
      %5719 = vmatpush1.msra.mxu0 0.0
      %5720 = vmatprep.subr.mxu0 0.0
      %5721 = vmatpush1.msra.mxu0 0.0
      %5722 = vmatprep.subr.mxu0 0.0
      %5723 = vmatpush1.msra.mxu0 0.0
      %5724 = vmatprep.subr.mxu0 0.0
      %5725 = vmatpush1.msra.mxu0 0.0
      %5726 = vmatprep.subr.mxu0 0.0
      %5727 = vmatpush1.msra.mxu0 0.0
      %5728 = vmatprep.subr.mxu0 0.0
      %5729 = vmatpush1.msra.mxu0 0.0
      %5730 = vmatprep.subr.mxu0 0.0
      %5731 = vmatpush1.msra.mxu0 0.0
      %5732 = vmatprep.subr.mxu0 0.0
      %5733 = vmatpush1.msra.mxu0 0.0
      %5734 = vmatprep.subr.mxu0 0.0
      %5735 = vmatpush1.msra.mxu0 0.0
      %5736 = vmatprep.subr.mxu0 0.0
      %5737 = vmatpush1.msra.mxu0 0.0
      %5738 = vmatprep.subr.mxu0 0.0
      %5739 = vmatpush1.msra.mxu0 0.0
      %5740 = vmatprep.subr.mxu0 0.0
      %5741 = vmatpush1.msra.mxu0 0.0
      %5742 = vmatprep.subr.mxu0 0.0
      %5743 = vmatpush1.msra.mxu0 0.0
      %5744 = vmatprep.subr.mxu0 0.0
      %5745 = vmatpush1.msra.mxu0 0.0
      %5746 = vmatprep.subr.mxu0 0.0
      %5747 = vmatpush1.msra.mxu0 0.0
      %5748 = vmatprep.subr.mxu0 0.0
      %5749 = vmatpush1.msra.mxu0 0.0
      %5750 = vmatprep.subr.mxu0 0.0
      %5751 = vmatpush1.msra.mxu0 0.0
      %5752 = vmatprep.subr.mxu0 0.0
      %5753 = vmatpush1.msra.mxu0 0.0
      %5754 = vmatprep.subr.mxu0 0.0
      %5755 = vmatpush1.msra.mxu0 0.0
      %5756 = vmatprep.subr.mxu0 0.0
      %5757 = vmatpush1.msra.mxu0 0.0
      %5758 = vmatprep.subr.mxu0 0.0
      %5759 = vmatpush1.msra.mxu0 0.0
      %5760 = vmatprep.subr.mxu0 0.0
      %5761 = vmatpush1.msra.mxu0 0.0
      %5762 = vmatprep.subr.mxu0 0.0
      %5763 = vmatpush1.msra.mxu0 0.0
      %5764 = vmatprep.subr.mxu0 0.0
      %5765 = vmatpush1.msra.mxu0 0.0
      %5766 = vmatprep.subr.mxu0 0.0
      %5767 = vmatpush1.msra.mxu0 0.0
      %5768 = vmatprep.mubr.f32.mxu0 0.0
      %5769 = vmatmul.mubr.f32.gmra.mrb[0].mxu0 %v5568
      %v5770 = vpop.f32.mrb[0].mxu0
      %v5771 = vadd.f32 %v5557, %v5770
      %v5772 = vpop.f32.mrb[0].mxu0
      %v5773 = vadd.f32 %v5561, %v5772
      %5774 = vmatprep.mubr.f32.mxu0 0.0
      %5775 = vmatmul.mubr.f32.gmra.mrb[0].mxu0 %v5571
      %v5776 = vpop.f32.mrb[0].mxu0
      %v5777 = vadd.f32 %v5557, %v5776
      %v5778 = vpop.f32.mrb[0].mxu0
      %v5779 = vadd.f32 %v5561, %v5778
      %5780 = vmatprep.mubr.f32.mxu0 0.0
      %5781 = vmatmul.mubr.f32.gmra.mrb[0].mxu0 %v5574
      %v5782 = vpop.f32.mrb[0].mxu0
      %v5783 = vadd.f32 %v5557, %v5782
      %v5784 = vpop.f32.mrb[0].mxu0
      %v5785 = vadd.f32 %v5561, %v5784
      %5786 = vmatprep.mubr.f32.mxu0 0.0
      %5787 = vmatmul.mubr.f32.gmra.mrb[0].mxu0 %v5577
      %v5788 = vpop.f32.mrb[0].mxu0
      %v5789 = vadd.f32 %v5557, %v5788
      %v5790 = vpop.f32.mrb[0].mxu0
      %v5791 = vadd.f32 %v5561, %v5790
      %5792 = vmatprep.mubr.f32.mxu0 0.0
      %5793 = vmatmul.mubr.f32.gmra.mrb[0].mxu0 %v5580
      %v5794 = vpop.f32.mrb[0].mxu0
      %v5795 = vadd.f32 %v5557, %v5794
      %v5796 = vpop.f32.mrb[0].mxu0
      %v5797 = vadd.f32 %v5561, %v5796
      %5798 = vmatprep.mubr.f32.mxu0 0.0
      %5799 = vmatmul.mubr.f32.gmra.mrb[0].mxu0 %v5583
      %v5800 = vpop.f32.mrb[0].mxu0
      %v5801 = vadd.f32 %v5557, %v5800
      %v5802 = vpop.f32.mrb[0].mxu0
      %v5803 = vadd.f32 %v5561, %v5802
      %5804 = vmatprep.mubr.f32.mxu0 0.0
      %5805 = vmatmul.mubr.f32.gmra.mrb[0].mxu0 %v5586
      %v5806 = vpop.f32.mrb[0].mxu0
      %v5807 = vadd.f32 %v5557, %v5806
      %v5808 = vpop.f32.mrb[0].mxu0
      %v5809 = vadd.f32 %v5561, %v5808
      %5810 = vmatprep.mubr.f32.mxu0 0.0
      %5811 = vmatmul.mubr.f32.gmra.mrb[0].mxu0 %v5589
      %v5812 = vpop.f32.mrb[0].mxu0
      %v5813 = vadd.f32 %v5557, %v5812
      %v5814 = vpop.f32.mrb[0].mxu0
      %v5815 = vadd.f32 %v5561, %v5814
      %5816 = vdwg.mxu0
      %v5817 = vxor.u32 %v5658, 2147483648
      %v5818 = vxor.u32 %v5660, 2147483648
      %v5819 = vxor.u32 %v5771, 2147483648
      %v5820 = vxor.u32 %v5773, 2147483648
      %v5821 = vxor.u32 %v5664, 2147483648
      %v5822 = vxor.u32 %v5666, 2147483648
      %v5823 = vxor.u32 %v5777, 2147483648
      %v5824 = vxor.u32 %v5779, 2147483648
      %v5825 = vxor.u32 %v5670, 2147483648
      %v5826 = vxor.u32 %v5672, 2147483648
      %v5827 = vxor.u32 %v5783, 2147483648
      %v5828 = vxor.u32 %v5785, 2147483648
      %v5829 = vxor.u32 %v5676, 2147483648
      %v5830 = vxor.u32 %v5678, 2147483648
      %v5831 = vxor.u32 %v5789, 2147483648
      %v5832 = vxor.u32 %v5791, 2147483648
      %v5833 = vxor.u32 %v5682, 2147483648
      %v5834 = vxor.u32 %v5684, 2147483648
      %v5835 = vxor.u32 %v5795, 2147483648
      %v5836 = vxor.u32 %v5797, 2147483648
      %v5837 = vxor.u32 %v5688, 2147483648
      %v5838 = vxor.u32 %v5690, 2147483648
      %v5839 = vxor.u32 %v5801, 2147483648
      %v5840 = vxor.u32 %v5803, 2147483648
      %v5841 = vxor.u32 %v5694, 2147483648
      %v5842 = vxor.u32 %v5696, 2147483648
      %v5843 = vxor.u32 %v5807, 2147483648
      %v5844 = vxor.u32 %v5809, 2147483648
      %v5845 = vxor.u32 %v5700, 2147483648
      %v5846 = vxor.u32 %v5702, 2147483648
      %v5847 = vxor.u32 %v5813, 2147483648
      %v5848 = vxor.u32 %v5815, 2147483648
      %v5849 = vmul.f32 %v5817, 1.442695
      %v5850 = vpow.pop %v5849
      %v5851 = vmul.f32 %v5818, 1.442695
      %v5852 = vpow.pop %v5851
      %v5853 = vmul.f32 %v5819, 1.442695
      %v5854 = vpow.pop %v5853
      %v5855 = vmul.f32 %v5820, 1.442695
      %v5856 = vpow.pop %v5855
      %v5857 = vmul.f32 %v5821, 1.442695
      %v5858 = vpow.pop %v5857
      %v5859 = vmul.f32 %v5822, 1.442695
      %v5860 = vpow.pop %v5859
      %v5861 = vmul.f32 %v5823, 1.442695
      %v5862 = vpow.pop %v5861
      %v5863 = vmul.f32 %v5824, 1.442695
      %v5864 = vpow.pop %v5863
      %v5865 = vmul.f32 %v5825, 1.442695
      %v5866 = vpow.pop %v5865
      %v5867 = vmul.f32 %v5826, 1.442695
      %v5868 = vpow.pop %v5867
      %v5869 = vmul.f32 %v5827, 1.442695
      %v5870 = vpow.pop %v5869
      %v5871 = vmul.f32 %v5828, 1.442695
      %v5872 = vpow.pop %v5871
      %v5873 = vmul.f32 %v5829, 1.442695
      %v5874 = vpow.pop %v5873
      %v5875 = vmul.f32 %v5830, 1.442695
      %v5876 = vpow.pop %v5875
      %v5877 = vmul.f32 %v5831, 1.442695
      %v5878 = vpow.pop %v5877
      %v5879 = vmul.f32 %v5832, 1.442695
      %v5880 = vpow.pop %v5879
      %v5881 = vmul.f32 %v5833, 1.442695
      %v5882 = vpow.pop %v5881
      %v5883 = vmul.f32 %v5834, 1.442695
      %v5884 = vpow.pop %v5883
      %v5885 = vmul.f32 %v5835, 1.442695
      %v5886 = vpow.pop %v5885
      %v5887 = vmul.f32 %v5836, 1.442695
      %v5888 = vpow.pop %v5887
      %v5889 = vmul.f32 %v5837, 1.442695
      %v5890 = vpow.pop %v5889
      %v5891 = vmul.f32 %v5838, 1.442695
      %v5892 = vpow.pop %v5891
      %v5893 = vmul.f32 %v5839, 1.442695
      %v5894 = vpow.pop %v5893
      %v5895 = vmul.f32 %v5840, 1.442695
      %v5896 = vpow.pop %v5895
      %v5897 = vmul.f32 %v5841, 1.442695
      %v5898 = vpow.pop %v5897
      %v5899 = vmul.f32 %v5842, 1.442695
      %v5900 = vpow.pop %v5899
      %v5901 = vmul.f32 %v5843, 1.442695
      %v5902 = vpow.pop %v5901
      %v5903 = vmul.f32 %v5844, 1.442695
      %v5904 = vpow.pop %v5903
      %v5905 = vmul.f32 %v5845, 1.442695
      %v5906 = vpow.pop %v5905
      %v5907 = vmul.f32 %v5846, 1.442695
      %v5908 = vpow.pop %v5907
      %v5909 = vmul.f32 %v5847, 1.442695
      %v5910 = vpow.pop %v5909
      %v5911 = vmul.f32 %v5848, 1.442695
      %v5912 = vpow.pop %v5911
      %v5913 = vadd.f32 %v5850, 1.0
      %v5914 = vadd.f32 %v5852, 1.0
      %v5915 = vadd.f32 %v5854, 1.0
      %v5916 = vadd.f32 %v5856, 1.0
      %v5917 = vadd.f32 %v5858, 1.0
      %v5918 = vadd.f32 %v5860, 1.0
      %v5919 = vadd.f32 %v5862, 1.0
      %v5920 = vadd.f32 %v5864, 1.0
      %v5921 = vadd.f32 %v5866, 1.0
      %v5922 = vadd.f32 %v5868, 1.0
      %v5923 = vadd.f32 %v5870, 1.0
      %v5924 = vadd.f32 %v5872, 1.0
      %v5925 = vadd.f32 %v5874, 1.0
      %v5926 = vadd.f32 %v5876, 1.0
      %v5927 = vadd.f32 %v5878, 1.0
      %v5928 = vadd.f32 %v5880, 1.0
      %v5929 = vadd.f32 %v5882, 1.0
      %v5930 = vadd.f32 %v5884, 1.0
      %v5931 = vadd.f32 %v5886, 1.0
      %v5932 = vadd.f32 %v5888, 1.0
      %v5933 = vadd.f32 %v5890, 1.0
      %v5934 = vadd.f32 %v5892, 1.0
      %v5935 = vadd.f32 %v5894, 1.0
      %v5936 = vadd.f32 %v5896, 1.0
      %v5937 = vadd.f32 %v5898, 1.0
      %v5938 = vadd.f32 %v5900, 1.0
      %v5939 = vadd.f32 %v5902, 1.0
      %v5940 = vadd.f32 %v5904, 1.0
      %v5941 = vadd.f32 %v5906, 1.0
      %v5942 = vadd.f32 %v5908, 1.0
      %v5943 = vadd.f32 %v5910, 1.0
      %v5944 = vadd.f32 %v5912, 1.0
      %v5945 = vrcp.pop %v5913
      %v5946 = vmul.f32 1.0, %v5945
      %v5947 = vrcp.pop %v5914
      %v5948 = vmul.f32 1.0, %v5947
      %v5949 = vrcp.pop %v5915
      %v5950 = vmul.f32 1.0, %v5949
      %v5951 = vrcp.pop %v5916
      %v5952 = vmul.f32 1.0, %v5951
      %v5953 = vrcp.pop %v5917
      %v5954 = vmul.f32 1.0, %v5953
      %v5955 = vrcp.pop %v5918
      %v5956 = vmul.f32 1.0, %v5955
      %v5957 = vrcp.pop %v5919
      %v5958 = vmul.f32 1.0, %v5957
      %v5959 = vrcp.pop %v5920
      %v5960 = vmul.f32 1.0, %v5959
      %v5961 = vrcp.pop %v5921
      %v5962 = vmul.f32 1.0, %v5961
      %v5963 = vrcp.pop %v5922
      %v5964 = vmul.f32 1.0, %v5963
      %v5965 = vrcp.pop %v5923
      %v5966 = vmul.f32 1.0, %v5965
      %v5967 = vrcp.pop %v5924
      %v5968 = vmul.f32 1.0, %v5967
      %v5969 = vrcp.pop %v5925
      %v5970 = vmul.f32 1.0, %v5969
      %v5971 = vrcp.pop %v5926
      %v5972 = vmul.f32 1.0, %v5971
      %v5973 = vrcp.pop %v5927
      %v5974 = vmul.f32 1.0, %v5973
      %v5975 = vrcp.pop %v5928
      %v5976 = vmul.f32 1.0, %v5975
      %v5977 = vrcp.pop %v5929
      %v5978 = vmul.f32 1.0, %v5977
      %v5979 = vrcp.pop %v5930
      %v5980 = vmul.f32 1.0, %v5979
      %v5981 = vrcp.pop %v5931
      %v5982 = vmul.f32 1.0, %v5981
      %v5983 = vrcp.pop %v5932
      %v5984 = vmul.f32 1.0, %v5983
      %v5985 = vrcp.pop %v5933
      %v5986 = vmul.f32 1.0, %v5985
      %v5987 = vrcp.pop %v5934
      %v5988 = vmul.f32 1.0, %v5987
      %v5989 = vrcp.pop %v5935
      %v5990 = vmul.f32 1.0, %v5989
      %v5991 = vrcp.pop %v5936
      %v5992 = vmul.f32 1.0, %v5991
      %v5993 = vrcp.pop %v5937
      %v5994 = vmul.f32 1.0, %v5993
      %v5995 = vrcp.pop %v5938
      %v5996 = vmul.f32 1.0, %v5995
      %v5997 = vrcp.pop %v5939
      %v5998 = vmul.f32 1.0, %v5997
      %v5999 = vrcp.pop %v5940
      %v6000 = vmul.f32 1.0, %v5999
      %v6001 = vrcp.pop %v5941
      %v6002 = vmul.f32 1.0, %v6001
      %v6003 = vrcp.pop %v5942
      %v6004 = vmul.f32 1.0, %v6003
      %v6005 = vrcp.pop %v5943
      %v6006 = vmul.f32 1.0, %v6005
      %v6007 = vrcp.pop %v5944
      %v6008 = vmul.f32 1.0, %v6007
      %s6009 = scalar_lea.vmem %s3, 64
      %v6010 = vld [vmem:[%s6009] sm:$0xff]
      %v6011 = vld [vmem:[%s6009 + $0x8] sm:$0xff]
      %v6012 = vld [vmem:[%s6009 + $0x10] sm:$0xff]
      %v6013 = vld [vmem:[%s6009 + $0x18] sm:$0xff]
      %v6014 = vld [vmem:[%s6009 + $0x20] sm:$0xff]
      %v6015 = vld [vmem:[%s6009 + $0x28] sm:$0xff]
      %v6016 = vld [vmem:[%s6009 + $0x30] sm:$0xff]
      %v6017 = vld [vmem:[%s6009 + $0x38] sm:$0xff]
      %v6019 = vlaneseq
      %v6020 = vshrl.u32 %v6019, 7
      %v6021 = vsub.s32 0, %v6020
      %v6022 = vrot.slane %v248, %v6021
      %v6023 = vlaneseq
      %v6024 = vshrl.u32 %v6023, 7
      %v6025 = vsub.s32 1, %v6024
      %v6026 = vrot.slane %v248, %v6025
      %v6027 = vlaneseq
      %v6028 = vshrl.u32 %v6027, 7
      %v6029 = vsub.s32 2, %v6028
      %v6030 = vrot.slane %v248, %v6029
      %v6031 = vlaneseq
      %v6032 = vshrl.u32 %v6031, 7
      %v6033 = vsub.s32 3, %v6032
      %v6034 = vrot.slane %v248, %v6033
      %v6040 = vsel %vm5566, %v5529, 0
      %v6043 = vsel %vm5566, %v5530, 0
      %v6046 = vsel %vm5566, %v5531, 0
      %v6049 = vsel %vm5566, %v5532, 0
      %v6052 = vsel %vm5566, %v5533, 0
      %v6055 = vsel %vm5566, %v5534, 0
      %v6058 = vsel %vm5566, %v5535, 0
      %v6061 = vsel %vm5566, %v5536, 0
      %6063 = vmatprep.subr.mxu0 %v6011
      %6064 = vmatpush1.msra.mxu0 %v6010
      %6065 = vmatprep.subr.mxu0 %v6015
      %6066 = vmatpush1.msra.mxu0 %v6014
      %6067 = vmatprep.subr.mxu0 0.0
      %6068 = vmatpush1.msra.mxu0 0.0
      %6069 = vmatprep.subr.mxu0 0.0
      %6070 = vmatpush1.msra.mxu0 0.0
      %6071 = vmatprep.subr.mxu0 0.0
      %6072 = vmatpush1.msra.mxu0 0.0
      %6073 = vmatprep.subr.mxu0 0.0
      %6074 = vmatpush1.msra.mxu0 0.0
      %6075 = vmatprep.subr.mxu0 0.0
      %6076 = vmatpush1.msra.mxu0 0.0
      %6077 = vmatprep.subr.mxu0 0.0
      %6078 = vmatpush1.msra.mxu0 0.0
      %6079 = vmatprep.subr.mxu0 0.0
      %6080 = vmatpush1.msra.mxu0 0.0
      %6081 = vmatprep.subr.mxu0 0.0
      %6082 = vmatpush1.msra.mxu0 0.0
      %6083 = vmatprep.subr.mxu0 0.0
      %6084 = vmatpush1.msra.mxu0 0.0
      %6085 = vmatprep.subr.mxu0 0.0
      %6086 = vmatpush1.msra.mxu0 0.0
      %6087 = vmatprep.subr.mxu0 0.0
      %6088 = vmatpush1.msra.mxu0 0.0
      %6089 = vmatprep.subr.mxu0 0.0
      %6090 = vmatpush1.msra.mxu0 0.0
      %6091 = vmatprep.subr.mxu0 0.0
      %6092 = vmatpush1.msra.mxu0 0.0
      %6093 = vmatprep.subr.mxu0 0.0
      %6094 = vmatpush1.msra.mxu0 0.0
      %6095 = vmatprep.subr.mxu0 0.0
      %6096 = vmatpush1.msra.mxu0 0.0
      %6097 = vmatprep.subr.mxu0 0.0
      %6098 = vmatpush1.msra.mxu0 0.0
      %6099 = vmatprep.subr.mxu0 0.0
      %6100 = vmatpush1.msra.mxu0 0.0
      %6101 = vmatprep.subr.mxu0 0.0
      %6102 = vmatpush1.msra.mxu0 0.0
      %6103 = vmatprep.subr.mxu0 0.0
      %6104 = vmatpush1.msra.mxu0 0.0
      %6105 = vmatprep.subr.mxu0 0.0
      %6106 = vmatpush1.msra.mxu0 0.0
      %6107 = vmatprep.subr.mxu0 0.0
      %6108 = vmatpush1.msra.mxu0 0.0
      %6109 = vmatprep.subr.mxu0 0.0
      %6110 = vmatpush1.msra.mxu0 0.0
      %6111 = vmatprep.subr.mxu0 0.0
      %6112 = vmatpush1.msra.mxu0 0.0
      %6113 = vmatprep.subr.mxu0 0.0
      %6114 = vmatpush1.msra.mxu0 0.0
      %6115 = vmatprep.subr.mxu0 0.0
      %6116 = vmatpush1.msra.mxu0 0.0
      %6117 = vmatprep.subr.mxu0 0.0
      %6118 = vmatpush1.msra.mxu0 0.0
      %6119 = vmatprep.subr.mxu0 0.0
      %6120 = vmatpush1.msra.mxu0 0.0
      %6121 = vmatprep.subr.mxu0 0.0
      %6122 = vmatpush1.msra.mxu0 0.0
      %6123 = vmatprep.subr.mxu0 0.0
      %6124 = vmatpush1.msra.mxu0 0.0
      %6125 = vmatprep.subr.mxu0 0.0
      %6126 = vmatpush1.msra.mxu0 0.0
      %6127 = vmatprep.mubr.f32.mxu0 0.0
      %6128 = vmatmul.mubr.f32.gmra.mrb[0].mxu0 %v6040
      %v6129 = vpop.f32.mrb[0].mxu0
      %v6130 = vadd.f32 %v6022, %v6129
      %v6131 = vpop.f32.mrb[0].mxu0
      %v6132 = vadd.f32 %v6026, %v6131
      %6133 = vmatprep.mubr.f32.mxu0 0.0
      %6134 = vmatmul.mubr.f32.gmra.mrb[0].mxu0 %v6043
      %v6135 = vpop.f32.mrb[0].mxu0
      %v6136 = vadd.f32 %v6022, %v6135
      %v6137 = vpop.f32.mrb[0].mxu0
      %v6138 = vadd.f32 %v6026, %v6137
      %6139 = vmatprep.mubr.f32.mxu0 0.0
      %6140 = vmatmul.mubr.f32.gmra.mrb[0].mxu0 %v6046
      %v6141 = vpop.f32.mrb[0].mxu0
      %v6142 = vadd.f32 %v6022, %v6141
      %v6143 = vpop.f32.mrb[0].mxu0
      %v6144 = vadd.f32 %v6026, %v6143
      %6145 = vmatprep.mubr.f32.mxu0 0.0
      %6146 = vmatmul.mubr.f32.gmra.mrb[0].mxu0 %v6049
      %v6147 = vpop.f32.mrb[0].mxu0
      %v6148 = vadd.f32 %v6022, %v6147
      %v6149 = vpop.f32.mrb[0].mxu0
      %v6150 = vadd.f32 %v6026, %v6149
      %6151 = vmatprep.mubr.f32.mxu0 0.0
      %6152 = vmatmul.mubr.f32.gmra.mrb[0].mxu0 %v6052
      %v6153 = vpop.f32.mrb[0].mxu0
      %v6154 = vadd.f32 %v6022, %v6153
      %v6155 = vpop.f32.mrb[0].mxu0
      %v6156 = vadd.f32 %v6026, %v6155
      %6157 = vmatprep.mubr.f32.mxu0 0.0
      %6158 = vmatmul.mubr.f32.gmra.mrb[0].mxu0 %v6055
      %v6159 = vpop.f32.mrb[0].mxu0
      %v6160 = vadd.f32 %v6022, %v6159
      %v6161 = vpop.f32.mrb[0].mxu0
      %v6162 = vadd.f32 %v6026, %v6161
      %6163 = vmatprep.mubr.f32.mxu0 0.0
      %6164 = vmatmul.mubr.f32.gmra.mrb[0].mxu0 %v6058
      %v6165 = vpop.f32.mrb[0].mxu0
      %v6166 = vadd.f32 %v6022, %v6165
      %v6167 = vpop.f32.mrb[0].mxu0
      %v6168 = vadd.f32 %v6026, %v6167
      %6169 = vmatprep.mubr.f32.mxu0 0.0
      %6170 = vmatmul.mubr.f32.gmra.mrb[0].mxu0 %v6061
      %v6171 = vpop.f32.mrb[0].mxu0
      %v6172 = vadd.f32 %v6022, %v6171
      %v6173 = vpop.f32.mrb[0].mxu0
      %v6174 = vadd.f32 %v6026, %v6173
      %6175 = vdwg.mxu0
      %6176 = vmatprep.subr.mxu0 %v6013
      %6177 = vmatpush1.msra.mxu0 %v6012
      %6178 = vmatprep.subr.mxu0 %v6017
      %6179 = vmatpush1.msra.mxu0 %v6016
      %6180 = vmatprep.subr.mxu0 0.0
      %6181 = vmatpush1.msra.mxu0 0.0
      %6182 = vmatprep.subr.mxu0 0.0
      %6183 = vmatpush1.msra.mxu0 0.0
      %6184 = vmatprep.subr.mxu0 0.0
      %6185 = vmatpush1.msra.mxu0 0.0
      %6186 = vmatprep.subr.mxu0 0.0
      %6187 = vmatpush1.msra.mxu0 0.0
      %6188 = vmatprep.subr.mxu0 0.0
      %6189 = vmatpush1.msra.mxu0 0.0
      %6190 = vmatprep.subr.mxu0 0.0
      %6191 = vmatpush1.msra.mxu0 0.0
      %6192 = vmatprep.subr.mxu0 0.0
      %6193 = vmatpush1.msra.mxu0 0.0
      %6194 = vmatprep.subr.mxu0 0.0
      %6195 = vmatpush1.msra.mxu0 0.0
      %6196 = vmatprep.subr.mxu0 0.0
      %6197 = vmatpush1.msra.mxu0 0.0
      %6198 = vmatprep.subr.mxu0 0.0
      %6199 = vmatpush1.msra.mxu0 0.0
      %6200 = vmatprep.subr.mxu0 0.0
      %6201 = vmatpush1.msra.mxu0 0.0
      %6202 = vmatprep.subr.mxu0 0.0
      %6203 = vmatpush1.msra.mxu0 0.0
      %6204 = vmatprep.subr.mxu0 0.0
      %6205 = vmatpush1.msra.mxu0 0.0
      %6206 = vmatprep.subr.mxu0 0.0
      %6207 = vmatpush1.msra.mxu0 0.0
      %6208 = vmatprep.subr.mxu0 0.0
      %6209 = vmatpush1.msra.mxu0 0.0
      %6210 = vmatprep.subr.mxu0 0.0
      %6211 = vmatpush1.msra.mxu0 0.0
      %6212 = vmatprep.subr.mxu0 0.0
      %6213 = vmatpush1.msra.mxu0 0.0
      %6214 = vmatprep.subr.mxu0 0.0
      %6215 = vmatpush1.msra.mxu0 0.0
      %6216 = vmatprep.subr.mxu0 0.0
      %6217 = vmatpush1.msra.mxu0 0.0
      %6218 = vmatprep.subr.mxu0 0.0
      %6219 = vmatpush1.msra.mxu0 0.0
      %6220 = vmatprep.subr.mxu0 0.0
      %6221 = vmatpush1.msra.mxu0 0.0
      %6222 = vmatprep.subr.mxu0 0.0
      %6223 = vmatpush1.msra.mxu0 0.0
      %6224 = vmatprep.subr.mxu0 0.0
      %6225 = vmatpush1.msra.mxu0 0.0
      %6226 = vmatprep.subr.mxu0 0.0
      %6227 = vmatpush1.msra.mxu0 0.0
      %6228 = vmatprep.subr.mxu0 0.0
      %6229 = vmatpush1.msra.mxu0 0.0
      %6230 = vmatprep.subr.mxu0 0.0
      %6231 = vmatpush1.msra.mxu0 0.0
      %6232 = vmatprep.subr.mxu0 0.0
      %6233 = vmatpush1.msra.mxu0 0.0
      %6234 = vmatprep.subr.mxu0 0.0
      %6235 = vmatpush1.msra.mxu0 0.0
      %6236 = vmatprep.subr.mxu0 0.0
      %6237 = vmatpush1.msra.mxu0 0.0
      %6238 = vmatprep.subr.mxu0 0.0
      %6239 = vmatpush1.msra.mxu0 0.0
      %6240 = vmatprep.mubr.f32.mxu0 0.0
      %6241 = vmatmul.mubr.f32.gmra.mrb[0].mxu0 %v6040
      %v6242 = vpop.f32.mrb[0].mxu0
      %v6243 = vadd.f32 %v6030, %v6242
      %v6244 = vpop.f32.mrb[0].mxu0
      %v6245 = vadd.f32 %v6034, %v6244
      %6246 = vmatprep.mubr.f32.mxu0 0.0
      %6247 = vmatmul.mubr.f32.gmra.mrb[0].mxu0 %v6043
      %v6248 = vpop.f32.mrb[0].mxu0
      %v6249 = vadd.f32 %v6030, %v6248
      %v6250 = vpop.f32.mrb[0].mxu0
      %v6251 = vadd.f32 %v6034, %v6250
      %6252 = vmatprep.mubr.f32.mxu0 0.0
      %6253 = vmatmul.mubr.f32.gmra.mrb[0].mxu0 %v6046
      %v6254 = vpop.f32.mrb[0].mxu0
      %v6255 = vadd.f32 %v6030, %v6254
      %v6256 = vpop.f32.mrb[0].mxu0
      %v6257 = vadd.f32 %v6034, %v6256
      %6258 = vmatprep.mubr.f32.mxu0 0.0
      %6259 = vmatmul.mubr.f32.gmra.mrb[0].mxu0 %v6049
      %v6260 = vpop.f32.mrb[0].mxu0
      %v6261 = vadd.f32 %v6030, %v6260
      %v6262 = vpop.f32.mrb[0].mxu0
      %v6263 = vadd.f32 %v6034, %v6262
      %6264 = vmatprep.mubr.f32.mxu0 0.0
      %6265 = vmatmul.mubr.f32.gmra.mrb[0].mxu0 %v6052
      %v6266 = vpop.f32.mrb[0].mxu0
      %v6267 = vadd.f32 %v6030, %v6266
      %v6268 = vpop.f32.mrb[0].mxu0
      %v6269 = vadd.f32 %v6034, %v6268
      %6270 = vmatprep.mubr.f32.mxu0 0.0
      %6271 = vmatmul.mubr.f32.gmra.mrb[0].mxu0 %v6055
      %v6272 = vpop.f32.mrb[0].mxu0
      %v6273 = vadd.f32 %v6030, %v6272
      %v6274 = vpop.f32.mrb[0].mxu0
      %v6275 = vadd.f32 %v6034, %v6274
      %6276 = vmatprep.mubr.f32.mxu0 0.0
      %6277 = vmatmul.mubr.f32.gmra.mrb[0].mxu0 %v6058
      %v6278 = vpop.f32.mrb[0].mxu0
      %v6279 = vadd.f32 %v6030, %v6278
      %v6280 = vpop.f32.mrb[0].mxu0
      %v6281 = vadd.f32 %v6034, %v6280
      %6282 = vmatprep.mubr.f32.mxu0 0.0
      %6283 = vmatmul.mubr.f32.gmra.mrb[0].mxu0 %v6061
      %v6284 = vpop.f32.mrb[0].mxu0
      %v6285 = vadd.f32 %v6030, %v6284
      %v6286 = vpop.f32.mrb[0].mxu0
      %v6287 = vadd.f32 %v6034, %v6286
      %6288 = vdwg.mxu0
      %v6289 = vxor.u32 %v6130, 2147483648
      %v6290 = vxor.u32 %v6132, 2147483648
      %v6291 = vxor.u32 %v6243, 2147483648
      %v6292 = vxor.u32 %v6245, 2147483648
      %v6293 = vxor.u32 %v6136, 2147483648
      %v6294 = vxor.u32 %v6138, 2147483648
      %v6295 = vxor.u32 %v6249, 2147483648
      %v6296 = vxor.u32 %v6251, 2147483648
      %v6297 = vxor.u32 %v6142, 2147483648
      %v6298 = vxor.u32 %v6144, 2147483648
      %v6299 = vxor.u32 %v6255, 2147483648
      %v6300 = vxor.u32 %v6257, 2147483648
      %v6301 = vxor.u32 %v6148, 2147483648
      %v6302 = vxor.u32 %v6150, 2147483648
      %v6303 = vxor.u32 %v6261, 2147483648
      %v6304 = vxor.u32 %v6263, 2147483648
      %v6305 = vxor.u32 %v6154, 2147483648
      %v6306 = vxor.u32 %v6156, 2147483648
      %v6307 = vxor.u32 %v6267, 2147483648
      %v6308 = vxor.u32 %v6269, 2147483648
      %v6309 = vxor.u32 %v6160, 2147483648
      %v6310 = vxor.u32 %v6162, 2147483648
      %v6311 = vxor.u32 %v6273, 2147483648
      %v6312 = vxor.u32 %v6275, 2147483648
      %v6313 = vxor.u32 %v6166, 2147483648
      %v6314 = vxor.u32 %v6168, 2147483648
      %v6315 = vxor.u32 %v6279, 2147483648
      %v6316 = vxor.u32 %v6281, 2147483648
      %v6317 = vxor.u32 %v6172, 2147483648
      %v6318 = vxor.u32 %v6174, 2147483648
      %v6319 = vxor.u32 %v6285, 2147483648
      %v6320 = vxor.u32 %v6287, 2147483648
      %v6321 = vmul.f32 %v6289, 1.442695
      %v6322 = vpow.pop %v6321
      %v6323 = vmul.f32 %v6290, 1.442695
      %v6324 = vpow.pop %v6323
      %v6325 = vmul.f32 %v6291, 1.442695
      %v6326 = vpow.pop %v6325
      %v6327 = vmul.f32 %v6292, 1.442695
      %v6328 = vpow.pop %v6327
      %v6329 = vmul.f32 %v6293, 1.442695
      %v6330 = vpow.pop %v6329
      %v6331 = vmul.f32 %v6294, 1.442695
      %v6332 = vpow.pop %v6331
      %v6333 = vmul.f32 %v6295, 1.442695
      %v6334 = vpow.pop %v6333
      %v6335 = vmul.f32 %v6296, 1.442695
      %v6336 = vpow.pop %v6335
      %v6337 = vmul.f32 %v6297, 1.442695
      %v6338 = vpow.pop %v6337
      %v6339 = vmul.f32 %v6298, 1.442695
      %v6340 = vpow.pop %v6339
      %v6341 = vmul.f32 %v6299, 1.442695
      %v6342 = vpow.pop %v6341
      %v6343 = vmul.f32 %v6300, 1.442695
      %v6344 = vpow.pop %v6343
      %v6345 = vmul.f32 %v6301, 1.442695
      %v6346 = vpow.pop %v6345
      %v6347 = vmul.f32 %v6302, 1.442695
      %v6348 = vpow.pop %v6347
      %v6349 = vmul.f32 %v6303, 1.442695
      %v6350 = vpow.pop %v6349
      %v6351 = vmul.f32 %v6304, 1.442695
      %v6352 = vpow.pop %v6351
      %v6353 = vmul.f32 %v6305, 1.442695
      %v6354 = vpow.pop %v6353
      %v6355 = vmul.f32 %v6306, 1.442695
      %v6356 = vpow.pop %v6355
      %v6357 = vmul.f32 %v6307, 1.442695
      %v6358 = vpow.pop %v6357
      %v6359 = vmul.f32 %v6308, 1.442695
      %v6360 = vpow.pop %v6359
      %v6361 = vmul.f32 %v6309, 1.442695
      %v6362 = vpow.pop %v6361
      %v6363 = vmul.f32 %v6310, 1.442695
      %v6364 = vpow.pop %v6363
      %v6365 = vmul.f32 %v6311, 1.442695
      %v6366 = vpow.pop %v6365
      %v6367 = vmul.f32 %v6312, 1.442695
      %v6368 = vpow.pop %v6367
      %v6369 = vmul.f32 %v6313, 1.442695
      %v6370 = vpow.pop %v6369
      %v6371 = vmul.f32 %v6314, 1.442695
      %v6372 = vpow.pop %v6371
      %v6373 = vmul.f32 %v6315, 1.442695
      %v6374 = vpow.pop %v6373
      %v6375 = vmul.f32 %v6316, 1.442695
      %v6376 = vpow.pop %v6375
      %v6377 = vmul.f32 %v6317, 1.442695
      %v6378 = vpow.pop %v6377
      %v6379 = vmul.f32 %v6318, 1.442695
      %v6380 = vpow.pop %v6379
      %v6381 = vmul.f32 %v6319, 1.442695
      %v6382 = vpow.pop %v6381
      %v6383 = vmul.f32 %v6320, 1.442695
      %v6384 = vpow.pop %v6383
      %v6385 = vadd.f32 %v6322, 1.0
      %v6386 = vadd.f32 %v6324, 1.0
      %v6387 = vadd.f32 %v6326, 1.0
      %v6388 = vadd.f32 %v6328, 1.0
      %v6389 = vadd.f32 %v6330, 1.0
      %v6390 = vadd.f32 %v6332, 1.0
      %v6391 = vadd.f32 %v6334, 1.0
      %v6392 = vadd.f32 %v6336, 1.0
      %v6393 = vadd.f32 %v6338, 1.0
      %v6394 = vadd.f32 %v6340, 1.0
      %v6395 = vadd.f32 %v6342, 1.0
      %v6396 = vadd.f32 %v6344, 1.0
      %v6397 = vadd.f32 %v6346, 1.0
      %v6398 = vadd.f32 %v6348, 1.0
      %v6399 = vadd.f32 %v6350, 1.0
      %v6400 = vadd.f32 %v6352, 1.0
      %v6401 = vadd.f32 %v6354, 1.0
      %v6402 = vadd.f32 %v6356, 1.0
      %v6403 = vadd.f32 %v6358, 1.0
      %v6404 = vadd.f32 %v6360, 1.0
      %v6405 = vadd.f32 %v6362, 1.0
      %v6406 = vadd.f32 %v6364, 1.0
      %v6407 = vadd.f32 %v6366, 1.0
      %v6408 = vadd.f32 %v6368, 1.0
      %v6409 = vadd.f32 %v6370, 1.0
      %v6410 = vadd.f32 %v6372, 1.0
      %v6411 = vadd.f32 %v6374, 1.0
      %v6412 = vadd.f32 %v6376, 1.0
      %v6413 = vadd.f32 %v6378, 1.0
      %v6414 = vadd.f32 %v6380, 1.0
      %v6415 = vadd.f32 %v6382, 1.0
      %v6416 = vadd.f32 %v6384, 1.0
      %v6417 = vrcp.pop %v6385
      %v6418 = vmul.f32 1.0, %v6417
      %v6419 = vrcp.pop %v6386
      %v6420 = vmul.f32 1.0, %v6419
      %v6421 = vrcp.pop %v6387
      %v6422 = vmul.f32 1.0, %v6421
      %v6423 = vrcp.pop %v6388
      %v6424 = vmul.f32 1.0, %v6423
      %v6425 = vrcp.pop %v6389
      %v6426 = vmul.f32 1.0, %v6425
      %v6427 = vrcp.pop %v6390
      %v6428 = vmul.f32 1.0, %v6427
      %v6429 = vrcp.pop %v6391
      %v6430 = vmul.f32 1.0, %v6429
      %v6431 = vrcp.pop %v6392
      %v6432 = vmul.f32 1.0, %v6431
      %v6433 = vrcp.pop %v6393
      %v6434 = vmul.f32 1.0, %v6433
      %v6435 = vrcp.pop %v6394
      %v6436 = vmul.f32 1.0, %v6435
      %v6437 = vrcp.pop %v6395
      %v6438 = vmul.f32 1.0, %v6437
      %v6439 = vrcp.pop %v6396
      %v6440 = vmul.f32 1.0, %v6439
      %v6441 = vrcp.pop %v6397
      %v6442 = vmul.f32 1.0, %v6441
      %v6443 = vrcp.pop %v6398
      %v6444 = vmul.f32 1.0, %v6443
      %v6445 = vrcp.pop %v6399
      %v6446 = vmul.f32 1.0, %v6445
      %v6447 = vrcp.pop %v6400
      %v6448 = vmul.f32 1.0, %v6447
      %v6449 = vrcp.pop %v6401
      %v6450 = vmul.f32 1.0, %v6449
      %v6451 = vrcp.pop %v6402
      %v6452 = vmul.f32 1.0, %v6451
      %v6453 = vrcp.pop %v6403
      %v6454 = vmul.f32 1.0, %v6453
      %v6455 = vrcp.pop %v6404
      %v6456 = vmul.f32 1.0, %v6455
      %v6457 = vrcp.pop %v6405
      %v6458 = vmul.f32 1.0, %v6457
      %v6459 = vrcp.pop %v6406
      %v6460 = vmul.f32 1.0, %v6459
      %v6461 = vrcp.pop %v6407
      %v6462 = vmul.f32 1.0, %v6461
      %v6463 = vrcp.pop %v6408
      %v6464 = vmul.f32 1.0, %v6463
      %v6465 = vrcp.pop %v6409
      %v6466 = vmul.f32 1.0, %v6465
      %v6467 = vrcp.pop %v6410
      %v6468 = vmul.f32 1.0, %v6467
      %v6469 = vrcp.pop %v6411
      %v6470 = vmul.f32 1.0, %v6469
      %v6471 = vrcp.pop %v6412
      %v6472 = vmul.f32 1.0, %v6471
      %v6473 = vrcp.pop %v6413
      %v6474 = vmul.f32 1.0, %v6473
      %v6475 = vrcp.pop %v6414
      %v6476 = vmul.f32 1.0, %v6475
      %v6477 = vrcp.pop %v6415
      %v6478 = vmul.f32 1.0, %v6477
      %v6479 = vrcp.pop %v6416
      %v6480 = vmul.f32 1.0, %v6479
      %v6485 = vcombine.low %v5946, %v5948
      %v6486 = vcombine.high %v5946, %v5948
      %v6487 = vcombine.low %v5950, %v5952
      %v6488 = vcombine.high %v5950, %v5952
      %v6490 = vunpack.c.l.s4 1966171168
      %v6491 = vunpack.c.0.s8 %v6490
      %v6492 = vlaneseq
      %v6493 = vshrl.u32 %v6492, 7
      %v6494 = vsub.s32 %v6491, %v6493
      %v6495 = vrot.slane %v6485, %v6494
      %v6497 = vunpack.c.l.s4 1966171168
      %v6498 = vunpack.c.0.s8 %v6497
      %v6499 = vlaneseq
      %v6500 = vshrl.u32 %v6499, 7
      %v6501 = vsub.s32 %v6498, %v6500
      %v6502 = vrot.slane %v6486, %v6501
      %v6504 = vunpack.c.l.s4 1966171168
      %v6505 = vunpack.c.0.s8 %v6504
      %v6506 = vlaneseq
      %v6507 = vshrl.u32 %v6506, 7
      %v6508 = vsub.s32 %v6505, %v6507
      %v6509 = vrot.slane %v6487, %v6508
      %v6511 = vunpack.c.l.s4 1966171168
      %v6512 = vunpack.c.0.s8 %v6511
      %v6513 = vlaneseq
      %v6514 = vshrl.u32 %v6513, 7
      %v6515 = vsub.s32 %v6512, %v6514
      %v6516 = vrot.slane %v6488, %v6515
      %v6517 = vcombine.low %v6495, %v6509
      %v6518 = vcombine.high %v6495, %v6509
      %v6519 = vcombine.low %v6502, %v6516
      %v6520 = vcombine.high %v6502, %v6516
      %v6522 = vunpack.c.l.s4 1966171168
      %v6523 = vunpack.c.0.s8 %v6522
      %v6524 = vlaneseq
      %v6525 = vshrl.u32 %v6524, 7
      %v6526 = vsub.s32 %v6523, %v6525
      %v6527 = vrot.slane %v6517, %v6526
      %v6529 = vunpack.c.l.s4 1966171168
      %v6530 = vunpack.c.0.s8 %v6529
      %v6531 = vlaneseq
      %v6532 = vshrl.u32 %v6531, 7
      %v6533 = vsub.s32 %v6530, %v6532
      %v6534 = vrot.slane %v6519, %v6533
      %v6536 = vunpack.c.l.s4 1966171168
      %v6537 = vunpack.c.0.s8 %v6536
      %v6538 = vlaneseq
      %v6539 = vshrl.u32 %v6538, 7
      %v6540 = vsub.s32 %v6537, %v6539
      %v6541 = vrot.slane %v6518, %v6540
      %v6543 = vunpack.c.l.s4 1966171168
      %v6544 = vunpack.c.0.s8 %v6543
      %v6545 = vlaneseq
      %v6546 = vshrl.u32 %v6545, 7
      %v6547 = vsub.s32 %v6544, %v6546
      %v6548 = vrot.slane %v6520, %v6547
      %v6549 = vcombine.high %v6527, %v6527
      %v6550 = vcombine.high %v6534, %v6534
      %v6551 = vcombine.high %v6541, %v6541
      %v6552 = vlaneseq
      %v6553 = vshrl.u32 %v6552, 7
      %v6554 = vsub.s32 0, %v6553
      %v6555 = vrot.slane %v6527, %v6554
      %v6556 = vlaneseq
      %v6557 = vshrl.u32 %v6556, 7
      %v6558 = vsub.s32 1, %v6557
      %v6559 = vrot.slane %v6527, %v6558
      %v6560 = vlaneseq
      %v6561 = vshrl.u32 %v6560, 7
      %v6562 = vsub.s32 2, %v6561
      %v6563 = vrot.slane %v6527, %v6562
      %v6564 = vlaneseq
      %v6565 = vshrl.u32 %v6564, 7
      %v6566 = vsub.s32 3, %v6565
      %v6567 = vrot.slane %v6527, %v6566
      %v6568 = vlaneseq
      %v6569 = vshrl.u32 %v6568, 7
      %v6570 = vsub.s32 0, %v6569
      %v6571 = vrot.slane %v6541, %v6570
      %v6572 = vlaneseq
      %v6573 = vshrl.u32 %v6572, 7
      %v6574 = vsub.s32 1, %v6573
      %v6575 = vrot.slane %v6541, %v6574
      %v6576 = vlaneseq
      %v6577 = vshrl.u32 %v6576, 7
      %v6578 = vsub.s32 2, %v6577
      %v6579 = vrot.slane %v6541, %v6578
      %v6580 = vlaneseq
      %v6581 = vshrl.u32 %v6580, 7
      %v6582 = vsub.s32 3, %v6581
      %v6583 = vrot.slane %v6541, %v6582
      %v6584 = vlaneseq
      %v6585 = vshrl.u32 %v6584, 7
      %v6586 = vsub.s32 0, %v6585
      %v6587 = vrot.slane %v6549, %v6586
      %v6588 = vlaneseq
      %v6589 = vshrl.u32 %v6588, 7
      %v6590 = vsub.s32 1, %v6589
      %v6591 = vrot.slane %v6549, %v6590
      %v6592 = vlaneseq
      %v6593 = vshrl.u32 %v6592, 7
      %v6594 = vsub.s32 2, %v6593
      %v6595 = vrot.slane %v6549, %v6594
      %v6596 = vlaneseq
      %v6597 = vshrl.u32 %v6596, 7
      %v6598 = vsub.s32 3, %v6597
      %v6599 = vrot.slane %v6549, %v6598
      %v6600 = vlaneseq
      %v6601 = vshrl.u32 %v6600, 7
      %v6602 = vsub.s32 0, %v6601
      %v6603 = vrot.slane %v6551, %v6602
      %v6604 = vlaneseq
      %v6605 = vshrl.u32 %v6604, 7
      %v6606 = vsub.s32 1, %v6605
      %v6607 = vrot.slane %v6551, %v6606
      %v6608 = vlaneseq
      %v6609 = vshrl.u32 %v6608, 7
      %v6610 = vsub.s32 2, %v6609
      %v6611 = vrot.slane %v6551, %v6610
      %v6612 = vlaneseq
      %v6613 = vshrl.u32 %v6612, 7
      %v6614 = vsub.s32 3, %v6613
      %v6615 = vrot.slane %v6551, %v6614
      %v6616 = vlaneseq
      %v6617 = vshrl.u32 %v6616, 7
      %v6618 = vsub.s32 0, %v6617
      %v6619 = vrot.slane %v6534, %v6618
      %v6620 = vlaneseq
      %v6621 = vshrl.u32 %v6620, 7
      %v6622 = vsub.s32 1, %v6621
      %v6623 = vrot.slane %v6534, %v6622
      %v6624 = vlaneseq
      %v6625 = vshrl.u32 %v6624, 7
      %v6626 = vsub.s32 2, %v6625
      %v6627 = vrot.slane %v6534, %v6626
      %v6628 = vlaneseq
      %v6629 = vshrl.u32 %v6628, 7
      %v6630 = vsub.s32 3, %v6629
      %v6631 = vrot.slane %v6534, %v6630
      %v6632 = vlaneseq
      %v6633 = vshrl.u32 %v6632, 7
      %v6634 = vsub.s32 0, %v6633
      %v6635 = vrot.slane %v6548, %v6634
      %v6636 = vlaneseq
      %v6637 = vshrl.u32 %v6636, 7
      %v6638 = vsub.s32 1, %v6637
      %v6639 = vrot.slane %v6548, %v6638
      %v6640 = vlaneseq
      %v6641 = vshrl.u32 %v6640, 7
      %v6642 = vsub.s32 2, %v6641
      %v6643 = vrot.slane %v6548, %v6642
      %v6644 = vlaneseq
      %v6645 = vshrl.u32 %v6644, 7
      %v6646 = vsub.s32 3, %v6645
      %v6647 = vrot.slane %v6548, %v6646
      %v6648 = vlaneseq
      %v6649 = vshrl.u32 %v6648, 7
      %v6650 = vsub.s32 0, %v6649
      %v6651 = vrot.slane %v6550, %v6650
      %v6652 = vlaneseq
      %v6653 = vshrl.u32 %v6652, 7
      %v6654 = vsub.s32 1, %v6653
      %v6655 = vrot.slane %v6550, %v6654
      %v6656 = vlaneseq
      %v6657 = vshrl.u32 %v6656, 7
      %v6658 = vsub.s32 2, %v6657
      %v6659 = vrot.slane %v6550, %v6658
      %v6660 = vlaneseq
      %v6661 = vshrl.u32 %v6660, 7
      %v6662 = vsub.s32 3, %v6661
      %v6663 = vrot.slane %v6550, %v6662
      %v6692 = vmul.f32 %v6555, %v6418
      %v6693 = vmul.f32 %v6559, %v6420
      %v6694 = vmul.f32 %v6563, %v6422
      %v6695 = vmul.f32 %v6567, %v6424
      %v6696 = vmul.f32 %v6571, %v6418
      %v6697 = vmul.f32 %v6575, %v6420
      %v6698 = vmul.f32 %v6579, %v6422
      %v6699 = vmul.f32 %v6583, %v6424
      %v6700 = vmul.f32 %v6587, %v6418
      %v6701 = vmul.f32 %v6591, %v6420
      %v6702 = vmul.f32 %v6595, %v6422
      %v6703 = vmul.f32 %v6599, %v6424
      %v6704 = vmul.f32 %v6603, %v6418
      %v6705 = vmul.f32 %v6607, %v6420
      %v6706 = vmul.f32 %v6611, %v6422
      %v6707 = vmul.f32 %v6615, %v6424
      %v6708 = vmul.f32 %v6619, %v6418
      %v6709 = vmul.f32 %v6623, %v6420
      %v6710 = vmul.f32 %v6627, %v6422
      %v6711 = vmul.f32 %v6631, %v6424
      %v6712 = vmul.f32 %v6635, %v6418
      %v6713 = vmul.f32 %v6639, %v6420
      %v6714 = vmul.f32 %v6643, %v6422
      %v6715 = vmul.f32 %v6647, %v6424
      %v6716 = vmul.f32 %v6651, %v6418
      %v6717 = vmul.f32 %v6655, %v6420
      %v6718 = vmul.f32 %v6659, %v6422
      %v6719 = vmul.f32 %v6663, %v6424
      %6720 = vst [vmem:[%s231] sm:$0x7f] %v6692
      %6721 = vst [vmem:[%s231 + $0x8] sm:$0x7f] %v6693
      %6722 = vst [vmem:[%s231 + $0x10] sm:$0x7f] %v6694
      %6723 = vst [vmem:[%s231 + $0x18] sm:$0x7f] %v6695
      %6724 = vst [vmem:[%s231 + $0x20] sm:$0x7f] %v6696
      %6725 = vst [vmem:[%s231 + $0x28] sm:$0x7f] %v6697
      %6726 = vst [vmem:[%s231 + $0x30] sm:$0x7f] %v6698
      %6727 = vst [vmem:[%s231 + $0x38] sm:$0x7f] %v6699
      %6728 = vst [vmem:[%s231 + $0x40] sm:$0x7f] %v6700
      %6729 = vst [vmem:[%s231 + $0x48] sm:$0x7f] %v6701
      %6730 = vst [vmem:[%s231 + $0x50] sm:$0x7f] %v6702
      %6731 = vst [vmem:[%s231 + $0x58] sm:$0x7f] %v6703
      %6732 = vst [vmem:[%s231 + $0x60] sm:$0x7f] %v6704
      %6733 = vst [vmem:[%s231 + $0x68] sm:$0x7f] %v6705
      %6734 = vst [vmem:[%s231 + $0x70] sm:$0x7f] %v6706
      %6735 = vst [vmem:[%s231 + $0x78] sm:$0x7f] %v6707
      %6736 = vst [vmem:[%s231 + $0x80] sm:$0x7f] %v6708
      %6737 = vst [vmem:[%s231 + $0x88] sm:$0x7f] %v6709
      %6738 = vst [vmem:[%s231 + $0x90] sm:$0x7f] %v6710
      %6739 = vst [vmem:[%s231 + $0x98] sm:$0x7f] %v6711
      %6740 = vst [vmem:[%s231 + $0xa0] sm:$0x7f] %v6712
      %6741 = vst [vmem:[%s231 + $0xa8] sm:$0x7f] %v6713
      %6742 = vst [vmem:[%s231 + $0xb0] sm:$0x7f] %v6714
      %6743 = vst [vmem:[%s231 + $0xb8] sm:$0x7f] %v6715
      %6744 = vst [vmem:[%s231 + $0xc0] sm:$0x7f] %v6716
      %6745 = vst [vmem:[%s231 + $0xc8] sm:$0x7f] %v6717
      %6746 = vst [vmem:[%s231 + $0xd0] sm:$0x7f] %v6718
      %6747 = vst [vmem:[%s231 + $0xd8] sm:$0x7f] %v6719
      %v6752 = vcombine.low %v5954, %v5956
      %v6753 = vcombine.high %v5954, %v5956
      %v6754 = vcombine.low %v5958, %v5960
      %v6755 = vcombine.high %v5958, %v5960
      %v6757 = vunpack.c.l.s4 1966171168
      %v6758 = vunpack.c.0.s8 %v6757
      %v6759 = vlaneseq
      %v6760 = vshrl.u32 %v6759, 7
      %v6761 = vsub.s32 %v6758, %v6760
      %v6762 = vrot.slane %v6752, %v6761
      %v6764 = vunpack.c.l.s4 1966171168
      %v6765 = vunpack.c.0.s8 %v6764
      %v6766 = vlaneseq
      %v6767 = vshrl.u32 %v6766, 7
      %v6768 = vsub.s32 %v6765, %v6767
      %v6769 = vrot.slane %v6753, %v6768
      %v6771 = vunpack.c.l.s4 1966171168
      %v6772 = vunpack.c.0.s8 %v6771
      %v6773 = vlaneseq
      %v6774 = vshrl.u32 %v6773, 7
      %v6775 = vsub.s32 %v6772, %v6774
      %v6776 = vrot.slane %v6754, %v6775
      %v6778 = vunpack.c.l.s4 1966171168
      %v6779 = vunpack.c.0.s8 %v6778
      %v6780 = vlaneseq
      %v6781 = vshrl.u32 %v6780, 7
      %v6782 = vsub.s32 %v6779, %v6781
      %v6783 = vrot.slane %v6755, %v6782
      %v6784 = vcombine.low %v6762, %v6776
      %v6785 = vcombine.high %v6762, %v6776
      %v6786 = vcombine.low %v6769, %v6783
      %v6787 = vcombine.high %v6769, %v6783
      %v6789 = vunpack.c.l.s4 1966171168
      %v6790 = vunpack.c.0.s8 %v6789
      %v6791 = vlaneseq
      %v6792 = vshrl.u32 %v6791, 7
      %v6793 = vsub.s32 %v6790, %v6792
      %v6794 = vrot.slane %v6784, %v6793
      %v6796 = vunpack.c.l.s4 1966171168
      %v6797 = vunpack.c.0.s8 %v6796
      %v6798 = vlaneseq
      %v6799 = vshrl.u32 %v6798, 7
      %v6800 = vsub.s32 %v6797, %v6799
      %v6801 = vrot.slane %v6786, %v6800
      %v6803 = vunpack.c.l.s4 1966171168
      %v6804 = vunpack.c.0.s8 %v6803
      %v6805 = vlaneseq
      %v6806 = vshrl.u32 %v6805, 7
      %v6807 = vsub.s32 %v6804, %v6806
      %v6808 = vrot.slane %v6785, %v6807
      %v6810 = vunpack.c.l.s4 1966171168
      %v6811 = vunpack.c.0.s8 %v6810
      %v6812 = vlaneseq
      %v6813 = vshrl.u32 %v6812, 7
      %v6814 = vsub.s32 %v6811, %v6813
      %v6815 = vrot.slane %v6787, %v6814
      %v6816 = vcombine.high %v6794, %v6794
      %v6817 = vcombine.high %v6801, %v6801
      %v6818 = vcombine.high %v6808, %v6808
      %v6819 = vlaneseq
      %v6820 = vshrl.u32 %v6819, 7
      %v6821 = vsub.s32 0, %v6820
      %v6822 = vrot.slane %v6794, %v6821
      %v6823 = vlaneseq
      %v6824 = vshrl.u32 %v6823, 7
      %v6825 = vsub.s32 1, %v6824
      %v6826 = vrot.slane %v6794, %v6825
      %v6827 = vlaneseq
      %v6828 = vshrl.u32 %v6827, 7
      %v6829 = vsub.s32 2, %v6828
      %v6830 = vrot.slane %v6794, %v6829
      %v6831 = vlaneseq
      %v6832 = vshrl.u32 %v6831, 7
      %v6833 = vsub.s32 3, %v6832
      %v6834 = vrot.slane %v6794, %v6833
      %v6835 = vlaneseq
      %v6836 = vshrl.u32 %v6835, 7
      %v6837 = vsub.s32 0, %v6836
      %v6838 = vrot.slane %v6808, %v6837
      %v6839 = vlaneseq
      %v6840 = vshrl.u32 %v6839, 7
      %v6841 = vsub.s32 1, %v6840
      %v6842 = vrot.slane %v6808, %v6841
      %v6843 = vlaneseq
      %v6844 = vshrl.u32 %v6843, 7
      %v6845 = vsub.s32 2, %v6844
      %v6846 = vrot.slane %v6808, %v6845
      %v6847 = vlaneseq
      %v6848 = vshrl.u32 %v6847, 7
      %v6849 = vsub.s32 3, %v6848
      %v6850 = vrot.slane %v6808, %v6849
      %v6851 = vlaneseq
      %v6852 = vshrl.u32 %v6851, 7
      %v6853 = vsub.s32 0, %v6852
      %v6854 = vrot.slane %v6816, %v6853
      %v6855 = vlaneseq
      %v6856 = vshrl.u32 %v6855, 7
      %v6857 = vsub.s32 1, %v6856
      %v6858 = vrot.slane %v6816, %v6857
      %v6859 = vlaneseq
      %v6860 = vshrl.u32 %v6859, 7
      %v6861 = vsub.s32 2, %v6860
      %v6862 = vrot.slane %v6816, %v6861
      %v6863 = vlaneseq
      %v6864 = vshrl.u32 %v6863, 7
      %v6865 = vsub.s32 3, %v6864
      %v6866 = vrot.slane %v6816, %v6865
      %v6867 = vlaneseq
      %v6868 = vshrl.u32 %v6867, 7
      %v6869 = vsub.s32 0, %v6868
      %v6870 = vrot.slane %v6818, %v6869
      %v6871 = vlaneseq
      %v6872 = vshrl.u32 %v6871, 7
      %v6873 = vsub.s32 1, %v6872
      %v6874 = vrot.slane %v6818, %v6873
      %v6875 = vlaneseq
      %v6876 = vshrl.u32 %v6875, 7
      %v6877 = vsub.s32 2, %v6876
      %v6878 = vrot.slane %v6818, %v6877
      %v6879 = vlaneseq
      %v6880 = vshrl.u32 %v6879, 7
      %v6881 = vsub.s32 3, %v6880
      %v6882 = vrot.slane %v6818, %v6881
      %v6883 = vlaneseq
      %v6884 = vshrl.u32 %v6883, 7
      %v6885 = vsub.s32 0, %v6884
      %v6886 = vrot.slane %v6801, %v6885
      %v6887 = vlaneseq
      %v6888 = vshrl.u32 %v6887, 7
      %v6889 = vsub.s32 1, %v6888
      %v6890 = vrot.slane %v6801, %v6889
      %v6891 = vlaneseq
      %v6892 = vshrl.u32 %v6891, 7
      %v6893 = vsub.s32 2, %v6892
      %v6894 = vrot.slane %v6801, %v6893
      %v6895 = vlaneseq
      %v6896 = vshrl.u32 %v6895, 7
      %v6897 = vsub.s32 3, %v6896
      %v6898 = vrot.slane %v6801, %v6897
      %v6899 = vlaneseq
      %v6900 = vshrl.u32 %v6899, 7
      %v6901 = vsub.s32 0, %v6900
      %v6902 = vrot.slane %v6815, %v6901
      %v6903 = vlaneseq
      %v6904 = vshrl.u32 %v6903, 7
      %v6905 = vsub.s32 1, %v6904
      %v6906 = vrot.slane %v6815, %v6905
      %v6907 = vlaneseq
      %v6908 = vshrl.u32 %v6907, 7
      %v6909 = vsub.s32 2, %v6908
      %v6910 = vrot.slane %v6815, %v6909
      %v6911 = vlaneseq
      %v6912 = vshrl.u32 %v6911, 7
      %v6913 = vsub.s32 3, %v6912
      %v6914 = vrot.slane %v6815, %v6913
      %v6915 = vlaneseq
      %v6916 = vshrl.u32 %v6915, 7
      %v6917 = vsub.s32 0, %v6916
      %v6918 = vrot.slane %v6817, %v6917
      %v6919 = vlaneseq
      %v6920 = vshrl.u32 %v6919, 7
      %v6921 = vsub.s32 1, %v6920
      %v6922 = vrot.slane %v6817, %v6921
      %v6923 = vlaneseq
      %v6924 = vshrl.u32 %v6923, 7
      %v6925 = vsub.s32 2, %v6924
      %v6926 = vrot.slane %v6817, %v6925
      %v6927 = vlaneseq
      %v6928 = vshrl.u32 %v6927, 7
      %v6929 = vsub.s32 3, %v6928
      %v6930 = vrot.slane %v6817, %v6929
      %v6959 = vmul.f32 %v6822, %v6426
      %v6960 = vmul.f32 %v6826, %v6428
      %v6961 = vmul.f32 %v6830, %v6430
      %v6962 = vmul.f32 %v6834, %v6432
      %v6963 = vmul.f32 %v6838, %v6426
      %v6964 = vmul.f32 %v6842, %v6428
      %v6965 = vmul.f32 %v6846, %v6430
      %v6966 = vmul.f32 %v6850, %v6432
      %v6967 = vmul.f32 %v6854, %v6426
      %v6968 = vmul.f32 %v6858, %v6428
      %v6969 = vmul.f32 %v6862, %v6430
      %v6970 = vmul.f32 %v6866, %v6432
      %v6971 = vmul.f32 %v6870, %v6426
      %v6972 = vmul.f32 %v6874, %v6428
      %v6973 = vmul.f32 %v6878, %v6430
      %v6974 = vmul.f32 %v6882, %v6432
      %v6975 = vmul.f32 %v6886, %v6426
      %v6976 = vmul.f32 %v6890, %v6428
      %v6977 = vmul.f32 %v6894, %v6430
      %v6978 = vmul.f32 %v6898, %v6432
      %v6979 = vmul.f32 %v6902, %v6426
      %v6980 = vmul.f32 %v6906, %v6428
      %v6981 = vmul.f32 %v6910, %v6430
      %v6982 = vmul.f32 %v6914, %v6432
      %v6983 = vmul.f32 %v6918, %v6426
      %v6984 = vmul.f32 %v6922, %v6428
      %v6985 = vmul.f32 %v6926, %v6430
      %v6986 = vmul.f32 %v6930, %v6432
      %s6987 = scalar_lea.vmem %s231, 224
      %6988 = vst [vmem:[%s6987] sm:$0x7f] %v6959
      %6989 = vst [vmem:[%s6987 + $0x8] sm:$0x7f] %v6960
      %6990 = vst [vmem:[%s6987 + $0x10] sm:$0x7f] %v6961
      %6991 = vst [vmem:[%s6987 + $0x18] sm:$0x7f] %v6962
      %6992 = vst [vmem:[%s6987 + $0x20] sm:$0x7f] %v6963
      %6993 = vst [vmem:[%s6987 + $0x28] sm:$0x7f] %v6964
      %6994 = vst [vmem:[%s6987 + $0x30] sm:$0x7f] %v6965
      %6995 = vst [vmem:[%s6987 + $0x38] sm:$0x7f] %v6966
      %6996 = vst [vmem:[%s6987 + $0x40] sm:$0x7f] %v6967
      %6997 = vst [vmem:[%s6987 + $0x48] sm:$0x7f] %v6968
      %6998 = vst [vmem:[%s6987 + $0x50] sm:$0x7f] %v6969
      %6999 = vst [vmem:[%s6987 + $0x58] sm:$0x7f] %v6970
      %7000 = vst [vmem:[%s6987 + $0x60] sm:$0x7f] %v6971
      %7001 = vst [vmem:[%s6987 + $0x68] sm:$0x7f] %v6972
      %7002 = vst [vmem:[%s6987 + $0x70] sm:$0x7f] %v6973
      %7003 = vst [vmem:[%s6987 + $0x78] sm:$0x7f] %v6974
      %7004 = vst [vmem:[%s6987 + $0x80] sm:$0x7f] %v6975
      %7005 = vst [vmem:[%s6987 + $0x88] sm:$0x7f] %v6976
      %7006 = vst [vmem:[%s6987 + $0x90] sm:$0x7f] %v6977
      %7007 = vst [vmem:[%s6987 + $0x98] sm:$0x7f] %v6978
      %7008 = vst [vmem:[%s6987 + $0xa0] sm:$0x7f] %v6979
      %7009 = vst [vmem:[%s6987 + $0xa8] sm:$0x7f] %v6980
      %7010 = vst [vmem:[%s6987 + $0xb0] sm:$0x7f] %v6981
      %7011 = vst [vmem:[%s6987 + $0xb8] sm:$0x7f] %v6982
      %7012 = vst [vmem:[%s6987 + $0xc0] sm:$0x7f] %v6983
      %7013 = vst [vmem:[%s6987 + $0xc8] sm:$0x7f] %v6984
      %7014 = vst [vmem:[%s6987 + $0xd0] sm:$0x7f] %v6985
      %7015 = vst [vmem:[%s6987 + $0xd8] sm:$0x7f] %v6986
      %v7020 = vcombine.low %v5962, %v5964
      %v7021 = vcombine.high %v5962, %v5964
      %v7022 = vcombine.low %v5966, %v5968
      %v7023 = vcombine.high %v5966, %v5968
      %v7025 = vunpack.c.l.s4 1966171168
      %v7026 = vunpack.c.0.s8 %v7025
      %v7027 = vlaneseq
      %v7028 = vshrl.u32 %v7027, 7
      %v7029 = vsub.s32 %v7026, %v7028
      %v7030 = vrot.slane %v7020, %v7029
      %v7032 = vunpack.c.l.s4 1966171168
      %v7033 = vunpack.c.0.s8 %v7032
      %v7034 = vlaneseq
      %v7035 = vshrl.u32 %v7034, 7
      %v7036 = vsub.s32 %v7033, %v7035
      %v7037 = vrot.slane %v7021, %v7036
      %v7039 = vunpack.c.l.s4 1966171168
      %v7040 = vunpack.c.0.s8 %v7039
      %v7041 = vlaneseq
      %v7042 = vshrl.u32 %v7041, 7
      %v7043 = vsub.s32 %v7040, %v7042
      %v7044 = vrot.slane %v7022, %v7043
      %v7046 = vunpack.c.l.s4 1966171168
      %v7047 = vunpack.c.0.s8 %v7046
      %v7048 = vlaneseq
      %v7049 = vshrl.u32 %v7048, 7
      %v7050 = vsub.s32 %v7047, %v7049
      %v7051 = vrot.slane %v7023, %v7050
      %v7052 = vcombine.low %v7030, %v7044
      %v7053 = vcombine.high %v7030, %v7044
      %v7054 = vcombine.low %v7037, %v7051
      %v7055 = vcombine.high %v7037, %v7051
      %v7057 = vunpack.c.l.s4 1966171168
      %v7058 = vunpack.c.0.s8 %v7057
      %v7059 = vlaneseq
      %v7060 = vshrl.u32 %v7059, 7
      %v7061 = vsub.s32 %v7058, %v7060
      %v7062 = vrot.slane %v7052, %v7061
      %v7064 = vunpack.c.l.s4 1966171168
      %v7065 = vunpack.c.0.s8 %v7064
      %v7066 = vlaneseq
      %v7067 = vshrl.u32 %v7066, 7
      %v7068 = vsub.s32 %v7065, %v7067
      %v7069 = vrot.slane %v7054, %v7068
      %v7071 = vunpack.c.l.s4 1966171168
      %v7072 = vunpack.c.0.s8 %v7071
      %v7073 = vlaneseq
      %v7074 = vshrl.u32 %v7073, 7
      %v7075 = vsub.s32 %v7072, %v7074
      %v7076 = vrot.slane %v7053, %v7075
      %v7078 = vunpack.c.l.s4 1966171168
      %v7079 = vunpack.c.0.s8 %v7078
      %v7080 = vlaneseq
      %v7081 = vshrl.u32 %v7080, 7
      %v7082 = vsub.s32 %v7079, %v7081
      %v7083 = vrot.slane %v7055, %v7082
      %v7084 = vcombine.high %v7062, %v7062
      %v7085 = vcombine.high %v7069, %v7069
      %v7086 = vcombine.high %v7076, %v7076
      %v7087 = vlaneseq
      %v7088 = vshrl.u32 %v7087, 7
      %v7089 = vsub.s32 0, %v7088
      %v7090 = vrot.slane %v7062, %v7089
      %v7091 = vlaneseq
      %v7092 = vshrl.u32 %v7091, 7
      %v7093 = vsub.s32 1, %v7092
      %v7094 = vrot.slane %v7062, %v7093
      %v7095 = vlaneseq
      %v7096 = vshrl.u32 %v7095, 7
      %v7097 = vsub.s32 2, %v7096
      %v7098 = vrot.slane %v7062, %v7097
      %v7099 = vlaneseq
      %v7100 = vshrl.u32 %v7099, 7
      %v7101 = vsub.s32 3, %v7100
      %v7102 = vrot.slane %v7062, %v7101
      %v7103 = vlaneseq
      %v7104 = vshrl.u32 %v7103, 7
      %v7105 = vsub.s32 0, %v7104
      %v7106 = vrot.slane %v7076, %v7105
      %v7107 = vlaneseq
      %v7108 = vshrl.u32 %v7107, 7
      %v7109 = vsub.s32 1, %v7108
      %v7110 = vrot.slane %v7076, %v7109
      %v7111 = vlaneseq
      %v7112 = vshrl.u32 %v7111, 7
      %v7113 = vsub.s32 2, %v7112
      %v7114 = vrot.slane %v7076, %v7113
      %v7115 = vlaneseq
      %v7116 = vshrl.u32 %v7115, 7
      %v7117 = vsub.s32 3, %v7116
      %v7118 = vrot.slane %v7076, %v7117
      %v7119 = vlaneseq
      %v7120 = vshrl.u32 %v7119, 7
      %v7121 = vsub.s32 0, %v7120
      %v7122 = vrot.slane %v7084, %v7121
      %v7123 = vlaneseq
      %v7124 = vshrl.u32 %v7123, 7
      %v7125 = vsub.s32 1, %v7124
      %v7126 = vrot.slane %v7084, %v7125
      %v7127 = vlaneseq
      %v7128 = vshrl.u32 %v7127, 7
      %v7129 = vsub.s32 2, %v7128
      %v7130 = vrot.slane %v7084, %v7129
      %v7131 = vlaneseq
      %v7132 = vshrl.u32 %v7131, 7
      %v7133 = vsub.s32 3, %v7132
      %v7134 = vrot.slane %v7084, %v7133
      %v7135 = vlaneseq
      %v7136 = vshrl.u32 %v7135, 7
      %v7137 = vsub.s32 0, %v7136
      %v7138 = vrot.slane %v7086, %v7137
      %v7139 = vlaneseq
      %v7140 = vshrl.u32 %v7139, 7
      %v7141 = vsub.s32 1, %v7140
      %v7142 = vrot.slane %v7086, %v7141
      %v7143 = vlaneseq
      %v7144 = vshrl.u32 %v7143, 7
      %v7145 = vsub.s32 2, %v7144
      %v7146 = vrot.slane %v7086, %v7145
      %v7147 = vlaneseq
      %v7148 = vshrl.u32 %v7147, 7
      %v7149 = vsub.s32 3, %v7148
      %v7150 = vrot.slane %v7086, %v7149
      %v7151 = vlaneseq
      %v7152 = vshrl.u32 %v7151, 7
      %v7153 = vsub.s32 0, %v7152
      %v7154 = vrot.slane %v7069, %v7153
      %v7155 = vlaneseq
      %v7156 = vshrl.u32 %v7155, 7
      %v7157 = vsub.s32 1, %v7156
      %v7158 = vrot.slane %v7069, %v7157
      %v7159 = vlaneseq
      %v7160 = vshrl.u32 %v7159, 7
      %v7161 = vsub.s32 2, %v7160
      %v7162 = vrot.slane %v7069, %v7161
      %v7163 = vlaneseq
      %v7164 = vshrl.u32 %v7163, 7
      %v7165 = vsub.s32 3, %v7164
      %v7166 = vrot.slane %v7069, %v7165
      %v7167 = vlaneseq
      %v7168 = vshrl.u32 %v7167, 7
      %v7169 = vsub.s32 0, %v7168
      %v7170 = vrot.slane %v7083, %v7169
      %v7171 = vlaneseq
      %v7172 = vshrl.u32 %v7171, 7
      %v7173 = vsub.s32 1, %v7172
      %v7174 = vrot.slane %v7083, %v7173
      %v7175 = vlaneseq
      %v7176 = vshrl.u32 %v7175, 7
      %v7177 = vsub.s32 2, %v7176
      %v7178 = vrot.slane %v7083, %v7177
      %v7179 = vlaneseq
      %v7180 = vshrl.u32 %v7179, 7
      %v7181 = vsub.s32 3, %v7180
      %v7182 = vrot.slane %v7083, %v7181
      %v7183 = vlaneseq
      %v7184 = vshrl.u32 %v7183, 7
      %v7185 = vsub.s32 0, %v7184
      %v7186 = vrot.slane %v7085, %v7185
      %v7187 = vlaneseq
      %v7188 = vshrl.u32 %v7187, 7
      %v7189 = vsub.s32 1, %v7188
      %v7190 = vrot.slane %v7085, %v7189
      %v7191 = vlaneseq
      %v7192 = vshrl.u32 %v7191, 7
      %v7193 = vsub.s32 2, %v7192
      %v7194 = vrot.slane %v7085, %v7193
      %v7195 = vlaneseq
      %v7196 = vshrl.u32 %v7195, 7
      %v7197 = vsub.s32 3, %v7196
      %v7198 = vrot.slane %v7085, %v7197
      %v7227 = vmul.f32 %v7090, %v6434
      %v7228 = vmul.f32 %v7094, %v6436
      %v7229 = vmul.f32 %v7098, %v6438
      %v7230 = vmul.f32 %v7102, %v6440
      %v7231 = vmul.f32 %v7106, %v6434
      %v7232 = vmul.f32 %v7110, %v6436
      %v7233 = vmul.f32 %v7114, %v6438
      %v7234 = vmul.f32 %v7118, %v6440
      %v7235 = vmul.f32 %v7122, %v6434
      %v7236 = vmul.f32 %v7126, %v6436
      %v7237 = vmul.f32 %v7130, %v6438
      %v7238 = vmul.f32 %v7134, %v6440
      %v7239 = vmul.f32 %v7138, %v6434
      %v7240 = vmul.f32 %v7142, %v6436
      %v7241 = vmul.f32 %v7146, %v6438
      %v7242 = vmul.f32 %v7150, %v6440
      %v7243 = vmul.f32 %v7154, %v6434
      %v7244 = vmul.f32 %v7158, %v6436
      %v7245 = vmul.f32 %v7162, %v6438
      %v7246 = vmul.f32 %v7166, %v6440
      %v7247 = vmul.f32 %v7170, %v6434
      %v7248 = vmul.f32 %v7174, %v6436
      %v7249 = vmul.f32 %v7178, %v6438
      %v7250 = vmul.f32 %v7182, %v6440
      %v7251 = vmul.f32 %v7186, %v6434
      %v7252 = vmul.f32 %v7190, %v6436
      %v7253 = vmul.f32 %v7194, %v6438
      %v7254 = vmul.f32 %v7198, %v6440
      %s7255 = scalar_lea.vmem %s231, 448
      %7256 = vst [vmem:[%s7255] sm:$0x7f] %v7227
      %7257 = vst [vmem:[%s7255 + $0x8] sm:$0x7f] %v7228
      %7258 = vst [vmem:[%s7255 + $0x10] sm:$0x7f] %v7229
      %7259 = vst [vmem:[%s7255 + $0x18] sm:$0x7f] %v7230
      %7260 = vst [vmem:[%s7255 + $0x20] sm:$0x7f] %v7231
      %7261 = vst [vmem:[%s7255 + $0x28] sm:$0x7f] %v7232
      %7262 = vst [vmem:[%s7255 + $0x30] sm:$0x7f] %v7233
      %7263 = vst [vmem:[%s7255 + $0x38] sm:$0x7f] %v7234
      %7264 = vst [vmem:[%s7255 + $0x40] sm:$0x7f] %v7235
      %7265 = vst [vmem:[%s7255 + $0x48] sm:$0x7f] %v7236
      %7266 = vst [vmem:[%s7255 + $0x50] sm:$0x7f] %v7237
      %7267 = vst [vmem:[%s7255 + $0x58] sm:$0x7f] %v7238
      %7268 = vst [vmem:[%s7255 + $0x60] sm:$0x7f] %v7239
      %7269 = vst [vmem:[%s7255 + $0x68] sm:$0x7f] %v7240
      %7270 = vst [vmem:[%s7255 + $0x70] sm:$0x7f] %v7241
      %7271 = vst [vmem:[%s7255 + $0x78] sm:$0x7f] %v7242
      %7272 = vst [vmem:[%s7255 + $0x80] sm:$0x7f] %v7243
      %7273 = vst [vmem:[%s7255 + $0x88] sm:$0x7f] %v7244
      %7274 = vst [vmem:[%s7255 + $0x90] sm:$0x7f] %v7245
      %7275 = vst [vmem:[%s7255 + $0x98] sm:$0x7f] %v7246
      %7276 = vst [vmem:[%s7255 + $0xa0] sm:$0x7f] %v7247
      %7277 = vst [vmem:[%s7255 + $0xa8] sm:$0x7f] %v7248
      %7278 = vst [vmem:[%s7255 + $0xb0] sm:$0x7f] %v7249
      %7279 = vst [vmem:[%s7255 + $0xb8] sm:$0x7f] %v7250
      %7280 = vst [vmem:[%s7255 + $0xc0] sm:$0x7f] %v7251
      %7281 = vst [vmem:[%s7255 + $0xc8] sm:$0x7f] %v7252
      %7282 = vst [vmem:[%s7255 + $0xd0] sm:$0x7f] %v7253
      %7283 = vst [vmem:[%s7255 + $0xd8] sm:$0x7f] %v7254
      %v7288 = vcombine.low %v5970, %v5972
      %v7289 = vcombine.high %v5970, %v5972
      %v7290 = vcombine.low %v5974, %v5976
      %v7291 = vcombine.high %v5974, %v5976
      %v7293 = vunpack.c.l.s4 1966171168
      %v7294 = vunpack.c.0.s8 %v7293
      %v7295 = vlaneseq
      %v7296 = vshrl.u32 %v7295, 7
      %v7297 = vsub.s32 %v7294, %v7296
      %v7298 = vrot.slane %v7288, %v7297
      %v7300 = vunpack.c.l.s4 1966171168
      %v7301 = vunpack.c.0.s8 %v7300
      %v7302 = vlaneseq
      %v7303 = vshrl.u32 %v7302, 7
      %v7304 = vsub.s32 %v7301, %v7303
      %v7305 = vrot.slane %v7289, %v7304
      %v7307 = vunpack.c.l.s4 1966171168
      %v7308 = vunpack.c.0.s8 %v7307
      %v7309 = vlaneseq
      %v7310 = vshrl.u32 %v7309, 7
      %v7311 = vsub.s32 %v7308, %v7310
      %v7312 = vrot.slane %v7290, %v7311
      %v7314 = vunpack.c.l.s4 1966171168
      %v7315 = vunpack.c.0.s8 %v7314
      %v7316 = vlaneseq
      %v7317 = vshrl.u32 %v7316, 7
      %v7318 = vsub.s32 %v7315, %v7317
      %v7319 = vrot.slane %v7291, %v7318
      %v7320 = vcombine.low %v7298, %v7312
      %v7321 = vcombine.high %v7298, %v7312
      %v7322 = vcombine.low %v7305, %v7319
      %v7323 = vcombine.high %v7305, %v7319
      %v7325 = vunpack.c.l.s4 1966171168
      %v7326 = vunpack.c.0.s8 %v7325
      %v7327 = vlaneseq
      %v7328 = vshrl.u32 %v7327, 7
      %v7329 = vsub.s32 %v7326, %v7328
      %v7330 = vrot.slane %v7320, %v7329
      %v7332 = vunpack.c.l.s4 1966171168
      %v7333 = vunpack.c.0.s8 %v7332
      %v7334 = vlaneseq
      %v7335 = vshrl.u32 %v7334, 7
      %v7336 = vsub.s32 %v7333, %v7335
      %v7337 = vrot.slane %v7322, %v7336
      %v7339 = vunpack.c.l.s4 1966171168
      %v7340 = vunpack.c.0.s8 %v7339
      %v7341 = vlaneseq
      %v7342 = vshrl.u32 %v7341, 7
      %v7343 = vsub.s32 %v7340, %v7342
      %v7344 = vrot.slane %v7321, %v7343
      %v7346 = vunpack.c.l.s4 1966171168
      %v7347 = vunpack.c.0.s8 %v7346
      %v7348 = vlaneseq
      %v7349 = vshrl.u32 %v7348, 7
      %v7350 = vsub.s32 %v7347, %v7349
      %v7351 = vrot.slane %v7323, %v7350
      %v7352 = vcombine.high %v7330, %v7330
      %v7353 = vcombine.high %v7337, %v7337
      %v7354 = vcombine.high %v7344, %v7344
      %v7355 = vlaneseq
      %v7356 = vshrl.u32 %v7355, 7
      %v7357 = vsub.s32 0, %v7356
      %v7358 = vrot.slane %v7330, %v7357
      %v7359 = vlaneseq
      %v7360 = vshrl.u32 %v7359, 7
      %v7361 = vsub.s32 1, %v7360
      %v7362 = vrot.slane %v7330, %v7361
      %v7363 = vlaneseq
      %v7364 = vshrl.u32 %v7363, 7
      %v7365 = vsub.s32 2, %v7364
      %v7366 = vrot.slane %v7330, %v7365
      %v7367 = vlaneseq
      %v7368 = vshrl.u32 %v7367, 7
      %v7369 = vsub.s32 3, %v7368
      %v7370 = vrot.slane %v7330, %v7369
      %v7371 = vlaneseq
      %v7372 = vshrl.u32 %v7371, 7
      %v7373 = vsub.s32 0, %v7372
      %v7374 = vrot.slane %v7344, %v7373
      %v7375 = vlaneseq
      %v7376 = vshrl.u32 %v7375, 7
      %v7377 = vsub.s32 1, %v7376
      %v7378 = vrot.slane %v7344, %v7377
      %v7379 = vlaneseq
      %v7380 = vshrl.u32 %v7379, 7
      %v7381 = vsub.s32 2, %v7380
      %v7382 = vrot.slane %v7344, %v7381
      %v7383 = vlaneseq
      %v7384 = vshrl.u32 %v7383, 7
      %v7385 = vsub.s32 3, %v7384
      %v7386 = vrot.slane %v7344, %v7385
      %v7387 = vlaneseq
      %v7388 = vshrl.u32 %v7387, 7
      %v7389 = vsub.s32 0, %v7388
      %v7390 = vrot.slane %v7352, %v7389
      %v7391 = vlaneseq
      %v7392 = vshrl.u32 %v7391, 7
      %v7393 = vsub.s32 1, %v7392
      %v7394 = vrot.slane %v7352, %v7393
      %v7395 = vlaneseq
      %v7396 = vshrl.u32 %v7395, 7
      %v7397 = vsub.s32 2, %v7396
      %v7398 = vrot.slane %v7352, %v7397
      %v7399 = vlaneseq
      %v7400 = vshrl.u32 %v7399, 7
      %v7401 = vsub.s32 3, %v7400
      %v7402 = vrot.slane %v7352, %v7401
      %v7403 = vlaneseq
      %v7404 = vshrl.u32 %v7403, 7
      %v7405 = vsub.s32 0, %v7404
      %v7406 = vrot.slane %v7354, %v7405
      %v7407 = vlaneseq
      %v7408 = vshrl.u32 %v7407, 7
      %v7409 = vsub.s32 1, %v7408
      %v7410 = vrot.slane %v7354, %v7409
      %v7411 = vlaneseq
      %v7412 = vshrl.u32 %v7411, 7
      %v7413 = vsub.s32 2, %v7412
      %v7414 = vrot.slane %v7354, %v7413
      %v7415 = vlaneseq
      %v7416 = vshrl.u32 %v7415, 7
      %v7417 = vsub.s32 3, %v7416
      %v7418 = vrot.slane %v7354, %v7417
      %v7419 = vlaneseq
      %v7420 = vshrl.u32 %v7419, 7
      %v7421 = vsub.s32 0, %v7420
      %v7422 = vrot.slane %v7337, %v7421
      %v7423 = vlaneseq
      %v7424 = vshrl.u32 %v7423, 7
      %v7425 = vsub.s32 1, %v7424
      %v7426 = vrot.slane %v7337, %v7425
      %v7427 = vlaneseq
      %v7428 = vshrl.u32 %v7427, 7
      %v7429 = vsub.s32 2, %v7428
      %v7430 = vrot.slane %v7337, %v7429
      %v7431 = vlaneseq
      %v7432 = vshrl.u32 %v7431, 7
      %v7433 = vsub.s32 3, %v7432
      %v7434 = vrot.slane %v7337, %v7433
      %v7435 = vlaneseq
      %v7436 = vshrl.u32 %v7435, 7
      %v7437 = vsub.s32 0, %v7436
      %v7438 = vrot.slane %v7351, %v7437
      %v7439 = vlaneseq
      %v7440 = vshrl.u32 %v7439, 7
      %v7441 = vsub.s32 1, %v7440
      %v7442 = vrot.slane %v7351, %v7441
      %v7443 = vlaneseq
      %v7444 = vshrl.u32 %v7443, 7
      %v7445 = vsub.s32 2, %v7444
      %v7446 = vrot.slane %v7351, %v7445
      %v7447 = vlaneseq
      %v7448 = vshrl.u32 %v7447, 7
      %v7449 = vsub.s32 3, %v7448
      %v7450 = vrot.slane %v7351, %v7449
      %v7451 = vlaneseq
      %v7452 = vshrl.u32 %v7451, 7
      %v7453 = vsub.s32 0, %v7452
      %v7454 = vrot.slane %v7353, %v7453
      %v7455 = vlaneseq
      %v7456 = vshrl.u32 %v7455, 7
      %v7457 = vsub.s32 1, %v7456
      %v7458 = vrot.slane %v7353, %v7457
      %v7459 = vlaneseq
      %v7460 = vshrl.u32 %v7459, 7
      %v7461 = vsub.s32 2, %v7460
      %v7462 = vrot.slane %v7353, %v7461
      %v7463 = vlaneseq
      %v7464 = vshrl.u32 %v7463, 7
      %v7465 = vsub.s32 3, %v7464
      %v7466 = vrot.slane %v7353, %v7465
      %v7495 = vmul.f32 %v7358, %v6442
      %v7496 = vmul.f32 %v7362, %v6444
      %v7497 = vmul.f32 %v7366, %v6446
      %v7498 = vmul.f32 %v7370, %v6448
      %v7499 = vmul.f32 %v7374, %v6442
      %v7500 = vmul.f32 %v7378, %v6444
      %v7501 = vmul.f32 %v7382, %v6446
      %v7502 = vmul.f32 %v7386, %v6448
      %v7503 = vmul.f32 %v7390, %v6442
      %v7504 = vmul.f32 %v7394, %v6444
      %v7505 = vmul.f32 %v7398, %v6446
      %v7506 = vmul.f32 %v7402, %v6448
      %v7507 = vmul.f32 %v7406, %v6442
      %v7508 = vmul.f32 %v7410, %v6444
      %v7509 = vmul.f32 %v7414, %v6446
      %v7510 = vmul.f32 %v7418, %v6448
      %v7511 = vmul.f32 %v7422, %v6442
      %v7512 = vmul.f32 %v7426, %v6444
      %v7513 = vmul.f32 %v7430, %v6446
      %v7514 = vmul.f32 %v7434, %v6448
      %v7515 = vmul.f32 %v7438, %v6442
      %v7516 = vmul.f32 %v7442, %v6444
      %v7517 = vmul.f32 %v7446, %v6446
      %v7518 = vmul.f32 %v7450, %v6448
      %v7519 = vmul.f32 %v7454, %v6442
      %v7520 = vmul.f32 %v7458, %v6444
      %v7521 = vmul.f32 %v7462, %v6446
      %v7522 = vmul.f32 %v7466, %v6448
      %s7523 = scalar_lea.vmem %s231, 672
      %7524 = vst [vmem:[%s7523] sm:$0x7f] %v7495
      %7525 = vst [vmem:[%s7523 + $0x8] sm:$0x7f] %v7496
      %7526 = vst [vmem:[%s7523 + $0x10] sm:$0x7f] %v7497
      %7527 = vst [vmem:[%s7523 + $0x18] sm:$0x7f] %v7498
      %7528 = vst [vmem:[%s7523 + $0x20] sm:$0x7f] %v7499
      %7529 = vst [vmem:[%s7523 + $0x28] sm:$0x7f] %v7500
      %7530 = vst [vmem:[%s7523 + $0x30] sm:$0x7f] %v7501
      %7531 = vst [vmem:[%s7523 + $0x38] sm:$0x7f] %v7502
      %7532 = vst [vmem:[%s7523 + $0x40] sm:$0x7f] %v7503
      %7533 = vst [vmem:[%s7523 + $0x48] sm:$0x7f] %v7504
      %7534 = vst [vmem:[%s7523 + $0x50] sm:$0x7f] %v7505
      %7535 = vst [vmem:[%s7523 + $0x58] sm:$0x7f] %v7506
      %7536 = vst [vmem:[%s7523 + $0x60] sm:$0x7f] %v7507
      %7537 = vst [vmem:[%s7523 + $0x68] sm:$0x7f] %v7508
      %7538 = vst [vmem:[%s7523 + $0x70] sm:$0x7f] %v7509
      %7539 = vst [vmem:[%s7523 + $0x78] sm:$0x7f] %v7510
      %7540 = vst [vmem:[%s7523 + $0x80] sm:$0x7f] %v7511
      %7541 = vst [vmem:[%s7523 + $0x88] sm:$0x7f] %v7512
      %7542 = vst [vmem:[%s7523 + $0x90] sm:$0x7f] %v7513
      %7543 = vst [vmem:[%s7523 + $0x98] sm:$0x7f] %v7514
      %7544 = vst [vmem:[%s7523 + $0xa0] sm:$0x7f] %v7515
      %7545 = vst [vmem:[%s7523 + $0xa8] sm:$0x7f] %v7516
      %7546 = vst [vmem:[%s7523 + $0xb0] sm:$0x7f] %v7517
      %7547 = vst [vmem:[%s7523 + $0xb8] sm:$0x7f] %v7518
      %7548 = vst [vmem:[%s7523 + $0xc0] sm:$0x7f] %v7519
      %7549 = vst [vmem:[%s7523 + $0xc8] sm:$0x7f] %v7520
      %7550 = vst [vmem:[%s7523 + $0xd0] sm:$0x7f] %v7521
      %7551 = vst [vmem:[%s7523 + $0xd8] sm:$0x7f] %v7522
      %v7556 = vcombine.low %v5978, %v5980
      %v7557 = vcombine.high %v5978, %v5980
      %v7558 = vcombine.low %v5982, %v5984
      %v7559 = vcombine.high %v5982, %v5984
      %v7561 = vunpack.c.l.s4 1966171168
      %v7562 = vunpack.c.0.s8 %v7561
      %v7563 = vlaneseq
      %v7564 = vshrl.u32 %v7563, 7
      %v7565 = vsub.s32 %v7562, %v7564
      %v7566 = vrot.slane %v7556, %v7565
      %v7568 = vunpack.c.l.s4 1966171168
      %v7569 = vunpack.c.0.s8 %v7568
      %v7570 = vlaneseq
      %v7571 = vshrl.u32 %v7570, 7
      %v7572 = vsub.s32 %v7569, %v7571
      %v7573 = vrot.slane %v7557, %v7572
      %v7575 = vunpack.c.l.s4 1966171168
      %v7576 = vunpack.c.0.s8 %v7575
      %v7577 = vlaneseq
      %v7578 = vshrl.u32 %v7577, 7
      %v7579 = vsub.s32 %v7576, %v7578
      %v7580 = vrot.slane %v7558, %v7579
      %v7582 = vunpack.c.l.s4 1966171168
      %v7583 = vunpack.c.0.s8 %v7582
      %v7584 = vlaneseq
      %v7585 = vshrl.u32 %v7584, 7
      %v7586 = vsub.s32 %v7583, %v7585
      %v7587 = vrot.slane %v7559, %v7586
      %v7588 = vcombine.low %v7566, %v7580
      %v7589 = vcombine.high %v7566, %v7580
      %v7590 = vcombine.low %v7573, %v7587
      %v7591 = vcombine.high %v7573, %v7587
      %v7593 = vunpack.c.l.s4 1966171168
      %v7594 = vunpack.c.0.s8 %v7593
      %v7595 = vlaneseq
      %v7596 = vshrl.u32 %v7595, 7
      %v7597 = vsub.s32 %v7594, %v7596
      %v7598 = vrot.slane %v7588, %v7597
      %v7600 = vunpack.c.l.s4 1966171168
      %v7601 = vunpack.c.0.s8 %v7600
      %v7602 = vlaneseq
      %v7603 = vshrl.u32 %v7602, 7
      %v7604 = vsub.s32 %v7601, %v7603
      %v7605 = vrot.slane %v7590, %v7604
      %v7607 = vunpack.c.l.s4 1966171168
      %v7608 = vunpack.c.0.s8 %v7607
      %v7609 = vlaneseq
      %v7610 = vshrl.u32 %v7609, 7
      %v7611 = vsub.s32 %v7608, %v7610
      %v7612 = vrot.slane %v7589, %v7611
      %v7614 = vunpack.c.l.s4 1966171168
      %v7615 = vunpack.c.0.s8 %v7614
      %v7616 = vlaneseq
      %v7617 = vshrl.u32 %v7616, 7
      %v7618 = vsub.s32 %v7615, %v7617
      %v7619 = vrot.slane %v7591, %v7618
      %v7620 = vcombine.high %v7598, %v7598
      %v7621 = vcombine.high %v7605, %v7605
      %v7622 = vcombine.high %v7612, %v7612
      %v7623 = vlaneseq
      %v7624 = vshrl.u32 %v7623, 7
      %v7625 = vsub.s32 0, %v7624
      %v7626 = vrot.slane %v7598, %v7625
      %v7627 = vlaneseq
      %v7628 = vshrl.u32 %v7627, 7
      %v7629 = vsub.s32 1, %v7628
      %v7630 = vrot.slane %v7598, %v7629
      %v7631 = vlaneseq
      %v7632 = vshrl.u32 %v7631, 7
      %v7633 = vsub.s32 2, %v7632
      %v7634 = vrot.slane %v7598, %v7633
      %v7635 = vlaneseq
      %v7636 = vshrl.u32 %v7635, 7
      %v7637 = vsub.s32 3, %v7636
      %v7638 = vrot.slane %v7598, %v7637
      %v7639 = vlaneseq
      %v7640 = vshrl.u32 %v7639, 7
      %v7641 = vsub.s32 0, %v7640
      %v7642 = vrot.slane %v7612, %v7641
      %v7643 = vlaneseq
      %v7644 = vshrl.u32 %v7643, 7
      %v7645 = vsub.s32 1, %v7644
      %v7646 = vrot.slane %v7612, %v7645
      %v7647 = vlaneseq
      %v7648 = vshrl.u32 %v7647, 7
      %v7649 = vsub.s32 2, %v7648
      %v7650 = vrot.slane %v7612, %v7649
      %v7651 = vlaneseq
      %v7652 = vshrl.u32 %v7651, 7
      %v7653 = vsub.s32 3, %v7652
      %v7654 = vrot.slane %v7612, %v7653
      %v7655 = vlaneseq
      %v7656 = vshrl.u32 %v7655, 7
      %v7657 = vsub.s32 0, %v7656
      %v7658 = vrot.slane %v7620, %v7657
      %v7659 = vlaneseq
      %v7660 = vshrl.u32 %v7659, 7
      %v7661 = vsub.s32 1, %v7660
      %v7662 = vrot.slane %v7620, %v7661
      %v7663 = vlaneseq
      %v7664 = vshrl.u32 %v7663, 7
      %v7665 = vsub.s32 2, %v7664
      %v7666 = vrot.slane %v7620, %v7665
      %v7667 = vlaneseq
      %v7668 = vshrl.u32 %v7667, 7
      %v7669 = vsub.s32 3, %v7668
      %v7670 = vrot.slane %v7620, %v7669
      %v7671 = vlaneseq
      %v7672 = vshrl.u32 %v7671, 7
      %v7673 = vsub.s32 0, %v7672
      %v7674 = vrot.slane %v7622, %v7673
      %v7675 = vlaneseq
      %v7676 = vshrl.u32 %v7675, 7
      %v7677 = vsub.s32 1, %v7676
      %v7678 = vrot.slane %v7622, %v7677
      %v7679 = vlaneseq
      %v7680 = vshrl.u32 %v7679, 7
      %v7681 = vsub.s32 2, %v7680
      %v7682 = vrot.slane %v7622, %v7681
      %v7683 = vlaneseq
      %v7684 = vshrl.u32 %v7683, 7
      %v7685 = vsub.s32 3, %v7684
      %v7686 = vrot.slane %v7622, %v7685
      %v7687 = vlaneseq
      %v7688 = vshrl.u32 %v7687, 7
      %v7689 = vsub.s32 0, %v7688
      %v7690 = vrot.slane %v7605, %v7689
      %v7691 = vlaneseq
      %v7692 = vshrl.u32 %v7691, 7
      %v7693 = vsub.s32 1, %v7692
      %v7694 = vrot.slane %v7605, %v7693
      %v7695 = vlaneseq
      %v7696 = vshrl.u32 %v7695, 7
      %v7697 = vsub.s32 2, %v7696
      %v7698 = vrot.slane %v7605, %v7697
      %v7699 = vlaneseq
      %v7700 = vshrl.u32 %v7699, 7
      %v7701 = vsub.s32 3, %v7700
      %v7702 = vrot.slane %v7605, %v7701
      %v7703 = vlaneseq
      %v7704 = vshrl.u32 %v7703, 7
      %v7705 = vsub.s32 0, %v7704
      %v7706 = vrot.slane %v7619, %v7705
      %v7707 = vlaneseq
      %v7708 = vshrl.u32 %v7707, 7
      %v7709 = vsub.s32 1, %v7708
      %v7710 = vrot.slane %v7619, %v7709
      %v7711 = vlaneseq
      %v7712 = vshrl.u32 %v7711, 7
      %v7713 = vsub.s32 2, %v7712
      %v7714 = vrot.slane %v7619, %v7713
      %v7715 = vlaneseq
      %v7716 = vshrl.u32 %v7715, 7
      %v7717 = vsub.s32 3, %v7716
      %v7718 = vrot.slane %v7619, %v7717
      %v7719 = vlaneseq
      %v7720 = vshrl.u32 %v7719, 7
      %v7721 = vsub.s32 0, %v7720
      %v7722 = vrot.slane %v7621, %v7721
      %v7723 = vlaneseq
      %v7724 = vshrl.u32 %v7723, 7
      %v7725 = vsub.s32 1, %v7724
      %v7726 = vrot.slane %v7621, %v7725
      %v7727 = vlaneseq
      %v7728 = vshrl.u32 %v7727, 7
      %v7729 = vsub.s32 2, %v7728
      %v7730 = vrot.slane %v7621, %v7729
      %v7731 = vlaneseq
      %v7732 = vshrl.u32 %v7731, 7
      %v7733 = vsub.s32 3, %v7732
      %v7734 = vrot.slane %v7621, %v7733
      %v7763 = vmul.f32 %v7626, %v6450
      %v7764 = vmul.f32 %v7630, %v6452
      %v7765 = vmul.f32 %v7634, %v6454
      %v7766 = vmul.f32 %v7638, %v6456
      %v7767 = vmul.f32 %v7642, %v6450
      %v7768 = vmul.f32 %v7646, %v6452
      %v7769 = vmul.f32 %v7650, %v6454
      %v7770 = vmul.f32 %v7654, %v6456
      %v7771 = vmul.f32 %v7658, %v6450
      %v7772 = vmul.f32 %v7662, %v6452
      %v7773 = vmul.f32 %v7666, %v6454
      %v7774 = vmul.f32 %v7670, %v6456
      %v7775 = vmul.f32 %v7674, %v6450
      %v7776 = vmul.f32 %v7678, %v6452
      %v7777 = vmul.f32 %v7682, %v6454
      %v7778 = vmul.f32 %v7686, %v6456
      %v7779 = vmul.f32 %v7690, %v6450
      %v7780 = vmul.f32 %v7694, %v6452
      %v7781 = vmul.f32 %v7698, %v6454
      %v7782 = vmul.f32 %v7702, %v6456
      %v7783 = vmul.f32 %v7706, %v6450
      %v7784 = vmul.f32 %v7710, %v6452
      %v7785 = vmul.f32 %v7714, %v6454
      %v7786 = vmul.f32 %v7718, %v6456
      %v7787 = vmul.f32 %v7722, %v6450
      %v7788 = vmul.f32 %v7726, %v6452
      %v7789 = vmul.f32 %v7730, %v6454
      %v7790 = vmul.f32 %v7734, %v6456
      %s7791 = scalar_lea.vmem %s231, 896
      %7792 = vst [vmem:[%s7791] sm:$0x7f] %v7763
      %7793 = vst [vmem:[%s7791 + $0x8] sm:$0x7f] %v7764
      %7794 = vst [vmem:[%s7791 + $0x10] sm:$0x7f] %v7765
      %7795 = vst [vmem:[%s7791 + $0x18] sm:$0x7f] %v7766
      %7796 = vst [vmem:[%s7791 + $0x20] sm:$0x7f] %v7767
      %7797 = vst [vmem:[%s7791 + $0x28] sm:$0x7f] %v7768
      %7798 = vst [vmem:[%s7791 + $0x30] sm:$0x7f] %v7769
      %7799 = vst [vmem:[%s7791 + $0x38] sm:$0x7f] %v7770
      %7800 = vst [vmem:[%s7791 + $0x40] sm:$0x7f] %v7771
      %7801 = vst [vmem:[%s7791 + $0x48] sm:$0x7f] %v7772
      %7802 = vst [vmem:[%s7791 + $0x50] sm:$0x7f] %v7773
      %7803 = vst [vmem:[%s7791 + $0x58] sm:$0x7f] %v7774
      %7804 = vst [vmem:[%s7791 + $0x60] sm:$0x7f] %v7775
      %7805 = vst [vmem:[%s7791 + $0x68] sm:$0x7f] %v7776
      %7806 = vst [vmem:[%s7791 + $0x70] sm:$0x7f] %v7777
      %7807 = vst [vmem:[%s7791 + $0x78] sm:$0x7f] %v7778
      %7808 = vst [vmem:[%s7791 + $0x80] sm:$0x7f] %v7779
      %7809 = vst [vmem:[%s7791 + $0x88] sm:$0x7f] %v7780
      %7810 = vst [vmem:[%s7791 + $0x90] sm:$0x7f] %v7781
      %7811 = vst [vmem:[%s7791 + $0x98] sm:$0x7f] %v7782
      %7812 = vst [vmem:[%s7791 + $0xa0] sm:$0x7f] %v7783
      %7813 = vst [vmem:[%s7791 + $0xa8] sm:$0x7f] %v7784
      %7814 = vst [vmem:[%s7791 + $0xb0] sm:$0x7f] %v7785
      %7815 = vst [vmem:[%s7791 + $0xb8] sm:$0x7f] %v7786
      %7816 = vst [vmem:[%s7791 + $0xc0] sm:$0x7f] %v7787
      %7817 = vst [vmem:[%s7791 + $0xc8] sm:$0x7f] %v7788
      %7818 = vst [vmem:[%s7791 + $0xd0] sm:$0x7f] %v7789
      %7819 = vst [vmem:[%s7791 + $0xd8] sm:$0x7f] %v7790
      %v7824 = vcombine.low %v5986, %v5988
      %v7825 = vcombine.high %v5986, %v5988
      %v7826 = vcombine.low %v5990, %v5992
      %v7827 = vcombine.high %v5990, %v5992
      %v7829 = vunpack.c.l.s4 1966171168
      %v7830 = vunpack.c.0.s8 %v7829
      %v7831 = vlaneseq
      %v7832 = vshrl.u32 %v7831, 7
      %v7833 = vsub.s32 %v7830, %v7832
      %v7834 = vrot.slane %v7824, %v7833
      %v7836 = vunpack.c.l.s4 1966171168
      %v7837 = vunpack.c.0.s8 %v7836
      %v7838 = vlaneseq
      %v7839 = vshrl.u32 %v7838, 7
      %v7840 = vsub.s32 %v7837, %v7839
      %v7841 = vrot.slane %v7825, %v7840
      %v7843 = vunpack.c.l.s4 1966171168
      %v7844 = vunpack.c.0.s8 %v7843
      %v7845 = vlaneseq
      %v7846 = vshrl.u32 %v7845, 7
      %v7847 = vsub.s32 %v7844, %v7846
      %v7848 = vrot.slane %v7826, %v7847
      %v7850 = vunpack.c.l.s4 1966171168
      %v7851 = vunpack.c.0.s8 %v7850
      %v7852 = vlaneseq
      %v7853 = vshrl.u32 %v7852, 7
      %v7854 = vsub.s32 %v7851, %v7853
      %v7855 = vrot.slane %v7827, %v7854
      %v7856 = vcombine.low %v7834, %v7848
      %v7857 = vcombine.high %v7834, %v7848
      %v7858 = vcombine.low %v7841, %v7855
      %v7859 = vcombine.high %v7841, %v7855
      %v7861 = vunpack.c.l.s4 1966171168
      %v7862 = vunpack.c.0.s8 %v7861
      %v7863 = vlaneseq
      %v7864 = vshrl.u32 %v7863, 7
      %v7865 = vsub.s32 %v7862, %v7864
      %v7866 = vrot.slane %v7856, %v7865
      %v7868 = vunpack.c.l.s4 1966171168
      %v7869 = vunpack.c.0.s8 %v7868
      %v7870 = vlaneseq
      %v7871 = vshrl.u32 %v7870, 7
      %v7872 = vsub.s32 %v7869, %v7871
      %v7873 = vrot.slane %v7858, %v7872
      %v7875 = vunpack.c.l.s4 1966171168
      %v7876 = vunpack.c.0.s8 %v7875
      %v7877 = vlaneseq
      %v7878 = vshrl.u32 %v7877, 7
      %v7879 = vsub.s32 %v7876, %v7878
      %v7880 = vrot.slane %v7857, %v7879
      %v7882 = vunpack.c.l.s4 1966171168
      %v7883 = vunpack.c.0.s8 %v7882
      %v7884 = vlaneseq
      %v7885 = vshrl.u32 %v7884, 7
      %v7886 = vsub.s32 %v7883, %v7885
      %v7887 = vrot.slane %v7859, %v7886
      %v7888 = vcombine.high %v7866, %v7866
      %v7889 = vcombine.high %v7873, %v7873
      %v7890 = vcombine.high %v7880, %v7880
      %v7891 = vlaneseq
      %v7892 = vshrl.u32 %v7891, 7
      %v7893 = vsub.s32 0, %v7892
      %v7894 = vrot.slane %v7866, %v7893
      %v7895 = vlaneseq
      %v7896 = vshrl.u32 %v7895, 7
      %v7897 = vsub.s32 1, %v7896
      %v7898 = vrot.slane %v7866, %v7897
      %v7899 = vlaneseq
      %v7900 = vshrl.u32 %v7899, 7
      %v7901 = vsub.s32 2, %v7900
      %v7902 = vrot.slane %v7866, %v7901
      %v7903 = vlaneseq
      %v7904 = vshrl.u32 %v7903, 7
      %v7905 = vsub.s32 3, %v7904
      %v7906 = vrot.slane %v7866, %v7905
      %v7907 = vlaneseq
      %v7908 = vshrl.u32 %v7907, 7
      %v7909 = vsub.s32 0, %v7908
      %v7910 = vrot.slane %v7880, %v7909
      %v7911 = vlaneseq
      %v7912 = vshrl.u32 %v7911, 7
      %v7913 = vsub.s32 1, %v7912
      %v7914 = vrot.slane %v7880, %v7913
      %v7915 = vlaneseq
      %v7916 = vshrl.u32 %v7915, 7
      %v7917 = vsub.s32 2, %v7916
      %v7918 = vrot.slane %v7880, %v7917
      %v7919 = vlaneseq
      %v7920 = vshrl.u32 %v7919, 7
      %v7921 = vsub.s32 3, %v7920
      %v7922 = vrot.slane %v7880, %v7921
      %v7923 = vlaneseq
      %v7924 = vshrl.u32 %v7923, 7
      %v7925 = vsub.s32 0, %v7924
      %v7926 = vrot.slane %v7888, %v7925
      %v7927 = vlaneseq
      %v7928 = vshrl.u32 %v7927, 7
      %v7929 = vsub.s32 1, %v7928
      %v7930 = vrot.slane %v7888, %v7929
      %v7931 = vlaneseq
      %v7932 = vshrl.u32 %v7931, 7
      %v7933 = vsub.s32 2, %v7932
      %v7934 = vrot.slane %v7888, %v7933
      %v7935 = vlaneseq
      %v7936 = vshrl.u32 %v7935, 7
      %v7937 = vsub.s32 3, %v7936
      %v7938 = vrot.slane %v7888, %v7937
      %v7939 = vlaneseq
      %v7940 = vshrl.u32 %v7939, 7
      %v7941 = vsub.s32 0, %v7940
      %v7942 = vrot.slane %v7890, %v7941
      %v7943 = vlaneseq
      %v7944 = vshrl.u32 %v7943, 7
      %v7945 = vsub.s32 1, %v7944
      %v7946 = vrot.slane %v7890, %v7945
      %v7947 = vlaneseq
      %v7948 = vshrl.u32 %v7947, 7
      %v7949 = vsub.s32 2, %v7948
      %v7950 = vrot.slane %v7890, %v7949
      %v7951 = vlaneseq
      %v7952 = vshrl.u32 %v7951, 7
      %v7953 = vsub.s32 3, %v7952
      %v7954 = vrot.slane %v7890, %v7953
      %v7955 = vlaneseq
      %v7956 = vshrl.u32 %v7955, 7
      %v7957 = vsub.s32 0, %v7956
      %v7958 = vrot.slane %v7873, %v7957
      %v7959 = vlaneseq
      %v7960 = vshrl.u32 %v7959, 7
      %v7961 = vsub.s32 1, %v7960
      %v7962 = vrot.slane %v7873, %v7961
      %v7963 = vlaneseq
      %v7964 = vshrl.u32 %v7963, 7
      %v7965 = vsub.s32 2, %v7964
      %v7966 = vrot.slane %v7873, %v7965
      %v7967 = vlaneseq
      %v7968 = vshrl.u32 %v7967, 7
      %v7969 = vsub.s32 3, %v7968
      %v7970 = vrot.slane %v7873, %v7969
      %v7971 = vlaneseq
      %v7972 = vshrl.u32 %v7971, 7
      %v7973 = vsub.s32 0, %v7972
      %v7974 = vrot.slane %v7887, %v7973
      %v7975 = vlaneseq
      %v7976 = vshrl.u32 %v7975, 7
      %v7977 = vsub.s32 1, %v7976
      %v7978 = vrot.slane %v7887, %v7977
      %v7979 = vlaneseq
      %v7980 = vshrl.u32 %v7979, 7
      %v7981 = vsub.s32 2, %v7980
      %v7982 = vrot.slane %v7887, %v7981
      %v7983 = vlaneseq
      %v7984 = vshrl.u32 %v7983, 7
      %v7985 = vsub.s32 3, %v7984
      %v7986 = vrot.slane %v7887, %v7985
      %v7987 = vlaneseq
      %v7988 = vshrl.u32 %v7987, 7
      %v7989 = vsub.s32 0, %v7988
      %v7990 = vrot.slane %v7889, %v7989
      %v7991 = vlaneseq
      %v7992 = vshrl.u32 %v7991, 7
      %v7993 = vsub.s32 1, %v7992
      %v7994 = vrot.slane %v7889, %v7993
      %v7995 = vlaneseq
      %v7996 = vshrl.u32 %v7995, 7
      %v7997 = vsub.s32 2, %v7996
      %v7998 = vrot.slane %v7889, %v7997
      %v7999 = vlaneseq
      %v8000 = vshrl.u32 %v7999, 7
      %v8001 = vsub.s32 3, %v8000
      %v8002 = vrot.slane %v7889, %v8001
      %v8031 = vmul.f32 %v7894, %v6458
      %v8032 = vmul.f32 %v7898, %v6460
      %v8033 = vmul.f32 %v7902, %v6462
      %v8034 = vmul.f32 %v7906, %v6464
      %v8035 = vmul.f32 %v7910, %v6458
      %v8036 = vmul.f32 %v7914, %v6460
      %v8037 = vmul.f32 %v7918, %v6462
      %v8038 = vmul.f32 %v7922, %v6464
      %v8039 = vmul.f32 %v7926, %v6458
      %v8040 = vmul.f32 %v7930, %v6460
      %v8041 = vmul.f32 %v7934, %v6462
      %v8042 = vmul.f32 %v7938, %v6464
      %v8043 = vmul.f32 %v7942, %v6458
      %v8044 = vmul.f32 %v7946, %v6460
      %v8045 = vmul.f32 %v7950, %v6462
      %v8046 = vmul.f32 %v7954, %v6464
      %v8047 = vmul.f32 %v7958, %v6458
      %v8048 = vmul.f32 %v7962, %v6460
      %v8049 = vmul.f32 %v7966, %v6462
      %v8050 = vmul.f32 %v7970, %v6464
      %v8051 = vmul.f32 %v7974, %v6458
      %v8052 = vmul.f32 %v7978, %v6460
      %v8053 = vmul.f32 %v7982, %v6462
      %v8054 = vmul.f32 %v7986, %v6464
      %v8055 = vmul.f32 %v7990, %v6458
      %v8056 = vmul.f32 %v7994, %v6460
      %v8057 = vmul.f32 %v7998, %v6462
      %v8058 = vmul.f32 %v8002, %v6464
      %s8059 = scalar_lea.vmem %s231, 1120
      %8060 = vst [vmem:[%s8059] sm:$0x7f] %v8031
      %8061 = vst [vmem:[%s8059 + $0x8] sm:$0x7f] %v8032
      %8062 = vst [vmem:[%s8059 + $0x10] sm:$0x7f] %v8033
      %8063 = vst [vmem:[%s8059 + $0x18] sm:$0x7f] %v8034
      %8064 = vst [vmem:[%s8059 + $0x20] sm:$0x7f] %v8035
      %8065 = vst [vmem:[%s8059 + $0x28] sm:$0x7f] %v8036
      %8066 = vst [vmem:[%s8059 + $0x30] sm:$0x7f] %v8037
      %8067 = vst [vmem:[%s8059 + $0x38] sm:$0x7f] %v8038
      %8068 = vst [vmem:[%s8059 + $0x40] sm:$0x7f] %v8039
      %8069 = vst [vmem:[%s8059 + $0x48] sm:$0x7f] %v8040
      %8070 = vst [vmem:[%s8059 + $0x50] sm:$0x7f] %v8041
      %8071 = vst [vmem:[%s8059 + $0x58] sm:$0x7f] %v8042
      %8072 = vst [vmem:[%s8059 + $0x60] sm:$0x7f] %v8043
      %8073 = vst [vmem:[%s8059 + $0x68] sm:$0x7f] %v8044
      %8074 = vst [vmem:[%s8059 + $0x70] sm:$0x7f] %v8045
      %8075 = vst [vmem:[%s8059 + $0x78] sm:$0x7f] %v8046
      %8076 = vst [vmem:[%s8059 + $0x80] sm:$0x7f] %v8047
      %8077 = vst [vmem:[%s8059 + $0x88] sm:$0x7f] %v8048
      %8078 = vst [vmem:[%s8059 + $0x90] sm:$0x7f] %v8049
      %8079 = vst [vmem:[%s8059 + $0x98] sm:$0x7f] %v8050
      %8080 = vst [vmem:[%s8059 + $0xa0] sm:$0x7f] %v8051
      %8081 = vst [vmem:[%s8059 + $0xa8] sm:$0x7f] %v8052
      %8082 = vst [vmem:[%s8059 + $0xb0] sm:$0x7f] %v8053
      %8083 = vst [vmem:[%s8059 + $0xb8] sm:$0x7f] %v8054
      %8084 = vst [vmem:[%s8059 + $0xc0] sm:$0x7f] %v8055
      %8085 = vst [vmem:[%s8059 + $0xc8] sm:$0x7f] %v8056
      %8086 = vst [vmem:[%s8059 + $0xd0] sm:$0x7f] %v8057
      %8087 = vst [vmem:[%s8059 + $0xd8] sm:$0x7f] %v8058
      %v8092 = vcombine.low %v5994, %v5996
      %v8093 = vcombine.high %v5994, %v5996
      %v8094 = vcombine.low %v5998, %v6000
      %v8095 = vcombine.high %v5998, %v6000
      %v8097 = vunpack.c.l.s4 1966171168
      %v8098 = vunpack.c.0.s8 %v8097
      %v8099 = vlaneseq
      %v8100 = vshrl.u32 %v8099, 7
      %v8101 = vsub.s32 %v8098, %v8100
      %v8102 = vrot.slane %v8092, %v8101
      %v8104 = vunpack.c.l.s4 1966171168
      %v8105 = vunpack.c.0.s8 %v8104
      %v8106 = vlaneseq
      %v8107 = vshrl.u32 %v8106, 7
      %v8108 = vsub.s32 %v8105, %v8107
      %v8109 = vrot.slane %v8093, %v8108
      %v8111 = vunpack.c.l.s4 1966171168
      %v8112 = vunpack.c.0.s8 %v8111
      %v8113 = vlaneseq
      %v8114 = vshrl.u32 %v8113, 7
      %v8115 = vsub.s32 %v8112, %v8114
      %v8116 = vrot.slane %v8094, %v8115
      %v8118 = vunpack.c.l.s4 1966171168
      %v8119 = vunpack.c.0.s8 %v8118
      %v8120 = vlaneseq
      %v8121 = vshrl.u32 %v8120, 7
      %v8122 = vsub.s32 %v8119, %v8121
      %v8123 = vrot.slane %v8095, %v8122
      %v8124 = vcombine.low %v8102, %v8116
      %v8125 = vcombine.high %v8102, %v8116
      %v8126 = vcombine.low %v8109, %v8123
      %v8127 = vcombine.high %v8109, %v8123
      %v8129 = vunpack.c.l.s4 1966171168
      %v8130 = vunpack.c.0.s8 %v8129
      %v8131 = vlaneseq
      %v8132 = vshrl.u32 %v8131, 7
      %v8133 = vsub.s32 %v8130, %v8132
      %v8134 = vrot.slane %v8124, %v8133
      %v8136 = vunpack.c.l.s4 1966171168
      %v8137 = vunpack.c.0.s8 %v8136
      %v8138 = vlaneseq
      %v8139 = vshrl.u32 %v8138, 7
      %v8140 = vsub.s32 %v8137, %v8139
      %v8141 = vrot.slane %v8126, %v8140
      %v8143 = vunpack.c.l.s4 1966171168
      %v8144 = vunpack.c.0.s8 %v8143
      %v8145 = vlaneseq
      %v8146 = vshrl.u32 %v8145, 7
      %v8147 = vsub.s32 %v8144, %v8146
      %v8148 = vrot.slane %v8125, %v8147
      %v8150 = vunpack.c.l.s4 1966171168
      %v8151 = vunpack.c.0.s8 %v8150
      %v8152 = vlaneseq
      %v8153 = vshrl.u32 %v8152, 7
      %v8154 = vsub.s32 %v8151, %v8153
      %v8155 = vrot.slane %v8127, %v8154
      %v8156 = vcombine.high %v8134, %v8134
      %v8157 = vcombine.high %v8141, %v8141
      %v8158 = vcombine.high %v8148, %v8148
      %v8159 = vlaneseq
      %v8160 = vshrl.u32 %v8159, 7
      %v8161 = vsub.s32 0, %v8160
      %v8162 = vrot.slane %v8134, %v8161
      %v8163 = vlaneseq
      %v8164 = vshrl.u32 %v8163, 7
      %v8165 = vsub.s32 1, %v8164
      %v8166 = vrot.slane %v8134, %v8165
      %v8167 = vlaneseq
      %v8168 = vshrl.u32 %v8167, 7
      %v8169 = vsub.s32 2, %v8168
      %v8170 = vrot.slane %v8134, %v8169
      %v8171 = vlaneseq
      %v8172 = vshrl.u32 %v8171, 7
      %v8173 = vsub.s32 3, %v8172
      %v8174 = vrot.slane %v8134, %v8173
      %v8175 = vlaneseq
      %v8176 = vshrl.u32 %v8175, 7
      %v8177 = vsub.s32 0, %v8176
      %v8178 = vrot.slane %v8148, %v8177
      %v8179 = vlaneseq
      %v8180 = vshrl.u32 %v8179, 7
      %v8181 = vsub.s32 1, %v8180
      %v8182 = vrot.slane %v8148, %v8181
      %v8183 = vlaneseq
      %v8184 = vshrl.u32 %v8183, 7
      %v8185 = vsub.s32 2, %v8184
      %v8186 = vrot.slane %v8148, %v8185
      %v8187 = vlaneseq
      %v8188 = vshrl.u32 %v8187, 7
      %v8189 = vsub.s32 3, %v8188
      %v8190 = vrot.slane %v8148, %v8189
      %v8191 = vlaneseq
      %v8192 = vshrl.u32 %v8191, 7
      %v8193 = vsub.s32 0, %v8192
      %v8194 = vrot.slane %v8156, %v8193
      %v8195 = vlaneseq
      %v8196 = vshrl.u32 %v8195, 7
      %v8197 = vsub.s32 1, %v8196
      %v8198 = vrot.slane %v8156, %v8197
      %v8199 = vlaneseq
      %v8200 = vshrl.u32 %v8199, 7
      %v8201 = vsub.s32 2, %v8200
      %v8202 = vrot.slane %v8156, %v8201
      %v8203 = vlaneseq
      %v8204 = vshrl.u32 %v8203, 7
      %v8205 = vsub.s32 3, %v8204
      %v8206 = vrot.slane %v8156, %v8205
      %v8207 = vlaneseq
      %v8208 = vshrl.u32 %v8207, 7
      %v8209 = vsub.s32 0, %v8208
      %v8210 = vrot.slane %v8158, %v8209
      %v8211 = vlaneseq
      %v8212 = vshrl.u32 %v8211, 7
      %v8213 = vsub.s32 1, %v8212
      %v8214 = vrot.slane %v8158, %v8213
      %v8215 = vlaneseq
      %v8216 = vshrl.u32 %v8215, 7
      %v8217 = vsub.s32 2, %v8216
      %v8218 = vrot.slane %v8158, %v8217
      %v8219 = vlaneseq
      %v8220 = vshrl.u32 %v8219, 7
      %v8221 = vsub.s32 3, %v8220
      %v8222 = vrot.slane %v8158, %v8221
      %v8223 = vlaneseq
      %v8224 = vshrl.u32 %v8223, 7
      %v8225 = vsub.s32 0, %v8224
      %v8226 = vrot.slane %v8141, %v8225
      %v8227 = vlaneseq
      %v8228 = vshrl.u32 %v8227, 7
      %v8229 = vsub.s32 1, %v8228
      %v8230 = vrot.slane %v8141, %v8229
      %v8231 = vlaneseq
      %v8232 = vshrl.u32 %v8231, 7
      %v8233 = vsub.s32 2, %v8232
      %v8234 = vrot.slane %v8141, %v8233
      %v8235 = vlaneseq
      %v8236 = vshrl.u32 %v8235, 7
      %v8237 = vsub.s32 3, %v8236
      %v8238 = vrot.slane %v8141, %v8237
      %v8239 = vlaneseq
      %v8240 = vshrl.u32 %v8239, 7
      %v8241 = vsub.s32 0, %v8240
      %v8242 = vrot.slane %v8155, %v8241
      %v8243 = vlaneseq
      %v8244 = vshrl.u32 %v8243, 7
      %v8245 = vsub.s32 1, %v8244
      %v8246 = vrot.slane %v8155, %v8245
      %v8247 = vlaneseq
      %v8248 = vshrl.u32 %v8247, 7
      %v8249 = vsub.s32 2, %v8248
      %v8250 = vrot.slane %v8155, %v8249
      %v8251 = vlaneseq
      %v8252 = vshrl.u32 %v8251, 7
      %v8253 = vsub.s32 3, %v8252
      %v8254 = vrot.slane %v8155, %v8253
      %v8255 = vlaneseq
      %v8256 = vshrl.u32 %v8255, 7
      %v8257 = vsub.s32 0, %v8256
      %v8258 = vrot.slane %v8157, %v8257
      %v8259 = vlaneseq
      %v8260 = vshrl.u32 %v8259, 7
      %v8261 = vsub.s32 1, %v8260
      %v8262 = vrot.slane %v8157, %v8261
      %v8263 = vlaneseq
      %v8264 = vshrl.u32 %v8263, 7
      %v8265 = vsub.s32 2, %v8264
      %v8266 = vrot.slane %v8157, %v8265
      %v8267 = vlaneseq
      %v8268 = vshrl.u32 %v8267, 7
      %v8269 = vsub.s32 3, %v8268
      %v8270 = vrot.slane %v8157, %v8269
      %v8299 = vmul.f32 %v8162, %v6466
      %v8300 = vmul.f32 %v8166, %v6468
      %v8301 = vmul.f32 %v8170, %v6470
      %v8302 = vmul.f32 %v8174, %v6472
      %v8303 = vmul.f32 %v8178, %v6466
      %v8304 = vmul.f32 %v8182, %v6468
      %v8305 = vmul.f32 %v8186, %v6470
      %v8306 = vmul.f32 %v8190, %v6472
      %v8307 = vmul.f32 %v8194, %v6466
      %v8308 = vmul.f32 %v8198, %v6468
      %v8309 = vmul.f32 %v8202, %v6470
      %v8310 = vmul.f32 %v8206, %v6472
      %v8311 = vmul.f32 %v8210, %v6466
      %v8312 = vmul.f32 %v8214, %v6468
      %v8313 = vmul.f32 %v8218, %v6470
      %v8314 = vmul.f32 %v8222, %v6472
      %v8315 = vmul.f32 %v8226, %v6466
      %v8316 = vmul.f32 %v8230, %v6468
      %v8317 = vmul.f32 %v8234, %v6470
      %v8318 = vmul.f32 %v8238, %v6472
      %v8319 = vmul.f32 %v8242, %v6466
      %v8320 = vmul.f32 %v8246, %v6468
      %v8321 = vmul.f32 %v8250, %v6470
      %v8322 = vmul.f32 %v8254, %v6472
      %v8323 = vmul.f32 %v8258, %v6466
      %v8324 = vmul.f32 %v8262, %v6468
      %v8325 = vmul.f32 %v8266, %v6470
      %v8326 = vmul.f32 %v8270, %v6472
      %s8327 = scalar_lea.vmem %s231, 1344
      %8328 = vst [vmem:[%s8327] sm:$0x7f] %v8299
      %8329 = vst [vmem:[%s8327 + $0x8] sm:$0x7f] %v8300
      %8330 = vst [vmem:[%s8327 + $0x10] sm:$0x7f] %v8301
      %8331 = vst [vmem:[%s8327 + $0x18] sm:$0x7f] %v8302
      %8332 = vst [vmem:[%s8327 + $0x20] sm:$0x7f] %v8303
      %8333 = vst [vmem:[%s8327 + $0x28] sm:$0x7f] %v8304
      %8334 = vst [vmem:[%s8327 + $0x30] sm:$0x7f] %v8305
      %8335 = vst [vmem:[%s8327 + $0x38] sm:$0x7f] %v8306
      %8336 = vst [vmem:[%s8327 + $0x40] sm:$0x7f] %v8307
      %8337 = vst [vmem:[%s8327 + $0x48] sm:$0x7f] %v8308
      %8338 = vst [vmem:[%s8327 + $0x50] sm:$0x7f] %v8309
      %8339 = vst [vmem:[%s8327 + $0x58] sm:$0x7f] %v8310
      %8340 = vst [vmem:[%s8327 + $0x60] sm:$0x7f] %v8311
      %8341 = vst [vmem:[%s8327 + $0x68] sm:$0x7f] %v8312
      %8342 = vst [vmem:[%s8327 + $0x70] sm:$0x7f] %v8313
      %8343 = vst [vmem:[%s8327 + $0x78] sm:$0x7f] %v8314
      %8344 = vst [vmem:[%s8327 + $0x80] sm:$0x7f] %v8315
      %8345 = vst [vmem:[%s8327 + $0x88] sm:$0x7f] %v8316
      %8346 = vst [vmem:[%s8327 + $0x90] sm:$0x7f] %v8317
      %8347 = vst [vmem:[%s8327 + $0x98] sm:$0x7f] %v8318
      %8348 = vst [vmem:[%s8327 + $0xa0] sm:$0x7f] %v8319
      %8349 = vst [vmem:[%s8327 + $0xa8] sm:$0x7f] %v8320
      %8350 = vst [vmem:[%s8327 + $0xb0] sm:$0x7f] %v8321
      %8351 = vst [vmem:[%s8327 + $0xb8] sm:$0x7f] %v8322
      %8352 = vst [vmem:[%s8327 + $0xc0] sm:$0x7f] %v8323
      %8353 = vst [vmem:[%s8327 + $0xc8] sm:$0x7f] %v8324
      %8354 = vst [vmem:[%s8327 + $0xd0] sm:$0x7f] %v8325
      %8355 = vst [vmem:[%s8327 + $0xd8] sm:$0x7f] %v8326
      %v8360 = vcombine.low %v6002, %v6004
      %v8361 = vcombine.high %v6002, %v6004
      %v8362 = vcombine.low %v6006, %v6008
      %v8363 = vcombine.high %v6006, %v6008
      %v8365 = vunpack.c.l.s4 1966171168
      %v8366 = vunpack.c.0.s8 %v8365
      %v8367 = vlaneseq
      %v8368 = vshrl.u32 %v8367, 7
      %v8369 = vsub.s32 %v8366, %v8368
      %v8370 = vrot.slane %v8360, %v8369
      %v8372 = vunpack.c.l.s4 1966171168
      %v8373 = vunpack.c.0.s8 %v8372
      %v8374 = vlaneseq
      %v8375 = vshrl.u32 %v8374, 7
      %v8376 = vsub.s32 %v8373, %v8375
      %v8377 = vrot.slane %v8361, %v8376
      %v8379 = vunpack.c.l.s4 1966171168
      %v8380 = vunpack.c.0.s8 %v8379
      %v8381 = vlaneseq
      %v8382 = vshrl.u32 %v8381, 7
      %v8383 = vsub.s32 %v8380, %v8382
      %v8384 = vrot.slane %v8362, %v8383
      %v8386 = vunpack.c.l.s4 1966171168
      %v8387 = vunpack.c.0.s8 %v8386
      %v8388 = vlaneseq
      %v8389 = vshrl.u32 %v8388, 7
      %v8390 = vsub.s32 %v8387, %v8389
      %v8391 = vrot.slane %v8363, %v8390
      %v8392 = vcombine.low %v8370, %v8384
      %v8393 = vcombine.high %v8370, %v8384
      %v8394 = vcombine.low %v8377, %v8391
      %v8395 = vcombine.high %v8377, %v8391
      %v8397 = vunpack.c.l.s4 1966171168
      %v8398 = vunpack.c.0.s8 %v8397
      %v8399 = vlaneseq
      %v8400 = vshrl.u32 %v8399, 7
      %v8401 = vsub.s32 %v8398, %v8400
      %v8402 = vrot.slane %v8392, %v8401
      %v8404 = vunpack.c.l.s4 1966171168
      %v8405 = vunpack.c.0.s8 %v8404
      %v8406 = vlaneseq
      %v8407 = vshrl.u32 %v8406, 7
      %v8408 = vsub.s32 %v8405, %v8407
      %v8409 = vrot.slane %v8394, %v8408
      %v8411 = vunpack.c.l.s4 1966171168
      %v8412 = vunpack.c.0.s8 %v8411
      %v8413 = vlaneseq
      %v8414 = vshrl.u32 %v8413, 7
      %v8415 = vsub.s32 %v8412, %v8414
      %v8416 = vrot.slane %v8393, %v8415
      %v8418 = vunpack.c.l.s4 1966171168
      %v8419 = vunpack.c.0.s8 %v8418
      %v8420 = vlaneseq
      %v8421 = vshrl.u32 %v8420, 7
      %v8422 = vsub.s32 %v8419, %v8421
      %v8423 = vrot.slane %v8395, %v8422
      %v8424 = vcombine.high %v8402, %v8402
      %v8425 = vcombine.high %v8409, %v8409
      %v8426 = vcombine.high %v8416, %v8416
      %v8427 = vlaneseq
      %v8428 = vshrl.u32 %v8427, 7
      %v8429 = vsub.s32 0, %v8428
      %v8430 = vrot.slane %v8402, %v8429
      %v8431 = vlaneseq
      %v8432 = vshrl.u32 %v8431, 7
      %v8433 = vsub.s32 1, %v8432
      %v8434 = vrot.slane %v8402, %v8433
      %v8435 = vlaneseq
      %v8436 = vshrl.u32 %v8435, 7
      %v8437 = vsub.s32 2, %v8436
      %v8438 = vrot.slane %v8402, %v8437
      %v8439 = vlaneseq
      %v8440 = vshrl.u32 %v8439, 7
      %v8441 = vsub.s32 3, %v8440
      %v8442 = vrot.slane %v8402, %v8441
      %v8443 = vlaneseq
      %v8444 = vshrl.u32 %v8443, 7
      %v8445 = vsub.s32 0, %v8444
      %v8446 = vrot.slane %v8416, %v8445
      %v8447 = vlaneseq
      %v8448 = vshrl.u32 %v8447, 7
      %v8449 = vsub.s32 1, %v8448
      %v8450 = vrot.slane %v8416, %v8449
      %v8451 = vlaneseq
      %v8452 = vshrl.u32 %v8451, 7
      %v8453 = vsub.s32 2, %v8452
      %v8454 = vrot.slane %v8416, %v8453
      %v8455 = vlaneseq
      %v8456 = vshrl.u32 %v8455, 7
      %v8457 = vsub.s32 3, %v8456
      %v8458 = vrot.slane %v8416, %v8457
      %v8459 = vlaneseq
      %v8460 = vshrl.u32 %v8459, 7
      %v8461 = vsub.s32 0, %v8460
      %v8462 = vrot.slane %v8424, %v8461
      %v8463 = vlaneseq
      %v8464 = vshrl.u32 %v8463, 7
      %v8465 = vsub.s32 1, %v8464
      %v8466 = vrot.slane %v8424, %v8465
      %v8467 = vlaneseq
      %v8468 = vshrl.u32 %v8467, 7
      %v8469 = vsub.s32 2, %v8468
      %v8470 = vrot.slane %v8424, %v8469
      %v8471 = vlaneseq
      %v8472 = vshrl.u32 %v8471, 7
      %v8473 = vsub.s32 3, %v8472
      %v8474 = vrot.slane %v8424, %v8473
      %v8475 = vlaneseq
      %v8476 = vshrl.u32 %v8475, 7
      %v8477 = vsub.s32 0, %v8476
      %v8478 = vrot.slane %v8426, %v8477
      %v8479 = vlaneseq
      %v8480 = vshrl.u32 %v8479, 7
      %v8481 = vsub.s32 1, %v8480
      %v8482 = vrot.slane %v8426, %v8481
      %v8483 = vlaneseq
      %v8484 = vshrl.u32 %v8483, 7
      %v8485 = vsub.s32 2, %v8484
      %v8486 = vrot.slane %v8426, %v8485
      %v8487 = vlaneseq
      %v8488 = vshrl.u32 %v8487, 7
      %v8489 = vsub.s32 3, %v8488
      %v8490 = vrot.slane %v8426, %v8489
      %v8491 = vlaneseq
      %v8492 = vshrl.u32 %v8491, 7
      %v8493 = vsub.s32 0, %v8492
      %v8494 = vrot.slane %v8409, %v8493
      %v8495 = vlaneseq
      %v8496 = vshrl.u32 %v8495, 7
      %v8497 = vsub.s32 1, %v8496
      %v8498 = vrot.slane %v8409, %v8497
      %v8499 = vlaneseq
      %v8500 = vshrl.u32 %v8499, 7
      %v8501 = vsub.s32 2, %v8500
      %v8502 = vrot.slane %v8409, %v8501
      %v8503 = vlaneseq
      %v8504 = vshrl.u32 %v8503, 7
      %v8505 = vsub.s32 3, %v8504
      %v8506 = vrot.slane %v8409, %v8505
      %v8507 = vlaneseq
      %v8508 = vshrl.u32 %v8507, 7
      %v8509 = vsub.s32 0, %v8508
      %v8510 = vrot.slane %v8423, %v8509
      %v8511 = vlaneseq
      %v8512 = vshrl.u32 %v8511, 7
      %v8513 = vsub.s32 1, %v8512
      %v8514 = vrot.slane %v8423, %v8513
      %v8515 = vlaneseq
      %v8516 = vshrl.u32 %v8515, 7
      %v8517 = vsub.s32 2, %v8516
      %v8518 = vrot.slane %v8423, %v8517
      %v8519 = vlaneseq
      %v8520 = vshrl.u32 %v8519, 7
      %v8521 = vsub.s32 3, %v8520
      %v8522 = vrot.slane %v8423, %v8521
      %v8523 = vlaneseq
      %v8524 = vshrl.u32 %v8523, 7
      %v8525 = vsub.s32 0, %v8524
      %v8526 = vrot.slane %v8425, %v8525
      %v8527 = vlaneseq
      %v8528 = vshrl.u32 %v8527, 7
      %v8529 = vsub.s32 1, %v8528
      %v8530 = vrot.slane %v8425, %v8529
      %v8531 = vlaneseq
      %v8532 = vshrl.u32 %v8531, 7
      %v8533 = vsub.s32 2, %v8532
      %v8534 = vrot.slane %v8425, %v8533
      %v8535 = vlaneseq
      %v8536 = vshrl.u32 %v8535, 7
      %v8537 = vsub.s32 3, %v8536
      %v8538 = vrot.slane %v8425, %v8537
      %v8567 = vmul.f32 %v8430, %v6474
      %v8568 = vmul.f32 %v8434, %v6476
      %v8569 = vmul.f32 %v8438, %v6478
      %v8570 = vmul.f32 %v8442, %v6480
      %v8571 = vmul.f32 %v8446, %v6474
      %v8572 = vmul.f32 %v8450, %v6476
      %v8573 = vmul.f32 %v8454, %v6478
      %v8574 = vmul.f32 %v8458, %v6480
      %v8575 = vmul.f32 %v8462, %v6474
      %v8576 = vmul.f32 %v8466, %v6476
      %v8577 = vmul.f32 %v8470, %v6478
      %v8578 = vmul.f32 %v8474, %v6480
      %v8579 = vmul.f32 %v8478, %v6474
      %v8580 = vmul.f32 %v8482, %v6476
      %v8581 = vmul.f32 %v8486, %v6478
      %v8582 = vmul.f32 %v8490, %v6480
      %v8583 = vmul.f32 %v8494, %v6474
      %v8584 = vmul.f32 %v8498, %v6476
      %v8585 = vmul.f32 %v8502, %v6478
      %v8586 = vmul.f32 %v8506, %v6480
      %v8587 = vmul.f32 %v8510, %v6474
      %v8588 = vmul.f32 %v8514, %v6476
      %v8589 = vmul.f32 %v8518, %v6478
      %v8590 = vmul.f32 %v8522, %v6480
      %v8591 = vmul.f32 %v8526, %v6474
      %v8592 = vmul.f32 %v8530, %v6476
      %v8593 = vmul.f32 %v8534, %v6478
      %v8594 = vmul.f32 %v8538, %v6480
      %s8595 = scalar_lea.vmem %s231, 1568
      %8596 = vst [vmem:[%s8595] sm:$0x7f] %v8567
      %8597 = vst [vmem:[%s8595 + $0x8] sm:$0x7f] %v8568
      %8598 = vst [vmem:[%s8595 + $0x10] sm:$0x7f] %v8569
      %8599 = vst [vmem:[%s8595 + $0x18] sm:$0x7f] %v8570
      %8600 = vst [vmem:[%s8595 + $0x20] sm:$0x7f] %v8571
      %8601 = vst [vmem:[%s8595 + $0x28] sm:$0x7f] %v8572
      %8602 = vst [vmem:[%s8595 + $0x30] sm:$0x7f] %v8573
      %8603 = vst [vmem:[%s8595 + $0x38] sm:$0x7f] %v8574
      %8604 = vst [vmem:[%s8595 + $0x40] sm:$0x7f] %v8575
      %8605 = vst [vmem:[%s8595 + $0x48] sm:$0x7f] %v8576
      %8606 = vst [vmem:[%s8595 + $0x50] sm:$0x7f] %v8577
      %8607 = vst [vmem:[%s8595 + $0x58] sm:$0x7f] %v8578
      %8608 = vst [vmem:[%s8595 + $0x60] sm:$0x7f] %v8579
      %8609 = vst [vmem:[%s8595 + $0x68] sm:$0x7f] %v8580
      %8610 = vst [vmem:[%s8595 + $0x70] sm:$0x7f] %v8581
      %8611 = vst [vmem:[%s8595 + $0x78] sm:$0x7f] %v8582
      %8612 = vst [vmem:[%s8595 + $0x80] sm:$0x7f] %v8583
      %8613 = vst [vmem:[%s8595 + $0x88] sm:$0x7f] %v8584
      %8614 = vst [vmem:[%s8595 + $0x90] sm:$0x7f] %v8585
      %8615 = vst [vmem:[%s8595 + $0x98] sm:$0x7f] %v8586
      %8616 = vst [vmem:[%s8595 + $0xa0] sm:$0x7f] %v8587
      %8617 = vst [vmem:[%s8595 + $0xa8] sm:$0x7f] %v8588
      %8618 = vst [vmem:[%s8595 + $0xb0] sm:$0x7f] %v8589
      %8619 = vst [vmem:[%s8595 + $0xb8] sm:$0x7f] %v8590
      %8620 = vst [vmem:[%s8595 + $0xc0] sm:$0x7f] %v8591
      %8621 = vst [vmem:[%s8595 + $0xc8] sm:$0x7f] %v8592
      %8622 = vst [vmem:[%s8595 + $0xd0] sm:$0x7f] %v8593
      %8623 = vst [vmem:[%s8595 + $0xd8] sm:$0x7f] %v8594
      %s8624 = smul.u32 8, %s16
      %p8625 = scmp.lt.s32.totalorder %s8624, 15
      %s8626 = scalar_select %p8625, %s8624, 15
      %s8627 = smul.addr %s8626, 28
      %s8628 = smul.addr %s8627, 8
      %s8629 = scalar_lea.vmem %s5, %s8628
      // Predicated region
      $region41: #{_lambda_.1} parent=39 // pred_check
        %p8630 = pneg %p144
      $region42: #{_lambda_.1} parent=39 // pred_check_branch
        %8632 = sbr.rel (%p8630) target = $region44
      $region43: #{_lambda_.1} parent=39 // pred_region
        %s8633 = smul.u32 8, %s16
      $region44: #{_lambda_.1} parent=39 // pred_fallthru
        _
    $region40: #{_lambda_.1} parent=5 // pred_fallthru
      _
    %p8634 = scmp.le.s32.totalorder 2, %s11
    // Predicated region
    $region45: #{_lambda_.1} parent=5 // pred_check
      %p8635 = pneg %p8634
    $region46: #{_lambda_.1} parent=5 // pred_check_branch
      %8637 = sbr.rel (%p8635) target = $region48
    $region47: #{_lambda_.1} parent=5 // pred_region
      %s8638 = ssub.s32 %s11, 2
      // Predicated region
      $region49: #{_lambda_.1} parent=47 // pred_check
        %p8639 = pneg %p150
      $region50: #{_lambda_.1} parent=47 // pred_check_branch
        %8641 = sbr.rel (%p8639) target = $region52
      $region51: #{_lambda_.1} parent=47 // pred_region
        %s8642 = smul.u32 8, %s17
        %p8643 = scmp.lt.s32.totalorder %s8642, 15
        %s8644 = scalar_select %p8643, %s8642, 15
        %s8645 = smul.addr %s8644, 28
        %s8646 = smul.addr %s8645, 8
        %s8647 = scalar_lea.vmem %s5, %s8646
      $region52: #{_lambda_.1} parent=47 // pred_fallthru
        _
    $region48: #{_lambda_.1} parent=5 // pred_fallthru
      _
  $region6: #{_lambda_.1} parent=0 // loop_footer
    %s15 = sadd.s32 1, %s11
  $region7: #{_lambda_.1} parent=0 // loop_footer_branch
    %10 = sbr.rel target = $region3
  $region8: #{_lambda_.1} parent=0 // loop_exit
    _

</llo_original>
